<compile_context>
chip_gen: v6e
topology: v6e:2x2x1
jax: 0.10.0
libtpu: 0.0.40
codegen_flags: <defaults>
</compile_context>

<pallas_src>
import functools

import jax
import jax.numpy as jnp
from jax.experimental import pallas as pl
from jax.experimental.pallas import tpu as pltpu


C1_PAD = 128   # conv1 out-channels padded 20 -> 128 (lane-dense stores/matmuls)
C2_PAD = 128   # conv2 out-channels padded 50 -> 128

_CPARAMS = pltpu.CompilerParams(vmem_limit_bytes=32 * 1024 * 1024)


# ----------------------------- Pallas kernels ------------------------------ #

def bilstm_kernel(T, B, H, x_ref, wi_ref, whf_ref, whb_ref, b_ref, len_ref,
                  out_ref):
    """Fused bidirectional LSTM, single invocation.

    x_ref:   (T*B, D)  time-major inputs (row t*B + b)
    wi_ref:  (D, 8H)   [W_ih_fwd^T | W_ih_bwd^T], torch gate order i, f, g, o
    whf/whb: (H, 4H)   per-direction recurrent weights (transposed)
    b_ref:   (1, 8H)   [b_fwd | b_bwd]   (b_ih + b_hh per direction)
    len_ref: (B, 1)    int32 valid lengths (loaded once)
    out_ref: (B, 2H)   [h_fwd_final | h_bwd_final]  == torch cat(hx[-2], hx[-1])
    """
    f32 = jnp.float32
    # Hoisted input projection: one wide (8H-lane) MXU matmul covering every
    # timestep and both directions; only h @ Wh remains inside the recurrence.
    gx = (jnp.dot(x_ref[...], wi_ref[...], preferred_element_type=f32)
          + b_ref[...])                                    # (T*B, 8H)
    lens = len_ref[...]                                    # (B, 1) int32
    whf = whf_ref[...]                                     # (H, 4H)
    whb = whb_ref[...]                                     # (H, 4H)

    def cell(g, h, c, valid):
        i = jax.nn.sigmoid(g[:, 0 * H:1 * H])
        f = jax.nn.sigmoid(g[:, 1 * H:2 * H])
        gg = jnp.tanh(g[:, 2 * H:3 * H])
        o = jax.nn.sigmoid(g[:, 3 * H:4 * H])
        c_new = f * c + i * gg
        h_new = o * jnp.tanh(c_new)
        # TODO(synk): pack_padded_sequence(enforce_sorted=False) has no Pallas
        # equivalent; padded timesteps are handled by freezing (h, c) instead.
        return jnp.where(valid, h_new, h), jnp.where(valid, c_new, c)

    zeros = jnp.zeros((B, H), f32)
    h_f, c_f, h_b, c_b = zeros, zeros, zeros, zeros
    for s in range(T):                     # fully unrolled: T is small & static
        # forward direction, time t = s (freezes once t >= len[b])
        g_f = gx[s * B:(s + 1) * B, 0:4 * H] + jnp.dot(
            h_f, whf, preferred_element_type=f32)
        h_f, c_f = cell(g_f, h_f, c_f, s < lens)
        # backward direction, time t = T-1-s (stays at the zero init until it
        # reaches the last valid timestep, then consumes the sequence reversed)
        tb = T - 1 - s
        g_b = gx[tb * B:(tb + 1) * B, 4 * H:8 * H] + jnp.dot(
            h_b, whb, preferred_element_type=f32)
        h_b, c_b = cell(g_b, h_b, c_b, tb < lens)

    out_ref[...] = jnp.concatenate([h_f, h_b], axis=1)


def conv_pool_kernel(p00_ref, p01_ref, p10_ref, p11_ref, w_ref, b_ref, o_ref):
    """conv (im2col matmul) + bias + ReLU + 2x2 maxpool, fused.

    p{dh}{dw}_ref: (R, K*K*Cin) patch matrix of the conv outputs that feed pool
    tap (dh, dw); rows are the *pooled* output positions, so the pool is just
    an elementwise max of four matmul results.
    """
    def tap(p_ref):
        return jnp.maximum(
            jnp.dot(p_ref[...], w_ref[...], preferred_element_type=jnp.float32)
            + b_ref[...], 0.0)

    o_ref[...] = jnp.maximum(jnp.maximum(tap(p00_ref), tap(p01_ref)),
                             jnp.maximum(tap(p10_ref), tap(p11_ref)))


def conv2_head_kernel(S, N, Cp,
                      p00_ref, p01_ref, p10_ref, p11_ref, w2c_ref, b2c_ref,
                      seq_ref, w1s_ref, w1i_ref, b1_ref, w2f_ref, b2f_ref,
                      w3_ref, b3_ref, code_ref, y_ref):
    """conv2 + ReLU + 2x2 maxpool + fused FC head (fc1-ReLU-fc2-Sigmoid, clf).

    `pooled` rows are ordered (ph, pw, n), so the torch NCHW flatten and the
    cat([seq_feat, img_feat]) are folded into the split fc1 weights:
        h1 = relu(seq @ W1_seq + sum_s pooled[s-block] @ W1_img[s-block] + b1)
    """
    f32 = jnp.float32

    def tap(p_ref):
        return jnp.maximum(
            jnp.dot(p_ref[...], w2c_ref[...], preferred_element_type=f32)
            + b2c_ref[...], 0.0)

    pooled = jnp.maximum(jnp.maximum(tap(p00_ref), tap(p01_ref)),
                         jnp.maximum(tap(p10_ref), tap(p11_ref)))   # (S*N, Cp)

    h1 = (jnp.dot(seq_ref[...], w1s_ref[...], preferred_element_type=f32)
          + b1_ref[...])
    for s in range(S):            # S = pooled spatial positions (static, tiny)
        h1 = h1 + jnp.dot(pooled[s * N:(s + 1) * N, :],
                          w1i_ref[s * Cp:(s + 1) * Cp, :],
                          preferred_element_type=f32)
    h1 = jnp.maximum(h1, 0.0)
    code = jax.nn.sigmoid(
        jnp.dot(h1, w2f_ref[...], preferred_element_type=f32) + b2f_ref[...])
    code_ref[...] = code
    y_ref[...] = (jnp.dot(code, w3_ref[...], preferred_element_type=f32)
                  + b3_ref[...])


# ------------------------------- JAX glue ----------------------------------- #

def _pooled_conv_patches(x, K, PH, PW, dh, dw, rows_spatial_major=False):
    """im2col patches of the conv outputs feeding pool tap (dh, dw).

    x: (N, H, W, C) NHWC.  Row (n, ph, pw) holds the K*K*C patch of the conv
    output at position (2*ph + dh, 2*pw + dw); columns ordered (kh, kw, c) to
    match the reshaped torch conv weight.  Output rows ordered (n, ph, pw), or
    (ph, pw, n) if rows_spatial_major (used for the fused-head spatial sum).
    """
    N, _, _, C = x.shape
    cols = []
    for kh in range(K):
        for kw in range(K):
            cols.append(x[:, dh + kh:dh + kh + 2 * PH:2,
                          dw + kw:dw + kw + 2 * PW:2, :])    # (N, PH, PW, C)
    pat = jnp.concatenate(cols, axis=-1)                     # (N, PH, PW, K*K*C)
    if rows_spatial_major:
        pat = jnp.transpose(pat, (1, 2, 0, 3))               # (PH, PW, N, K*K*C)
    return pat.reshape(-1, K * K * C)


# --------------------------- parameters & forward --------------------------- #

def conv_out_size(image_shape):
    # mirrors _get_conv_out for the fixed conv stack (5x5 conv, 2x2 pool, x2)
    _, IH, IW = image_shape
    oh1, ow1 = IH - 4, IW - 4
    ph1, pw1 = oh1 // 2, ow1 // 2
    oh2, ow2 = ph1 - 4, pw1 - 4
    ph2, pw2 = oh2 // 2, ow2 // 2
    return 50 * ph2 * pw2


def init_params(key, input_size, image_shape, n_labels, hidden_size):
    C = image_shape[0]
    H = hidden_size
    ks = jax.random.split(key, 20)

    def u(k, shape, fan_in):
        s = 1.0 / float(fan_in) ** 0.5
        return jax.random.uniform(k, shape, jnp.float32, -s, s)

    p = {}
    # LSTM (torch layout [4H, D] / [4H, H], gate order i, f, g, o)
    p["w_ih_f"] = u(ks[0], (4 * H, input_size), H)
    p["w_hh_f"] = u(ks[1], (4 * H, H), H)
    p["b_f"] = u(ks[2], (4 * H,), H) + u(ks[3], (4 * H,), H)   # b_ih + b_hh
    p["w_ih_b"] = u(ks[4], (4 * H, input_size), H)
    p["w_hh_b"] = u(ks[5], (4 * H, H), H)
    p["b_b"] = u(ks[6], (4 * H,), H) + u(ks[7], (4 * H,), H)
    # Conv stack (torch layout [Cout, Cin, K, K])
    p["conv1_w"] = u(ks[8], (20, C, 5, 5), C * 25)
    p["conv1_b"] = u(ks[9], (20,), C * 25)
    p["conv2_w"] = u(ks[10], (50, 20, 5, 5), 20 * 25)
    p["conv2_b"] = u(ks[11], (50,), 20 * 25)
    # FC head (torch layout [out, in])
    fc_in = conv_out_size(image_shape) + 2 * H
    p["fc1_w"] = u(ks[12], (500, fc_in), fc_in)
    p["fc1_b"] = u(ks[13], (500,), fc_in)
    p["fc2_w"] = u(ks[14], (250, 500), 500)
    p["fc2_b"] = u(ks[15], (250,), 500)
    p["clf_w"] = u(ks[16], (n_labels, 250), 250)
    p["clf_b"] = u(ks[17], (n_labels,), 250)
    return p


def hashing_two_branch_forward(p, seq_x, img_x, seq_x_len):
    B, T, D = seq_x.shape
    H = p["w_hh_f"].shape[1]
    K = 5

    # ---------------- sequence branch: fused bidirectional LSTM -------------
    x_tb = jnp.transpose(seq_x.astype(jnp.float32), (1, 0, 2)).reshape(T * B, D)
    wi = jnp.concatenate([p["w_ih_f"].T, p["w_ih_b"].T], axis=1)      # (D, 8H)
    bi = jnp.concatenate([p["b_f"], p["b_b"]]).reshape(1, 8 * H)
    lens2d = seq_x_len.astype(jnp.int32).reshape(B, 1)
    seq_feat = pl.pallas_call(
        functools.partial(bilstm_kernel, T, B, H),
        out_shape=jax.ShapeDtypeStruct((B, 2 * H), jnp.float32),
        compiler_params=_CPARAMS,
    )(x_tb, wi, p["w_hh_f"].T, p["w_hh_b"].T, bi, lens2d)             # (B, 2H)

    # ---------------- image branch: conv1 + ReLU + pool1 (one kernel) -------
    img = jnp.transpose(img_x.astype(jnp.float32), (0, 2, 3, 1))      # NHWC
    N, IH, IW, Cin = img.shape
    PH1, PW1 = (IH - K + 1) // 2, (IW - K + 1) // 2
    C1 = p["conv1_w"].shape[0]
    # /255 normalization folded into the conv1 weights (conv is linear in x);
    # Cout zero-padded to 128 lanes so stores are unmasked and padded channels
    # come out as relu(0) = 0 exactly.
    w1m = jnp.transpose(p["conv1_w"], (2, 3, 1, 0)).reshape(K * K * Cin, C1) / 255.0
    w1m = jnp.pad(w1m, ((0, 0), (0, C1_PAD - C1)))
    b1c = jnp.pad(p["conv1_b"], (0, C1_PAD - C1)).reshape(1, C1_PAD)
    p1 = [_pooled_conv_patches(img, K, PH1, PW1, dh, dw)
          for dh in (0, 1) for dw in (0, 1)]
    pool1 = pl.pallas_call(
        conv_pool_kernel,
        out_shape=jax.ShapeDtypeStruct((N * PH1 * PW1, C1_PAD), jnp.float32),
        compiler_params=_CPARAMS,
    )(*p1, w1m, b1c)                                                  # rows (n, ph, pw)

    # -------- conv2 + pool2 + FC head (one fused kernel) --------------------
    pool1_4d = pool1.reshape(N, PH1, PW1, C1_PAD)
    PH2, PW2 = (PH1 - K + 1) // 2, (PW1 - K + 1) // 2
    S = PH2 * PW2
    C2 = p["conv2_w"].shape[0]
    w2m = jnp.transpose(p["conv2_w"], (2, 3, 1, 0))                   # (K, K, 20, 50)
    w2m = jnp.pad(w2m, ((0, 0), (0, 0), (0, C1_PAD - w2m.shape[2]),
                        (0, C2_PAD - C2))).reshape(K * K * C1_PAD, C2_PAD)
    b2c = jnp.pad(p["conv2_b"], (0, C2_PAD - C2)).reshape(1, C2_PAD)
    p2 = [_pooled_conv_patches(pool1_4d, K, PH2, PW2, dh, dw,
                               rows_spatial_major=True)
          for dh in (0, 1) for dw in (0, 1)]

    # fc1 weight: split off the seq part, and permute/zero-pad the img part
    # from torch's NCHW flatten order (c, ph, pw) to (ph, pw, c_padded) so the
    # kernel consumes the pooled NHWC features directly (no cat / flatten).
    n_h1 = p["fc1_w"].shape[0]
    w1s = p["fc1_w"][:, :2 * H].T                                     # (2H, 500)
    w1i = p["fc1_w"][:, 2 * H:].reshape(n_h1, C2, PH2, PW2)
    w1i = jnp.transpose(w1i, (2, 3, 1, 0))                            # (PH2, PW2, C2, 500)
    w1i = jnp.pad(w1i, ((0, 0), (0, 0), (0, C2_PAD - C2), (0, 0)))
    w1i = w1i.reshape(S * C2_PAD, n_h1)

    n_labels = p["clf_w"].shape[0]
    code, y = pl.pallas_call(
        functools.partial(conv2_head_kernel, S, N, C2_PAD),
        out_shape=(jax.ShapeDtypeStruct((N, p["fc2_w"].shape[0]), jnp.float32),
                   jax.ShapeDtypeStruct((N, n_labels), jnp.float32)),
        compiler_params=_CPARAMS,
    )(*p2, w2m, b2c, seq_feat,
      w1s, w1i, p["fc1_b"].reshape(1, -1),
      p["fc2_w"].T, p["fc2_b"].reshape(1, -1),
      p["clf_w"].T, p["clf_b"].reshape(1, -1))
    return code, y


# ----------------------------------- main ----------------------------------- #

if __name__ == "__main__":
    B, T, D = 2, 8, 8                 # batch, seq len, LSTM input_size
    hidden_size = 32
    image_shape = (1, 16, 16)         # (C, H, W) -> conv_out_size = 50
    n_labels = 10

    key = jax.random.PRNGKey(0)
    k_p, k_seq, k_img = jax.random.split(key, 3)

    params = init_params(k_p, D, image_shape, n_labels, hidden_size)

    seq_x = jax.random.normal(k_seq, (B, T, D), jnp.float32)
    img_x = jax.random.uniform(k_img, (B,) + image_shape, jnp.float32, 0.0, 255.0)
    seq_x_len = jnp.array([5, 8], dtype=jnp.int32)   # enforce_sorted=False -> any order

    fwd = jax.jit(hashing_two_branch_forward)
    code, y = fwd(params, seq_x, img_x, seq_x_len)
    jax.block_until_ready((code, y))

    assert code.shape == (B, 250) and y.shape == (B, n_labels)
    assert bool(jnp.all(jnp.isfinite(code))) and bool(jnp.all(jnp.isfinite(y)))
    assert bool(jnp.all((code >= 0.0) & (code <= 1.0)))   # sigmoid range
    print("KERNEL_OK")
</pallas_src>

<mosaic_0001>
module attributes {stable_mosaic.version = 11 : i64} {
  func.func @conv_pool_kernel(%arg0: memref<72x25xf32, #tpu.memory_space<vmem>>, %arg1: memref<72x25xf32, #tpu.memory_space<vmem>>, %arg2: memref<72x25xf32, #tpu.memory_space<vmem>>, %arg3: memref<72x25xf32, #tpu.memory_space<vmem>>, %arg4: memref<25x128xf32, #tpu.memory_space<vmem>>, %arg5: memref<1x128xf32, #tpu.memory_space<vmem>>, %arg6: memref<72x128xf32, #tpu.memory_space<vmem>>) attributes {dimension_semantics = [], scalar_prefetch = 0 : i64, scratch_operands = 0 : i64, tpu.core_type = #tpu.core_type<tc>} {
    %c0 = arith.constant 0 : index
    %c0_0 = arith.constant 0 : index
    %0 = vector.load %arg0[%c0, %c0_0] : memref<72x25xf32, #tpu.memory_space<vmem>>, vector<72x25xf32>
    %c0_1 = arith.constant 0 : index
    %c0_2 = arith.constant 0 : index
    %1 = vector.load %arg4[%c0_1, %c0_2] : memref<25x128xf32, #tpu.memory_space<vmem>>, vector<25x128xf32>
    %cst = arith.constant dense<0.000000e+00> : vector<72x128xf32>
    %2 = tpu.matmul %0, %1, %cst {dimension_numbers = #tpu.dot_dimension_numbers<[1], [0], [0], [1], [0, 0, 1, 1], [], []>} : vector<72x25xf32>, vector<25x128xf32>, vector<72x128xf32> -> vector<72x128xf32>
    %c0_3 = arith.constant 0 : index
    %c0_4 = arith.constant 0 : index
    %3 = vector.load %arg5[%c0_3, %c0_4] : memref<1x128xf32, #tpu.memory_space<vmem>>, vector<1x128xf32>
    %4 = vector.broadcast %3 : vector<1x128xf32> to vector<72x128xf32>
    %5 = arith.addf %2, %4 : vector<72x128xf32>
    %cst_5 = arith.constant 0.000000e+00 : f32
    %6 = vector.broadcast %cst_5 : f32 to vector<72x128xf32>
    %7 = arith.maximumf %5, %6 : vector<72x128xf32>
    %c0_6 = arith.constant 0 : index
    %c0_7 = arith.constant 0 : index
    %8 = vector.load %arg1[%c0_6, %c0_7] : memref<72x25xf32, #tpu.memory_space<vmem>>, vector<72x25xf32>
    %c0_8 = arith.constant 0 : index
    %c0_9 = arith.constant 0 : index
    %9 = vector.load %arg4[%c0_8, %c0_9] : memref<25x128xf32, #tpu.memory_space<vmem>>, vector<25x128xf32>
    %cst_10 = arith.constant dense<0.000000e+00> : vector<72x128xf32>
    %10 = tpu.matmul %8, %9, %cst_10 {dimension_numbers = #tpu.dot_dimension_numbers<[1], [0], [0], [1], [0, 0, 1, 1], [], []>} : vector<72x25xf32>, vector<25x128xf32>, vector<72x128xf32> -> vector<72x128xf32>
    %c0_11 = arith.constant 0 : index
    %c0_12 = arith.constant 0 : index
    %11 = vector.load %arg5[%c0_11, %c0_12] : memref<1x128xf32, #tpu.memory_space<vmem>>, vector<1x128xf32>
    %12 = vector.broadcast %11 : vector<1x128xf32> to vector<72x128xf32>
    %13 = arith.addf %10, %12 : vector<72x128xf32>
    %cst_13 = arith.constant 0.000000e+00 : f32
    %14 = vector.broadcast %cst_13 : f32 to vector<72x128xf32>
    %15 = arith.maximumf %13, %14 : vector<72x128xf32>
    %16 = arith.maximumf %7, %15 : vector<72x128xf32>
    %c0_14 = arith.constant 0 : index
    %c0_15 = arith.constant 0 : index
    %17 = vector.load %arg2[%c0_14, %c0_15] : memref<72x25xf32, #tpu.memory_space<vmem>>, vector<72x25xf32>
    %c0_16 = arith.constant 0 : index
    %c0_17 = arith.constant 0 : index
    %18 = vector.load %arg4[%c0_16, %c0_17] : memref<25x128xf32, #tpu.memory_space<vmem>>, vector<25x128xf32>
    %cst_18 = arith.constant dense<0.000000e+00> : vector<72x128xf32>
    %19 = tpu.matmul %17, %18, %cst_18 {dimension_numbers = #tpu.dot_dimension_numbers<[1], [0], [0], [1], [0, 0, 1, 1], [], []>} : vector<72x25xf32>, vector<25x128xf32>, vector<72x128xf32> -> vector<72x128xf32>
    %c0_19 = arith.constant 0 : index
    %c0_20 = arith.constant 0 : index
    %20 = vector.load %arg5[%c0_19, %c0_20] : memref<1x128xf32, #tpu.memory_space<vmem>>, vector<1x128xf32>
    %21 = vector.broadcast %20 : vector<1x128xf32> to vector<72x128xf32>
    %22 = arith.addf %19, %21 : vector<72x128xf32>
    %cst_21 = arith.constant 0.000000e+00 : f32
    %23 = vector.broadcast %cst_21 : f32 to vector<72x128xf32>
    %24 = arith.maximumf %22, %23 : vector<72x128xf32>
    %c0_22 = arith.constant 0 : index
    %c0_23 = arith.constant 0 : index
    %25 = vector.load %arg3[%c0_22, %c0_23] : memref<72x25xf32, #tpu.memory_space<vmem>>, vector<72x25xf32>
    %c0_24 = arith.constant 0 : index
    %c0_25 = arith.constant 0 : index
    %26 = vector.load %arg4[%c0_24, %c0_25] : memref<25x128xf32, #tpu.memory_space<vmem>>, vector<25x128xf32>
    %cst_26 = arith.constant dense<0.000000e+00> : vector<72x128xf32>
    %27 = tpu.matmul %25, %26, %cst_26 {dimension_numbers = #tpu.dot_dimension_numbers<[1], [0], [0], [1], [0, 0, 1, 1], [], []>} : vector<72x25xf32>, vector<25x128xf32>, vector<72x128xf32> -> vector<72x128xf32>
    %c0_27 = arith.constant 0 : index
    %c0_28 = arith.constant 0 : index
    %28 = vector.load %arg5[%c0_27, %c0_28] : memref<1x128xf32, #tpu.memory_space<vmem>>, vector<1x128xf32>
    %29 = vector.broadcast %28 : vector<1x128xf32> to vector<72x128xf32>
    %30 = arith.addf %27, %29 : vector<72x128xf32>
    %cst_29 = arith.constant 0.000000e+00 : f32
    %31 = vector.broadcast %cst_29 : f32 to vector<72x128xf32>
    %32 = arith.maximumf %30, %31 : vector<72x128xf32>
    %33 = arith.maximumf %24, %32 : vector<72x128xf32>
    %34 = arith.maximumf %16, %33 : vector<72x128xf32>
    %c0_30 = arith.constant 0 : index
    %c0_31 = arith.constant 0 : index
    %35 = vector.load %arg6[%c0_30, %c0_31] : memref<72x128xf32, #tpu.memory_space<vmem>>, vector<72x128xf32>
    tpu.vector_store %arg6[%c0_30, %c0_31], %34 {strides = array<i32>} : memref<72x128xf32, #tpu.memory_space<vmem>>, vector<72x128xf32>,
    return
  }
}

module attributes {stable_mosaic.version = 11 : i64} {
  func.func @bilstm_kernel(%arg0: memref<16x8xf32, #tpu.memory_space<vmem>>, %arg1: memref<8x256xf32, #tpu.memory_space<vmem>>, %arg2: memref<32x128xf32, #tpu.memory_space<vmem>>, %arg3: memref<32x128xf32, #tpu.memory_space<vmem>>, %arg4: memref<1x256xf32, #tpu.memory_space<vmem>>, %arg5: memref<2x1xi32, #tpu.memory_space<vmem>>, %arg6: memref<2x64xf32, #tpu.memory_space<vmem>>) attributes {dimension_semantics = [], scalar_prefetch = 0 : i64, scratch_operands = 0 : i64, tpu.core_type = #tpu.core_type<tc>} {
    %c0 = arith.constant 0 : index
    %c0_0 = arith.constant 0 : index
    %0 = vector.load %arg0[%c0, %c0_0] : memref<16x8xf32, #tpu.memory_space<vmem>>, vector<16x8xf32>
    %c0_1 = arith.constant 0 : index
    %c0_2 = arith.constant 0 : index
    %1 = vector.load %arg1[%c0_1, %c0_2] : memref<8x256xf32, #tpu.memory_space<vmem>>, vector<8x256xf32>
    %cst = arith.constant dense<0.000000e+00> : vector<16x256xf32>
    %2 = tpu.matmul %0, %1, %cst {dimension_numbers = #tpu.dot_dimension_numbers<[1], [0], [0], [1], [0, 0, 1, 1], [], []>} : vector<16x8xf32>, vector<8x256xf32>, vector<16x256xf32> -> vector<16x256xf32>
    %c0_3 = arith.constant 0 : index
    %c0_4 = arith.constant 0 : index
    %3 = vector.load %arg4[%c0_3, %c0_4] : memref<1x256xf32, #tpu.memory_space<vmem>>, vector<1x256xf32>
    %4 = vector.broadcast %3 : vector<1x256xf32> to vector<16x256xf32>
    %5 = arith.addf %2, %4 : vector<16x256xf32>
    %c0_5 = arith.constant 0 : index
    %c0_6 = arith.constant 0 : index
    %6 = vector.load %arg5[%c0_5, %c0_6] : memref<2x1xi32, #tpu.memory_space<vmem>>, vector<2x1xi32>
    %c0_7 = arith.constant 0 : index
    %c0_8 = arith.constant 0 : index
    %7 = vector.load %arg2[%c0_7, %c0_8] : memref<32x128xf32, #tpu.memory_space<vmem>>, vector<32x128xf32>
    %c0_9 = arith.constant 0 : index
    %c0_10 = arith.constant 0 : index
    %8 = vector.load %arg3[%c0_9, %c0_10] : memref<32x128xf32, #tpu.memory_space<vmem>>, vector<32x128xf32>
    %cst_11 = arith.constant 0.000000e+00 : f32
    %9 = vector.broadcast %cst_11 : f32 to vector<2x32xf32>
    %10 = vector.extract_strided_slice %5 {offsets = [0, 0], sizes = [2, 128], strides = [1, 1]} : vector<16x256xf32> to vector<2x128xf32>
    %cst_12 = arith.constant dense<0.000000e+00> : vector<2x128xf32>
    %11 = tpu.matmul %9, %7, %cst_12 {dimension_numbers = #tpu.dot_dimension_numbers<[1], [0], [0], [1], [0, 0, 1, 1], [], []>} : vector<2x32xf32>, vector<32x128xf32>, vector<2x128xf32> -> vector<2x128xf32>
    %12 = arith.addf %10, %11 : vector<2x128xf32>
    %c0_i32 = arith.constant 0 : i32
    %13 = vector.broadcast %c0_i32 : i32 to vector<2x1xi32>
    %14 = arith.cmpi sgt, %6, %13 : vector<2x1xi32>
    %15 = vector.extract_strided_slice %12 {offsets = [0, 0], sizes = [2, 32], strides = [1, 1]} : vector<2x128xf32> to vector<2x32xf32>
    %16 = arith.negf %15 : vector<2x32xf32>
    %17 = math.exp %16 : vector<2x32xf32>
    %cst_13 = arith.constant 1.000000e+00 : f32
    %18 = vector.broadcast %cst_13 : f32 to vector<2x32xf32>
    %19 = arith.addf %18, %17 : vector<2x32xf32>
    %20 = arith.divf %18, %19 : vector<2x32xf32>
    %21 = vector.extract_strided_slice %12 {offsets = [0, 32], sizes = [2, 32], strides = [1, 1]} : vector<2x128xf32> to vector<2x32xf32>
    %22 = arith.negf %21 : vector<2x32xf32>
    %23 = math.exp %22 : vector<2x32xf32>
    %cst_14 = arith.constant 1.000000e+00 : f32
    %24 = vector.broadcast %cst_14 : f32 to vector<2x32xf32>
    %25 = arith.addf %24, %23 : vector<2x32xf32>
    %26 = arith.divf %24, %25 : vector<2x32xf32>
    %27 = vector.extract_strided_slice %12 {offsets = [0, 64], sizes = [2, 32], strides = [1, 1]} : vector<2x128xf32> to vector<2x32xf32>
    %28 = math.tanh %27 : vector<2x32xf32>
    %29 = vector.extract_strided_slice %12 {offsets = [0, 96], sizes = [2, 32], strides = [1, 1]} : vector<2x128xf32> to vector<2x32xf32>
    %30 = arith.negf %29 : vector<2x32xf32>
    %31 = math.exp %30 : vector<2x32xf32>
    %cst_15 = arith.constant 1.000000e+00 : f32
    %32 = vector.broadcast %cst_15 : f32 to vector<2x32xf32>
    %33 = arith.addf %32, %31 : vector<2x32xf32>
    %34 = arith.divf %32, %33 : vector<2x32xf32>
    %35 = arith.mulf %26, %9 : vector<2x32xf32>
    %36 = arith.mulf %20, %28 : vector<2x32xf32>
    %37 = arith.addf %35, %36 : vector<2x32xf32>
    %38 = math.tanh %37 : vector<2x32xf32>
    %39 = arith.mulf %34, %38 : vector<2x32xf32>
    %40 = vector.shape_cast %14 : vector<2x1xi1> to vector<2x1xi1>
    %41 = vector.broadcast %40 : vector<2x1xi1> to vector<2x32xi1>
    %42 = arith.select %41, %39, %9 : vector<2x32xi1>, vector<2x32xf32>
    %43 = vector.shape_cast %14 : vector<2x1xi1> to vector<2x1xi1>
    %44 = vector.broadcast %43 : vector<2x1xi1> to vector<2x32xi1>
    %45 = arith.select %44, %37, %9 : vector<2x32xi1>, vector<2x32xf32>
    %46 = vector.extract_strided_slice %5 {offsets = [14, 128], sizes = [2, 128], strides = [1, 1]} : vector<16x256xf32> to vector<2x128xf32>
    %cst_16 = arith.constant dense<0.000000e+00> : vector<2x128xf32>
    %47 = tpu.matmul %9, %8, %cst_16 {dimension_numbers = #tpu.dot_dimension_numbers<[1], [0], [0], [1], [0, 0, 1, 1], [], []>} : vector<2x32xf32>, vector<32x128xf32>, vector<2x128xf32> -> vector<2x128xf32>
    %48 = arith.addf %46, %47 : vector<2x128xf32>
    %c7_i32 = arith.constant 7 : i32
    %49 = vector.broadcast %c7_i32 : i32 to vector<2x1xi32>
    %50 = arith.cmpi sgt, %6, %49 : vector<2x1xi32>
    %51 = vector.extract_strided_slice %48 {offsets = [0, 0], sizes = [2, 32], strides = [1, 1]} : vector<2x128xf32> to vector<2x32xf32>
    %52 = arith.negf %51 : vector<2x32xf32>
    %53 = math.exp %52 : vector<2x32xf32>
    %cst_17 = arith.constant 1.000000e+00 : f32
    %54 = vector.broadcast %cst_17 : f32 to vector<2x32xf32>
    %55 = arith.addf %54, %53 : vector<2x32xf32>
    %56 = arith.divf %54, %55 : vector<2x32xf32>
    %57 = vector.extract_strided_slice %48 {offsets = [0, 32], sizes = [2, 32], strides = [1, 1]} : vector<2x128xf32> to vector<2x32xf32>
    %58 = arith.negf %57 : vector<2x32xf32>
    %59 = math.exp %58 : vector<2x32xf32>
    %cst_18 = arith.constant 1.000000e+00 : f32
    %60 = vector.broadcast %cst_18 : f32 to vector<2x32xf32>
    %61 = arith.addf %60, %59 : vector<2x32xf32>
    %62 = arith.divf %60, %61 : vector<2x32xf32>
    %63 = vector.extract_strided_slice %48 {offsets = [0, 64], sizes = [2, 32], strides = [1, 1]} : vector<2x128xf32> to vector<2x32xf32>
    %64 = math.tanh %63 : vector<2x32xf32>
    %65 = vector.extract_strided_slice %48 {offsets = [0, 96], sizes = [2, 32], strides = [1, 1]} : vector<2x128xf32> to vector<2x32xf32>
    %66 = arith.negf %65 : vector<2x32xf32>
    %67 = math.exp %66 : vector<2x32xf32>
    %cst_19 = arith.constant 1.000000e+00 : f32
    %68 = vector.broadcast %cst_19 : f32 to vector<2x32xf32>
    %69 = arith.addf %68, %67 : vector<2x32xf32>
    %70 = arith.divf %68, %69 : vector<2x32xf32>
    %71 = arith.mulf %62, %9 : vector<2x32xf32>
    %72 = arith.mulf %56, %64 : vector<2x32xf32>
    %73 = arith.addf %71, %72 : vector<2x32xf32>
    %74 = math.tanh %73 : vector<2x32xf32>
    %75 = arith.mulf %70, %74 : vector<2x32xf32>
    %76 = vector.shape_cast %50 : vector<2x1xi1> to vector<2x1xi1>
    %77 = vector.broadcast %76 : vector<2x1xi1> to vector<2x32xi1>
    %78 = arith.select %77, %75, %9 : vector<2x32xi1>, vector<2x32xf32>
    %79 = vector.shape_cast %50 : vector<2x1xi1> to vector<2x1xi1>
    %80 = vector.broadcast %79 : vector<2x1xi1> to vector<2x32xi1>
    %81 = arith.select %80, %73, %9 : vector<2x32xi1>, vector<2x32xf32>
    %82 = vector.extract_strided_slice %5 {offsets = [2, 0], sizes = [2, 128], strides = [1, 1]} : vector<16x256xf32> to vector<2x128xf32>
    %cst_20 = arith.constant dense<0.000000e+00> : vector<2x128xf32>
    %83 = tpu.matmul %42, %7, %cst_20 {dimension_numbers = #tpu.dot_dimension_numbers<[1], [0], [0], [1], [0, 0, 1, 1], [], []>} : vector<2x32xf32>, vector<32x128xf32>, vector<2x128xf32> -> vector<2x128xf32>
    %84 = arith.addf %82, %83 : vector<2x128xf32>
    %c1_i32 = arith.constant 1 : i32
    %85 = vector.broadcast %c1_i32 : i32 to vector<2x1xi32>
    %86 = arith.cmpi sgt, %6, %85 : vector<2x1xi32>
    %87 = vector.extract_strided_slice %84 {offsets = [0, 0], sizes = [2, 32], strides = [1, 1]} : vector<2x128xf32> to vector<2x32xf32>
    %88 = arith.negf %87 : vector<2x32xf32>
    %89 = math.exp %88 : vector<2x32xf32>
    %cst_21 = arith.constant 1.000000e+00 : f32
    %90 = vector.broadcast %cst_21 : f32 to vector<2x32xf32>
    %91 = arith.addf %90, %89 : vector<2x32xf32>
    %92 = arith.divf %90, %91 : vector<2x32xf32>
    %93 = vector.extract_strided_slice %84 {offsets = [0, 32], sizes = [2, 32], strides = [1, 1]} : vector<2x128xf32> to vector<2x32xf32>
    %94 = arith.negf %93 : vector<2x32xf32>
    %95 = math.exp %94 : vector<2x32xf32>
    %cst_22 = arith.constant 1.000000e+00 : f32
    %96 = vector.broadcast %cst_22 : f32 to vector<2x32xf32>
    %97 = arith.addf %96, %95 : vector<2x32xf32>
    %98 = arith.divf %96, %97 : vector<2x32xf32>
    %99 = vector.extract_strided_slice %84 {offsets = [0, 64], sizes = [2, 32], strides = [1, 1]} : vector<2x128xf32> to vector<2x32xf32>
    %100 = math.tanh %99 : vector<2x32xf32>
    %101 = vector.extract_strided_slice %84 {offsets = [0, 96], sizes = [2, 32], strides = [1, 1]} : vector<2x128xf32> to vector<2x32xf32>
    %102 = arith.negf %101 : vector<2x32xf32>
    %103 = math.exp %102 : vector<2x32xf32>
    %cst_23 = arith.constant 1.000000e+00 : f32
    %104 = vector.broadcast %cst_23 : f32 to vector<2x32xf32>
    %105 = arith.addf %104, %103 : vector<2x32xf32>
    %106 = arith.divf %104, %105 : vector<2x32xf32>
    %107 = arith.mulf %98, %45 : vector<2x32xf32>
    %108 = arith.mulf %92, %100 : vector<2x32xf32>
    %109 = arith.addf %107, %108 : vector<2x32xf32>
    %110 = math.tanh %109 : vector<2x32xf32>
    %111 = arith.mulf %106, %110 : vector<2x32xf32>
    %112 = vector.shape_cast %86 : vector<2x1xi1> to vector<2x1xi1>
    %113 = vector.broadcast %112 : vector<2x1xi1> to vector<2x32xi1>
    %114 = arith.select %113, %111, %42 : vector<2x32xi1>, vector<2x32xf32>
    %115 = vector.shape_cast %86 : vector<2x1xi1> to vector<2x1xi1>
    %116 = vector.broadcast %115 : vector<2x1xi1> to vector<2x32xi1>
    %117 = arith.select %116, %109, %45 : vector<2x32xi1>, vector<2x32xf32>
    %118 = vector.extract_strided_slice %5 {offsets = [12, 128], sizes = [2, 128], strides = [1, 1]} : vector<16x256xf32> to vector<2x128xf32>
    %cst_24 = arith.constant dense<0.000000e+00> : vector<2x128xf32>
    %119 = tpu.matmul %78, %8, %cst_24 {dimension_numbers = #tpu.dot_dimension_numbers<[1], [0], [0], [1], [0, 0, 1, 1], [], []>} : vector<2x32xf32>, vector<32x128xf32>, vector<2x128xf32> -> vector<2x128xf32>
    %120 = arith.addf %118, %119 : vector<2x128xf32>
    %c6_i32 = arith.constant 6 : i32
    %121 = vector.broadcast %c6_i32 : i32 to vector<2x1xi32>
    %122 = arith.cmpi sgt, %6, %121 : vector<2x1xi32>
    %123 = vector.extract_strided_slice %120 {offsets = [0, 0], sizes = [2, 32], strides = [1, 1]} : vector<2x128xf32> to vector<2x32xf32>
    %124 = arith.negf %123 : vector<2x32xf32>
    %125 = math.exp %124 : vector<2x32xf32>
    %cst_25 = arith.constant 1.000000e+00 : f32
    %126 = vector.broadcast %cst_25 : f32 to vector<2x32xf32>
    %127 = arith.addf %126, %125 : vector<2x32xf32>
    %128 = arith.divf %126, %127 : vector<2x32xf32>
    %129 = vector.extract_strided_slice %120 {offsets = [0, 32], sizes = [2, 32], strides = [1, 1]} : vector<2x128xf32> to vector<2x32xf32>
    %130 = arith.negf %129 : vector<2x32xf32>
    %131 = math.exp %130 : vector<2x32xf32>
    %cst_26 = arith.constant 1.000000e+00 : f32
    %132 = vector.broadcast %cst_26 : f32 to vector<2x32xf32>
    %133 = arith.addf %132, %131 : vector<2x32xf32>
    %134 = arith.divf %132, %133 : vector<2x32xf32>
    %135 = vector.extract_strided_slice %120 {offsets = [0, 64], sizes = [2, 32], strides = [1, 1]} : vector<2x128xf32> to vector<2x32xf32>
    %136 = math.tanh %135 : vector<2x32xf32>
    %137 = vector.extract_strided_slice %120 {offsets = [0, 96], sizes = [2, 32], strides = [1, 1]} : vector<2x128xf32> to vector<2x32xf32>
    %138 = arith.negf %137 : vector<2x32xf32>
    %139 = math.exp %138 : vector<2x32xf32>
    %cst_27 = arith.constant 1.000000e+00 : f32
    %140 = vector.broadcast %cst_27 : f32 to vector<2x32xf32>
    %141 = arith.addf %140, %139 : vector<2x32xf32>
    %142 = arith.divf %140, %141 : vector<2x32xf32>
    %143 = arith.mulf %134, %81 : vector<2x32xf32>
    %144 = arith.mulf %128, %136 : vector<2x32xf32>
    %145 = arith.addf %143, %144 : vector<2x32xf32>
    %146 = math.tanh %145 : vector<2x32xf32>
    %147 = arith.mulf %142, %146 : vector<2x32xf32>
    %148 = vector.shape_cast %122 : vector<2x1xi1> to vector<2x1xi1>
    %149 = vector.broadcast %148 : vector<2x1xi1> to vector<2x32xi1>
    %150 = arith.select %149, %147, %78 : vector<2x32xi1>, vector<2x32xf32>
    %151 = vector.shape_cast %122 : vector<2x1xi1> to vector<2x1xi1>
    %152 = vector.broadcast %151 : vector<2x1xi1> to vector<2x32xi1>
    %153 = arith.select %152, %145, %81 : vector<2x32xi1>, vector<2x32xf32>
    %154 = vector.extract_strided_slice %5 {offsets = [4, 0], sizes = [2, 128], strides = [1, 1]} : vector<16x256xf32> to vector<2x128xf32>
    %cst_28 = arith.constant dense<0.000000e+00> : vector<2x128xf32>
    %155 = tpu.matmul %114, %7, %cst_28 {dimension_numbers = #tpu.dot_dimension_numbers<[1], [0], [0], [1], [0, 0, 1, 1], [], []>} : vector<2x32xf32>, vector<32x128xf32>, vector<2x128xf32> -> vector<2x128xf32>
    %156 = arith.addf %154, %155 : vector<2x128xf32>
    %c2_i32 = arith.constant 2 : i32
    %157 = vector.broadcast %c2_i32 : i32 to vector<2x1xi32>
    %158 = arith.cmpi sgt, %6, %157 : vector<2x1xi32>
    %159 = vector.extract_strided_slice %156 {offsets = [0, 0], sizes = [2, 32], strides = [1, 1]} : vector<2x128xf32> to vector<2x32xf32>
    %160 = arith.negf %159 : vector<2x32xf32>
    %161 = math.exp %160 : vector<2x32xf32>
    %cst_29 = arith.constant 1.000000e+00 : f32
    %162 = vector.broadcast %cst_29 : f32 to vector<2x32xf32>
    %163 = arith.addf %162, %161 : vector<2x32xf32>
    %164 = arith.divf %162, %163 : vector<2x32xf32>
    %165 = vector.extract_strided_slice %156 {offsets = [0, 32], sizes = [2, 32], strides = [1, 1]} : vector<2x128xf32> to vector<2x32xf32>
    %166 = arith.negf %165 : vector<2x32xf32>
    %167 = math.exp %166 : vector<2x32xf32>
    %cst_30 = arith.constant 1.000000e+00 : f32
    %168 = vector.broadcast %cst_30 : f32 to vector<2x32xf32>
    %169 = arith.addf %168, %167 : vector<2x32xf32>
    %170 = arith.divf %168, %169 : vector<2x32xf32>
    %171 = vector.extract_strided_slice %156 {offsets = [0, 64], sizes = [2, 32], strides = [1, 1]} : vector<2x128xf32> to vector<2x32xf32>
    %172 = math.tanh %171 : vector<2x32xf32>
    %173 = vector.extract_strided_slice %156 {offsets = [0, 96], sizes = [2, 32], strides = [1, 1]} : vector<2x128xf32> to vector<2x32xf32>
    %174 = arith.negf %173 : vector<2x32xf32>
    %175 = math.exp %174 : vector<2x32xf32>
    %cst_31 = arith.constant 1.000000e+00 : f32
    %176 = vector.broadcast %cst_31 : f32 to vector<2x32xf32>
    %177 = arith.addf %176, %175 : vector<2x32xf32>
    %178 = arith.divf %176, %177 : vector<2x32xf32>
    %179 = arith.mulf %170, %117 : vector<2x32xf32>
    %180 = arith.mulf %164, %172 : vector<2x32xf32>
    %181 = arith.addf %179, %180 : vector<2x32xf32>
    %182 = math.tanh %181 : vector<2x32xf32>
    %183 = arith.mulf %178, %182 : vector<2x32xf32>
    %184 = vector.shape_cast %158 : vector<2x1xi1> to vector<2x1xi1>
    %185 = vector.broadcast %184 : vector<2x1xi1> to vector<2x32xi1>
    %186 = arith.select %185, %183, %114 : vector<2x32xi1>, vector<2x32xf32>
    %187 = vector.shape_cast %158 : vector<2x1xi1> to vector<2x1xi1>
    %188 = vector.broadcast %187 : vector<2x1xi1> to vector<2x32xi1>
    %189 = arith.select %188, %181, %117 : vector<2x32xi1>, vector<2x32xf32>
    %190 = vector.extract_strided_slice %5 {offsets = [10, 128], sizes = [2, 128], strides = [1, 1]} : vector<16x256xf32> to vector<2x128xf32>
    %cst_32 = arith.constant dense<0.000000e+00> : vector<2x128xf32>
    %191 = tpu.matmul %150, %8, %cst_32 {dimension_numbers = #tpu.dot_dimension_numbers<[1], [0], [0], [1], [0, 0, 1, 1], [], []>} : vector<2x32xf32>, vector<32x128xf32>, vector<2x128xf32> -> vector<2x128xf32>
    %192 = arith.addf %190, %191 : vector<2x128xf32>
    %c5_i32 = arith.constant 5 : i32
    %193 = vector.broadcast %c5_i32 : i32 to vector<2x1xi32>
    %194 = arith.cmpi sgt, %6, %193 : vector<2x1xi32>
    %195 = vector.extract_strided_slice %192 {offsets = [0, 0], sizes = [2, 32], strides = [1, 1]} : vector<2x128xf32> to vector<2x32xf32>
    %196 = arith.negf %195 : vector<2x32xf32>
    %197 = math.exp %196 : vector<2x32xf32>
    %cst_33 = arith.constant 1.000000e+00 : f32
    %198 = vector.broadcast %cst_33 : f32 to vector<2x32xf32>
    %199 = arith.addf %198, %197 : vector<2x32xf32>
    %200 = arith.divf %198, %199 : vector<2x32xf32>
    %201 = vector.extract_strided_slice %192 {offsets = [0, 32], sizes = [2, 32], strides = [1, 1]} : vector<2x128xf32> to vector<2x32xf32>
    %202 = arith.negf %201 : vector<2x32xf32>
    %203 = math.exp %202 : vector<2x32xf32>
    %cst_34 = arith.constant 1.000000e+00 : f32
    %204 = vector.broadcast %cst_34 : f32 to vector<2x32xf32>
    %205 = arith.addf %204, %203 : vector<2x32xf32>
    %206 = arith.divf %204, %205 : vector<2x32xf32>
    %207 = vector.extract_strided_slice %192 {offsets = [0, 64], sizes = [2, 32], strides = [1, 1]} : vector<2x128xf32> to vector<2x32xf32>
    %208 = math.tanh %207 : vector<2x32xf32>
    %209 = vector.extract_strided_slice %192 {offsets = [0, 96], sizes = [2, 32], strides = [1, 1]} : vector<2x128xf32> to vector<2x32xf32>
    %210 = arith.negf %209 : vector<2x32xf32>
    %211 = math.exp %210 : vector<2x32xf32>
    %cst_35 = arith.constant 1.000000e+00 : f32
    %212 = vector.broadcast %cst_35 : f32 to vector<2x32xf32>
    %213 = arith.addf %212, %211 : vector<2x32xf32>
    %214 = arith.divf %212, %213 : vector<2x32xf32>
    %215 = arith.mulf %206, %153 : vector<2x32xf32>
    %216 = arith.mulf %200, %208 : vector<2x32xf32>
    %217 = arith.addf %215, %216 : vector<2x32xf32>
    %218 = math.tanh %217 : vector<2x32xf32>
    %219 = arith.mulf %214, %218 : vector<2x32xf32>
    %220 = vector.shape_cast %194 : vector<2x1xi1> to vector<2x1xi1>
    %221 = vector.broadcast %220 : vector<2x1xi1> to vector<2x32xi1>
    %222 = arith.select %221, %219, %150 : vector<2x32xi1>, vector<2x32xf32>
    %223 = vector.shape_cast %194 : vector<2x1xi1> to vector<2x1xi1>
    %224 = vector.broadcast %223 : vector<2x1xi1> to vector<2x32xi1>
    %225 = arith.select %224, %217, %153 : vector<2x32xi1>, vector<2x32xf32>
    %226 = vector.extract_strided_slice %5 {offsets = [6, 0], sizes = [2, 128], strides = [1, 1]} : vector<16x256xf32> to vector<2x128xf32>
    %cst_36 = arith.constant dense<0.000000e+00> : vector<2x128xf32>
    %227 = tpu.matmul %186, %7, %cst_36 {dimension_numbers = #tpu.dot_dimension_numbers<[1], [0], [0], [1], [0, 0, 1, 1], [], []>} : vector<2x32xf32>, vector<32x128xf32>, vector<2x128xf32> -> vector<2x128xf32>
    %228 = arith.addf %226, %227 : vector<2x128xf32>
    %c3_i32 = arith.constant 3 : i32
    %229 = vector.broadcast %c3_i32 : i32 to vector<2x1xi32>
    %230 = arith.cmpi sgt, %6, %229 : vector<2x1xi32>
    %231 = vector.extract_strided_slice %228 {offsets = [0, 0], sizes = [2, 32], strides = [1, 1]} : vector<2x128xf32> to vector<2x32xf32>
    %232 = arith.negf %231 : vector<2x32xf32>
    %233 = math.exp %232 : vector<2x32xf32>
    %cst_37 = arith.constant 1.000000e+00 : f32
    %234 = vector.broadcast %cst_37 : f32 to vector<2x32xf32>
    %235 = arith.addf %234, %233 : vector<2x32xf32>
    %236 = arith.divf %234, %235 : vector<2x32xf32>
    %237 = vector.extract_strided_slice %228 {offsets = [0, 32], sizes = [2, 32], strides = [1, 1]} : vector<2x128xf32> to vector<2x32xf32>
    %238 = arith.negf %237 : vector<2x32xf32>
    %239 = math.exp %238 : vector<2x32xf32>
    %cst_38 = arith.constant 1.000000e+00 : f32
    %240 = vector.broadcast %cst_38 : f32 to vector<2x32xf32>
    %241 = arith.addf %240, %239 : vector<2x32xf32>
    %242 = arith.divf %240, %241 : vector<2x32xf32>
    %243 = vector.extract_strided_slice %228 {offsets = [0, 64], sizes = [2, 32], strides = [1, 1]} : vector<2x128xf32> to vector<2x32xf32>
    %244 = math.tanh %243 : vector<2x32xf32>
    %245 = vector.extract_strided_slice %228 {offsets = [0, 96], sizes = [2, 32], strides = [1, 1]} : vector<2x128xf32> to vector<2x32xf32>
    %246 = arith.negf %245 : vector<2x32xf32>
    %247 = math.exp %246 : vector<2x32xf32>
    %cst_39 = arith.constant 1.000000e+00 : f32
    %248 = vector.broadcast %cst_39 : f32 to vector<2x32xf32>
    %249 = arith.addf %248, %247 : vector<2x32xf32>
    %250 = arith.divf %248, %249 : vector<2x32xf32>
    %251 = arith.mulf %242, %189 : vector<2x32xf32>
    %252 = arith.mulf %236, %244 : vector<2x32xf32>
    %253 = arith.addf %251, %252 : vector<2x32xf32>
    %254 = math.tanh %253 : vector<2x32xf32>
    %255 = arith.mulf %250, %254 : vector<2x32xf32>
    %256 = vector.shape_cast %230 : vector<2x1xi1> to vector<2x1xi1>
    %257 = vector.broadcast %256 : vector<2x1xi1> to vector<2x32xi1>
    %258 = arith.select %257, %255, %186 : vector<2x32xi1>, vector<2x32xf32>
    %259 = vector.shape_cast %230 : vector<2x1xi1> to vector<2x1xi1>
    %260 = vector.broadcast %259 : vector<2x1xi1> to vector<2x32xi1>
    %261 = arith.select %260, %253, %189 : vector<2x32xi1>, vector<2x32xf32>
    %262 = vector.extract_strided_slice %5 {offsets = [8, 128], sizes = [2, 128], strides = [1, 1]} : vector<16x256xf32> to vector<2x128xf32>
    %cst_40 = arith.constant dense<0.000000e+00> : vector<2x128xf32>
    %263 = tpu.matmul %222, %8, %cst_40 {dimension_numbers = #tpu.dot_dimension_numbers<[1], [0], [0], [1], [0, 0, 1, 1], [], []>} : vector<2x32xf32>, vector<32x128xf32>, vector<2x128xf32> -> vector<2x128xf32>
    %264 = arith.addf %262, %263 : vector<2x128xf32>
    %c4_i32 = arith.constant 4 : i32
    %265 = vector.broadcast %c4_i32 : i32 to vector<2x1xi32>
    %266 = arith.cmpi sgt, %6, %265 : vector<2x1xi32>
    %267 = vector.extract_strided_slice %264 {offsets = [0, 0], sizes = [2, 32], strides = [1, 1]} : vector<2x128xf32> to vector<2x32xf32>
    %268 = arith.negf %267 : vector<2x32xf32>
    %269 = math.exp %268 : vector<2x32xf32>
    %cst_41 = arith.constant 1.000000e+00 : f32
    %270 = vector.broadcast %cst_41 : f32 to vector<2x32xf32>
    %271 = arith.addf %270, %269 : vector<2x32xf32>
    %272 = arith.divf %270, %271 : vector<2x32xf32>
    %273 = vector.extract_strided_slice %264 {offsets = [0, 32], sizes = [2, 32], strides = [1, 1]} : vector<2x128xf32> to vector<2x32xf32>
    %274 = arith.negf %273 : vector<2x32xf32>
    %275 = math.exp %274 : vector<2x32xf32>
    %cst_42 = arith.constant 1.000000e+00 : f32
    %276 = vector.broadcast %cst_42 : f32 to vector<2x32xf32>
    %277 = arith.addf %276, %275 : vector<2x32xf32>
    %278 = arith.divf %276, %277 : vector<2x32xf32>
    %279 = vector.extract_strided_slice %264 {offsets = [0, 64], sizes = [2, 32], strides = [1, 1]} : vector<2x128xf32> to vector<2x32xf32>
    %280 = math.tanh %279 : vector<2x32xf32>
    %281 = vector.extract_strided_slice %264 {offsets = [0, 96], sizes = [2, 32], strides = [1, 1]} : vector<2x128xf32> to vector<2x32xf32>
    %282 = arith.negf %281 : vector<2x32xf32>
    %283 = math.exp %282 : vector<2x32xf32>
    %cst_43 = arith.constant 1.000000e+00 : f32
    %284 = vector.broadcast %cst_43 : f32 to vector<2x32xf32>
    %285 = arith.addf %284, %283 : vector<2x32xf32>
    %286 = arith.divf %284, %285 : vector<2x32xf32>
    %287 = arith.mulf %278, %225 : vector<2x32xf32>
    %288 = arith.mulf %272, %280 : vector<2x32xf32>
    %289 = arith.addf %287, %288 : vector<2x32xf32>
    %290 = math.tanh %289 : vector<2x32xf32>
    %291 = arith.mulf %286, %290 : vector<2x32xf32>
    %292 = vector.shape_cast %266 : vector<2x1xi1> to vector<2x1xi1>
    %293 = vector.broadcast %292 : vector<2x1xi1> to vector<2x32xi1>
    %294 = arith.select %293, %291, %222 : vector<2x32xi1>, vector<2x32xf32>
    %295 = vector.shape_cast %266 : vector<2x1xi1> to vector<2x1xi1>
    %296 = vector.broadcast %295 : vector<2x1xi1> to vector<2x32xi1>
    %297 = arith.select %296, %289, %225 : vector<2x32xi1>, vector<2x32xf32>
    %298 = vector.extract_strided_slice %5 {offsets = [8, 0], sizes = [2, 128], strides = [1, 1]} : vector<16x256xf32> to vector<2x128xf32>
    %cst_44 = arith.constant dense<0.000000e+00> : vector<2x128xf32>
    %299 = tpu.matmul %258, %7, %cst_44 {dimension_numbers = #tpu.dot_dimension_numbers<[1], [0], [0], [1], [0, 0, 1, 1], [], []>} : vector<2x32xf32>, vector<32x128xf32>, vector<2x128xf32> -> vector<2x128xf32>
    %300 = arith.addf %298, %299 : vector<2x128xf32>
    %c4_i32_45 = arith.constant 4 : i32
    %301 = vector.broadcast %c4_i32_45 : i32 to vector<2x1xi32>
    %302 = arith.cmpi sgt, %6, %301 : vector<2x1xi32>
    %303 = vector.extract_strided_slice %300 {offsets = [0, 0], sizes = [2, 32], strides = [1, 1]} : vector<2x128xf32> to vector<2x32xf32>
    %304 = arith.negf %303 : vector<2x32xf32>
    %305 = math.exp %304 : vector<2x32xf32>
    %cst_46 = arith.constant 1.000000e+00 : f32
    %306 = vector.broadcast %cst_46 : f32 to vector<2x32xf32>
    %307 = arith.addf %306, %305 : vector<2x32xf32>
    %308 = arith.divf %306, %307 : vector<2x32xf32>
    %309 = vector.extract_strided_slice %300 {offsets = [0, 32], sizes = [2, 32], strides = [1, 1]} : vector<2x128xf32> to vector<2x32xf32>
    %310 = arith.negf %309 : vector<2x32xf32>
    %311 = math.exp %310 : vector<2x32xf32>
    %cst_47 = arith.constant 1.000000e+00 : f32
    %312 = vector.broadcast %cst_47 : f32 to vector<2x32xf32>
    %313 = arith.addf %312, %311 : vector<2x32xf32>
    %314 = arith.divf %312, %313 : vector<2x32xf32>
    %315 = vector.extract_strided_slice %300 {offsets = [0, 64], sizes = [2, 32], strides = [1, 1]} : vector<2x128xf32> to vector<2x32xf32>
    %316 = math.tanh %315 : vector<2x32xf32>
    %317 = vector.extract_strided_slice %300 {offsets = [0, 96], sizes = [2, 32], strides = [1, 1]} : vector<2x128xf32> to vector<2x32xf32>
    %318 = arith.negf %317 : vector<2x32xf32>
    %319 = math.exp %318 : vector<2x32xf32>
    %cst_48 = arith.constant 1.000000e+00 : f32
    %320 = vector.broadcast %cst_48 : f32 to vector<2x32xf32>
    %321 = arith.addf %320, %319 : vector<2x32xf32>
    %322 = arith.divf %320, %321 : vector<2x32xf32>
    %323 = arith.mulf %314, %261 : vector<2x32xf32>
    %324 = arith.mulf %308, %316 : vector<2x32xf32>
    %325 = arith.addf %323, %324 : vector<2x32xf32>
    %326 = math.tanh %325 : vector<2x32xf32>
    %327 = arith.mulf %322, %326 : vector<2x32xf32>
    %328 = vector.shape_cast %302 : vector<2x1xi1> to vector<2x1xi1>
    %329 = vector.broadcast %328 : vector<2x1xi1> to vector<2x32xi1>
    %330 = arith.select %329, %327, %258 : vector<2x32xi1>, vector<2x32xf32>
    %331 = vector.shape_cast %302 : vector<2x1xi1> to vector<2x1xi1>
    %332 = vector.broadcast %331 : vector<2x1xi1> to vector<2x32xi1>
    %333 = arith.select %332, %325, %261 : vector<2x32xi1>, vector<2x32xf32>
    %334 = vector.extract_strided_slice %5 {offsets = [6, 128], sizes = [2, 128], strides = [1, 1]} : vector<16x256xf32> to vector<2x128xf32>
    %cst_49 = arith.constant dense<0.000000e+00> : vector<2x128xf32>
    %335 = tpu.matmul %294, %8, %cst_49 {dimension_numbers = #tpu.dot_dimension_numbers<[1], [0], [0], [1], [0, 0, 1, 1], [], []>} : vector<2x32xf32>, vector<32x128xf32>, vector<2x128xf32> -> vector<2x128xf32>
    %336 = arith.addf %334, %335 : vector<2x128xf32>
    %c3_i32_50 = arith.constant 3 : i32
    %337 = vector.broadcast %c3_i32_50 : i32 to vector<2x1xi32>
    %338 = arith.cmpi sgt, %6, %337 : vector<2x1xi32>
    %339 = vector.extract_strided_slice %336 {offsets = [0, 0], sizes = [2, 32], strides = [1, 1]} : vector<2x128xf32> to vector<2x32xf32>
    %340 = arith.negf %339 : vector<2x32xf32>
    %341 = math.exp %340 : vector<2x32xf32>
    %cst_51 = arith.constant 1.000000e+00 : f32
    %342 = vector.broadcast %cst_51 : f32 to vector<2x32xf32>
    %343 = arith.addf %342, %341 : vector<2x32xf32>
    %344 = arith.divf %342, %343 : vector<2x32xf32>
    %345 = vector.extract_strided_slice %336 {offsets = [0, 32], sizes = [2, 32], strides = [1, 1]} : vector<2x128xf32> to vector<2x32xf32>
    %346 = arith.negf %345 : vector<2x32xf32>
    %347 = math.exp %346 : vector<2x32xf32>
    %cst_52 = arith.constant 1.000000e+00 : f32
    %348 = vector.broadcast %cst_52 : f32 to vector<2x32xf32>
    %349 = arith.addf %348, %347 : vector<2x32xf32>
    %350 = arith.divf %348, %349 : vector<2x32xf32>
    %351 = vector.extract_strided_slice %336 {offsets = [0, 64], sizes = [2, 32], strides = [1, 1]} : vector<2x128xf32> to vector<2x32xf32>
    %352 = math.tanh %351 : vector<2x32xf32>
    %353 = vector.extract_strided_slice %336 {offsets = [0, 96], sizes = [2, 32], strides = [1, 1]} : vector<2x128xf32> to vector<2x32xf32>
    %354 = arith.negf %353 : vector<2x32xf32>
    %355 = math.exp %354 : vector<2x32xf32>
    %cst_53 = arith.constant 1.000000e+00 : f32
    %356 = vector.broadcast %cst_53 : f32 to vector<2x32xf32>
    %357 = arith.addf %356, %355 : vector<2x32xf32>
    %358 = arith.divf %356, %357 : vector<2x32xf32>
    %359 = arith.mulf %350, %297 : vector<2x32xf32>
    %360 = arith.mulf %344, %352 : vector<2x32xf32>
    %361 = arith.addf %359, %360 : vector<2x32xf32>
    %362 = math.tanh %361 : vector<2x32xf32>
    %363 = arith.mulf %358, %362 : vector<2x32xf32>
    %364 = vector.shape_cast %338 : vector<2x1xi1> to vector<2x1xi1>
    %365 = vector.broadcast %364 : vector<2x1xi1> to vector<2x32xi1>
    %366 = arith.select %365, %363, %294 : vector<2x32xi1>, vector<2x32xf32>
    %367 = vector.shape_cast %338 : vector<2x1xi1> to vector<2x1xi1>
    %368 = vector.broadcast %367 : vector<2x1xi1> to vector<2x32xi1>
    %369 = arith.select %368, %361, %297 : vector<2x32xi1>, vector<2x32xf32>
    %370 = vector.extract_strided_slice %5 {offsets = [10, 0], sizes = [2, 128], strides = [1, 1]} : vector<16x256xf32> to vector<2x128xf32>
    %cst_54 = arith.constant dense<0.000000e+00> : vector<2x128xf32>
    %371 = tpu.matmul %330, %7, %cst_54 {dimension_numbers = #tpu.dot_dimension_numbers<[1], [0], [0], [1], [0, 0, 1, 1], [], []>} : vector<2x32xf32>, vector<32x128xf32>, vector<2x128xf32> -> vector<2x128xf32>
    %372 = arith.addf %370, %371 : vector<2x128xf32>
    %c5_i32_55 = arith.constant 5 : i32
    %373 = vector.broadcast %c5_i32_55 : i32 to vector<2x1xi32>
    %374 = arith.cmpi sgt, %6, %373 : vector<2x1xi32>
    %375 = vector.extract_strided_slice %372 {offsets = [0, 0], sizes = [2, 32], strides = [1, 1]} : vector<2x128xf32> to vector<2x32xf32>
    %376 = arith.negf %375 : vector<2x32xf32>
    %377 = math.exp %376 : vector<2x32xf32>
    %cst_56 = arith.constant 1.000000e+00 : f32
    %378 = vector.broadcast %cst_56 : f32 to vector<2x32xf32>
    %379 = arith.addf %378, %377 : vector<2x32xf32>
    %380 = arith.divf %378, %379 : vector<2x32xf32>
    %381 = vector.extract_strided_slice %372 {offsets = [0, 32], sizes = [2, 32], strides = [1, 1]} : vector<2x128xf32> to vector<2x32xf32>
    %382 = arith.negf %381 : vector<2x32xf32>
    %383 = math.exp %382 : vector<2x32xf32>
    %cst_57 = arith.constant 1.000000e+00 : f32
    %384 = vector.broadcast %cst_57 : f32 to vector<2x32xf32>
    %385 = arith.addf %384, %383 : vector<2x32xf32>
    %386 = arith.divf %384, %385 : vector<2x32xf32>
    %387 = vector.extract_strided_slice %372 {offsets = [0, 64], sizes = [2, 32], strides = [1, 1]} : vector<2x128xf32> to vector<2x32xf32>
    %388 = math.tanh %387 : vector<2x32xf32>
    %389 = vector.extract_strided_slice %372 {offsets = [0, 96], sizes = [2, 32], strides = [1, 1]} : vector<2x128xf32> to vector<2x32xf32>
    %390 = arith.negf %389 : vector<2x32xf32>
    %391 = math.exp %390 : vector<2x32xf32>
    %cst_58 = arith.constant 1.000000e+00 : f32
    %392 = vector.broadcast %cst_58 : f32 to vector<2x32xf32>
    %393 = arith.addf %392, %391 : vector<2x32xf32>
    %394 = arith.divf %392, %393 : vector<2x32xf32>
    %395 = arith.mulf %386, %333 : vector<2x32xf32>
    %396 = arith.mulf %380, %388 : vector<2x32xf32>
    %397 = arith.addf %395, %396 : vector<2x32xf32>
    %398 = math.tanh %397 : vector<2x32xf32>
    %399 = arith.mulf %394, %398 : vector<2x32xf32>
    %400 = vector.shape_cast %374 : vector<2x1xi1> to vector<2x1xi1>
    %401 = vector.broadcast %400 : vector<2x1xi1> to vector<2x32xi1>
    %402 = arith.select %401, %399, %330 : vector<2x32xi1>, vector<2x32xf32>
    %403 = vector.shape_cast %374 : vector<2x1xi1> to vector<2x1xi1>
    %404 = vector.broadcast %403 : vector<2x1xi1> to vector<2x32xi1>
    %405 = arith.select %404, %397, %333 : vector<2x32xi1>, vector<2x32xf32>
    %406 = vector.extract_strided_slice %5 {offsets = [4, 128], sizes = [2, 128], strides = [1, 1]} : vector<16x256xf32> to vector<2x128xf32>
    %cst_59 = arith.constant dense<0.000000e+00> : vector<2x128xf32>
    %407 = tpu.matmul %366, %8, %cst_59 {dimension_numbers = #tpu.dot_dimension_numbers<[1], [0], [0], [1], [0, 0, 1, 1], [], []>} : vector<2x32xf32>, vector<32x128xf32>, vector<2x128xf32> -> vector<2x128xf32>
    %408 = arith.addf %406, %407 : vector<2x128xf32>
    %c2_i32_60 = arith.constant 2 : i32
    %409 = vector.broadcast %c2_i32_60 : i32 to vector<2x1xi32>
    %410 = arith.cmpi sgt, %6, %409 : vector<2x1xi32>
    %411 = vector.extract_strided_slice %408 {offsets = [0, 0], sizes = [2, 32], strides = [1, 1]} : vector<2x128xf32> to vector<2x32xf32>
    %412 = arith.negf %411 : vector<2x32xf32>
    %413 = math.exp %412 : vector<2x32xf32>
    %cst_61 = arith.constant 1.000000e+00 : f32
    %414 = vector.broadcast %cst_61 : f32 to vector<2x32xf32>
    %415 = arith.addf %414, %413 : vector<2x32xf32>
    %416 = arith.divf %414, %415 : vector<2x32xf32>
    %417 = vector.extract_strided_slice %408 {offsets = [0, 32], sizes = [2, 32], strides = [1, 1]} : vector<2x128xf32> to vector<2x32xf32>
    %418 = arith.negf %417 : vector<2x32xf32>
    %419 = math.exp %418 : vector<2x32xf32>
    %cst_62 = arith.constant 1.000000e+00 : f32
    %420 = vector.broadcast %cst_62 : f32 to vector<2x32xf32>
    %421 = arith.addf %420, %419 : vector<2x32xf32>
    %422 = arith.divf %420, %421 : vector<2x32xf32>
    %423 = vector.extract_strided_slice %408 {offsets = [0, 64], sizes = [2, 32], strides = [1, 1]} : vector<2x128xf32> to vector<2x32xf32>
    %424 = math.tanh %423 : vector<2x32xf32>
    %425 = vector.extract_strided_slice %408 {offsets = [0, 96], sizes = [2, 32], strides = [1, 1]} : vector<2x128xf32> to vector<2x32xf32>
    %426 = arith.negf %425 : vector<2x32xf32>
    %427 = math.exp %426 : vector<2x32xf32>
    %cst_63 = arith.constant 1.000000e+00 : f32
    %428 = vector.broadcast %cst_63 : f32 to vector<2x32xf32>
    %429 = arith.addf %428, %427 : vector<2x32xf32>
    %430 = arith.divf %428, %429 : vector<2x32xf32>
    %431 = arith.mulf %422, %369 : vector<2x32xf32>
    %432 = arith.mulf %416, %424 : vector<2x32xf32>
    %433 = arith.addf %431, %432 : vector<2x32xf32>
    %434 = math.tanh %433 : vector<2x32xf32>
    %435 = arith.mulf %430, %434 : vector<2x32xf32>
    %436 = vector.shape_cast %410 : vector<2x1xi1> to vector<2x1xi1>
    %437 = vector.broadcast %436 : vector<2x1xi1> to vector<2x32xi1>
    %438 = arith.select %437, %435, %366 : vector<2x32xi1>, vector<2x32xf32>
    %439 = vector.shape_cast %410 : vector<2x1xi1> to vector<2x1xi1>
    %440 = vector.broadcast %439 : vector<2x1xi1> to vector<2x32xi1>
    %441 = arith.select %440, %433, %369 : vector<2x32xi1>, vector<2x32xf32>
    %442 = vector.extract_strided_slice %5 {offsets = [12, 0], sizes = [2, 128], strides = [1, 1]} : vector<16x256xf32> to vector<2x128xf32>
    %cst_64 = arith.constant dense<0.000000e+00> : vector<2x128xf32>
    %443 = tpu.matmul %402, %7, %cst_64 {dimension_numbers = #tpu.dot_dimension_numbers<[1], [0], [0], [1], [0, 0, 1, 1], [], []>} : vector<2x32xf32>, vector<32x128xf32>, vector<2x128xf32> -> vector<2x128xf32>
    %444 = arith.addf %442, %443 : vector<2x128xf32>
    %c6_i32_65 = arith.constant 6 : i32
    %445 = vector.broadcast %c6_i32_65 : i32 to vector<2x1xi32>
    %446 = arith.cmpi sgt, %6, %445 : vector<2x1xi32>
    %447 = vector.extract_strided_slice %444 {offsets = [0, 0], sizes = [2, 32], strides = [1, 1]} : vector<2x128xf32> to vector<2x32xf32>
    %448 = arith.negf %447 : vector<2x32xf32>
    %449 = math.exp %448 : vector<2x32xf32>
    %cst_66 = arith.constant 1.000000e+00 : f32
    %450 = vector.broadcast %cst_66 : f32 to vector<2x32xf32>
    %451 = arith.addf %450, %449 : vector<2x32xf32>
    %452 = arith.divf %450, %451 : vector<2x32xf32>
    %453 = vector.extract_strided_slice %444 {offsets = [0, 32], sizes = [2, 32], strides = [1, 1]} : vector<2x128xf32> to vector<2x32xf32>
    %454 = arith.negf %453 : vector<2x32xf32>
    %455 = math.exp %454 : vector<2x32xf32>
    %cst_67 = arith.constant 1.000000e+00 : f32
    %456 = vector.broadcast %cst_67 : f32 to vector<2x32xf32>
    %457 = arith.addf %456, %455 : vector<2x32xf32>
    %458 = arith.divf %456, %457 : vector<2x32xf32>
    %459 = vector.extract_strided_slice %444 {offsets = [0, 64], sizes = [2, 32], strides = [1, 1]} : vector<2x128xf32> to vector<2x32xf32>
    %460 = math.tanh %459 : vector<2x32xf32>
    %461 = vector.extract_strided_slice %444 {offsets = [0, 96], sizes = [2, 32], strides = [1, 1]} : vector<2x128xf32> to vector<2x32xf32>
    %462 = arith.negf %461 : vector<2x32xf32>
    %463 = math.exp %462 : vector<2x32xf32>
    %cst_68 = arith.constant 1.000000e+00 : f32
    %464 = vector.broadcast %cst_68 : f32 to vector<2x32xf32>
    %465 = arith.addf %464, %463 : vector<2x32xf32>
    %466 = arith.divf %464, %465 : vector<2x32xf32>
    %467 = arith.mulf %458, %405 : vector<2x32xf32>
    %468 = arith.mulf %452, %460 : vector<2x32xf32>
    %469 = arith.addf %467, %468 : vector<2x32xf32>
    %470 = math.tanh %469 : vector<2x32xf32>
    %471 = arith.mulf %466, %470 : vector<2x32xf32>
    %472 = vector.shape_cast %446 : vector<2x1xi1> to vector<2x1xi1>
    %473 = vector.broadcast %472 : vector<2x1xi1> to vector<2x32xi1>
    %474 = arith.select %473, %471, %402 : vector<2x32xi1>, vector<2x32xf32>
    %475 = vector.shape_cast %446 : vector<2x1xi1> to vector<2x1xi1>
    %476 = vector.broadcast %475 : vector<2x1xi1> to vector<2x32xi1>
    %477 = arith.select %476, %469, %405 : vector<2x32xi1>, vector<2x32xf32>
    %478 = vector.extract_strided_slice %5 {offsets = [2, 128], sizes = [2, 128], strides = [1, 1]} : vector<16x256xf32> to vector<2x128xf32>
    %cst_69 = arith.constant dense<0.000000e+00> : vector<2x128xf32>
    %479 = tpu.matmul %438, %8, %cst_69 {dimension_numbers = #tpu.dot_dimension_numbers<[1], [0], [0], [1], [0, 0, 1, 1], [], []>} : vector<2x32xf32>, vector<32x128xf32>, vector<2x128xf32> -> vector<2x128xf32>
    %480 = arith.addf %478, %479 : vector<2x128xf32>
    %c1_i32_70 = arith.constant 1 : i32
    %481 = vector.broadcast %c1_i32_70 : i32 to vector<2x1xi32>
    %482 = arith.cmpi sgt, %6, %481 : vector<2x1xi32>
    %483 = vector.extract_strided_slice %480 {offsets = [0, 0], sizes = [2, 32], strides = [1, 1]} : vector<2x128xf32> to vector<2x32xf32>
    %484 = arith.negf %483 : vector<2x32xf32>
    %485 = math.exp %484 : vector<2x32xf32>
    %cst_71 = arith.constant 1.000000e+00 : f32
    %486 = vector.broadcast %cst_71 : f32 to vector<2x32xf32>
    %487 = arith.addf %486, %485 : vector<2x32xf32>
    %488 = arith.divf %486, %487 : vector<2x32xf32>
    %489 = vector.extract_strided_slice %480 {offsets = [0, 32], sizes = [2, 32], strides = [1, 1]} : vector<2x128xf32> to vector<2x32xf32>
    %490 = arith.negf %489 : vector<2x32xf32>
    %491 = math.exp %490 : vector<2x32xf32>
    %cst_72 = arith.constant 1.000000e+00 : f32
    %492 = vector.broadcast %cst_72 : f32 to vector<2x32xf32>
    %493 = arith.addf %492, %491 : vector<2x32xf32>
    %494 = arith.divf %492, %493 : vector<2x32xf32>
    %495 = vector.extract_strided_slice %480 {offsets = [0, 64], sizes = [2, 32], strides = [1, 1]} : vector<2x128xf32> to vector<2x32xf32>
    %496 = math.tanh %495 : vector<2x32xf32>
    %497 = vector.extract_strided_slice %480 {offsets = [0, 96], sizes = [2, 32], strides = [1, 1]} : vector<2x128xf32> to vector<2x32xf32>
    %498 = arith.negf %497 : vector<2x32xf32>
    %499 = math.exp %498 : vector<2x32xf32>
    %cst_73 = arith.constant 1.000000e+00 : f32
    %500 = vector.broadcast %cst_73 : f32 to vector<2x32xf32>
    %501 = arith.addf %500, %499 : vector<2x32xf32>
    %502 = arith.divf %500, %501 : vector<2x32xf32>
    %503 = arith.mulf %494, %441 : vector<2x32xf32>
    %504 = arith.mulf %488, %496 : vector<2x32xf32>
    %505 = arith.addf %503, %504 : vector<2x32xf32>
    %506 = math.tanh %505 : vector<2x32xf32>
    %507 = arith.mulf %502, %506 : vector<2x32xf32>
    %508 = vector.shape_cast %482 : vector<2x1xi1> to vector<2x1xi1>
    %509 = vector.broadcast %508 : vector<2x1xi1> to vector<2x32xi1>
    %510 = arith.select %509, %507, %438 : vector<2x32xi1>, vector<2x32xf32>
    %511 = vector.shape_cast %482 : vector<2x1xi1> to vector<2x1xi1>
    %512 = vector.broadcast %511 : vector<2x1xi1> to vector<2x32xi1>
    %513 = arith.select %512, %505, %441 : vector<2x32xi1>, vector<2x32xf32>
    %514 = vector.extract_strided_slice %5 {offsets = [14, 0], sizes = [2, 128], strides = [1, 1]} : vector<16x256xf32> to vector<2x128xf32>
    %cst_74 = arith.constant dense<0.000000e+00> : vector<2x128xf32>
    %515 = tpu.matmul %474, %7, %cst_74 {dimension_numbers = #tpu.dot_dimension_numbers<[1], [0], [0], [1], [0, 0, 1, 1], [], []>} : vector<2x32xf32>, vector<32x128xf32>, vector<2x128xf32> -> vector<2x128xf32>
    %516 = arith.addf %514, %515 : vector<2x128xf32>
    %c7_i32_75 = arith.constant 7 : i32
    %517 = vector.broadcast %c7_i32_75 : i32 to vector<2x1xi32>
    %518 = arith.cmpi sgt, %6, %517 : vector<2x1xi32>
    %519 = vector.extract_strided_slice %516 {offsets = [0, 0], sizes = [2, 32], strides = [1, 1]} : vector<2x128xf32> to vector<2x32xf32>
    %520 = arith.negf %519 : vector<2x32xf32>
    %521 = math.exp %520 : vector<2x32xf32>
    %cst_76 = arith.constant 1.000000e+00 : f32
    %522 = vector.broadcast %cst_76 : f32 to vector<2x32xf32>
    %523 = arith.addf %522, %521 : vector<2x32xf32>
    %524 = arith.divf %522, %523 : vector<2x32xf32>
    %525 = vector.extract_strided_slice %516 {offsets = [0, 32], sizes = [2, 32], strides = [1, 1]} : vector<2x128xf32> to vector<2x32xf32>
    %526 = arith.negf %525 : vector<2x32xf32>
    %527 = math.exp %526 : vector<2x32xf32>
    %cst_77 = arith.constant 1.000000e+00 : f32
    %528 = vector.broadcast %cst_77 : f32 to vector<2x32xf32>
    %529 = arith.addf %528, %527 : vector<2x32xf32>
    %530 = arith.divf %528, %529 : vector<2x32xf32>
    %531 = vector.extract_strided_slice %516 {offsets = [0, 64], sizes = [2, 32], strides = [1, 1]} : vector<2x128xf32> to vector<2x32xf32>
    %532 = math.tanh %531 : vector<2x32xf32>
    %533 = vector.extract_strided_slice %516 {offsets = [0, 96], sizes = [2, 32], strides = [1, 1]} : vector<2x128xf32> to vector<2x32xf32>
    %534 = arith.negf %533 : vector<2x32xf32>
    %535 = math.exp %534 : vector<2x32xf32>
    %cst_78 = arith.constant 1.000000e+00 : f32
    %536 = vector.broadcast %cst_78 : f32 to vector<2x32xf32>
    %537 = arith.addf %536, %535 : vector<2x32xf32>
    %538 = arith.divf %536, %537 : vector<2x32xf32>
    %539 = arith.mulf %530, %477 : vector<2x32xf32>
    %540 = arith.mulf %524, %532 : vector<2x32xf32>
    %541 = arith.addf %539, %540 : vector<2x32xf32>
    %542 = math.tanh %541 : vector<2x32xf32>
    %543 = arith.mulf %538, %542 : vector<2x32xf32>
    %544 = vector.shape_cast %518 : vector<2x1xi1> to vector<2x1xi1>
    %545 = vector.broadcast %544 : vector<2x1xi1> to vector<2x32xi1>
    %546 = arith.select %545, %543, %474 : vector<2x32xi1>, vector<2x32xf32>
    %547 = vector.extract_strided_slice %5 {offsets = [0, 128], sizes = [2, 128], strides = [1, 1]} : vector<16x256xf32> to vector<2x128xf32>
    %cst_79 = arith.constant dense<0.000000e+00> : vector<2x128xf32>
    %548 = tpu.matmul %510, %8, %cst_79 {dimension_numbers = #tpu.dot_dimension_numbers<[1], [0], [0], [1], [0, 0, 1, 1], [], []>} : vector<2x32xf32>, vector<32x128xf32>, vector<2x128xf32> -> vector<2x128xf32>
    %549 = arith.addf %547, %548 : vector<2x128xf32>
    %c0_i32_80 = arith.constant 0 : i32
    %550 = vector.broadcast %c0_i32_80 : i32 to vector<2x1xi32>
    %551 = arith.cmpi sgt, %6, %550 : vector<2x1xi32>
    %552 = vector.extract_strided_slice %549 {offsets = [0, 0], sizes = [2, 32], strides = [1, 1]} : vector<2x128xf32> to vector<2x32xf32>
    %553 = arith.negf %552 : vector<2x32xf32>
    %554 = math.exp %553 : vector<2x32xf32>
    %cst_81 = arith.constant 1.000000e+00 : f32
    %555 = vector.broadcast %cst_81 : f32 to vector<2x32xf32>
    %556 = arith.addf %555, %554 : vector<2x32xf32>
    %557 = arith.divf %555, %556 : vector<2x32xf32>
    %558 = vector.extract_strided_slice %549 {offsets = [0, 32], sizes = [2, 32], strides = [1, 1]} : vector<2x128xf32> to vector<2x32xf32>
    %559 = arith.negf %558 : vector<2x32xf32>
    %560 = math.exp %559 : vector<2x32xf32>
    %cst_82 = arith.constant 1.000000e+00 : f32
    %561 = vector.broadcast %cst_82 : f32 to vector<2x32xf32>
    %562 = arith.addf %561, %560 : vector<2x32xf32>
    %563 = arith.divf %561, %562 : vector<2x32xf32>
    %564 = vector.extract_strided_slice %549 {offsets = [0, 64], sizes = [2, 32], strides = [1, 1]} : vector<2x128xf32> to vector<2x32xf32>
    %565 = math.tanh %564 : vector<2x32xf32>
    %566 = vector.extract_strided_slice %549 {offsets = [0, 96], sizes = [2, 32], strides = [1, 1]} : vector<2x128xf32> to vector<2x32xf32>
    %567 = arith.negf %566 : vector<2x32xf32>
    %568 = math.exp %567 : vector<2x32xf32>
    %cst_83 = arith.constant 1.000000e+00 : f32
    %569 = vector.broadcast %cst_83 : f32 to vector<2x32xf32>
    %570 = arith.addf %569, %568 : vector<2x32xf32>
    %571 = arith.divf %569, %570 : vector<2x32xf32>
    %572 = arith.mulf %563, %513 : vector<2x32xf32>
    %573 = arith.mulf %557, %565 : vector<2x32xf32>
    %574 = arith.addf %572, %573 : vector<2x32xf32>
    %575 = math.tanh %574 : vector<2x32xf32>
    %576 = arith.mulf %571, %575 : vector<2x32xf32>
    %577 = vector.shape_cast %551 : vector<2x1xi1> to vector<2x1xi1>
    %578 = vector.broadcast %577 : vector<2x1xi1> to vector<2x32xi1>
    %579 = arith.select %578, %576, %510 : vector<2x32xi1>, vector<2x32xf32>
    %580 = tpu.concatenate %546, %579 in 1 : vector<2x32xf32>, vector<2x32xf32> -> vector<2x64xf32>
    %c0_84 = arith.constant 0 : index
    %c0_85 = arith.constant 0 : index
    %581 = vector.load %arg6[%c0_84, %c0_85] : memref<2x64xf32, #tpu.memory_space<vmem>>, vector<2x64xf32>
    tpu.vector_store %arg6[%c0_84, %c0_85], %580 {strides = array<i32>} : memref<2x64xf32, #tpu.memory_space<vmem>>, vector<2x64xf32>,
    return
  }
}

module attributes {stable_mosaic.version = 11 : i64} {
  func.func @conv2_head_kernel(%arg0: memref<2x3200xf32, #tpu.memory_space<vmem>>, %arg1: memref<2x3200xf32, #tpu.memory_space<vmem>>, %arg2: memref<2x3200xf32, #tpu.memory_space<vmem>>, %arg3: memref<2x3200xf32, #tpu.memory_space<vmem>>, %arg4: memref<3200x128xf32, #tpu.memory_space<vmem>>, %arg5: memref<1x128xf32, #tpu.memory_space<vmem>>, %arg6: memref<2x64xf32, #tpu.memory_space<vmem>>, %arg7: memref<64x500xf32, #tpu.memory_space<vmem>>, %arg8: memref<128x500xf32, #tpu.memory_space<vmem>>, %arg9: memref<1x500xf32, #tpu.memory_space<vmem>>, %arg10: memref<500x250xf32, #tpu.memory_space<vmem>>, %arg11: memref<1x250xf32, #tpu.memory_space<vmem>>, %arg12: memref<250x10xf32, #tpu.memory_space<vmem>>, %arg13: memref<1x10xf32, #tpu.memory_space<vmem>>, %arg14: memref<2x250xf32, #tpu.memory_space<vmem>>, %arg15: memref<2x10xf32, #tpu.memory_space<vmem>>) attributes {dimension_semantics = [], scalar_prefetch = 0 : i64, scratch_operands = 0 : i64, tpu.core_type = #tpu.core_type<tc>} {
    %c0 = arith.constant 0 : index
    %c0_0 = arith.constant 0 : index
    %0 = vector.load %arg0[%c0, %c0_0] : memref<2x3200xf32, #tpu.memory_space<vmem>>, vector<2x3200xf32>
    %c0_1 = arith.constant 0 : index
    %c0_2 = arith.constant 0 : index
    %1 = vector.load %arg4[%c0_1, %c0_2] : memref<3200x128xf32, #tpu.memory_space<vmem>>, vector<3200x128xf32>
    %cst = arith.constant dense<0.000000e+00> : vector<2x128xf32>
    %2 = tpu.matmul %0, %1, %cst {dimension_numbers = #tpu.dot_dimension_numbers<[1], [0], [0], [1], [0, 0, 1, 1], [], []>} : vector<2x3200xf32>, vector<3200x128xf32>, vector<2x128xf32> -> vector<2x128xf32>
    %c0_3 = arith.constant 0 : index
    %c0_4 = arith.constant 0 : index
    %3 = vector.load %arg5[%c0_3, %c0_4] : memref<1x128xf32, #tpu.memory_space<vmem>>, vector<1x128xf32>
    %4 = vector.broadcast %3 : vector<1x128xf32> to vector<2x128xf32>
    %5 = arith.addf %2, %4 : vector<2x128xf32>
    %cst_5 = arith.constant 0.000000e+00 : f32
    %6 = vector.broadcast %cst_5 : f32 to vector<2x128xf32>
    %7 = arith.maximumf %5, %6 : vector<2x128xf32>
    %c0_6 = arith.constant 0 : index
    %c0_7 = arith.constant 0 : index
    %8 = vector.load %arg1[%c0_6, %c0_7] : memref<2x3200xf32, #tpu.memory_space<vmem>>, vector<2x3200xf32>
    %c0_8 = arith.constant 0 : index
    %c0_9 = arith.constant 0 : index
    %9 = vector.load %arg4[%c0_8, %c0_9] : memref<3200x128xf32, #tpu.memory_space<vmem>>, vector<3200x128xf32>
    %cst_10 = arith.constant dense<0.000000e+00> : vector<2x128xf32>
    %10 = tpu.matmul %8, %9, %cst_10 {dimension_numbers = #tpu.dot_dimension_numbers<[1], [0], [0], [1], [0, 0, 1, 1], [], []>} : vector<2x3200xf32>, vector<3200x128xf32>, vector<2x128xf32> -> vector<2x128xf32>
    %c0_11 = arith.constant 0 : index
    %c0_12 = arith.constant 0 : index
    %11 = vector.load %arg5[%c0_11, %c0_12] : memref<1x128xf32, #tpu.memory_space<vmem>>, vector<1x128xf32>
    %12 = vector.broadcast %11 : vector<1x128xf32> to vector<2x128xf32>
    %13 = arith.addf %10, %12 : vector<2x128xf32>
    %cst_13 = arith.constant 0.000000e+00 : f32
    %14 = vector.broadcast %cst_13 : f32 to vector<2x128xf32>
    %15 = arith.maximumf %13, %14 : vector<2x128xf32>
    %16 = arith.maximumf %7, %15 : vector<2x128xf32>
    %c0_14 = arith.constant 0 : index
    %c0_15 = arith.constant 0 : index
    %17 = vector.load %arg2[%c0_14, %c0_15] : memref<2x3200xf32, #tpu.memory_space<vmem>>, vector<2x3200xf32>
    %c0_16 = arith.constant 0 : index
    %c0_17 = arith.constant 0 : index
    %18 = vector.load %arg4[%c0_16, %c0_17] : memref<3200x128xf32, #tpu.memory_space<vmem>>, vector<3200x128xf32>
    %cst_18 = arith.constant dense<0.000000e+00> : vector<2x128xf32>
    %19 = tpu.matmul %17, %18, %cst_18 {dimension_numbers = #tpu.dot_dimension_numbers<[1], [0], [0], [1], [0, 0, 1, 1], [], []>} : vector<2x3200xf32>, vector<3200x128xf32>, vector<2x128xf32> -> vector<2x128xf32>
    %c0_19 = arith.constant 0 : index
    %c0_20 = arith.constant 0 : index
    %20 = vector.load %arg5[%c0_19, %c0_20] : memref<1x128xf32, #tpu.memory_space<vmem>>, vector<1x128xf32>
    %21 = vector.broadcast %20 : vector<1x128xf32> to vector<2x128xf32>
    %22 = arith.addf %19, %21 : vector<2x128xf32>
    %cst_21 = arith.constant 0.000000e+00 : f32
    %23 = vector.broadcast %cst_21 : f32 to vector<2x128xf32>
    %24 = arith.maximumf %22, %23 : vector<2x128xf32>
    %c0_22 = arith.constant 0 : index
    %c0_23 = arith.constant 0 : index
    %25 = vector.load %arg3[%c0_22, %c0_23] : memref<2x3200xf32, #tpu.memory_space<vmem>>, vector<2x3200xf32>
    %c0_24 = arith.constant 0 : index
    %c0_25 = arith.constant 0 : index
    %26 = vector.load %arg4[%c0_24, %c0_25] : memref<3200x128xf32, #tpu.memory_space<vmem>>, vector<3200x128xf32>
    %cst_26 = arith.constant dense<0.000000e+00> : vector<2x128xf32>
    %27 = tpu.matmul %25, %26, %cst_26 {dimension_numbers = #tpu.dot_dimension_numbers<[1], [0], [0], [1], [0, 0, 1, 1], [], []>} : vector<2x3200xf32>, vector<3200x128xf32>, vector<2x128xf32> -> vector<2x128xf32>
    %c0_27 = arith.constant 0 : index
    %c0_28 = arith.constant 0 : index
    %28 = vector.load %arg5[%c0_27, %c0_28] : memref<1x128xf32, #tpu.memory_space<vmem>>, vector<1x128xf32>
    %29 = vector.broadcast %28 : vector<1x128xf32> to vector<2x128xf32>
    %30 = arith.addf %27, %29 : vector<2x128xf32>
    %cst_29 = arith.constant 0.000000e+00 : f32
    %31 = vector.broadcast %cst_29 : f32 to vector<2x128xf32>
    %32 = arith.maximumf %30, %31 : vector<2x128xf32>
    %33 = arith.maximumf %24, %32 : vector<2x128xf32>
    %34 = arith.maximumf %16, %33 : vector<2x128xf32>
    %c0_30 = arith.constant 0 : index
    %c0_31 = arith.constant 0 : index
    %35 = vector.load %arg6[%c0_30, %c0_31] : memref<2x64xf32, #tpu.memory_space<vmem>>, vector<2x64xf32>
    %c0_32 = arith.constant 0 : index
    %c0_33 = arith.constant 0 : index
    %36 = vector.load %arg7[%c0_32, %c0_33] : memref<64x500xf32, #tpu.memory_space<vmem>>, vector<64x500xf32>
    %cst_34 = arith.constant dense<0.000000e+00> : vector<2x500xf32>
    %37 = tpu.matmul %35, %36, %cst_34 {dimension_numbers = #tpu.dot_dimension_numbers<[1], [0], [0], [1], [0, 0, 1, 1], [], []>} : vector<2x64xf32>, vector<64x500xf32>, vector<2x500xf32> -> vector<2x500xf32>
    %c0_35 = arith.constant 0 : index
    %c0_36 = arith.constant 0 : index
    %38 = vector.load %arg9[%c0_35, %c0_36] : memref<1x500xf32, #tpu.memory_space<vmem>>, vector<1x500xf32>
    %39 = vector.broadcast %38 : vector<1x500xf32> to vector<2x500xf32>
    %40 = arith.addf %37, %39 : vector<2x500xf32>
    %c0_37 = arith.constant 0 : index
    %c0_38 = arith.constant 0 : index
    %41 = vector.load %arg8[%c0_37, %c0_38] : memref<128x500xf32, #tpu.memory_space<vmem>>, vector<128x500xf32>
    %cst_39 = arith.constant dense<0.000000e+00> : vector<2x500xf32>
    %42 = tpu.matmul %34, %41, %cst_39 {dimension_numbers = #tpu.dot_dimension_numbers<[1], [0], [0], [1], [0, 0, 1, 1], [], []>} : vector<2x128xf32>, vector<128x500xf32>, vector<2x500xf32> -> vector<2x500xf32>
    %43 = arith.addf %40, %42 : vector<2x500xf32>
    %cst_40 = arith.constant 0.000000e+00 : f32
    %44 = vector.broadcast %cst_40 : f32 to vector<2x500xf32>
    %45 = arith.maximumf %43, %44 : vector<2x500xf32>
    %c0_41 = arith.constant 0 : index
    %c0_42 = arith.constant 0 : index
    %46 = vector.load %arg10[%c0_41, %c0_42] : memref<500x250xf32, #tpu.memory_space<vmem>>, vector<500x250xf32>
    %cst_43 = arith.constant dense<0.000000e+00> : vector<2x250xf32>
    %47 = tpu.matmul %45, %46, %cst_43 {dimension_numbers = #tpu.dot_dimension_numbers<[1], [0], [0], [1], [0, 0, 1, 1], [], []>} : vector<2x500xf32>, vector<500x250xf32>, vector<2x250xf32> -> vector<2x250xf32>
    %c0_44 = arith.constant 0 : index
    %c0_45 = arith.constant 0 : index
    %48 = vector.load %arg11[%c0_44, %c0_45] : memref<1x250xf32, #tpu.memory_space<vmem>>, vector<1x250xf32>
    %49 = vector.broadcast %48 : vector<1x250xf32> to vector<2x250xf32>
    %50 = arith.addf %47, %49 : vector<2x250xf32>
    %51 = arith.negf %50 : vector<2x250xf32>
    %52 = math.exp %51 : vector<2x250xf32>
    %cst_46 = arith.constant 1.000000e+00 : f32
    %53 = vector.broadcast %cst_46 : f32 to vector<2x250xf32>
    %54 = arith.addf %53, %52 : vector<2x250xf32>
    %55 = arith.divf %53, %54 : vector<2x250xf32>
    %c0_47 = arith.constant 0 : index
    %c0_48 = arith.constant 0 : index
    %56 = vector.load %arg14[%c0_47, %c0_48] : memref<2x250xf32, #tpu.memory_space<vmem>>, vector<2x250xf32>
    tpu.vector_store %arg14[%c0_47, %c0_48], %55 {strides = array<i32>} : memref<2x250xf32, #tpu.memory_space<vmem>>, vector<2x250xf32>,
    %c0_49 = arith.constant 0 : index
    %c0_50 = arith.constant 0 : index
    %57 = vector.load %arg12[%c0_49, %c0_50] : memref<250x10xf32, #tpu.memory_space<vmem>>, vector<250x10xf32>
    %cst_51 = arith.constant dense<0.000000e+00> : vector<2x10xf32>
    %58 = tpu.matmul %55, %57, %cst_51 {dimension_numbers = #tpu.dot_dimension_numbers<[1], [0], [0], [1], [0, 0, 1, 1], [], []>} : vector<2x250xf32>, vector<250x10xf32>, vector<2x10xf32> -> vector<2x10xf32>
    %c0_52 = arith.constant 0 : index
    %c0_53 = arith.constant 0 : index
    %59 = vector.load %arg13[%c0_52, %c0_53] : memref<1x10xf32, #tpu.memory_space<vmem>>, vector<1x10xf32>
    %60 = vector.broadcast %59 : vector<1x10xf32> to vector<2x10xf32>
    %61 = arith.addf %58, %60 : vector<2x10xf32>
    %c0_54 = arith.constant 0 : index
    %c0_55 = arith.constant 0 : index
    %62 = vector.load %arg15[%c0_54, %c0_55] : memref<2x10xf32, #tpu.memory_space<vmem>>, vector<2x10xf32>
    tpu.vector_store %arg15[%c0_54, %c0_55], %61 {strides = array<i32>} : memref<2x10xf32, #tpu.memory_space<vmem>>, vector<2x10xf32>,
    return
  }
}

</mosaic_0001>

<llo_original>
// kernel: hashing_two_branch_forward.4
$region0: #{hashing_two_branch_forward.4}
  #allocation0 [shape = 'u32[]', space=smem, size = 0x4, offset = 0x4, fixed_abs, tag = 'smem constant byte address 0x4 - core index']
  #allocation1 [shape = 'u32[144,128]{1,0:T(1,128)}', space=vmem, size = 0x12000, scoped, tag = 'internal scratch']
  %s0 = inlined_call_operand.vmem [shape: f32[72,25], index: 0, kind: input, shape index: {}]
  %s1 = inlined_call_operand.vmem [shape: f32[72,25], index: 1, kind: input, shape index: {}]
  %s2 = inlined_call_operand.vmem [shape: f32[72,25], index: 2, kind: input, shape index: {}]
  %s3 = inlined_call_operand.vmem [shape: f32[72,25], index: 3, kind: input, shape index: {}]
  %s4 = inlined_call_operand.vmem [shape: f32[25,128], index: 4, kind: input, shape index: {}]
  %s5 = inlined_call_operand.vmem [shape: f32[1,128], index: 5, kind: input, shape index: {}]
  %s6 = inlined_call_operand.vmem [shape: f32[72,128], index: 6, kind: output, shape index: {}]
  %s7 = sld [smem:[#allocation0]]
  $region34: #{hashing_two_branch_forward.4} parent=0
    _
  %s9 = ssub.s32 1, %s7
  %s10 = scalar_select 0, %s9, %s7
  // Predicated region
  $region2: #{hashing_two_branch_forward.4} parent=0 // pred_check
    _
  $region3: #{hashing_two_branch_forward.4} parent=0 // pred_check_branch
    %12 = sbr.rel (0) target = $region5
  $region4: #{hashing_two_branch_forward.4} parent=0 // pred_region
    _
  $region5: #{hashing_two_branch_forward.4} parent=0 // pred_fallthru
    _
  // Predicated region
  $region6: #{hashing_two_branch_forward.4} parent=0 // pred_check
    _
  $region7: #{hashing_two_branch_forward.4} parent=0 // pred_check_branch
    %14 = sbr.rel (0) target = $region9
  $region8: #{hashing_two_branch_forward.4} parent=0 // pred_region
    _
  $region9: #{hashing_two_branch_forward.4} parent=0 // pred_fallthru
    _
  // Predicated region
  $region10: #{hashing_two_branch_forward.4} parent=0 // pred_check
    _
  $region11: #{hashing_two_branch_forward.4} parent=0 // pred_check_branch
    %16 = sbr.rel (0) target = $region13
  $region12: #{hashing_two_branch_forward.4} parent=0 // pred_region
    _
  $region13: #{hashing_two_branch_forward.4} parent=0 // pred_fallthru
    _
  // Predicated region
  $region14: #{hashing_two_branch_forward.4} parent=0 // pred_check
    _
  $region15: #{hashing_two_branch_forward.4} parent=0 // pred_check_branch
    %18 = sbr.rel (0) target = $region17
  $region16: #{hashing_two_branch_forward.4} parent=0 // pred_region
    _
  $region17: #{hashing_two_branch_forward.4} parent=0 // pred_fallthru
    _
  // Predicated region
  $region18: #{hashing_two_branch_forward.4} parent=0 // pred_check
    _
  $region19: #{hashing_two_branch_forward.4} parent=0 // pred_check_branch
    %20 = sbr.rel (0) target = $region21
  $region20: #{hashing_two_branch_forward.4} parent=0 // pred_region
    _
  $region21: #{hashing_two_branch_forward.4} parent=0 // pred_fallthru
    _
  // Predicated region
  $region22: #{hashing_two_branch_forward.4} parent=0 // pred_check
    _
  $region23: #{hashing_two_branch_forward.4} parent=0 // pred_check_branch
    %22 = sbr.rel (0) target = $region25
  $region24: #{hashing_two_branch_forward.4} parent=0 // pred_region
    _
  $region25: #{hashing_two_branch_forward.4} parent=0 // pred_fallthru
    _
  %v23 = vld [vmem:[%s0] sm:$0xff]
  %v24 = vld [vmem:[%s0 + $0x8] sm:$0xff]
  %v25 = vld [vmem:[%s0 + $0x10] sm:$0xff]
  %v26 = vld [vmem:[%s0 + $0x18] sm:$0xff]
  %v27 = vld [vmem:[%s0 + $0x20] sm:$0xff]
  %v28 = vld [vmem:[%s0 + $0x28] sm:$0xff]
  %v29 = vld [vmem:[%s0 + $0x30] sm:$0xff]
  %v30 = vld [vmem:[%s0 + $0x38] sm:$0xff]
  %v31 = vld [vmem:[%s0 + $0x40] sm:$0xff]
  %v32 = vld [vmem:[%s4] sm:$0xff]
  %v33 = vld [vmem:[%s4 + $0x8] sm:$0xff]
  %v34 = vld [vmem:[%s4 + $0x10] sm:$0xff]
  %v35 = vld [vmem:[%s4 + $0x18] sm:$0x1]
  %v36 = vld [vmem:[%s5] sm:$0x1]
  %v38 = vlaneseq
  %v39 = vshrl.u32 %v38, 7
  %v40 = vsub.s32 0, %v39
  %v41 = vrot.slane %v36, %v40
  %vm43 = vcmask 203776
  %v45 = vsel %vm43, %v23, 0
  %v48 = vsel %vm43, %v24, 0
  %v51 = vsel %vm43, %v25, 0
  %v54 = vsel %vm43, %v26, 0
  %v57 = vsel %vm43, %v27, 0
  %v60 = vsel %vm43, %v28, 0
  %v63 = vsel %vm43, %v29, 0
  %v66 = vsel %vm43, %v30, 0
  %v69 = vsel %vm43, %v31, 0
  %vm71 = vcmask 1040384
  %v73 = vsel %vm71, %v35, 0
  %75 = vmatprep.subr.mxu0 0.0
  %76 = vmatpush1.msra.mxu0 0.0
  %77 = vmatprep.subr.mxu0 0.0
  %78 = vmatpush1.msra.mxu0 0.0
  %79 = vmatprep.subr.mxu0 0.0
  %80 = vmatpush1.msra.mxu0 0.0
  %81 = vmatprep.subr.mxu0 0.0
  %82 = vmatpush1.msra.mxu0 0.0
  %83 = vmatprep.subr.mxu0 0.0
  %84 = vmatpush1.msra.mxu0 0.0
  %85 = vmatprep.subr.mxu0 0.0
  %86 = vmatpush1.msra.mxu0 0.0
  %87 = vmatprep.subr.mxu0 0.0
  %88 = vmatpush1.msra.mxu0 0.0
  %89 = vmatprep.subr.mxu0 0.0
  %90 = vmatpush1.msra.mxu0 0.0
  %91 = vmatprep.subr.mxu0 0.0
  %92 = vmatpush1.msra.mxu0 0.0
  %93 = vmatprep.subr.mxu0 0.0
  %94 = vmatpush1.msra.mxu0 0.0
  %95 = vmatprep.subr.mxu0 0.0
  %96 = vmatpush1.msra.mxu0 0.0
  %97 = vmatprep.subr.mxu0 0.0
  %98 = vmatpush1.msra.mxu0 0.0
  %99 = vmatprep.subr.mxu0 0.0
  %100 = vmatpush1.msra.mxu0 %v73
  %101 = vmatprep.subr.mxu0 0.0
  %102 = vmatpush1.msra.mxu0 %v34
  %103 = vmatprep.subr.mxu0 0.0
  %104 = vmatpush1.msra.mxu0 %v33
  %105 = vmatprep.subr.mxu0 0.0
  %106 = vmatpush1.msra.mxu0 %v32
  %107 = vmatprep.subr.mxu0 0.0
  %108 = vmatpush2.msra.mxu0 0.0
  %109 = vmatprep.subr.mxu0 0.0
  %110 = vmatpush2.msra.mxu0 0.0
  %111 = vmatprep.subr.mxu0 0.0
  %112 = vmatpush2.msra.mxu0 0.0
  %113 = vmatprep.subr.mxu0 0.0
  %114 = vmatpush2.msra.mxu0 0.0
  %115 = vmatprep.subr.mxu0 0.0
  %116 = vmatpush2.msra.mxu0 0.0
  %117 = vmatprep.subr.mxu0 0.0
  %118 = vmatpush2.msra.mxu0 0.0
  %119 = vmatprep.subr.mxu0 0.0
  %120 = vmatpush2.msra.mxu0 0.0
  %121 = vmatprep.subr.mxu0 0.0
  %122 = vmatpush2.msra.mxu0 0.0
  %123 = vmatprep.subr.mxu0 0.0
  %124 = vmatpush2.msra.mxu0 0.0
  %125 = vmatprep.subr.mxu0 0.0
  %126 = vmatpush2.msra.mxu0 0.0
  %127 = vmatprep.subr.mxu0 0.0
  %128 = vmatpush2.msra.mxu0 0.0
  %129 = vmatprep.subr.mxu0 0.0
  %130 = vmatpush2.msra.mxu0 0.0
  %131 = vmatprep.subr.mxu0 0.0
  %132 = vmatpush2.msra.mxu0 0.0
  %133 = vmatprep.subr.mxu0 0.0
  %134 = vmatpush2.msra.mxu0 0.0
  %135 = vmatprep.subr.mxu0 0.0
  %136 = vmatpush2.msra.mxu0 0.0
  %137 = vmatprep.subr.mxu0 0.0
  %138 = vmatpush2.msra.mxu0 0.0
  %139 = vmatprep.mubr.f32.mxu0 0.0
  %140 = vmatmul.mubr.f32.gmra.mxu0 %v45
  %v141 = vpop.f32.mrf.mxu0
  %v142 = vadd.f32 %v41, %v141
  %v143 = vpop.f32.mrf.mxu0
  %144 = vmatprep.mubr.f32.mxu0 0.0
  %145 = vmatmul.mubr.f32.gmra.mxu0 %v48
  %v146 = vpop.f32.mrf.mxu0
  %v147 = vadd.f32 %v41, %v146
  %v148 = vpop.f32.mrf.mxu0
  %149 = vmatprep.mubr.f32.mxu0 0.0
  %150 = vmatmul.mubr.f32.gmra.mxu0 %v51
  %v151 = vpop.f32.mrf.mxu0
  %v152 = vadd.f32 %v41, %v151
  %v153 = vpop.f32.mrf.mxu0
  %154 = vmatprep.mubr.f32.mxu0 0.0
  %155 = vmatmul.mubr.f32.gmra.mxu0 %v54
  %v156 = vpop.f32.mrf.mxu0
  %v157 = vadd.f32 %v41, %v156
  %v158 = vpop.f32.mrf.mxu0
  %159 = vmatprep.mubr.f32.mxu0 0.0
  %160 = vmatmul.mubr.f32.gmra.mxu0 %v57
  %v161 = vpop.f32.mrf.mxu0
  %v162 = vadd.f32 %v41, %v161
  %v163 = vpop.f32.mrf.mxu0
  %164 = vmatprep.mubr.f32.mxu0 0.0
  %165 = vmatmul.mubr.f32.gmra.mxu0 %v60
  %v166 = vpop.f32.mrf.mxu0
  %v167 = vadd.f32 %v41, %v166
  %v168 = vpop.f32.mrf.mxu0
  %169 = vmatprep.mubr.f32.mxu0 0.0
  %170 = vmatmul.mubr.f32.gmra.mxu0 %v63
  %v171 = vpop.f32.mrf.mxu0
  %v172 = vadd.f32 %v41, %v171
  %v173 = vpop.f32.mrf.mxu0
  %174 = vmatprep.mubr.f32.mxu0 0.0
  %175 = vmatmul.mubr.f32.gmra.mxu0 %v66
  %v176 = vpop.f32.mrf.mxu0
  %v177 = vadd.f32 %v41, %v176
  %v178 = vpop.f32.mrf.mxu0
  %179 = vmatprep.mubr.f32.mxu0 0.0
  %180 = vmatmul.mubr.f32.gmra.mxu0 %v69
  %v181 = vpop.f32.mrf.mxu0
  %v182 = vadd.f32 %v41, %v181
  %v183 = vpop.f32.mrf.mxu0
  %184 = vdwg.mxu0
  %v185 = vmax.f32 %v142, 0.0
  %v186 = vmax.f32 %v147, 0.0
  %v187 = vmax.f32 %v152, 0.0
  %v188 = vmax.f32 %v157, 0.0
  %v189 = vmax.f32 %v162, 0.0
  %v190 = vmax.f32 %v167, 0.0
  %v191 = vmax.f32 %v172, 0.0
  %v192 = vmax.f32 %v177, 0.0
  %v193 = vmax.f32 %v182, 0.0
  %v194 = vld [vmem:[%s1] sm:$0xff]
  %v195 = vld [vmem:[%s1 + $0x8] sm:$0xff]
  %v196 = vld [vmem:[%s1 + $0x10] sm:$0xff]
  %v197 = vld [vmem:[%s1 + $0x18] sm:$0xff]
  %v198 = vld [vmem:[%s1 + $0x20] sm:$0xff]
  %v199 = vld [vmem:[%s1 + $0x28] sm:$0xff]
  %v200 = vld [vmem:[%s1 + $0x30] sm:$0xff]
  %v201 = vld [vmem:[%s1 + $0x38] sm:$0xff]
  %v202 = vld [vmem:[%s1 + $0x40] sm:$0xff]
  %v204 = vsel %vm43, %v194, 0
  %v207 = vsel %vm43, %v195, 0
  %v210 = vsel %vm43, %v196, 0
  %v213 = vsel %vm43, %v197, 0
  %v216 = vsel %vm43, %v198, 0
  %v219 = vsel %vm43, %v199, 0
  %v222 = vsel %vm43, %v200, 0
  %v225 = vsel %vm43, %v201, 0
  %v228 = vsel %vm43, %v202, 0
  %230 = vmatprep.subr.mxu0 0.0
  %231 = vmatpush1.msra.mxu0 0.0
  %232 = vmatprep.subr.mxu0 0.0
  %233 = vmatpush1.msra.mxu0 0.0
  %234 = vmatprep.subr.mxu0 0.0
  %235 = vmatpush1.msra.mxu0 0.0
  %236 = vmatprep.subr.mxu0 0.0
  %237 = vmatpush1.msra.mxu0 0.0
  %238 = vmatprep.subr.mxu0 0.0
  %239 = vmatpush1.msra.mxu0 0.0
  %240 = vmatprep.subr.mxu0 0.0
  %241 = vmatpush1.msra.mxu0 0.0
  %242 = vmatprep.subr.mxu0 0.0
  %243 = vmatpush1.msra.mxu0 0.0
  %244 = vmatprep.subr.mxu0 0.0
  %245 = vmatpush1.msra.mxu0 0.0
  %246 = vmatprep.subr.mxu0 0.0
  %247 = vmatpush1.msra.mxu0 0.0
  %248 = vmatprep.subr.mxu0 0.0
  %249 = vmatpush1.msra.mxu0 0.0
  %250 = vmatprep.subr.mxu0 0.0
  %251 = vmatpush1.msra.mxu0 0.0
  %252 = vmatprep.subr.mxu0 0.0
  %253 = vmatpush1.msra.mxu0 0.0
  %254 = vmatprep.subr.mxu0 0.0
  %255 = vmatpush1.msra.mxu0 %v73
  %256 = vmatprep.subr.mxu0 0.0
  %257 = vmatpush1.msra.mxu0 %v34
  %258 = vmatprep.subr.mxu0 0.0
  %259 = vmatpush1.msra.mxu0 %v33
  %260 = vmatprep.subr.mxu0 0.0
  %261 = vmatpush1.msra.mxu0 %v32
  %262 = vmatprep.subr.mxu0 0.0
  %263 = vmatpush2.msra.mxu0 0.0
  %264 = vmatprep.subr.mxu0 0.0
  %265 = vmatpush2.msra.mxu0 0.0
  %266 = vmatprep.subr.mxu0 0.0
  %267 = vmatpush2.msra.mxu0 0.0
  %268 = vmatprep.subr.mxu0 0.0
  %269 = vmatpush2.msra.mxu0 0.0
  %270 = vmatprep.subr.mxu0 0.0
  %271 = vmatpush2.msra.mxu0 0.0
  %272 = vmatprep.subr.mxu0 0.0
  %273 = vmatpush2.msra.mxu0 0.0
  %274 = vmatprep.subr.mxu0 0.0
  %275 = vmatpush2.msra.mxu0 0.0
  %276 = vmatprep.subr.mxu0 0.0
  %277 = vmatpush2.msra.mxu0 0.0
  %278 = vmatprep.subr.mxu0 0.0
  %279 = vmatpush2.msra.mxu0 0.0
  %280 = vmatprep.subr.mxu0 0.0
  %281 = vmatpush2.msra.mxu0 0.0
  %282 = vmatprep.subr.mxu0 0.0
  %283 = vmatpush2.msra.mxu0 0.0
  %284 = vmatprep.subr.mxu0 0.0
  %285 = vmatpush2.msra.mxu0 0.0
  %286 = vmatprep.subr.mxu0 0.0
  %287 = vmatpush2.msra.mxu0 0.0
  %288 = vmatprep.subr.mxu0 0.0
  %289 = vmatpush2.msra.mxu0 0.0
  %290 = vmatprep.subr.mxu0 0.0
  %291 = vmatpush2.msra.mxu0 0.0
  %292 = vmatprep.subr.mxu0 0.0
  %293 = vmatpush2.msra.mxu0 0.0
  %294 = vmatprep.mubr.f32.mxu0 0.0
  %295 = vmatmul.mubr.f32.gmra.mxu0 %v204
  %v296 = vpop.f32.mrf.mxu0
  %v297 = vadd.f32 %v41, %v296
  %v298 = vpop.f32.mrf.mxu0
  %299 = vmatprep.mubr.f32.mxu0 0.0
  %300 = vmatmul.mubr.f32.gmra.mxu0 %v207
  %v301 = vpop.f32.mrf.mxu0
  %v302 = vadd.f32 %v41, %v301
  %v303 = vpop.f32.mrf.mxu0
  %304 = vmatprep.mubr.f32.mxu0 0.0
  %305 = vmatmul.mubr.f32.gmra.mxu0 %v210
  %v306 = vpop.f32.mrf.mxu0
  %v307 = vadd.f32 %v41, %v306
  %v308 = vpop.f32.mrf.mxu0
  %309 = vmatprep.mubr.f32.mxu0 0.0
  %310 = vmatmul.mubr.f32.gmra.mxu0 %v213
  %v311 = vpop.f32.mrf.mxu0
  %v312 = vadd.f32 %v41, %v311
  %v313 = vpop.f32.mrf.mxu0
  %314 = vmatprep.mubr.f32.mxu0 0.0
  %315 = vmatmul.mubr.f32.gmra.mxu0 %v216
  %v316 = vpop.f32.mrf.mxu0
  %v317 = vadd.f32 %v41, %v316
  %v318 = vpop.f32.mrf.mxu0
  %319 = vmatprep.mubr.f32.mxu0 0.0
  %320 = vmatmul.mubr.f32.gmra.mxu0 %v219
  %v321 = vpop.f32.mrf.mxu0
  %v322 = vadd.f32 %v41, %v321
  %v323 = vpop.f32.mrf.mxu0
  %324 = vmatprep.mubr.f32.mxu0 0.0
  %325 = vmatmul.mubr.f32.gmra.mxu0 %v222
  %v326 = vpop.f32.mrf.mxu0
  %v327 = vadd.f32 %v41, %v326
  %v328 = vpop.f32.mrf.mxu0
  %329 = vmatprep.mubr.f32.mxu0 0.0
  %330 = vmatmul.mubr.f32.gmra.mxu0 %v225
  %v331 = vpop.f32.mrf.mxu0
  %v332 = vadd.f32 %v41, %v331
  %v333 = vpop.f32.mrf.mxu0
  %334 = vmatprep.mubr.f32.mxu0 0.0
  %335 = vmatmul.mubr.f32.gmra.mxu0 %v228
  %v336 = vpop.f32.mrf.mxu0
  %v337 = vadd.f32 %v41, %v336
  %v338 = vpop.f32.mrf.mxu0
  %339 = vdwg.mxu0
  %v340 = vmax.f32 %v297, 0.0
  %v341 = vmax.f32 %v302, 0.0
  %v342 = vmax.f32 %v307, 0.0
  %v343 = vmax.f32 %v312, 0.0
  %v344 = vmax.f32 %v317, 0.0
  %v345 = vmax.f32 %v322, 0.0
  %v346 = vmax.f32 %v327, 0.0
  %v347 = vmax.f32 %v332, 0.0
  %v348 = vmax.f32 %v337, 0.0
  %v349 = vmax.f32 %v185, %v340
  %v350 = vmax.f32 %v186, %v341
  %v351 = vmax.f32 %v187, %v342
  %v352 = vmax.f32 %v188, %v343
  %v353 = vmax.f32 %v189, %v344
  %v354 = vmax.f32 %v190, %v345
  %v355 = vmax.f32 %v191, %v346
  %v356 = vmax.f32 %v192, %v347
  %v357 = vmax.f32 %v193, %v348
  %v358 = vld [vmem:[%s2] sm:$0xff]
  %v359 = vld [vmem:[%s2 + $0x8] sm:$0xff]
  %v360 = vld [vmem:[%s2 + $0x10] sm:$0xff]
  %v361 = vld [vmem:[%s2 + $0x18] sm:$0xff]
  %v362 = vld [vmem:[%s2 + $0x20] sm:$0xff]
  %v363 = vld [vmem:[%s2 + $0x28] sm:$0xff]
  %v364 = vld [vmem:[%s2 + $0x30] sm:$0xff]
  %v365 = vld [vmem:[%s2 + $0x38] sm:$0xff]
  %v366 = vld [vmem:[%s2 + $0x40] sm:$0xff]
  %v368 = vsel %vm43, %v358, 0
  %v371 = vsel %vm43, %v359, 0
  %v374 = vsel %vm43, %v360, 0
  %v377 = vsel %vm43, %v361, 0
  %v380 = vsel %vm43, %v362, 0
  %v383 = vsel %vm43, %v363, 0
  %v386 = vsel %vm43, %v364, 0
  %v389 = vsel %vm43, %v365, 0
  %v392 = vsel %vm43, %v366, 0
  %394 = vmatprep.subr.mxu0 0.0
  %395 = vmatpush1.msra.mxu0 0.0
  %396 = vmatprep.subr.mxu0 0.0
  %397 = vmatpush1.msra.mxu0 0.0
  %398 = vmatprep.subr.mxu0 0.0
  %399 = vmatpush1.msra.mxu0 0.0
  %400 = vmatprep.subr.mxu0 0.0
  %401 = vmatpush1.msra.mxu0 0.0
  %402 = vmatprep.subr.mxu0 0.0
  %403 = vmatpush1.msra.mxu0 0.0
  %404 = vmatprep.subr.mxu0 0.0
  %405 = vmatpush1.msra.mxu0 0.0
  %406 = vmatprep.subr.mxu0 0.0
  %407 = vmatpush1.msra.mxu0 0.0
  %408 = vmatprep.subr.mxu0 0.0
  %409 = vmatpush1.msra.mxu0 0.0
  %410 = vmatprep.subr.mxu0 0.0
  %411 = vmatpush1.msra.mxu0 0.0
  %412 = vmatprep.subr.mxu0 0.0
  %413 = vmatpush1.msra.mxu0 0.0
  %414 = vmatprep.subr.mxu0 0.0
  %415 = vmatpush1.msra.mxu0 0.0
  %416 = vmatprep.subr.mxu0 0.0
  %417 = vmatpush1.msra.mxu0 0.0
  %418 = vmatprep.subr.mxu0 0.0
  %419 = vmatpush1.msra.mxu0 %v73
  %420 = vmatprep.subr.mxu0 0.0
  %421 = vmatpush1.msra.mxu0 %v34
  %422 = vmatprep.subr.mxu0 0.0
  %423 = vmatpush1.msra.mxu0 %v33
  %424 = vmatprep.subr.mxu0 0.0
  %425 = vmatpush1.msra.mxu0 %v32
  %426 = vmatprep.subr.mxu0 0.0
  %427 = vmatpush2.msra.mxu0 0.0
  %428 = vmatprep.subr.mxu0 0.0
  %429 = vmatpush2.msra.mxu0 0.0
  %430 = vmatprep.subr.mxu0 0.0
  %431 = vmatpush2.msra.mxu0 0.0
  %432 = vmatprep.subr.mxu0 0.0
  %433 = vmatpush2.msra.mxu0 0.0
  %434 = vmatprep.subr.mxu0 0.0
  %435 = vmatpush2.msra.mxu0 0.0
  %436 = vmatprep.subr.mxu0 0.0
  %437 = vmatpush2.msra.mxu0 0.0
  %438 = vmatprep.subr.mxu0 0.0
  %439 = vmatpush2.msra.mxu0 0.0
  %440 = vmatprep.subr.mxu0 0.0
  %441 = vmatpush2.msra.mxu0 0.0
  %442 = vmatprep.subr.mxu0 0.0
  %443 = vmatpush2.msra.mxu0 0.0
  %444 = vmatprep.subr.mxu0 0.0
  %445 = vmatpush2.msra.mxu0 0.0
  %446 = vmatprep.subr.mxu0 0.0
  %447 = vmatpush2.msra.mxu0 0.0
  %448 = vmatprep.subr.mxu0 0.0
  %449 = vmatpush2.msra.mxu0 0.0
  %450 = vmatprep.subr.mxu0 0.0
  %451 = vmatpush2.msra.mxu0 0.0
  %452 = vmatprep.subr.mxu0 0.0
  %453 = vmatpush2.msra.mxu0 0.0
  %454 = vmatprep.subr.mxu0 0.0
  %455 = vmatpush2.msra.mxu0 0.0
  %456 = vmatprep.subr.mxu0 0.0
  %457 = vmatpush2.msra.mxu0 0.0
  %458 = vmatprep.mubr.f32.mxu0 0.0
  %459 = vmatmul.mubr.f32.gmra.mxu0 %v368
  %v460 = vpop.f32.mrf.mxu0
  %v461 = vadd.f32 %v41, %v460
  %v462 = vpop.f32.mrf.mxu0
  %463 = vmatprep.mubr.f32.mxu0 0.0
  %464 = vmatmul.mubr.f32.gmra.mxu0 %v371
  %v465 = vpop.f32.mrf.mxu0
  %v466 = vadd.f32 %v41, %v465
  %v467 = vpop.f32.mrf.mxu0
  %468 = vmatprep.mubr.f32.mxu0 0.0
  %469 = vmatmul.mubr.f32.gmra.mxu0 %v374
  %v470 = vpop.f32.mrf.mxu0
  %v471 = vadd.f32 %v41, %v470
  %v472 = vpop.f32.mrf.mxu0
  %473 = vmatprep.mubr.f32.mxu0 0.0
  %474 = vmatmul.mubr.f32.gmra.mxu0 %v377
  %v475 = vpop.f32.mrf.mxu0
  %v476 = vadd.f32 %v41, %v475
  %v477 = vpop.f32.mrf.mxu0
  %478 = vmatprep.mubr.f32.mxu0 0.0
  %479 = vmatmul.mubr.f32.gmra.mxu0 %v380
  %v480 = vpop.f32.mrf.mxu0
  %v481 = vadd.f32 %v41, %v480
  %v482 = vpop.f32.mrf.mxu0
  %483 = vmatprep.mubr.f32.mxu0 0.0
  %484 = vmatmul.mubr.f32.gmra.mxu0 %v383
  %v485 = vpop.f32.mrf.mxu0
  %v486 = vadd.f32 %v41, %v485
  %v487 = vpop.f32.mrf.mxu0
  %488 = vmatprep.mubr.f32.mxu0 0.0
  %489 = vmatmul.mubr.f32.gmra.mxu0 %v386
  %v490 = vpop.f32.mrf.mxu0
  %v491 = vadd.f32 %v41, %v490
  %v492 = vpop.f32.mrf.mxu0
  %493 = vmatprep.mubr.f32.mxu0 0.0
  %494 = vmatmul.mubr.f32.gmra.mxu0 %v389
  %v495 = vpop.f32.mrf.mxu0
  %v496 = vadd.f32 %v41, %v495
  %v497 = vpop.f32.mrf.mxu0
  %498 = vmatprep.mubr.f32.mxu0 0.0
  %499 = vmatmul.mubr.f32.gmra.mxu0 %v392
  %v500 = vpop.f32.mrf.mxu0
  %v501 = vadd.f32 %v41, %v500
  %v502 = vpop.f32.mrf.mxu0
  %503 = vdwg.mxu0
  %v504 = vmax.f32 %v461, 0.0
  %v505 = vmax.f32 %v466, 0.0
  %v506 = vmax.f32 %v471, 0.0
  %v507 = vmax.f32 %v476, 0.0
  %v508 = vmax.f32 %v481, 0.0
  %v509 = vmax.f32 %v486, 0.0
  %v510 = vmax.f32 %v491, 0.0
  %v511 = vmax.f32 %v496, 0.0
  %v512 = vmax.f32 %v501, 0.0
  %v513 = vld [vmem:[%s3] sm:$0xff]
  %v514 = vld [vmem:[%s3 + $0x8] sm:$0xff]
  %v515 = vld [vmem:[%s3 + $0x10] sm:$0xff]
  %v516 = vld [vmem:[%s3 + $0x18] sm:$0xff]
  %v517 = vld [vmem:[%s3 + $0x20] sm:$0xff]
  %v518 = vld [vmem:[%s3 + $0x28] sm:$0xff]
  %v519 = vld [vmem:[%s3 + $0x30] sm:$0xff]
  %v520 = vld [vmem:[%s3 + $0x38] sm:$0xff]
  %v521 = vld [vmem:[%s3 + $0x40] sm:$0xff]
  %v523 = vsel %vm43, %v513, 0
  %v526 = vsel %vm43, %v514, 0
  %v529 = vsel %vm43, %v515, 0
  %v532 = vsel %vm43, %v516, 0
  %v535 = vsel %vm43, %v517, 0
  %v538 = vsel %vm43, %v518, 0
  %v541 = vsel %vm43, %v519, 0
  %v544 = vsel %vm43, %v520, 0
  %v547 = vsel %vm43, %v521, 0
  %549 = vmatprep.subr.mxu0 0.0
  %550 = vmatpush1.msra.mxu0 0.0
  %551 = vmatprep.subr.mxu0 0.0
  %552 = vmatpush1.msra.mxu0 0.0
  %553 = vmatprep.subr.mxu0 0.0
  %554 = vmatpush1.msra.mxu0 0.0
  %555 = vmatprep.subr.mxu0 0.0
  %556 = vmatpush1.msra.mxu0 0.0
  %557 = vmatprep.subr.mxu0 0.0
  %558 = vmatpush1.msra.mxu0 0.0
  %559 = vmatprep.subr.mxu0 0.0
  %560 = vmatpush1.msra.mxu0 0.0
  %561 = vmatprep.subr.mxu0 0.0
  %562 = vmatpush1.msra.mxu0 0.0
  %563 = vmatprep.subr.mxu0 0.0
  %564 = vmatpush1.msra.mxu0 0.0
  %565 = vmatprep.subr.mxu0 0.0
  %566 = vmatpush1.msra.mxu0 0.0
  %567 = vmatprep.subr.mxu0 0.0
  %568 = vmatpush1.msra.mxu0 0.0
  %569 = vmatprep.subr.mxu0 0.0
  %570 = vmatpush1.msra.mxu0 0.0
  %571 = vmatprep.subr.mxu0 0.0
  %572 = vmatpush1.msra.mxu0 0.0
  %573 = vmatprep.subr.mxu0 0.0
  %574 = vmatpush1.msra.mxu0 %v73
  %575 = vmatprep.subr.mxu0 0.0
  %576 = vmatpush1.msra.mxu0 %v34
  %577 = vmatprep.subr.mxu0 0.0
  %578 = vmatpush1.msra.mxu0 %v33
  %579 = vmatprep.subr.mxu0 0.0
  %580 = vmatpush1.msra.mxu0 %v32
  %581 = vmatprep.subr.mxu0 0.0
  %582 = vmatpush2.msra.mxu0 0.0
  %583 = vmatprep.subr.mxu0 0.0
  %584 = vmatpush2.msra.mxu0 0.0
  %585 = vmatprep.subr.mxu0 0.0
  %586 = vmatpush2.msra.mxu0 0.0
  %587 = vmatprep.subr.mxu0 0.0
  %588 = vmatpush2.msra.mxu0 0.0
  %589 = vmatprep.subr.mxu0 0.0
  %590 = vmatpush2.msra.mxu0 0.0
  %591 = vmatprep.subr.mxu0 0.0
  %592 = vmatpush2.msra.mxu0 0.0
  %593 = vmatprep.subr.mxu0 0.0
  %594 = vmatpush2.msra.mxu0 0.0
  %595 = vmatprep.subr.mxu0 0.0
  %596 = vmatpush2.msra.mxu0 0.0
  %597 = vmatprep.subr.mxu0 0.0
  %598 = vmatpush2.msra.mxu0 0.0
  %599 = vmatprep.subr.mxu0 0.0
  %600 = vmatpush2.msra.mxu0 0.0
  %601 = vmatprep.subr.mxu0 0.0
  %602 = vmatpush2.msra.mxu0 0.0
  %603 = vmatprep.subr.mxu0 0.0
  %604 = vmatpush2.msra.mxu0 0.0
  %605 = vmatprep.subr.mxu0 0.0
  %606 = vmatpush2.msra.mxu0 0.0
  %607 = vmatprep.subr.mxu0 0.0
  %608 = vmatpush2.msra.mxu0 0.0
  %609 = vmatprep.subr.mxu0 0.0
  %610 = vmatpush2.msra.mxu0 0.0
  %611 = vmatprep.subr.mxu0 0.0
  %612 = vmatpush2.msra.mxu0 0.0
  %613 = vmatprep.mubr.f32.mxu0 0.0
  %614 = vmatmul.mubr.f32.gmra.mxu0 %v523
  %v615 = vpop.f32.mrf.mxu0
  %v616 = vadd.f32 %v41, %v615
  %v617 = vpop.f32.mrf.mxu0
  %618 = vmatprep.mubr.f32.mxu0 0.0
  %619 = vmatmul.mubr.f32.gmra.mxu0 %v526
  %v620 = vpop.f32.mrf.mxu0
  %v621 = vadd.f32 %v41, %v620
  %v622 = vpop.f32.mrf.mxu0
  %623 = vmatprep.mubr.f32.mxu0 0.0
  %624 = vmatmul.mubr.f32.gmra.mxu0 %v529
  %v625 = vpop.f32.mrf.mxu0
  %v626 = vadd.f32 %v41, %v625
  %v627 = vpop.f32.mrf.mxu0
  %628 = vmatprep.mubr.f32.mxu0 0.0
  %629 = vmatmul.mubr.f32.gmra.mxu0 %v532
  %v630 = vpop.f32.mrf.mxu0
  %v631 = vadd.f32 %v41, %v630
  %v632 = vpop.f32.mrf.mxu0
  %633 = vmatprep.mubr.f32.mxu0 0.0
  %634 = vmatmul.mubr.f32.gmra.mxu0 %v535
  %v635 = vpop.f32.mrf.mxu0
  %v636 = vadd.f32 %v41, %v635
  %v637 = vpop.f32.mrf.mxu0
  %638 = vmatprep.mubr.f32.mxu0 0.0
  %639 = vmatmul.mubr.f32.gmra.mxu0 %v538
  %v640 = vpop.f32.mrf.mxu0
  %v641 = vadd.f32 %v41, %v640
  %v642 = vpop.f32.mrf.mxu0
  %643 = vmatprep.mubr.f32.mxu0 0.0
  %644 = vmatmul.mubr.f32.gmra.mxu0 %v541
  %v645 = vpop.f32.mrf.mxu0
  %v646 = vadd.f32 %v41, %v645
  %v647 = vpop.f32.mrf.mxu0
  %648 = vmatprep.mubr.f32.mxu0 0.0
  %649 = vmatmul.mubr.f32.gmra.mxu0 %v544
  %v650 = vpop.f32.mrf.mxu0
  %v651 = vadd.f32 %v41, %v650
  %v652 = vpop.f32.mrf.mxu0
  %653 = vmatprep.mubr.f32.mxu0 0.0
  %654 = vmatmul.mubr.f32.gmra.mxu0 %v547
  %v655 = vpop.f32.mrf.mxu0
  %v656 = vadd.f32 %v41, %v655
  %v657 = vpop.f32.mrf.mxu0
  %658 = vdwg.mxu0
  %v659 = vmax.f32 %v616, 0.0
  %v660 = vmax.f32 %v621, 0.0
  %v661 = vmax.f32 %v626, 0.0
  %v662 = vmax.f32 %v631, 0.0
  %v663 = vmax.f32 %v636, 0.0
  %v664 = vmax.f32 %v641, 0.0
  %v665 = vmax.f32 %v646, 0.0
  %v666 = vmax.f32 %v651, 0.0
  %v667 = vmax.f32 %v656, 0.0
  %v668 = vmax.f32 %v504, %v659
  %v669 = vmax.f32 %v505, %v660
  %v670 = vmax.f32 %v506, %v661
  %v671 = vmax.f32 %v507, %v662
  %v672 = vmax.f32 %v508, %v663
  %v673 = vmax.f32 %v509, %v664
  %v674 = vmax.f32 %v510, %v665
  %v675 = vmax.f32 %v511, %v666
  %v676 = vmax.f32 %v512, %v667
  %v677 = vmax.f32 %v349, %v668
  %v678 = vmax.f32 %v350, %v669
  %v679 = vmax.f32 %v351, %v670
  %v680 = vmax.f32 %v352, %v671
  %v681 = vmax.f32 %v353, %v672
  %v682 = vmax.f32 %v354, %v673
  %v683 = vmax.f32 %v355, %v674
  %v684 = vmax.f32 %v356, %v675
  %v685 = vmax.f32 %v357, %v676
  %686 = vst [vmem:[%s6] sm:$0xff] %v677
  %687 = vst [vmem:[%s6 + $0x8] sm:$0xff] %v678
  %688 = vst [vmem:[%s6 + $0x10] sm:$0xff] %v679
  %689 = vst [vmem:[%s6 + $0x18] sm:$0xff] %v680
  %690 = vst [vmem:[%s6 + $0x20] sm:$0xff] %v681
  %691 = vst [vmem:[%s6 + $0x28] sm:$0xff] %v682
  %692 = vst [vmem:[%s6 + $0x30] sm:$0xff] %v683
  %693 = vst [vmem:[%s6 + $0x38] sm:$0xff] %v684
  %694 = vst [vmem:[%s6 + $0x40] sm:$0xff] %v685
  // Predicated region
  $region26: #{hashing_two_branch_forward.4} parent=0 // pred_check
    _
  $region27: #{hashing_two_branch_forward.4} parent=0 // pred_check_branch
    %696 = sbr.rel (0) target = $region29
  $region28: #{hashing_two_branch_forward.4} parent=0 // pred_region
    _
  $region29: #{hashing_two_branch_forward.4} parent=0 // pred_fallthru
    _
  // Predicated region
  $region30: #{hashing_two_branch_forward.4} parent=0 // pred_check
    _
  $region31: #{hashing_two_branch_forward.4} parent=0 // pred_check_branch
    %698 = sbr.rel (0) target = $region33
  $region32: #{hashing_two_branch_forward.4} parent=0 // pred_region
    _
  $region33: #{hashing_two_branch_forward.4} parent=0 // pred_fallthru
    _

// kernel: hashing_two_branch_forward.3
$region0: #{hashing_two_branch_forward.3}
  #allocation0 [shape = 'u32[]', space=smem, size = 0x4, offset = 0x4, fixed_abs, tag = 'smem constant byte address 0x4 - core index']
  #allocation1 [shape = 'u32[144,128]{1,0:T(1,128)}', space=vmem, size = 0x12000, scoped, tag = 'internal scratch']
  %s0 = inlined_call_operand.vmem [shape: f32[16,8], index: 0, kind: input, shape index: {}]
  %s1 = inlined_call_operand.vmem [shape: f32[8,256], index: 1, kind: input, shape index: {}]
  %s2 = inlined_call_operand.vmem [shape: f32[32,128], index: 2, kind: input, shape index: {}]
  %s3 = inlined_call_operand.vmem [shape: f32[32,128], index: 3, kind: input, shape index: {}]
  %s4 = inlined_call_operand.vmem [shape: f32[1,256], index: 4, kind: input, shape index: {}]
  %s5 = inlined_call_operand.vmem [shape: s32[2,1], index: 5, kind: input, shape index: {}]
  %s6 = inlined_call_operand.vmem [shape: f32[2,64], index: 6, kind: output, shape index: {}]
  %s7 = sld [smem:[#allocation0]]
  $region34: #{hashing_two_branch_forward.3} parent=0
    _
  %s9 = ssub.s32 1, %s7
  %s10 = scalar_select 0, %s9, %s7
  // Predicated region
  $region2: #{hashing_two_branch_forward.3} parent=0 // pred_check
    _
  $region3: #{hashing_two_branch_forward.3} parent=0 // pred_check_branch
    %12 = sbr.rel (0) target = $region5
  $region4: #{hashing_two_branch_forward.3} parent=0 // pred_region
    _
  $region5: #{hashing_two_branch_forward.3} parent=0 // pred_fallthru
    _
  // Predicated region
  $region6: #{hashing_two_branch_forward.3} parent=0 // pred_check
    _
  $region7: #{hashing_two_branch_forward.3} parent=0 // pred_check_branch
    %14 = sbr.rel (0) target = $region9
  $region8: #{hashing_two_branch_forward.3} parent=0 // pred_region
    _
  $region9: #{hashing_two_branch_forward.3} parent=0 // pred_fallthru
    _
  // Predicated region
  $region10: #{hashing_two_branch_forward.3} parent=0 // pred_check
    _
  $region11: #{hashing_two_branch_forward.3} parent=0 // pred_check_branch
    %16 = sbr.rel (0) target = $region13
  $region12: #{hashing_two_branch_forward.3} parent=0 // pred_region
    _
  $region13: #{hashing_two_branch_forward.3} parent=0 // pred_fallthru
    _
  // Predicated region
  $region14: #{hashing_two_branch_forward.3} parent=0 // pred_check
    _
  $region15: #{hashing_two_branch_forward.3} parent=0 // pred_check_branch
    %18 = sbr.rel (0) target = $region17
  $region16: #{hashing_two_branch_forward.3} parent=0 // pred_region
    _
  $region17: #{hashing_two_branch_forward.3} parent=0 // pred_fallthru
    _
  // Predicated region
  $region18: #{hashing_two_branch_forward.3} parent=0 // pred_check
    _
  $region19: #{hashing_two_branch_forward.3} parent=0 // pred_check_branch
    %20 = sbr.rel (0) target = $region21
  $region20: #{hashing_two_branch_forward.3} parent=0 // pred_region
    _
  $region21: #{hashing_two_branch_forward.3} parent=0 // pred_fallthru
    _
  // Predicated region
  $region22: #{hashing_two_branch_forward.3} parent=0 // pred_check
    _
  $region23: #{hashing_two_branch_forward.3} parent=0 // pred_check_branch
    %22 = sbr.rel (0) target = $region25
  $region24: #{hashing_two_branch_forward.3} parent=0 // pred_region
    _
  $region25: #{hashing_two_branch_forward.3} parent=0 // pred_fallthru
    _
  %v23 = vld [vmem:[%s0] sm:$0xff]
  %v24 = vld [vmem:[%s0 + $0x8] sm:$0xff]
  %v25 = vld [vmem:[%s1] sm:$0xff]
  %v26 = vld [vmem:[%s1 + $0x8] sm:$0xff]
  %v27 = vld [vmem:[%s4] sm:$0x3]
  %v29 = vlaneseq
  %v30 = vshrl.u32 %v29, 7
  %v31 = vsub.s32 0, %v30
  %v32 = vrot.slane %v27, %v31
  %v33 = vlaneseq
  %v34 = vshrl.u32 %v33, 7
  %v35 = vsub.s32 1, %v34
  %v36 = vrot.slane %v27, %v35
  %vm39 = vcmask 64512
  %v41 = vsel %vm39, %v23, 0
  %v44 = vsel %vm39, %v24, 0
  %46 = vmatprep.subr.mxu0 0.0
  %47 = vmatpush1.msra.mxu0 0.0
  %48 = vmatprep.subr.mxu0 0.0
  %49 = vmatpush1.msra.mxu0 0.0
  %50 = vmatprep.subr.mxu0 0.0
  %51 = vmatpush1.msra.mxu0 0.0
  %52 = vmatprep.subr.mxu0 0.0
  %53 = vmatpush1.msra.mxu0 0.0
  %54 = vmatprep.subr.mxu0 0.0
  %55 = vmatpush1.msra.mxu0 0.0
  %56 = vmatprep.subr.mxu0 0.0
  %57 = vmatpush1.msra.mxu0 0.0
  %58 = vmatprep.subr.mxu0 0.0
  %59 = vmatpush1.msra.mxu0 0.0
  %60 = vmatprep.subr.mxu0 0.0
  %61 = vmatpush1.msra.mxu0 0.0
  %62 = vmatprep.subr.mxu0 0.0
  %63 = vmatpush1.msra.mxu0 0.0
  %64 = vmatprep.subr.mxu0 0.0
  %65 = vmatpush1.msra.mxu0 0.0
  %66 = vmatprep.subr.mxu0 0.0
  %67 = vmatpush1.msra.mxu0 0.0
  %68 = vmatprep.subr.mxu0 0.0
  %69 = vmatpush1.msra.mxu0 0.0
  %70 = vmatprep.subr.mxu0 0.0
  %71 = vmatpush1.msra.mxu0 0.0
  %72 = vmatprep.subr.mxu0 0.0
  %73 = vmatpush1.msra.mxu0 0.0
  %74 = vmatprep.subr.mxu0 0.0
  %75 = vmatpush1.msra.mxu0 0.0
  %76 = vmatprep.subr.mxu0 %v26
  %77 = vmatpush1.msra.mxu0 %v25
  %78 = vmatprep.subr.mxu0 0.0
  %79 = vmatpush2.msra.mxu0 0.0
  %80 = vmatprep.subr.mxu0 0.0
  %81 = vmatpush2.msra.mxu0 0.0
  %82 = vmatprep.subr.mxu0 0.0
  %83 = vmatpush2.msra.mxu0 0.0
  %84 = vmatprep.subr.mxu0 0.0
  %85 = vmatpush2.msra.mxu0 0.0
  %86 = vmatprep.subr.mxu0 0.0
  %87 = vmatpush2.msra.mxu0 0.0
  %88 = vmatprep.subr.mxu0 0.0
  %89 = vmatpush2.msra.mxu0 0.0
  %90 = vmatprep.subr.mxu0 0.0
  %91 = vmatpush2.msra.mxu0 0.0
  %92 = vmatprep.subr.mxu0 0.0
  %93 = vmatpush2.msra.mxu0 0.0
  %94 = vmatprep.subr.mxu0 0.0
  %95 = vmatpush2.msra.mxu0 0.0
  %96 = vmatprep.subr.mxu0 0.0
  %97 = vmatpush2.msra.mxu0 0.0
  %98 = vmatprep.subr.mxu0 0.0
  %99 = vmatpush2.msra.mxu0 0.0
  %100 = vmatprep.subr.mxu0 0.0
  %101 = vmatpush2.msra.mxu0 0.0
  %102 = vmatprep.subr.mxu0 0.0
  %103 = vmatpush2.msra.mxu0 0.0
  %104 = vmatprep.subr.mxu0 0.0
  %105 = vmatpush2.msra.mxu0 0.0
  %106 = vmatprep.subr.mxu0 0.0
  %107 = vmatpush2.msra.mxu0 0.0
  %108 = vmatprep.subr.mxu0 0.0
  %109 = vmatpush2.msra.mxu0 0.0
  %110 = vmatprep.mubr.f32.mxu0 0.0
  %111 = vmatmul.mubr.f32.gmra.mxu0 %v41
  %v112 = vpop.f32.mrf.mxu0
  %v113 = vadd.f32 %v32, %v112
  %v114 = vpop.f32.mrf.mxu0
  %v115 = vadd.f32 %v36, %v114
  %116 = vmatprep.mubr.f32.mxu0 0.0
  %117 = vmatmul.mubr.f32.gmra.mxu0 %v44
  %v118 = vpop.f32.mrf.mxu0
  %v119 = vadd.f32 %v32, %v118
  %v120 = vpop.f32.mrf.mxu0
  %v121 = vadd.f32 %v36, %v120
  %122 = vdwg.mxu0
  %v123 = vld [vmem:[%s5] sm:$0x3]
  %v124 = vld [vmem:[%s2] sm:$0xff]
  %v125 = vld [vmem:[%s2 + $0x8] sm:$0xff]
  %v126 = vld [vmem:[%s2 + $0x10] sm:$0xff]
  %v127 = vld [vmem:[%s2 + $0x18] sm:$0xff]
  %v128 = vld [vmem:[%s3] sm:$0xff]
  %v129 = vld [vmem:[%s3 + $0x8] sm:$0xff]
  %v130 = vld [vmem:[%s3 + $0x10] sm:$0xff]
  %v131 = vld [vmem:[%s3 + $0x18] sm:$0xff]
  %vm132 = vcmask 261120
  %v134 = vsel %vm132, 0.0, 0
  %136 = vmatprep.subr.mxu0 0.0
  %137 = vmatpush1.msra.mxu0 0.0
  %138 = vmatprep.subr.mxu0 0.0
  %139 = vmatpush1.msra.mxu0 0.0
  %140 = vmatprep.subr.mxu0 0.0
  %141 = vmatpush1.msra.mxu0 0.0
  %142 = vmatprep.subr.mxu0 0.0
  %143 = vmatpush1.msra.mxu0 0.0
  %144 = vmatprep.subr.mxu0 0.0
  %145 = vmatpush1.msra.mxu0 0.0
  %146 = vmatprep.subr.mxu0 0.0
  %147 = vmatpush1.msra.mxu0 0.0
  %148 = vmatprep.subr.mxu0 0.0
  %149 = vmatpush1.msra.mxu0 0.0
  %150 = vmatprep.subr.mxu0 0.0
  %151 = vmatpush1.msra.mxu0 0.0
  %152 = vmatprep.subr.mxu0 0.0
  %153 = vmatpush1.msra.mxu0 0.0
  %154 = vmatprep.subr.mxu0 0.0
  %155 = vmatpush1.msra.mxu0 0.0
  %156 = vmatprep.subr.mxu0 0.0
  %157 = vmatpush1.msra.mxu0 0.0
  %158 = vmatprep.subr.mxu0 0.0
  %159 = vmatpush1.msra.mxu0 0.0
  %160 = vmatprep.subr.mxu0 0.0
  %161 = vmatpush1.msra.mxu0 %v127
  %162 = vmatprep.subr.mxu0 0.0
  %163 = vmatpush1.msra.mxu0 %v126
  %164 = vmatprep.subr.mxu0 0.0
  %165 = vmatpush1.msra.mxu0 %v125
  %166 = vmatprep.subr.mxu0 0.0
  %167 = vmatpush1.msra.mxu0 %v124
  %168 = vmatprep.subr.mxu0 0.0
  %169 = vmatpush2.msra.mxu0 0.0
  %170 = vmatprep.subr.mxu0 0.0
  %171 = vmatpush2.msra.mxu0 0.0
  %172 = vmatprep.subr.mxu0 0.0
  %173 = vmatpush2.msra.mxu0 0.0
  %174 = vmatprep.subr.mxu0 0.0
  %175 = vmatpush2.msra.mxu0 0.0
  %176 = vmatprep.subr.mxu0 0.0
  %177 = vmatpush2.msra.mxu0 0.0
  %178 = vmatprep.subr.mxu0 0.0
  %179 = vmatpush2.msra.mxu0 0.0
  %180 = vmatprep.subr.mxu0 0.0
  %181 = vmatpush2.msra.mxu0 0.0
  %182 = vmatprep.subr.mxu0 0.0
  %183 = vmatpush2.msra.mxu0 0.0
  %184 = vmatprep.subr.mxu0 0.0
  %185 = vmatpush2.msra.mxu0 0.0
  %186 = vmatprep.subr.mxu0 0.0
  %187 = vmatpush2.msra.mxu0 0.0
  %188 = vmatprep.subr.mxu0 0.0
  %189 = vmatpush2.msra.mxu0 0.0
  %190 = vmatprep.subr.mxu0 0.0
  %191 = vmatpush2.msra.mxu0 0.0
  %192 = vmatprep.subr.mxu0 0.0
  %193 = vmatpush2.msra.mxu0 0.0
  %194 = vmatprep.subr.mxu0 0.0
  %195 = vmatpush2.msra.mxu0 0.0
  %196 = vmatprep.subr.mxu0 0.0
  %197 = vmatpush2.msra.mxu0 0.0
  %198 = vmatprep.subr.mxu0 0.0
  %199 = vmatpush2.msra.mxu0 0.0
  %200 = vmatprep.mubr.f32.mxu0 0.0
  %201 = vmatmul.mubr.f32.gmra.mxu0 %v134
  %v202 = vpop.f32.mrf.mxu0
  %v203 = vadd.f32 0.0, %v202
  %v204 = vpop.f32.mrf.mxu0
  %205 = vdwg.mxu0
  %v206 = vadd.f32 %v113, %v203
  %vm207 = vcmp.gt.s32.totalorder %v123, 0
  %v208 = vxor.u32 %v206, 2147483648
  %v209 = vmul.f32 %v208, 1.442695
  %v210 = vpow.pop %v209
  %v211 = vadd.f32 %v210, 1.0
  %v212 = vrcp.pop %v211
  %v213 = vmul.f32 1.0, %v212
  %v214 = vtanh.pop %v206
  %v215 = vmul.f32 %v213, 0.0
  %217 = vrot.lane.b32.xlu0 %v214, 64
  %v218 = vpop.permute.xlu0 %217
  %v220 = vmul.f32 %v213, %v218
  %222 = vrot.lane.b32.xlu0 %v220, 32
  %v223 = vpop.permute.xlu0 %222
  %v225 = vadd.f32 %v215, %v223
  %v226 = vtanh.pop %v225
  %228 = vrot.lane.b32.xlu0 %v226, 64
  %v229 = vpop.permute.xlu0 %228
  %v231 = vmul.f32 %v213, %v229
  %v232 = vsel %vm207, 1, 0
  %233 = vset.pattern.permute.xlu0 0
  %234 = vperm.xlu0 %233, %v232
  %v235 = vpop.permute.xlu0 %234
  %vm236 = vcmp.eq.s32.totalorder %v235, 1
  %v237 = vsel %vm236, %v231, 0.0
  %v238 = vsel %vm236, %v225, 0.0
  %239 = vmatprep.subr.mxu0 0.0
  %240 = vmatpush1.msra.mxu0 0.0
  %241 = vmatprep.subr.mxu0 0.0
  %242 = vmatpush1.msra.mxu0 0.0
  %243 = vmatprep.subr.mxu0 0.0
  %244 = vmatpush1.msra.mxu0 0.0
  %245 = vmatprep.subr.mxu0 0.0
  %246 = vmatpush1.msra.mxu0 0.0
  %247 = vmatprep.subr.mxu0 0.0
  %248 = vmatpush1.msra.mxu0 0.0
  %249 = vmatprep.subr.mxu0 0.0
  %250 = vmatpush1.msra.mxu0 0.0
  %251 = vmatprep.subr.mxu0 0.0
  %252 = vmatpush1.msra.mxu0 0.0
  %253 = vmatprep.subr.mxu0 0.0
  %254 = vmatpush1.msra.mxu0 0.0
  %255 = vmatprep.subr.mxu0 0.0
  %256 = vmatpush1.msra.mxu0 0.0
  %257 = vmatprep.subr.mxu0 0.0
  %258 = vmatpush1.msra.mxu0 0.0
  %259 = vmatprep.subr.mxu0 0.0
  %260 = vmatpush1.msra.mxu0 0.0
  %261 = vmatprep.subr.mxu0 0.0
  %262 = vmatpush1.msra.mxu0 0.0
  %263 = vmatprep.subr.mxu0 0.0
  %264 = vmatpush1.msra.mxu0 %v131
  %265 = vmatprep.subr.mxu0 0.0
  %266 = vmatpush1.msra.mxu0 %v130
  %267 = vmatprep.subr.mxu0 0.0
  %268 = vmatpush1.msra.mxu0 %v129
  %269 = vmatprep.subr.mxu0 0.0
  %270 = vmatpush1.msra.mxu0 %v128
  %271 = vmatprep.subr.mxu0 0.0
  %272 = vmatpush2.msra.mxu0 0.0
  %273 = vmatprep.subr.mxu0 0.0
  %274 = vmatpush2.msra.mxu0 0.0
  %275 = vmatprep.subr.mxu0 0.0
  %276 = vmatpush2.msra.mxu0 0.0
  %277 = vmatprep.subr.mxu0 0.0
  %278 = vmatpush2.msra.mxu0 0.0
  %279 = vmatprep.subr.mxu0 0.0
  %280 = vmatpush2.msra.mxu0 0.0
  %281 = vmatprep.subr.mxu0 0.0
  %282 = vmatpush2.msra.mxu0 0.0
  %283 = vmatprep.subr.mxu0 0.0
  %284 = vmatpush2.msra.mxu0 0.0
  %285 = vmatprep.subr.mxu0 0.0
  %286 = vmatpush2.msra.mxu0 0.0
  %287 = vmatprep.subr.mxu0 0.0
  %288 = vmatpush2.msra.mxu0 0.0
  %289 = vmatprep.subr.mxu0 0.0
  %290 = vmatpush2.msra.mxu0 0.0
  %291 = vmatprep.subr.mxu0 0.0
  %292 = vmatpush2.msra.mxu0 0.0
  %293 = vmatprep.subr.mxu0 0.0
  %294 = vmatpush2.msra.mxu0 0.0
  %295 = vmatprep.subr.mxu0 0.0
  %296 = vmatpush2.msra.mxu0 0.0
  %297 = vmatprep.subr.mxu0 0.0
  %298 = vmatpush2.msra.mxu0 0.0
  %299 = vmatprep.subr.mxu0 0.0
  %300 = vmatpush2.msra.mxu0 0.0
  %301 = vmatprep.subr.mxu0 0.0
  %302 = vmatpush2.msra.mxu0 0.0
  %303 = vmatprep.mubr.f32.mxu0 0.0
  %304 = vmatmul.mubr.f32.gmra.mxu0 %v134
  %v305 = vpop.f32.mrf.mxu0
  %v306 = vadd.f32 0.0, %v305
  %v307 = vpop.f32.mrf.mxu0
  %308 = vdwg.mxu0
  %v310 = vrot.slane %v306, 2
  %v312 = vadd.f32 %v121, %v310
  %vm313 = vcmp.gt.s32.totalorder %v123, 7
  %v314 = vxor.u32 %v312, 2147483648
  %v315 = vmul.f32 %v314, 1.442695
  %v316 = vpow.pop %v315
  %v317 = vadd.f32 %v316, 1.0
  %v318 = vrcp.pop %v317
  %v319 = vmul.f32 1.0, %v318
  %v320 = vtanh.pop %v312
  %v321 = vmul.f32 %v319, 0.0
  %323 = vrot.lane.b32.xlu0 %v320, 64
  %v324 = vpop.permute.xlu0 %323
  %v326 = vmul.f32 %v319, %v324
  %328 = vrot.lane.b32.xlu0 %v326, 32
  %v329 = vpop.permute.xlu0 %328
  %v331 = vadd.f32 %v321, %v329
  %v332 = vtanh.pop %v331
  %334 = vrot.lane.b32.xlu0 %v332, 64
  %v335 = vpop.permute.xlu0 %334
  %v337 = vmul.f32 %v319, %v335
  %v338 = vsel %vm313, 1, 0
  %339 = vset.pattern.permute.xlu0 0
  %340 = vperm.xlu0 %339, %v338
  %v341 = vpop.permute.xlu0 %340
  %vm342 = vcmp.eq.s32.totalorder %v341, 1
  %v344 = vrot.slane %v337, 6
  %345 = vrot.lane.b32.xlu0 %v344, 32
  %v346 = vpop.permute.xlu0 %345
  %v348 = vsel %vm342, %v346, 0.0
  %v350 = vrot.slane %v331, 6
  %351 = vrot.lane.b32.xlu0 %v350, 96
  %v352 = vpop.permute.xlu0 %351
  %v354 = vsel %vm342, %v352, 0.0
  %356 = vrot.lane.b32.xlu0 %v237, 32
  %v357 = vpop.permute.xlu0 %356
  %v358 = vsel %vm132, %v357, 0
  %360 = vmatprep.subr.mxu0 0.0
  %361 = vmatpush1.msra.mxu0 0.0
  %362 = vmatprep.subr.mxu0 0.0
  %363 = vmatpush1.msra.mxu0 0.0
  %364 = vmatprep.subr.mxu0 0.0
  %365 = vmatpush1.msra.mxu0 0.0
  %366 = vmatprep.subr.mxu0 0.0
  %367 = vmatpush1.msra.mxu0 0.0
  %368 = vmatprep.subr.mxu0 0.0
  %369 = vmatpush1.msra.mxu0 0.0
  %370 = vmatprep.subr.mxu0 0.0
  %371 = vmatpush1.msra.mxu0 0.0
  %372 = vmatprep.subr.mxu0 0.0
  %373 = vmatpush1.msra.mxu0 0.0
  %374 = vmatprep.subr.mxu0 0.0
  %375 = vmatpush1.msra.mxu0 0.0
  %376 = vmatprep.subr.mxu0 0.0
  %377 = vmatpush1.msra.mxu0 0.0
  %378 = vmatprep.subr.mxu0 0.0
  %379 = vmatpush1.msra.mxu0 0.0
  %380 = vmatprep.subr.mxu0 0.0
  %381 = vmatpush1.msra.mxu0 0.0
  %382 = vmatprep.subr.mxu0 0.0
  %383 = vmatpush1.msra.mxu0 0.0
  %384 = vmatprep.subr.mxu0 0.0
  %385 = vmatpush1.msra.mxu0 %v127
  %386 = vmatprep.subr.mxu0 0.0
  %387 = vmatpush1.msra.mxu0 %v126
  %388 = vmatprep.subr.mxu0 0.0
  %389 = vmatpush1.msra.mxu0 %v125
  %390 = vmatprep.subr.mxu0 0.0
  %391 = vmatpush1.msra.mxu0 %v124
  %392 = vmatprep.subr.mxu0 0.0
  %393 = vmatpush2.msra.mxu0 0.0
  %394 = vmatprep.subr.mxu0 0.0
  %395 = vmatpush2.msra.mxu0 0.0
  %396 = vmatprep.subr.mxu0 0.0
  %397 = vmatpush2.msra.mxu0 0.0
  %398 = vmatprep.subr.mxu0 0.0
  %399 = vmatpush2.msra.mxu0 0.0
  %400 = vmatprep.subr.mxu0 0.0
  %401 = vmatpush2.msra.mxu0 0.0
  %402 = vmatprep.subr.mxu0 0.0
  %403 = vmatpush2.msra.mxu0 0.0
  %404 = vmatprep.subr.mxu0 0.0
  %405 = vmatpush2.msra.mxu0 0.0
  %406 = vmatprep.subr.mxu0 0.0
  %407 = vmatpush2.msra.mxu0 0.0
  %408 = vmatprep.subr.mxu0 0.0
  %409 = vmatpush2.msra.mxu0 0.0
  %410 = vmatprep.subr.mxu0 0.0
  %411 = vmatpush2.msra.mxu0 0.0
  %412 = vmatprep.subr.mxu0 0.0
  %413 = vmatpush2.msra.mxu0 0.0
  %414 = vmatprep.subr.mxu0 0.0
  %415 = vmatpush2.msra.mxu0 0.0
  %416 = vmatprep.subr.mxu0 0.0
  %417 = vmatpush2.msra.mxu0 0.0
  %418 = vmatprep.subr.mxu0 0.0
  %419 = vmatpush2.msra.mxu0 0.0
  %420 = vmatprep.subr.mxu0 0.0
  %421 = vmatpush2.msra.mxu0 0.0
  %422 = vmatprep.subr.mxu0 0.0
  %423 = vmatpush2.msra.mxu0 0.0
  %424 = vmatprep.mubr.f32.mxu0 0.0
  %425 = vmatmul.mubr.f32.gmra.mxu0 %v358
  %v426 = vpop.f32.mrf.mxu0
  %v427 = vadd.f32 0.0, %v426
  %v428 = vpop.f32.mrf.mxu0
  %429 = vdwg.mxu0
  %v431 = vrot.slane %v427, 6
  %v433 = vadd.f32 %v113, %v431
  %vm434 = vcmp.gt.s32.totalorder %v123, 1
  %v435 = vxor.u32 %v433, 2147483648
  %v436 = vmul.f32 %v435, 1.442695
  %v437 = vpow.pop %v436
  %v438 = vadd.f32 %v437, 1.0
  %v439 = vrcp.pop %v438
  %v440 = vmul.f32 1.0, %v439
  %v441 = vtanh.pop %v433
  %v443 = vrot.slane %v238, 6
  %v445 = vmul.f32 %v440, %v443
  %447 = vrot.lane.b32.xlu0 %v441, 64
  %v448 = vpop.permute.xlu0 %447
  %v450 = vmul.f32 %v440, %v448
  %452 = vrot.lane.b32.xlu0 %v450, 32
  %v453 = vpop.permute.xlu0 %452
  %v455 = vadd.f32 %v445, %v453
  %v456 = vtanh.pop %v455
  %458 = vrot.lane.b32.xlu0 %v456, 64
  %v459 = vpop.permute.xlu0 %458
  %v461 = vmul.f32 %v440, %v459
  %v462 = vsel %vm434, 1, 0
  %463 = vset.pattern.permute.xlu0 0
  %464 = vperm.xlu0 %463, %v462
  %v465 = vpop.permute.xlu0 %464
  %vm466 = vcmp.eq.s32.totalorder %v465, 1
  %v468 = vrot.slane %v461, 2
  %469 = vrot.lane.b32.xlu0 %v468, 32
  %v470 = vpop.permute.xlu0 %469
  %v473 = vsel %vm466, %v470, %v357
  %v475 = vrot.slane %v455, 2
  %476 = vrot.lane.b32.xlu0 %v475, 96
  %v477 = vpop.permute.xlu0 %476
  %479 = vrot.lane.b32.xlu0 %v238, 96
  %v480 = vpop.permute.xlu0 %479
  %v482 = vsel %vm466, %v477, %v480
  %v484 = vsel %vm132, %v348, 0
  %486 = vmatprep.subr.mxu0 0.0
  %487 = vmatpush1.msra.mxu0 0.0
  %488 = vmatprep.subr.mxu0 0.0
  %489 = vmatpush1.msra.mxu0 0.0
  %490 = vmatprep.subr.mxu0 0.0
  %491 = vmatpush1.msra.mxu0 0.0
  %492 = vmatprep.subr.mxu0 0.0
  %493 = vmatpush1.msra.mxu0 0.0
  %494 = vmatprep.subr.mxu0 0.0
  %495 = vmatpush1.msra.mxu0 0.0
  %496 = vmatprep.subr.mxu0 0.0
  %497 = vmatpush1.msra.mxu0 0.0
  %498 = vmatprep.subr.mxu0 0.0
  %499 = vmatpush1.msra.mxu0 0.0
  %500 = vmatprep.subr.mxu0 0.0
  %501 = vmatpush1.msra.mxu0 0.0
  %502 = vmatprep.subr.mxu0 0.0
  %503 = vmatpush1.msra.mxu0 0.0
  %504 = vmatprep.subr.mxu0 0.0
  %505 = vmatpush1.msra.mxu0 0.0
  %506 = vmatprep.subr.mxu0 0.0
  %507 = vmatpush1.msra.mxu0 0.0
  %508 = vmatprep.subr.mxu0 0.0
  %509 = vmatpush1.msra.mxu0 0.0
  %510 = vmatprep.subr.mxu0 0.0
  %511 = vmatpush1.msra.mxu0 %v131
  %512 = vmatprep.subr.mxu0 0.0
  %513 = vmatpush1.msra.mxu0 %v130
  %514 = vmatprep.subr.mxu0 0.0
  %515 = vmatpush1.msra.mxu0 %v129
  %516 = vmatprep.subr.mxu0 0.0
  %517 = vmatpush1.msra.mxu0 %v128
  %518 = vmatprep.subr.mxu0 0.0
  %519 = vmatpush2.msra.mxu0 0.0
  %520 = vmatprep.subr.mxu0 0.0
  %521 = vmatpush2.msra.mxu0 0.0
  %522 = vmatprep.subr.mxu0 0.0
  %523 = vmatpush2.msra.mxu0 0.0
  %524 = vmatprep.subr.mxu0 0.0
  %525 = vmatpush2.msra.mxu0 0.0
  %526 = vmatprep.subr.mxu0 0.0
  %527 = vmatpush2.msra.mxu0 0.0
  %528 = vmatprep.subr.mxu0 0.0
  %529 = vmatpush2.msra.mxu0 0.0
  %530 = vmatprep.subr.mxu0 0.0
  %531 = vmatpush2.msra.mxu0 0.0
  %532 = vmatprep.subr.mxu0 0.0
  %533 = vmatpush2.msra.mxu0 0.0
  %534 = vmatprep.subr.mxu0 0.0
  %535 = vmatpush2.msra.mxu0 0.0
  %536 = vmatprep.subr.mxu0 0.0
  %537 = vmatpush2.msra.mxu0 0.0
  %538 = vmatprep.subr.mxu0 0.0
  %539 = vmatpush2.msra.mxu0 0.0
  %540 = vmatprep.subr.mxu0 0.0
  %541 = vmatpush2.msra.mxu0 0.0
  %542 = vmatprep.subr.mxu0 0.0
  %543 = vmatpush2.msra.mxu0 0.0
  %544 = vmatprep.subr.mxu0 0.0
  %545 = vmatpush2.msra.mxu0 0.0
  %546 = vmatprep.subr.mxu0 0.0
  %547 = vmatpush2.msra.mxu0 0.0
  %548 = vmatprep.subr.mxu0 0.0
  %549 = vmatpush2.msra.mxu0 0.0
  %550 = vmatprep.mubr.f32.mxu0 0.0
  %551 = vmatmul.mubr.f32.gmra.mxu0 %v484
  %v552 = vpop.f32.mrf.mxu0
  %v553 = vadd.f32 0.0, %v552
  %v554 = vpop.f32.mrf.mxu0
  %555 = vdwg.mxu0
  %v557 = vrot.slane %v553, 4
  %v559 = vadd.f32 %v121, %v557
  %vm560 = vcmp.gt.s32.totalorder %v123, 6
  %v561 = vxor.u32 %v559, 2147483648
  %v562 = vmul.f32 %v561, 1.442695
  %v563 = vpow.pop %v562
  %v564 = vadd.f32 %v563, 1.0
  %v565 = vrcp.pop %v564
  %v566 = vmul.f32 1.0, %v565
  %v567 = vtanh.pop %v559
  %v569 = vrot.slane %v354, 4
  %570 = vrot.lane.b32.xlu0 %v569, 32
  %v571 = vpop.permute.xlu0 %570
  %v573 = vmul.f32 %v566, %v571
  %575 = vrot.lane.b32.xlu0 %v567, 64
  %v576 = vpop.permute.xlu0 %575
  %v578 = vmul.f32 %v566, %v576
  %580 = vrot.lane.b32.xlu0 %v578, 32
  %v581 = vpop.permute.xlu0 %580
  %v583 = vadd.f32 %v573, %v581
  %v584 = vtanh.pop %v583
  %586 = vrot.lane.b32.xlu0 %v584, 64
  %v587 = vpop.permute.xlu0 %586
  %v589 = vmul.f32 %v566, %v587
  %v590 = vsel %vm560, 1, 0
  %591 = vset.pattern.permute.xlu0 0
  %592 = vperm.xlu0 %591, %v590
  %v593 = vpop.permute.xlu0 %592
  %vm594 = vcmp.eq.s32.totalorder %v593, 1
  %v596 = vrot.slane %v589, 4
  %597 = vrot.lane.b32.xlu0 %v596, 32
  %v598 = vpop.permute.xlu0 %597
  %v600 = vsel %vm594, %v598, %v348
  %v602 = vrot.slane %v583, 4
  %603 = vrot.lane.b32.xlu0 %v602, 96
  %v604 = vpop.permute.xlu0 %603
  %v606 = vsel %vm594, %v604, %v354
  %v608 = vsel %vm132, %v473, 0
  %610 = vmatprep.subr.mxu0 0.0
  %611 = vmatpush1.msra.mxu0 0.0
  %612 = vmatprep.subr.mxu0 0.0
  %613 = vmatpush1.msra.mxu0 0.0
  %614 = vmatprep.subr.mxu0 0.0
  %615 = vmatpush1.msra.mxu0 0.0
  %616 = vmatprep.subr.mxu0 0.0
  %617 = vmatpush1.msra.mxu0 0.0
  %618 = vmatprep.subr.mxu0 0.0
  %619 = vmatpush1.msra.mxu0 0.0
  %620 = vmatprep.subr.mxu0 0.0
  %621 = vmatpush1.msra.mxu0 0.0
  %622 = vmatprep.subr.mxu0 0.0
  %623 = vmatpush1.msra.mxu0 0.0
  %624 = vmatprep.subr.mxu0 0.0
  %625 = vmatpush1.msra.mxu0 0.0
  %626 = vmatprep.subr.mxu0 0.0
  %627 = vmatpush1.msra.mxu0 0.0
  %628 = vmatprep.subr.mxu0 0.0
  %629 = vmatpush1.msra.mxu0 0.0
  %630 = vmatprep.subr.mxu0 0.0
  %631 = vmatpush1.msra.mxu0 0.0
  %632 = vmatprep.subr.mxu0 0.0
  %633 = vmatpush1.msra.mxu0 0.0
  %634 = vmatprep.subr.mxu0 0.0
  %635 = vmatpush1.msra.mxu0 %v127
  %636 = vmatprep.subr.mxu0 0.0
  %637 = vmatpush1.msra.mxu0 %v126
  %638 = vmatprep.subr.mxu0 0.0
  %639 = vmatpush1.msra.mxu0 %v125
  %640 = vmatprep.subr.mxu0 0.0
  %641 = vmatpush1.msra.mxu0 %v124
  %642 = vmatprep.subr.mxu0 0.0
  %643 = vmatpush2.msra.mxu0 0.0
  %644 = vmatprep.subr.mxu0 0.0
  %645 = vmatpush2.msra.mxu0 0.0
  %646 = vmatprep.subr.mxu0 0.0
  %647 = vmatpush2.msra.mxu0 0.0
  %648 = vmatprep.subr.mxu0 0.0
  %649 = vmatpush2.msra.mxu0 0.0
  %650 = vmatprep.subr.mxu0 0.0
  %651 = vmatpush2.msra.mxu0 0.0
  %652 = vmatprep.subr.mxu0 0.0
  %653 = vmatpush2.msra.mxu0 0.0
  %654 = vmatprep.subr.mxu0 0.0
  %655 = vmatpush2.msra.mxu0 0.0
  %656 = vmatprep.subr.mxu0 0.0
  %657 = vmatpush2.msra.mxu0 0.0
  %658 = vmatprep.subr.mxu0 0.0
  %659 = vmatpush2.msra.mxu0 0.0
  %660 = vmatprep.subr.mxu0 0.0
  %661 = vmatpush2.msra.mxu0 0.0
  %662 = vmatprep.subr.mxu0 0.0
  %663 = vmatpush2.msra.mxu0 0.0
  %664 = vmatprep.subr.mxu0 0.0
  %665 = vmatpush2.msra.mxu0 0.0
  %666 = vmatprep.subr.mxu0 0.0
  %667 = vmatpush2.msra.mxu0 0.0
  %668 = vmatprep.subr.mxu0 0.0
  %669 = vmatpush2.msra.mxu0 0.0
  %670 = vmatprep.subr.mxu0 0.0
  %671 = vmatpush2.msra.mxu0 0.0
  %672 = vmatprep.subr.mxu0 0.0
  %673 = vmatpush2.msra.mxu0 0.0
  %674 = vmatprep.mubr.f32.mxu0 0.0
  %675 = vmatmul.mubr.f32.gmra.mxu0 %v608
  %v676 = vpop.f32.mrf.mxu0
  %v677 = vadd.f32 0.0, %v676
  %v678 = vpop.f32.mrf.mxu0
  %679 = vdwg.mxu0
  %v681 = vrot.slane %v677, 4
  %v683 = vadd.f32 %v113, %v681
  %vm684 = vcmp.gt.s32.totalorder %v123, 2
  %v685 = vxor.u32 %v683, 2147483648
  %v686 = vmul.f32 %v685, 1.442695
  %v687 = vpow.pop %v686
  %v688 = vadd.f32 %v687, 1.0
  %v689 = vrcp.pop %v688
  %v690 = vmul.f32 1.0, %v689
  %v691 = vtanh.pop %v683
  %v693 = vrot.slane %v482, 4
  %694 = vrot.lane.b32.xlu0 %v693, 32
  %v695 = vpop.permute.xlu0 %694
  %v697 = vmul.f32 %v690, %v695
  %699 = vrot.lane.b32.xlu0 %v691, 64
  %v700 = vpop.permute.xlu0 %699
  %v702 = vmul.f32 %v690, %v700
  %704 = vrot.lane.b32.xlu0 %v702, 32
  %v705 = vpop.permute.xlu0 %704
  %v707 = vadd.f32 %v697, %v705
  %v708 = vtanh.pop %v707
  %710 = vrot.lane.b32.xlu0 %v708, 64
  %v711 = vpop.permute.xlu0 %710
  %v713 = vmul.f32 %v690, %v711
  %v714 = vsel %vm684, 1, 0
  %715 = vset.pattern.permute.xlu0 0
  %716 = vperm.xlu0 %715, %v714
  %v717 = vpop.permute.xlu0 %716
  %vm718 = vcmp.eq.s32.totalorder %v717, 1
  %v720 = vrot.slane %v713, 4
  %721 = vrot.lane.b32.xlu0 %v720, 32
  %v722 = vpop.permute.xlu0 %721
  %v724 = vsel %vm718, %v722, %v473
  %v726 = vrot.slane %v707, 4
  %727 = vrot.lane.b32.xlu0 %v726, 96
  %v728 = vpop.permute.xlu0 %727
  %v730 = vsel %vm718, %v728, %v482
  %v732 = vsel %vm132, %v600, 0
  %734 = vmatprep.subr.mxu0 0.0
  %735 = vmatpush1.msra.mxu0 0.0
  %736 = vmatprep.subr.mxu0 0.0
  %737 = vmatpush1.msra.mxu0 0.0
  %738 = vmatprep.subr.mxu0 0.0
  %739 = vmatpush1.msra.mxu0 0.0
  %740 = vmatprep.subr.mxu0 0.0
  %741 = vmatpush1.msra.mxu0 0.0
  %742 = vmatprep.subr.mxu0 0.0
  %743 = vmatpush1.msra.mxu0 0.0
  %744 = vmatprep.subr.mxu0 0.0
  %745 = vmatpush1.msra.mxu0 0.0
  %746 = vmatprep.subr.mxu0 0.0
  %747 = vmatpush1.msra.mxu0 0.0
  %748 = vmatprep.subr.mxu0 0.0
  %749 = vmatpush1.msra.mxu0 0.0
  %750 = vmatprep.subr.mxu0 0.0
  %751 = vmatpush1.msra.mxu0 0.0
  %752 = vmatprep.subr.mxu0 0.0
  %753 = vmatpush1.msra.mxu0 0.0
  %754 = vmatprep.subr.mxu0 0.0
  %755 = vmatpush1.msra.mxu0 0.0
  %756 = vmatprep.subr.mxu0 0.0
  %757 = vmatpush1.msra.mxu0 0.0
  %758 = vmatprep.subr.mxu0 0.0
  %759 = vmatpush1.msra.mxu0 %v131
  %760 = vmatprep.subr.mxu0 0.0
  %761 = vmatpush1.msra.mxu0 %v130
  %762 = vmatprep.subr.mxu0 0.0
  %763 = vmatpush1.msra.mxu0 %v129
  %764 = vmatprep.subr.mxu0 0.0
  %765 = vmatpush1.msra.mxu0 %v128
  %766 = vmatprep.subr.mxu0 0.0
  %767 = vmatpush2.msra.mxu0 0.0
  %768 = vmatprep.subr.mxu0 0.0
  %769 = vmatpush2.msra.mxu0 0.0
  %770 = vmatprep.subr.mxu0 0.0
  %771 = vmatpush2.msra.mxu0 0.0
  %772 = vmatprep.subr.mxu0 0.0
  %773 = vmatpush2.msra.mxu0 0.0
  %774 = vmatprep.subr.mxu0 0.0
  %775 = vmatpush2.msra.mxu0 0.0
  %776 = vmatprep.subr.mxu0 0.0
  %777 = vmatpush2.msra.mxu0 0.0
  %778 = vmatprep.subr.mxu0 0.0
  %779 = vmatpush2.msra.mxu0 0.0
  %780 = vmatprep.subr.mxu0 0.0
  %781 = vmatpush2.msra.mxu0 0.0
  %782 = vmatprep.subr.mxu0 0.0
  %783 = vmatpush2.msra.mxu0 0.0
  %784 = vmatprep.subr.mxu0 0.0
  %785 = vmatpush2.msra.mxu0 0.0
  %786 = vmatprep.subr.mxu0 0.0
  %787 = vmatpush2.msra.mxu0 0.0
  %788 = vmatprep.subr.mxu0 0.0
  %789 = vmatpush2.msra.mxu0 0.0
  %790 = vmatprep.subr.mxu0 0.0
  %791 = vmatpush2.msra.mxu0 0.0
  %792 = vmatprep.subr.mxu0 0.0
  %793 = vmatpush2.msra.mxu0 0.0
  %794 = vmatprep.subr.mxu0 0.0
  %795 = vmatpush2.msra.mxu0 0.0
  %796 = vmatprep.subr.mxu0 0.0
  %797 = vmatpush2.msra.mxu0 0.0
  %798 = vmatprep.mubr.f32.mxu0 0.0
  %799 = vmatmul.mubr.f32.gmra.mxu0 %v732
  %v800 = vpop.f32.mrf.mxu0
  %v801 = vadd.f32 0.0, %v800
  %v802 = vpop.f32.mrf.mxu0
  %803 = vdwg.mxu0
  %v805 = vrot.slane %v801, 6
  %v807 = vadd.f32 %v121, %v805
  %vm808 = vcmp.gt.s32.totalorder %v123, 5
  %v809 = vxor.u32 %v807, 2147483648
  %v810 = vmul.f32 %v809, 1.442695
  %v811 = vpow.pop %v810
  %v812 = vadd.f32 %v811, 1.0
  %v813 = vrcp.pop %v812
  %v814 = vmul.f32 1.0, %v813
  %v815 = vtanh.pop %v807
  %v817 = vrot.slane %v606, 6
  %818 = vrot.lane.b32.xlu0 %v817, 32
  %v819 = vpop.permute.xlu0 %818
  %v821 = vmul.f32 %v814, %v819
  %823 = vrot.lane.b32.xlu0 %v815, 64
  %v824 = vpop.permute.xlu0 %823
  %v826 = vmul.f32 %v814, %v824
  %828 = vrot.lane.b32.xlu0 %v826, 32
  %v829 = vpop.permute.xlu0 %828
  %v831 = vadd.f32 %v821, %v829
  %v832 = vtanh.pop %v831
  %834 = vrot.lane.b32.xlu0 %v832, 64
  %v835 = vpop.permute.xlu0 %834
  %v837 = vmul.f32 %v814, %v835
  %v838 = vsel %vm808, 1, 0
  %839 = vset.pattern.permute.xlu0 0
  %840 = vperm.xlu0 %839, %v838
  %v841 = vpop.permute.xlu0 %840
  %vm842 = vcmp.eq.s32.totalorder %v841, 1
  %v844 = vrot.slane %v837, 2
  %845 = vrot.lane.b32.xlu0 %v844, 32
  %v846 = vpop.permute.xlu0 %845
  %v848 = vsel %vm842, %v846, %v600
  %v850 = vrot.slane %v831, 2
  %851 = vrot.lane.b32.xlu0 %v850, 96
  %v852 = vpop.permute.xlu0 %851
  %v854 = vsel %vm842, %v852, %v606
  %v856 = vsel %vm132, %v724, 0
  %858 = vmatprep.subr.mxu0 0.0
  %859 = vmatpush1.msra.mxu0 0.0
  %860 = vmatprep.subr.mxu0 0.0
  %861 = vmatpush1.msra.mxu0 0.0
  %862 = vmatprep.subr.mxu0 0.0
  %863 = vmatpush1.msra.mxu0 0.0
  %864 = vmatprep.subr.mxu0 0.0
  %865 = vmatpush1.msra.mxu0 0.0
  %866 = vmatprep.subr.mxu0 0.0
  %867 = vmatpush1.msra.mxu0 0.0
  %868 = vmatprep.subr.mxu0 0.0
  %869 = vmatpush1.msra.mxu0 0.0
  %870 = vmatprep.subr.mxu0 0.0
  %871 = vmatpush1.msra.mxu0 0.0
  %872 = vmatprep.subr.mxu0 0.0
  %873 = vmatpush1.msra.mxu0 0.0
  %874 = vmatprep.subr.mxu0 0.0
  %875 = vmatpush1.msra.mxu0 0.0
  %876 = vmatprep.subr.mxu0 0.0
  %877 = vmatpush1.msra.mxu0 0.0
  %878 = vmatprep.subr.mxu0 0.0
  %879 = vmatpush1.msra.mxu0 0.0
  %880 = vmatprep.subr.mxu0 0.0
  %881 = vmatpush1.msra.mxu0 0.0
  %882 = vmatprep.subr.mxu0 0.0
  %883 = vmatpush1.msra.mxu0 %v127
  %884 = vmatprep.subr.mxu0 0.0
  %885 = vmatpush1.msra.mxu0 %v126
  %886 = vmatprep.subr.mxu0 0.0
  %887 = vmatpush1.msra.mxu0 %v125
  %888 = vmatprep.subr.mxu0 0.0
  %889 = vmatpush1.msra.mxu0 %v124
  %890 = vmatprep.subr.mxu0 0.0
  %891 = vmatpush2.msra.mxu0 0.0
  %892 = vmatprep.subr.mxu0 0.0
  %893 = vmatpush2.msra.mxu0 0.0
  %894 = vmatprep.subr.mxu0 0.0
  %895 = vmatpush2.msra.mxu0 0.0
  %896 = vmatprep.subr.mxu0 0.0
  %897 = vmatpush2.msra.mxu0 0.0
  %898 = vmatprep.subr.mxu0 0.0
  %899 = vmatpush2.msra.mxu0 0.0
  %900 = vmatprep.subr.mxu0 0.0
  %901 = vmatpush2.msra.mxu0 0.0
  %902 = vmatprep.subr.mxu0 0.0
  %903 = vmatpush2.msra.mxu0 0.0
  %904 = vmatprep.subr.mxu0 0.0
  %905 = vmatpush2.msra.mxu0 0.0
  %906 = vmatprep.subr.mxu0 0.0
  %907 = vmatpush2.msra.mxu0 0.0
  %908 = vmatprep.subr.mxu0 0.0
  %909 = vmatpush2.msra.mxu0 0.0
  %910 = vmatprep.subr.mxu0 0.0
  %911 = vmatpush2.msra.mxu0 0.0
  %912 = vmatprep.subr.mxu0 0.0
  %913 = vmatpush2.msra.mxu0 0.0
  %914 = vmatprep.subr.mxu0 0.0
  %915 = vmatpush2.msra.mxu0 0.0
  %916 = vmatprep.subr.mxu0 0.0
  %917 = vmatpush2.msra.mxu0 0.0
  %918 = vmatprep.subr.mxu0 0.0
  %919 = vmatpush2.msra.mxu0 0.0
  %920 = vmatprep.subr.mxu0 0.0
  %921 = vmatpush2.msra.mxu0 0.0
  %922 = vmatprep.mubr.f32.mxu0 0.0
  %923 = vmatmul.mubr.f32.gmra.mxu0 %v856
  %v924 = vpop.f32.mrf.mxu0
  %v925 = vadd.f32 0.0, %v924
  %v926 = vpop.f32.mrf.mxu0
  %927 = vdwg.mxu0
  %v929 = vrot.slane %v925, 2
  %v931 = vadd.f32 %v113, %v929
  %vm932 = vcmp.gt.s32.totalorder %v123, 3
  %v933 = vxor.u32 %v931, 2147483648
  %v934 = vmul.f32 %v933, 1.442695
  %v935 = vpow.pop %v934
  %v936 = vadd.f32 %v935, 1.0
  %v937 = vrcp.pop %v936
  %v938 = vmul.f32 1.0, %v937
  %v939 = vtanh.pop %v931
  %v941 = vrot.slane %v730, 2
  %942 = vrot.lane.b32.xlu0 %v941, 32
  %v943 = vpop.permute.xlu0 %942
  %v945 = vmul.f32 %v938, %v943
  %947 = vrot.lane.b32.xlu0 %v939, 64
  %v948 = vpop.permute.xlu0 %947
  %v950 = vmul.f32 %v938, %v948
  %952 = vrot.lane.b32.xlu0 %v950, 32
  %v953 = vpop.permute.xlu0 %952
  %v955 = vadd.f32 %v945, %v953
  %v956 = vtanh.pop %v955
  %958 = vrot.lane.b32.xlu0 %v956, 64
  %v959 = vpop.permute.xlu0 %958
  %v961 = vmul.f32 %v938, %v959
  %v962 = vsel %vm932, 1, 0
  %963 = vset.pattern.permute.xlu0 0
  %964 = vperm.xlu0 %963, %v962
  %v965 = vpop.permute.xlu0 %964
  %vm966 = vcmp.eq.s32.totalorder %v965, 1
  %v968 = vrot.slane %v961, 6
  %969 = vrot.lane.b32.xlu0 %v968, 32
  %v970 = vpop.permute.xlu0 %969
  %v972 = vsel %vm966, %v970, %v724
  %v974 = vrot.slane %v955, 6
  %975 = vrot.lane.b32.xlu0 %v974, 96
  %v976 = vpop.permute.xlu0 %975
  %v978 = vsel %vm966, %v976, %v730
  %v980 = vsel %vm132, %v848, 0
  %982 = vmatprep.subr.mxu0 0.0
  %983 = vmatpush1.msra.mxu0 0.0
  %984 = vmatprep.subr.mxu0 0.0
  %985 = vmatpush1.msra.mxu0 0.0
  %986 = vmatprep.subr.mxu0 0.0
  %987 = vmatpush1.msra.mxu0 0.0
  %988 = vmatprep.subr.mxu0 0.0
  %989 = vmatpush1.msra.mxu0 0.0
  %990 = vmatprep.subr.mxu0 0.0
  %991 = vmatpush1.msra.mxu0 0.0
  %992 = vmatprep.subr.mxu0 0.0
  %993 = vmatpush1.msra.mxu0 0.0
  %994 = vmatprep.subr.mxu0 0.0
  %995 = vmatpush1.msra.mxu0 0.0
  %996 = vmatprep.subr.mxu0 0.0
  %997 = vmatpush1.msra.mxu0 0.0
  %998 = vmatprep.subr.mxu0 0.0
  %999 = vmatpush1.msra.mxu0 0.0
  %1000 = vmatprep.subr.mxu0 0.0
  %1001 = vmatpush1.msra.mxu0 0.0
  %1002 = vmatprep.subr.mxu0 0.0
  %1003 = vmatpush1.msra.mxu0 0.0
  %1004 = vmatprep.subr.mxu0 0.0
  %1005 = vmatpush1.msra.mxu0 0.0
  %1006 = vmatprep.subr.mxu0 0.0
  %1007 = vmatpush1.msra.mxu0 %v131
  %1008 = vmatprep.subr.mxu0 0.0
  %1009 = vmatpush1.msra.mxu0 %v130
  %1010 = vmatprep.subr.mxu0 0.0
  %1011 = vmatpush1.msra.mxu0 %v129
  %1012 = vmatprep.subr.mxu0 0.0
  %1013 = vmatpush1.msra.mxu0 %v128
  %1014 = vmatprep.subr.mxu0 0.0
  %1015 = vmatpush2.msra.mxu0 0.0
  %1016 = vmatprep.subr.mxu0 0.0
  %1017 = vmatpush2.msra.mxu0 0.0
  %1018 = vmatprep.subr.mxu0 0.0
  %1019 = vmatpush2.msra.mxu0 0.0
  %1020 = vmatprep.subr.mxu0 0.0
  %1021 = vmatpush2.msra.mxu0 0.0
  %1022 = vmatprep.subr.mxu0 0.0
  %1023 = vmatpush2.msra.mxu0 0.0
  %1024 = vmatprep.subr.mxu0 0.0
  %1025 = vmatpush2.msra.mxu0 0.0
  %1026 = vmatprep.subr.mxu0 0.0
  %1027 = vmatpush2.msra.mxu0 0.0
  %1028 = vmatprep.subr.mxu0 0.0
  %1029 = vmatpush2.msra.mxu0 0.0
  %1030 = vmatprep.subr.mxu0 0.0
  %1031 = vmatpush2.msra.mxu0 0.0
  %1032 = vmatprep.subr.mxu0 0.0
  %1033 = vmatpush2.msra.mxu0 0.0
  %1034 = vmatprep.subr.mxu0 0.0
  %1035 = vmatpush2.msra.mxu0 0.0
  %1036 = vmatprep.subr.mxu0 0.0
  %1037 = vmatpush2.msra.mxu0 0.0
  %1038 = vmatprep.subr.mxu0 0.0
  %1039 = vmatpush2.msra.mxu0 0.0
  %1040 = vmatprep.subr.mxu0 0.0
  %1041 = vmatpush2.msra.mxu0 0.0
  %1042 = vmatprep.subr.mxu0 0.0
  %1043 = vmatpush2.msra.mxu0 0.0
  %1044 = vmatprep.subr.mxu0 0.0
  %1045 = vmatpush2.msra.mxu0 0.0
  %1046 = vmatprep.mubr.f32.mxu0 0.0
  %1047 = vmatmul.mubr.f32.gmra.mxu0 %v980
  %v1048 = vpop.f32.mrf.mxu0
  %v1049 = vadd.f32 0.0, %v1048
  %v1050 = vpop.f32.mrf.mxu0
  %1051 = vdwg.mxu0
  %v1052 = vadd.f32 %v121, %v1049
  %vm1053 = vcmp.gt.s32.totalorder %v123, 4
  %v1054 = vxor.u32 %v1052, 2147483648
  %v1055 = vmul.f32 %v1054, 1.442695
  %v1056 = vpow.pop %v1055
  %v1057 = vadd.f32 %v1056, 1.0
  %v1058 = vrcp.pop %v1057
  %v1059 = vmul.f32 1.0, %v1058
  %v1060 = vtanh.pop %v1052
  %1062 = vrot.lane.b32.xlu0 %v854, 32
  %v1063 = vpop.permute.xlu0 %1062
  %v1065 = vmul.f32 %v1059, %v1063
  %1067 = vrot.lane.b32.xlu0 %v1060, 64
  %v1068 = vpop.permute.xlu0 %1067
  %v1070 = vmul.f32 %v1059, %v1068
  %1072 = vrot.lane.b32.xlu0 %v1070, 32
  %v1073 = vpop.permute.xlu0 %1072
  %v1075 = vadd.f32 %v1065, %v1073
  %v1076 = vtanh.pop %v1075
  %1078 = vrot.lane.b32.xlu0 %v1076, 64
  %v1079 = vpop.permute.xlu0 %1078
  %v1081 = vmul.f32 %v1059, %v1079
  %v1082 = vsel %vm1053, 1, 0
  %1083 = vset.pattern.permute.xlu0 0
  %1084 = vperm.xlu0 %1083, %v1082
  %v1085 = vpop.permute.xlu0 %1084
  %vm1086 = vcmp.eq.s32.totalorder %v1085, 1
  %1087 = vrot.lane.b32.xlu0 %v848, 96
  %v1088 = vpop.permute.xlu0 %1087
  %v1090 = vsel %vm1086, %v1081, %v1088
  %v1091 = vsel %vm1086, %v1075, %v1063
  %v1093 = vsel %vm132, %v972, 0
  %1095 = vmatprep.subr.mxu0 0.0
  %1096 = vmatpush1.msra.mxu0 0.0
  %1097 = vmatprep.subr.mxu0 0.0
  %1098 = vmatpush1.msra.mxu0 0.0
  %1099 = vmatprep.subr.mxu0 0.0
  %1100 = vmatpush1.msra.mxu0 0.0
  %1101 = vmatprep.subr.mxu0 0.0
  %1102 = vmatpush1.msra.mxu0 0.0
  %1103 = vmatprep.subr.mxu0 0.0
  %1104 = vmatpush1.msra.mxu0 0.0
  %1105 = vmatprep.subr.mxu0 0.0
  %1106 = vmatpush1.msra.mxu0 0.0
  %1107 = vmatprep.subr.mxu0 0.0
  %1108 = vmatpush1.msra.mxu0 0.0
  %1109 = vmatprep.subr.mxu0 0.0
  %1110 = vmatpush1.msra.mxu0 0.0
  %1111 = vmatprep.subr.mxu0 0.0
  %1112 = vmatpush1.msra.mxu0 0.0
  %1113 = vmatprep.subr.mxu0 0.0
  %1114 = vmatpush1.msra.mxu0 0.0
  %1115 = vmatprep.subr.mxu0 0.0
  %1116 = vmatpush1.msra.mxu0 0.0
  %1117 = vmatprep.subr.mxu0 0.0
  %1118 = vmatpush1.msra.mxu0 0.0
  %1119 = vmatprep.subr.mxu0 0.0
  %1120 = vmatpush1.msra.mxu0 %v127
  %1121 = vmatprep.subr.mxu0 0.0
  %1122 = vmatpush1.msra.mxu0 %v126
  %1123 = vmatprep.subr.mxu0 0.0
  %1124 = vmatpush1.msra.mxu0 %v125
  %1125 = vmatprep.subr.mxu0 0.0
  %1126 = vmatpush1.msra.mxu0 %v124
  %1127 = vmatprep.subr.mxu0 0.0
  %1128 = vmatpush2.msra.mxu0 0.0
  %1129 = vmatprep.subr.mxu0 0.0
  %1130 = vmatpush2.msra.mxu0 0.0
  %1131 = vmatprep.subr.mxu0 0.0
  %1132 = vmatpush2.msra.mxu0 0.0
  %1133 = vmatprep.subr.mxu0 0.0
  %1134 = vmatpush2.msra.mxu0 0.0
  %1135 = vmatprep.subr.mxu0 0.0
  %1136 = vmatpush2.msra.mxu0 0.0
  %1137 = vmatprep.subr.mxu0 0.0
  %1138 = vmatpush2.msra.mxu0 0.0
  %1139 = vmatprep.subr.mxu0 0.0
  %1140 = vmatpush2.msra.mxu0 0.0
  %1141 = vmatprep.subr.mxu0 0.0
  %1142 = vmatpush2.msra.mxu0 0.0
  %1143 = vmatprep.subr.mxu0 0.0
  %1144 = vmatpush2.msra.mxu0 0.0
  %1145 = vmatprep.subr.mxu0 0.0
  %1146 = vmatpush2.msra.mxu0 0.0
  %1147 = vmatprep.subr.mxu0 0.0
  %1148 = vmatpush2.msra.mxu0 0.0
  %1149 = vmatprep.subr.mxu0 0.0
  %1150 = vmatpush2.msra.mxu0 0.0
  %1151 = vmatprep.subr.mxu0 0.0
  %1152 = vmatpush2.msra.mxu0 0.0
  %1153 = vmatprep.subr.mxu0 0.0
  %1154 = vmatpush2.msra.mxu0 0.0
  %1155 = vmatprep.subr.mxu0 0.0
  %1156 = vmatpush2.msra.mxu0 0.0
  %1157 = vmatprep.subr.mxu0 0.0
  %1158 = vmatpush2.msra.mxu0 0.0
  %1159 = vmatprep.mubr.f32.mxu0 0.0
  %1160 = vmatmul.mubr.f32.gmra.mxu0 %v1093
  %v1161 = vpop.f32.mrf.mxu0
  %v1162 = vadd.f32 0.0, %v1161
  %v1163 = vpop.f32.mrf.mxu0
  %1164 = vdwg.mxu0
  %v1165 = vadd.f32 %v119, %v1162
  %v1166 = vxor.u32 %v1165, 2147483648
  %v1167 = vmul.f32 %v1166, 1.442695
  %v1168 = vpow.pop %v1167
  %v1169 = vadd.f32 %v1168, 1.0
  %v1170 = vrcp.pop %v1169
  %v1171 = vmul.f32 1.0, %v1170
  %v1172 = vtanh.pop %v1165
  %1174 = vrot.lane.b32.xlu0 %v978, 32
  %v1175 = vpop.permute.xlu0 %1174
  %v1177 = vmul.f32 %v1171, %v1175
  %1179 = vrot.lane.b32.xlu0 %v1172, 64
  %v1180 = vpop.permute.xlu0 %1179
  %v1182 = vmul.f32 %v1171, %v1180
  %1184 = vrot.lane.b32.xlu0 %v1182, 32
  %v1185 = vpop.permute.xlu0 %1184
  %v1187 = vadd.f32 %v1177, %v1185
  %v1188 = vtanh.pop %v1187
  %1190 = vrot.lane.b32.xlu0 %v1188, 64
  %v1191 = vpop.permute.xlu0 %1190
  %v1193 = vmul.f32 %v1171, %v1191
  %1194 = vrot.lane.b32.xlu0 %v972, 96
  %v1195 = vpop.permute.xlu0 %1194
  %v1197 = vsel %vm1086, %v1193, %v1195
  %v1198 = vsel %vm1086, %v1187, %v1175
  %1200 = vrot.lane.b32.xlu0 %v1090, 32
  %v1201 = vpop.permute.xlu0 %1200
  %v1202 = vsel %vm132, %v1201, 0
  %1204 = vmatprep.subr.mxu0 0.0
  %1205 = vmatpush1.msra.mxu0 0.0
  %1206 = vmatprep.subr.mxu0 0.0
  %1207 = vmatpush1.msra.mxu0 0.0
  %1208 = vmatprep.subr.mxu0 0.0
  %1209 = vmatpush1.msra.mxu0 0.0
  %1210 = vmatprep.subr.mxu0 0.0
  %1211 = vmatpush1.msra.mxu0 0.0
  %1212 = vmatprep.subr.mxu0 0.0
  %1213 = vmatpush1.msra.mxu0 0.0
  %1214 = vmatprep.subr.mxu0 0.0
  %1215 = vmatpush1.msra.mxu0 0.0
  %1216 = vmatprep.subr.mxu0 0.0
  %1217 = vmatpush1.msra.mxu0 0.0
  %1218 = vmatprep.subr.mxu0 0.0
  %1219 = vmatpush1.msra.mxu0 0.0
  %1220 = vmatprep.subr.mxu0 0.0
  %1221 = vmatpush1.msra.mxu0 0.0
  %1222 = vmatprep.subr.mxu0 0.0
  %1223 = vmatpush1.msra.mxu0 0.0
  %1224 = vmatprep.subr.mxu0 0.0
  %1225 = vmatpush1.msra.mxu0 0.0
  %1226 = vmatprep.subr.mxu0 0.0
  %1227 = vmatpush1.msra.mxu0 0.0
  %1228 = vmatprep.subr.mxu0 0.0
  %1229 = vmatpush1.msra.mxu0 %v131
  %1230 = vmatprep.subr.mxu0 0.0
  %1231 = vmatpush1.msra.mxu0 %v130
  %1232 = vmatprep.subr.mxu0 0.0
  %1233 = vmatpush1.msra.mxu0 %v129
  %1234 = vmatprep.subr.mxu0 0.0
  %1235 = vmatpush1.msra.mxu0 %v128
  %1236 = vmatprep.subr.mxu0 0.0
  %1237 = vmatpush2.msra.mxu0 0.0
  %1238 = vmatprep.subr.mxu0 0.0
  %1239 = vmatpush2.msra.mxu0 0.0
  %1240 = vmatprep.subr.mxu0 0.0
  %1241 = vmatpush2.msra.mxu0 0.0
  %1242 = vmatprep.subr.mxu0 0.0
  %1243 = vmatpush2.msra.mxu0 0.0
  %1244 = vmatprep.subr.mxu0 0.0
  %1245 = vmatpush2.msra.mxu0 0.0
  %1246 = vmatprep.subr.mxu0 0.0
  %1247 = vmatpush2.msra.mxu0 0.0
  %1248 = vmatprep.subr.mxu0 0.0
  %1249 = vmatpush2.msra.mxu0 0.0
  %1250 = vmatprep.subr.mxu0 0.0
  %1251 = vmatpush2.msra.mxu0 0.0
  %1252 = vmatprep.subr.mxu0 0.0
  %1253 = vmatpush2.msra.mxu0 0.0
  %1254 = vmatprep.subr.mxu0 0.0
  %1255 = vmatpush2.msra.mxu0 0.0
  %1256 = vmatprep.subr.mxu0 0.0
  %1257 = vmatpush2.msra.mxu0 0.0
  %1258 = vmatprep.subr.mxu0 0.0
  %1259 = vmatpush2.msra.mxu0 0.0
  %1260 = vmatprep.subr.mxu0 0.0
  %1261 = vmatpush2.msra.mxu0 0.0
  %1262 = vmatprep.subr.mxu0 0.0
  %1263 = vmatpush2.msra.mxu0 0.0
  %1264 = vmatprep.subr.mxu0 0.0
  %1265 = vmatpush2.msra.mxu0 0.0
  %1266 = vmatprep.subr.mxu0 0.0
  %1267 = vmatpush2.msra.mxu0 0.0
  %1268 = vmatprep.mubr.f32.mxu0 0.0
  %1269 = vmatmul.mubr.f32.gmra.mxu0 %v1202
  %v1270 = vpop.f32.mrf.mxu0
  %v1271 = vadd.f32 0.0, %v1270
  %v1272 = vpop.f32.mrf.mxu0
  %1273 = vdwg.mxu0
  %v1275 = vrot.slane %v1271, 2
  %v1277 = vadd.f32 %v115, %v1275
  %v1278 = vxor.u32 %v1277, 2147483648
  %v1279 = vmul.f32 %v1278, 1.442695
  %v1280 = vpow.pop %v1279
  %v1281 = vadd.f32 %v1280, 1.0
  %v1282 = vrcp.pop %v1281
  %v1283 = vmul.f32 1.0, %v1282
  %v1284 = vtanh.pop %v1277
  %v1286 = vrot.slane %v1091, 2
  %v1288 = vmul.f32 %v1283, %v1286
  %1290 = vrot.lane.b32.xlu0 %v1284, 64
  %v1291 = vpop.permute.xlu0 %1290
  %v1293 = vmul.f32 %v1283, %v1291
  %1295 = vrot.lane.b32.xlu0 %v1293, 32
  %v1296 = vpop.permute.xlu0 %1295
  %v1298 = vadd.f32 %v1288, %v1296
  %v1299 = vtanh.pop %v1298
  %1301 = vrot.lane.b32.xlu0 %v1299, 64
  %v1302 = vpop.permute.xlu0 %1301
  %v1304 = vmul.f32 %v1283, %v1302
  %v1306 = vrot.slane %v1304, 6
  %1307 = vrot.lane.b32.xlu0 %v1306, 32
  %v1308 = vpop.permute.xlu0 %1307
  %v1311 = vsel %vm966, %v1308, %v1201
  %v1313 = vrot.slane %v1298, 6
  %1314 = vrot.lane.b32.xlu0 %v1313, 96
  %v1315 = vpop.permute.xlu0 %1314
  %1317 = vrot.lane.b32.xlu0 %v1091, 96
  %v1318 = vpop.permute.xlu0 %1317
  %v1320 = vsel %vm966, %v1315, %v1318
  %1322 = vrot.lane.b32.xlu0 %v1197, 32
  %v1323 = vpop.permute.xlu0 %1322
  %v1324 = vsel %vm132, %v1323, 0
  %1326 = vmatprep.subr.mxu0 0.0
  %1327 = vmatpush1.msra.mxu0 0.0
  %1328 = vmatprep.subr.mxu0 0.0
  %1329 = vmatpush1.msra.mxu0 0.0
  %1330 = vmatprep.subr.mxu0 0.0
  %1331 = vmatpush1.msra.mxu0 0.0
  %1332 = vmatprep.subr.mxu0 0.0
  %1333 = vmatpush1.msra.mxu0 0.0
  %1334 = vmatprep.subr.mxu0 0.0
  %1335 = vmatpush1.msra.mxu0 0.0
  %1336 = vmatprep.subr.mxu0 0.0
  %1337 = vmatpush1.msra.mxu0 0.0
  %1338 = vmatprep.subr.mxu0 0.0
  %1339 = vmatpush1.msra.mxu0 0.0
  %1340 = vmatprep.subr.mxu0 0.0
  %1341 = vmatpush1.msra.mxu0 0.0
  %1342 = vmatprep.subr.mxu0 0.0
  %1343 = vmatpush1.msra.mxu0 0.0
  %1344 = vmatprep.subr.mxu0 0.0
  %1345 = vmatpush1.msra.mxu0 0.0
  %1346 = vmatprep.subr.mxu0 0.0
  %1347 = vmatpush1.msra.mxu0 0.0
  %1348 = vmatprep.subr.mxu0 0.0
  %1349 = vmatpush1.msra.mxu0 0.0
  %1350 = vmatprep.subr.mxu0 0.0
  %1351 = vmatpush1.msra.mxu0 %v127
  %1352 = vmatprep.subr.mxu0 0.0
  %1353 = vmatpush1.msra.mxu0 %v126
  %1354 = vmatprep.subr.mxu0 0.0
  %1355 = vmatpush1.msra.mxu0 %v125
  %1356 = vmatprep.subr.mxu0 0.0
  %1357 = vmatpush1.msra.mxu0 %v124
  %1358 = vmatprep.subr.mxu0 0.0
  %1359 = vmatpush2.msra.mxu0 0.0
  %1360 = vmatprep.subr.mxu0 0.0
  %1361 = vmatpush2.msra.mxu0 0.0
  %1362 = vmatprep.subr.mxu0 0.0
  %1363 = vmatpush2.msra.mxu0 0.0
  %1364 = vmatprep.subr.mxu0 0.0
  %1365 = vmatpush2.msra.mxu0 0.0
  %1366 = vmatprep.subr.mxu0 0.0
  %1367 = vmatpush2.msra.mxu0 0.0
  %1368 = vmatprep.subr.mxu0 0.0
  %1369 = vmatpush2.msra.mxu0 0.0
  %1370 = vmatprep.subr.mxu0 0.0
  %1371 = vmatpush2.msra.mxu0 0.0
  %1372 = vmatprep.subr.mxu0 0.0
  %1373 = vmatpush2.msra.mxu0 0.0
  %1374 = vmatprep.subr.mxu0 0.0
  %1375 = vmatpush2.msra.mxu0 0.0
  %1376 = vmatprep.subr.mxu0 0.0
  %1377 = vmatpush2.msra.mxu0 0.0
  %1378 = vmatprep.subr.mxu0 0.0
  %1379 = vmatpush2.msra.mxu0 0.0
  %1380 = vmatprep.subr.mxu0 0.0
  %1381 = vmatpush2.msra.mxu0 0.0
  %1382 = vmatprep.subr.mxu0 0.0
  %1383 = vmatpush2.msra.mxu0 0.0
  %1384 = vmatprep.subr.mxu0 0.0
  %1385 = vmatpush2.msra.mxu0 0.0
  %1386 = vmatprep.subr.mxu0 0.0
  %1387 = vmatpush2.msra.mxu0 0.0
  %1388 = vmatprep.subr.mxu0 0.0
  %1389 = vmatpush2.msra.mxu0 0.0
  %1390 = vmatprep.mubr.f32.mxu0 0.0
  %1391 = vmatmul.mubr.f32.gmra.mxu0 %v1324
  %v1392 = vpop.f32.mrf.mxu0
  %v1393 = vadd.f32 0.0, %v1392
  %v1394 = vpop.f32.mrf.mxu0
  %1395 = vdwg.mxu0
  %v1397 = vrot.slane %v1393, 6
  %v1399 = vadd.f32 %v119, %v1397
  %v1400 = vxor.u32 %v1399, 2147483648
  %v1401 = vmul.f32 %v1400, 1.442695
  %v1402 = vpow.pop %v1401
  %v1403 = vadd.f32 %v1402, 1.0
  %v1404 = vrcp.pop %v1403
  %v1405 = vmul.f32 1.0, %v1404
  %v1406 = vtanh.pop %v1399
  %v1408 = vrot.slane %v1198, 6
  %v1410 = vmul.f32 %v1405, %v1408
  %1412 = vrot.lane.b32.xlu0 %v1406, 64
  %v1413 = vpop.permute.xlu0 %1412
  %v1415 = vmul.f32 %v1405, %v1413
  %1417 = vrot.lane.b32.xlu0 %v1415, 32
  %v1418 = vpop.permute.xlu0 %1417
  %v1420 = vadd.f32 %v1410, %v1418
  %v1421 = vtanh.pop %v1420
  %1423 = vrot.lane.b32.xlu0 %v1421, 64
  %v1424 = vpop.permute.xlu0 %1423
  %v1426 = vmul.f32 %v1405, %v1424
  %v1428 = vrot.slane %v1426, 2
  %1429 = vrot.lane.b32.xlu0 %v1428, 32
  %v1430 = vpop.permute.xlu0 %1429
  %v1433 = vsel %vm842, %v1430, %v1323
  %v1435 = vrot.slane %v1420, 2
  %1436 = vrot.lane.b32.xlu0 %v1435, 96
  %v1437 = vpop.permute.xlu0 %1436
  %1439 = vrot.lane.b32.xlu0 %v1198, 96
  %v1440 = vpop.permute.xlu0 %1439
  %v1442 = vsel %vm842, %v1437, %v1440
  %v1444 = vsel %vm132, %v1311, 0
  %1446 = vmatprep.subr.mxu0 0.0
  %1447 = vmatpush1.msra.mxu0 0.0
  %1448 = vmatprep.subr.mxu0 0.0
  %1449 = vmatpush1.msra.mxu0 0.0
  %1450 = vmatprep.subr.mxu0 0.0
  %1451 = vmatpush1.msra.mxu0 0.0
  %1452 = vmatprep.subr.mxu0 0.0
  %1453 = vmatpush1.msra.mxu0 0.0
  %1454 = vmatprep.subr.mxu0 0.0
  %1455 = vmatpush1.msra.mxu0 0.0
  %1456 = vmatprep.subr.mxu0 0.0
  %1457 = vmatpush1.msra.mxu0 0.0
  %1458 = vmatprep.subr.mxu0 0.0
  %1459 = vmatpush1.msra.mxu0 0.0
  %1460 = vmatprep.subr.mxu0 0.0
  %1461 = vmatpush1.msra.mxu0 0.0
  %1462 = vmatprep.subr.mxu0 0.0
  %1463 = vmatpush1.msra.mxu0 0.0
  %1464 = vmatprep.subr.mxu0 0.0
  %1465 = vmatpush1.msra.mxu0 0.0
  %1466 = vmatprep.subr.mxu0 0.0
  %1467 = vmatpush1.msra.mxu0 0.0
  %1468 = vmatprep.subr.mxu0 0.0
  %1469 = vmatpush1.msra.mxu0 0.0
  %1470 = vmatprep.subr.mxu0 0.0
  %1471 = vmatpush1.msra.mxu0 %v131
  %1472 = vmatprep.subr.mxu0 0.0
  %1473 = vmatpush1.msra.mxu0 %v130
  %1474 = vmatprep.subr.mxu0 0.0
  %1475 = vmatpush1.msra.mxu0 %v129
  %1476 = vmatprep.subr.mxu0 0.0
  %1477 = vmatpush1.msra.mxu0 %v128
  %1478 = vmatprep.subr.mxu0 0.0
  %1479 = vmatpush2.msra.mxu0 0.0
  %1480 = vmatprep.subr.mxu0 0.0
  %1481 = vmatpush2.msra.mxu0 0.0
  %1482 = vmatprep.subr.mxu0 0.0
  %1483 = vmatpush2.msra.mxu0 0.0
  %1484 = vmatprep.subr.mxu0 0.0
  %1485 = vmatpush2.msra.mxu0 0.0
  %1486 = vmatprep.subr.mxu0 0.0
  %1487 = vmatpush2.msra.mxu0 0.0
  %1488 = vmatprep.subr.mxu0 0.0
  %1489 = vmatpush2.msra.mxu0 0.0
  %1490 = vmatprep.subr.mxu0 0.0
  %1491 = vmatpush2.msra.mxu0 0.0
  %1492 = vmatprep.subr.mxu0 0.0
  %1493 = vmatpush2.msra.mxu0 0.0
  %1494 = vmatprep.subr.mxu0 0.0
  %1495 = vmatpush2.msra.mxu0 0.0
  %1496 = vmatprep.subr.mxu0 0.0
  %1497 = vmatpush2.msra.mxu0 0.0
  %1498 = vmatprep.subr.mxu0 0.0
  %1499 = vmatpush2.msra.mxu0 0.0
  %1500 = vmatprep.subr.mxu0 0.0
  %1501 = vmatpush2.msra.mxu0 0.0
  %1502 = vmatprep.subr.mxu0 0.0
  %1503 = vmatpush2.msra.mxu0 0.0
  %1504 = vmatprep.subr.mxu0 0.0
  %1505 = vmatpush2.msra.mxu0 0.0
  %1506 = vmatprep.subr.mxu0 0.0
  %1507 = vmatpush2.msra.mxu0 0.0
  %1508 = vmatprep.subr.mxu0 0.0
  %1509 = vmatpush2.msra.mxu0 0.0
  %1510 = vmatprep.mubr.f32.mxu0 0.0
  %1511 = vmatmul.mubr.f32.gmra.mxu0 %v1444
  %v1512 = vpop.f32.mrf.mxu0
  %v1513 = vadd.f32 0.0, %v1512
  %v1514 = vpop.f32.mrf.mxu0
  %1515 = vdwg.mxu0
  %v1517 = vrot.slane %v1513, 4
  %v1519 = vadd.f32 %v115, %v1517
  %v1520 = vxor.u32 %v1519, 2147483648
  %v1521 = vmul.f32 %v1520, 1.442695
  %v1522 = vpow.pop %v1521
  %v1523 = vadd.f32 %v1522, 1.0
  %v1524 = vrcp.pop %v1523
  %v1525 = vmul.f32 1.0, %v1524
  %v1526 = vtanh.pop %v1519
  %v1528 = vrot.slane %v1320, 4
  %1529 = vrot.lane.b32.xlu0 %v1528, 32
  %v1530 = vpop.permute.xlu0 %1529
  %v1532 = vmul.f32 %v1525, %v1530
  %1534 = vrot.lane.b32.xlu0 %v1526, 64
  %v1535 = vpop.permute.xlu0 %1534
  %v1537 = vmul.f32 %v1525, %v1535
  %1539 = vrot.lane.b32.xlu0 %v1537, 32
  %v1540 = vpop.permute.xlu0 %1539
  %v1542 = vadd.f32 %v1532, %v1540
  %v1543 = vtanh.pop %v1542
  %1545 = vrot.lane.b32.xlu0 %v1543, 64
  %v1546 = vpop.permute.xlu0 %1545
  %v1548 = vmul.f32 %v1525, %v1546
  %v1550 = vrot.slane %v1548, 4
  %1551 = vrot.lane.b32.xlu0 %v1550, 32
  %v1552 = vpop.permute.xlu0 %1551
  %v1554 = vsel %vm718, %v1552, %v1311
  %v1556 = vrot.slane %v1542, 4
  %1557 = vrot.lane.b32.xlu0 %v1556, 96
  %v1558 = vpop.permute.xlu0 %1557
  %v1560 = vsel %vm718, %v1558, %v1320
  %v1562 = vsel %vm132, %v1433, 0
  %1564 = vmatprep.subr.mxu0 0.0
  %1565 = vmatpush1.msra.mxu0 0.0
  %1566 = vmatprep.subr.mxu0 0.0
  %1567 = vmatpush1.msra.mxu0 0.0
  %1568 = vmatprep.subr.mxu0 0.0
  %1569 = vmatpush1.msra.mxu0 0.0
  %1570 = vmatprep.subr.mxu0 0.0
  %1571 = vmatpush1.msra.mxu0 0.0
  %1572 = vmatprep.subr.mxu0 0.0
  %1573 = vmatpush1.msra.mxu0 0.0
  %1574 = vmatprep.subr.mxu0 0.0
  %1575 = vmatpush1.msra.mxu0 0.0
  %1576 = vmatprep.subr.mxu0 0.0
  %1577 = vmatpush1.msra.mxu0 0.0
  %1578 = vmatprep.subr.mxu0 0.0
  %1579 = vmatpush1.msra.mxu0 0.0
  %1580 = vmatprep.subr.mxu0 0.0
  %1581 = vmatpush1.msra.mxu0 0.0
  %1582 = vmatprep.subr.mxu0 0.0
  %1583 = vmatpush1.msra.mxu0 0.0
  %1584 = vmatprep.subr.mxu0 0.0
  %1585 = vmatpush1.msra.mxu0 0.0
  %1586 = vmatprep.subr.mxu0 0.0
  %1587 = vmatpush1.msra.mxu0 0.0
  %1588 = vmatprep.subr.mxu0 0.0
  %1589 = vmatpush1.msra.mxu0 %v127
  %1590 = vmatprep.subr.mxu0 0.0
  %1591 = vmatpush1.msra.mxu0 %v126
  %1592 = vmatprep.subr.mxu0 0.0
  %1593 = vmatpush1.msra.mxu0 %v125
  %1594 = vmatprep.subr.mxu0 0.0
  %1595 = vmatpush1.msra.mxu0 %v124
  %1596 = vmatprep.subr.mxu0 0.0
  %1597 = vmatpush2.msra.mxu0 0.0
  %1598 = vmatprep.subr.mxu0 0.0
  %1599 = vmatpush2.msra.mxu0 0.0
  %1600 = vmatprep.subr.mxu0 0.0
  %1601 = vmatpush2.msra.mxu0 0.0
  %1602 = vmatprep.subr.mxu0 0.0
  %1603 = vmatpush2.msra.mxu0 0.0
  %1604 = vmatprep.subr.mxu0 0.0
  %1605 = vmatpush2.msra.mxu0 0.0
  %1606 = vmatprep.subr.mxu0 0.0
  %1607 = vmatpush2.msra.mxu0 0.0
  %1608 = vmatprep.subr.mxu0 0.0
  %1609 = vmatpush2.msra.mxu0 0.0
  %1610 = vmatprep.subr.mxu0 0.0
  %1611 = vmatpush2.msra.mxu0 0.0
  %1612 = vmatprep.subr.mxu0 0.0
  %1613 = vmatpush2.msra.mxu0 0.0
  %1614 = vmatprep.subr.mxu0 0.0
  %1615 = vmatpush2.msra.mxu0 0.0
  %1616 = vmatprep.subr.mxu0 0.0
  %1617 = vmatpush2.msra.mxu0 0.0
  %1618 = vmatprep.subr.mxu0 0.0
  %1619 = vmatpush2.msra.mxu0 0.0
  %1620 = vmatprep.subr.mxu0 0.0
  %1621 = vmatpush2.msra.mxu0 0.0
  %1622 = vmatprep.subr.mxu0 0.0
  %1623 = vmatpush2.msra.mxu0 0.0
  %1624 = vmatprep.subr.mxu0 0.0
  %1625 = vmatpush2.msra.mxu0 0.0
  %1626 = vmatprep.subr.mxu0 0.0
  %1627 = vmatpush2.msra.mxu0 0.0
  %1628 = vmatprep.mubr.f32.mxu0 0.0
  %1629 = vmatmul.mubr.f32.gmra.mxu0 %v1562
  %v1630 = vpop.f32.mrf.mxu0
  %v1631 = vadd.f32 0.0, %v1630
  %v1632 = vpop.f32.mrf.mxu0
  %1633 = vdwg.mxu0
  %v1635 = vrot.slane %v1631, 4
  %v1637 = vadd.f32 %v119, %v1635
  %v1638 = vxor.u32 %v1637, 2147483648
  %v1639 = vmul.f32 %v1638, 1.442695
  %v1640 = vpow.pop %v1639
  %v1641 = vadd.f32 %v1640, 1.0
  %v1642 = vrcp.pop %v1641
  %v1643 = vmul.f32 1.0, %v1642
  %v1644 = vtanh.pop %v1637
  %v1646 = vrot.slane %v1442, 4
  %1647 = vrot.lane.b32.xlu0 %v1646, 32
  %v1648 = vpop.permute.xlu0 %1647
  %v1650 = vmul.f32 %v1643, %v1648
  %1652 = vrot.lane.b32.xlu0 %v1644, 64
  %v1653 = vpop.permute.xlu0 %1652
  %v1655 = vmul.f32 %v1643, %v1653
  %1657 = vrot.lane.b32.xlu0 %v1655, 32
  %v1658 = vpop.permute.xlu0 %1657
  %v1660 = vadd.f32 %v1650, %v1658
  %v1661 = vtanh.pop %v1660
  %1663 = vrot.lane.b32.xlu0 %v1661, 64
  %v1664 = vpop.permute.xlu0 %1663
  %v1666 = vmul.f32 %v1643, %v1664
  %v1668 = vrot.slane %v1666, 4
  %1669 = vrot.lane.b32.xlu0 %v1668, 32
  %v1670 = vpop.permute.xlu0 %1669
  %v1672 = vsel %vm594, %v1670, %v1433
  %v1674 = vrot.slane %v1660, 4
  %1675 = vrot.lane.b32.xlu0 %v1674, 96
  %v1676 = vpop.permute.xlu0 %1675
  %v1678 = vsel %vm594, %v1676, %v1442
  %v1680 = vsel %vm132, %v1554, 0
  %1682 = vmatprep.subr.mxu0 0.0
  %1683 = vmatpush1.msra.mxu0 0.0
  %1684 = vmatprep.subr.mxu0 0.0
  %1685 = vmatpush1.msra.mxu0 0.0
  %1686 = vmatprep.subr.mxu0 0.0
  %1687 = vmatpush1.msra.mxu0 0.0
  %1688 = vmatprep.subr.mxu0 0.0
  %1689 = vmatpush1.msra.mxu0 0.0
  %1690 = vmatprep.subr.mxu0 0.0
  %1691 = vmatpush1.msra.mxu0 0.0
  %1692 = vmatprep.subr.mxu0 0.0
  %1693 = vmatpush1.msra.mxu0 0.0
  %1694 = vmatprep.subr.mxu0 0.0
  %1695 = vmatpush1.msra.mxu0 0.0
  %1696 = vmatprep.subr.mxu0 0.0
  %1697 = vmatpush1.msra.mxu0 0.0
  %1698 = vmatprep.subr.mxu0 0.0
  %1699 = vmatpush1.msra.mxu0 0.0
  %1700 = vmatprep.subr.mxu0 0.0
  %1701 = vmatpush1.msra.mxu0 0.0
  %1702 = vmatprep.subr.mxu0 0.0
  %1703 = vmatpush1.msra.mxu0 0.0
  %1704 = vmatprep.subr.mxu0 0.0
  %1705 = vmatpush1.msra.mxu0 0.0
  %1706 = vmatprep.subr.mxu0 0.0
  %1707 = vmatpush1.msra.mxu0 %v131
  %1708 = vmatprep.subr.mxu0 0.0
  %1709 = vmatpush1.msra.mxu0 %v130
  %1710 = vmatprep.subr.mxu0 0.0
  %1711 = vmatpush1.msra.mxu0 %v129
  %1712 = vmatprep.subr.mxu0 0.0
  %1713 = vmatpush1.msra.mxu0 %v128
  %1714 = vmatprep.subr.mxu0 0.0
  %1715 = vmatpush2.msra.mxu0 0.0
  %1716 = vmatprep.subr.mxu0 0.0
  %1717 = vmatpush2.msra.mxu0 0.0
  %1718 = vmatprep.subr.mxu0 0.0
  %1719 = vmatpush2.msra.mxu0 0.0
  %1720 = vmatprep.subr.mxu0 0.0
  %1721 = vmatpush2.msra.mxu0 0.0
  %1722 = vmatprep.subr.mxu0 0.0
  %1723 = vmatpush2.msra.mxu0 0.0
  %1724 = vmatprep.subr.mxu0 0.0
  %1725 = vmatpush2.msra.mxu0 0.0
  %1726 = vmatprep.subr.mxu0 0.0
  %1727 = vmatpush2.msra.mxu0 0.0
  %1728 = vmatprep.subr.mxu0 0.0
  %1729 = vmatpush2.msra.mxu0 0.0
  %1730 = vmatprep.subr.mxu0 0.0
  %1731 = vmatpush2.msra.mxu0 0.0
  %1732 = vmatprep.subr.mxu0 0.0
  %1733 = vmatpush2.msra.mxu0 0.0
  %1734 = vmatprep.subr.mxu0 0.0
  %1735 = vmatpush2.msra.mxu0 0.0
  %1736 = vmatprep.subr.mxu0 0.0
  %1737 = vmatpush2.msra.mxu0 0.0
  %1738 = vmatprep.subr.mxu0 0.0
  %1739 = vmatpush2.msra.mxu0 0.0
  %1740 = vmatprep.subr.mxu0 0.0
  %1741 = vmatpush2.msra.mxu0 0.0
  %1742 = vmatprep.subr.mxu0 0.0
  %1743 = vmatpush2.msra.mxu0 0.0
  %1744 = vmatprep.subr.mxu0 0.0
  %1745 = vmatpush2.msra.mxu0 0.0
  %1746 = vmatprep.mubr.f32.mxu0 0.0
  %1747 = vmatmul.mubr.f32.gmra.mxu0 %v1680
  %v1748 = vpop.f32.mrf.mxu0
  %v1749 = vadd.f32 0.0, %v1748
  %v1750 = vpop.f32.mrf.mxu0
  %1751 = vdwg.mxu0
  %v1753 = vrot.slane %v1749, 6
  %v1755 = vadd.f32 %v115, %v1753
  %v1756 = vxor.u32 %v1755, 2147483648
  %v1757 = vmul.f32 %v1756, 1.442695
  %v1758 = vpow.pop %v1757
  %v1759 = vadd.f32 %v1758, 1.0
  %v1760 = vrcp.pop %v1759
  %v1761 = vmul.f32 1.0, %v1760
  %v1762 = vtanh.pop %v1755
  %v1764 = vrot.slane %v1560, 6
  %1765 = vrot.lane.b32.xlu0 %v1764, 32
  %v1766 = vpop.permute.xlu0 %1765
  %v1768 = vmul.f32 %v1761, %v1766
  %1770 = vrot.lane.b32.xlu0 %v1762, 64
  %v1771 = vpop.permute.xlu0 %1770
  %v1773 = vmul.f32 %v1761, %v1771
  %1775 = vrot.lane.b32.xlu0 %v1773, 32
  %v1776 = vpop.permute.xlu0 %1775
  %v1778 = vadd.f32 %v1768, %v1776
  %v1779 = vtanh.pop %v1778
  %1781 = vrot.lane.b32.xlu0 %v1779, 64
  %v1782 = vpop.permute.xlu0 %1781
  %v1784 = vmul.f32 %v1761, %v1782
  %v1786 = vrot.slane %v1784, 2
  %1787 = vrot.lane.b32.xlu0 %v1786, 32
  %v1788 = vpop.permute.xlu0 %1787
  %v1790 = vsel %vm466, %v1788, %v1554
  %v1792 = vrot.slane %v1778, 2
  %1793 = vrot.lane.b32.xlu0 %v1792, 96
  %v1794 = vpop.permute.xlu0 %1793
  %v1796 = vsel %vm466, %v1794, %v1560
  %v1798 = vsel %vm132, %v1672, 0
  %1800 = vmatprep.subr.mxu0 0.0
  %1801 = vmatpush1.msra.mxu0 0.0
  %1802 = vmatprep.subr.mxu0 0.0
  %1803 = vmatpush1.msra.mxu0 0.0
  %1804 = vmatprep.subr.mxu0 0.0
  %1805 = vmatpush1.msra.mxu0 0.0
  %1806 = vmatprep.subr.mxu0 0.0
  %1807 = vmatpush1.msra.mxu0 0.0
  %1808 = vmatprep.subr.mxu0 0.0
  %1809 = vmatpush1.msra.mxu0 0.0
  %1810 = vmatprep.subr.mxu0 0.0
  %1811 = vmatpush1.msra.mxu0 0.0
  %1812 = vmatprep.subr.mxu0 0.0
  %1813 = vmatpush1.msra.mxu0 0.0
  %1814 = vmatprep.subr.mxu0 0.0
  %1815 = vmatpush1.msra.mxu0 0.0
  %1816 = vmatprep.subr.mxu0 0.0
  %1817 = vmatpush1.msra.mxu0 0.0
  %1818 = vmatprep.subr.mxu0 0.0
  %1819 = vmatpush1.msra.mxu0 0.0
  %1820 = vmatprep.subr.mxu0 0.0
  %1821 = vmatpush1.msra.mxu0 0.0
  %1822 = vmatprep.subr.mxu0 0.0
  %1823 = vmatpush1.msra.mxu0 0.0
  %1824 = vmatprep.subr.mxu0 0.0
  %1825 = vmatpush1.msra.mxu0 %v127
  %1826 = vmatprep.subr.mxu0 0.0
  %1827 = vmatpush1.msra.mxu0 %v126
  %1828 = vmatprep.subr.mxu0 0.0
  %1829 = vmatpush1.msra.mxu0 %v125
  %1830 = vmatprep.subr.mxu0 0.0
  %1831 = vmatpush1.msra.mxu0 %v124
  %1832 = vmatprep.subr.mxu0 0.0
  %1833 = vmatpush2.msra.mxu0 0.0
  %1834 = vmatprep.subr.mxu0 0.0
  %1835 = vmatpush2.msra.mxu0 0.0
  %1836 = vmatprep.subr.mxu0 0.0
  %1837 = vmatpush2.msra.mxu0 0.0
  %1838 = vmatprep.subr.mxu0 0.0
  %1839 = vmatpush2.msra.mxu0 0.0
  %1840 = vmatprep.subr.mxu0 0.0
  %1841 = vmatpush2.msra.mxu0 0.0
  %1842 = vmatprep.subr.mxu0 0.0
  %1843 = vmatpush2.msra.mxu0 0.0
  %1844 = vmatprep.subr.mxu0 0.0
  %1845 = vmatpush2.msra.mxu0 0.0
  %1846 = vmatprep.subr.mxu0 0.0
  %1847 = vmatpush2.msra.mxu0 0.0
  %1848 = vmatprep.subr.mxu0 0.0
  %1849 = vmatpush2.msra.mxu0 0.0
  %1850 = vmatprep.subr.mxu0 0.0
  %1851 = vmatpush2.msra.mxu0 0.0
  %1852 = vmatprep.subr.mxu0 0.0
  %1853 = vmatpush2.msra.mxu0 0.0
  %1854 = vmatprep.subr.mxu0 0.0
  %1855 = vmatpush2.msra.mxu0 0.0
  %1856 = vmatprep.subr.mxu0 0.0
  %1857 = vmatpush2.msra.mxu0 0.0
  %1858 = vmatprep.subr.mxu0 0.0
  %1859 = vmatpush2.msra.mxu0 0.0
  %1860 = vmatprep.subr.mxu0 0.0
  %1861 = vmatpush2.msra.mxu0 0.0
  %1862 = vmatprep.subr.mxu0 0.0
  %1863 = vmatpush2.msra.mxu0 0.0
  %1864 = vmatprep.mubr.f32.mxu0 0.0
  %1865 = vmatmul.mubr.f32.gmra.mxu0 %v1798
  %v1866 = vpop.f32.mrf.mxu0
  %v1867 = vadd.f32 0.0, %v1866
  %v1868 = vpop.f32.mrf.mxu0
  %1869 = vdwg.mxu0
  %v1871 = vrot.slane %v1867, 2
  %v1873 = vadd.f32 %v119, %v1871
  %v1874 = vxor.u32 %v1873, 2147483648
  %v1875 = vmul.f32 %v1874, 1.442695
  %v1876 = vpow.pop %v1875
  %v1877 = vadd.f32 %v1876, 1.0
  %v1878 = vrcp.pop %v1877
  %v1879 = vmul.f32 1.0, %v1878
  %v1880 = vtanh.pop %v1873
  %v1882 = vrot.slane %v1678, 2
  %1883 = vrot.lane.b32.xlu0 %v1882, 32
  %v1884 = vpop.permute.xlu0 %1883
  %v1886 = vmul.f32 %v1879, %v1884
  %1888 = vrot.lane.b32.xlu0 %v1880, 64
  %v1889 = vpop.permute.xlu0 %1888
  %v1891 = vmul.f32 %v1879, %v1889
  %1893 = vrot.lane.b32.xlu0 %v1891, 32
  %v1894 = vpop.permute.xlu0 %1893
  %v1896 = vadd.f32 %v1886, %v1894
  %v1897 = vtanh.pop %v1896
  %1899 = vrot.lane.b32.xlu0 %v1897, 64
  %v1900 = vpop.permute.xlu0 %1899
  %v1902 = vmul.f32 %v1879, %v1900
  %v1904 = vrot.slane %v1902, 6
  %1905 = vrot.lane.b32.xlu0 %v1904, 32
  %v1906 = vpop.permute.xlu0 %1905
  %v1908 = vsel %vm342, %v1906, %v1672
  %v1910 = vsel %vm132, %v1790, 0
  %1912 = vmatprep.subr.mxu0 0.0
  %1913 = vmatpush1.msra.mxu0 0.0
  %1914 = vmatprep.subr.mxu0 0.0
  %1915 = vmatpush1.msra.mxu0 0.0
  %1916 = vmatprep.subr.mxu0 0.0
  %1917 = vmatpush1.msra.mxu0 0.0
  %1918 = vmatprep.subr.mxu0 0.0
  %1919 = vmatpush1.msra.mxu0 0.0
  %1920 = vmatprep.subr.mxu0 0.0
  %1921 = vmatpush1.msra.mxu0 0.0
  %1922 = vmatprep.subr.mxu0 0.0
  %1923 = vmatpush1.msra.mxu0 0.0
  %1924 = vmatprep.subr.mxu0 0.0
  %1925 = vmatpush1.msra.mxu0 0.0
  %1926 = vmatprep.subr.mxu0 0.0
  %1927 = vmatpush1.msra.mxu0 0.0
  %1928 = vmatprep.subr.mxu0 0.0
  %1929 = vmatpush1.msra.mxu0 0.0
  %1930 = vmatprep.subr.mxu0 0.0
  %1931 = vmatpush1.msra.mxu0 0.0
  %1932 = vmatprep.subr.mxu0 0.0
  %1933 = vmatpush1.msra.mxu0 0.0
  %1934 = vmatprep.subr.mxu0 0.0
  %1935 = vmatpush1.msra.mxu0 0.0
  %1936 = vmatprep.subr.mxu0 0.0
  %1937 = vmatpush1.msra.mxu0 %v131
  %1938 = vmatprep.subr.mxu0 0.0
  %1939 = vmatpush1.msra.mxu0 %v130
  %1940 = vmatprep.subr.mxu0 0.0
  %1941 = vmatpush1.msra.mxu0 %v129
  %1942 = vmatprep.subr.mxu0 0.0
  %1943 = vmatpush1.msra.mxu0 %v128
  %1944 = vmatprep.subr.mxu0 0.0
  %1945 = vmatpush2.msra.mxu0 0.0
  %1946 = vmatprep.subr.mxu0 0.0
  %1947 = vmatpush2.msra.mxu0 0.0
  %1948 = vmatprep.subr.mxu0 0.0
  %1949 = vmatpush2.msra.mxu0 0.0
  %1950 = vmatprep.subr.mxu0 0.0
  %1951 = vmatpush2.msra.mxu0 0.0
  %1952 = vmatprep.subr.mxu0 0.0
  %1953 = vmatpush2.msra.mxu0 0.0
  %1954 = vmatprep.subr.mxu0 0.0
  %1955 = vmatpush2.msra.mxu0 0.0
  %1956 = vmatprep.subr.mxu0 0.0
  %1957 = vmatpush2.msra.mxu0 0.0
  %1958 = vmatprep.subr.mxu0 0.0
  %1959 = vmatpush2.msra.mxu0 0.0
  %1960 = vmatprep.subr.mxu0 0.0
  %1961 = vmatpush2.msra.mxu0 0.0
  %1962 = vmatprep.subr.mxu0 0.0
  %1963 = vmatpush2.msra.mxu0 0.0
  %1964 = vmatprep.subr.mxu0 0.0
  %1965 = vmatpush2.msra.mxu0 0.0
  %1966 = vmatprep.subr.mxu0 0.0
  %1967 = vmatpush2.msra.mxu0 0.0
  %1968 = vmatprep.subr.mxu0 0.0
  %1969 = vmatpush2.msra.mxu0 0.0
  %1970 = vmatprep.subr.mxu0 0.0
  %1971 = vmatpush2.msra.mxu0 0.0
  %1972 = vmatprep.subr.mxu0 0.0
  %1973 = vmatpush2.msra.mxu0 0.0
  %1974 = vmatprep.subr.mxu0 0.0
  %1975 = vmatpush2.msra.mxu0 0.0
  %1976 = vmatprep.mubr.f32.mxu0 0.0
  %1977 = vmatmul.mubr.f32.gmra.mxu0 %v1910
  %v1978 = vpop.f32.mrf.mxu0
  %v1979 = vadd.f32 0.0, %v1978
  %v1980 = vpop.f32.mrf.mxu0
  %1981 = vdwg.mxu0
  %v1982 = vadd.f32 %v115, %v1979
  %v1983 = vxor.u32 %v1982, 2147483648
  %v1984 = vmul.f32 %v1983, 1.442695
  %v1985 = vpow.pop %v1984
  %v1986 = vadd.f32 %v1985, 1.0
  %v1987 = vrcp.pop %v1986
  %v1988 = vmul.f32 1.0, %v1987
  %v1989 = vtanh.pop %v1982
  %1991 = vrot.lane.b32.xlu0 %v1796, 32
  %v1992 = vpop.permute.xlu0 %1991
  %v1994 = vmul.f32 %v1988, %v1992
  %1996 = vrot.lane.b32.xlu0 %v1989, 64
  %v1997 = vpop.permute.xlu0 %1996
  %v1999 = vmul.f32 %v1988, %v1997
  %2001 = vrot.lane.b32.xlu0 %v1999, 32
  %v2002 = vpop.permute.xlu0 %2001
  %v2004 = vadd.f32 %v1994, %v2002
  %v2005 = vtanh.pop %v2004
  %2007 = vrot.lane.b32.xlu0 %v2005, 64
  %v2008 = vpop.permute.xlu0 %2007
  %v2010 = vmul.f32 %v1988, %v2008
  %2011 = vrot.lane.b32.xlu0 %v1790, 96
  %v2012 = vpop.permute.xlu0 %2011
  %v2014 = vsel %vm236, %v2010, %v2012
  %2016 = vrot.lane.b32.xlu0 %v2014, 64
  %v2017 = vpop.permute.xlu0 %2016
  %v2019 = vsel %vm132, %v1908, %v2017
  %vm2020 = vcmask 517120
  %2021 = vst.msk [vmem:[%s6] sm:$0x3] %vm2020, %v2019
  // Predicated region
  $region26: #{hashing_two_branch_forward.3} parent=0 // pred_check
    _
  $region27: #{hashing_two_branch_forward.3} parent=0 // pred_check_branch
    %2023 = sbr.rel (0) target = $region29
  $region28: #{hashing_two_branch_forward.3} parent=0 // pred_region
    _
  $region29: #{hashing_two_branch_forward.3} parent=0 // pred_fallthru
    _
  // Predicated region
  $region30: #{hashing_two_branch_forward.3} parent=0 // pred_check
    _
  $region31: #{hashing_two_branch_forward.3} parent=0 // pred_check_branch
    %2025 = sbr.rel (0) target = $region33
  $region32: #{hashing_two_branch_forward.3} parent=0 // pred_region
    _
  $region33: #{hashing_two_branch_forward.3} parent=0 // pred_fallthru
    _

// kernel: hashing_two_branch_forward.5
$region0: #{hashing_two_branch_forward.5}
  #allocation0 [shape = 'u32[]', space=smem, size = 0x4, offset = 0x4, fixed_abs, tag = 'smem constant byte address 0x4 - core index']
  #allocation1 [shape = 'u32[144,128]{1,0:T(1,128)}', space=vmem, size = 0x12000, scoped, tag = 'internal scratch']
  %s0 = inlined_call_operand.vmem [shape: f32[2,3200], index: 0, kind: input, shape index: {}]
  %s1 = inlined_call_operand.vmem [shape: f32[2,3200], index: 1, kind: input, shape index: {}]
  %s2 = inlined_call_operand.vmem [shape: f32[2,3200], index: 2, kind: input, shape index: {}]
  %s3 = inlined_call_operand.vmem [shape: f32[2,3200], index: 3, kind: input, shape index: {}]
  %s4 = inlined_call_operand.vmem [shape: f32[3200,128], index: 4, kind: input, shape index: {}]
  %s5 = inlined_call_operand.vmem [shape: f32[1,128], index: 5, kind: input, shape index: {}]
  %s6 = inlined_call_operand.vmem [shape: f32[2,64], index: 6, kind: input, shape index: {}]
  %s7 = inlined_call_operand.vmem [shape: f32[64,500], index: 7, kind: input, shape index: {}]
  %s8 = inlined_call_operand.vmem [shape: f32[128,500], index: 8, kind: input, shape index: {}]
  %s9 = inlined_call_operand.vmem [shape: f32[1,500], index: 9, kind: input, shape index: {}]
  %s10 = inlined_call_operand.vmem [shape: f32[500,250], index: 10, kind: input, shape index: {}]
  %s11 = inlined_call_operand.vmem [shape: f32[1,250], index: 11, kind: input, shape index: {}]
  %s12 = inlined_call_operand.vmem [shape: f32[250,10], index: 12, kind: input, shape index: {}]
  %s13 = inlined_call_operand.vmem [shape: f32[1,10], index: 13, kind: input, shape index: {}]
  %s14 = inlined_call_operand.hbm [shape: f32[2,250], index: 14, kind: output, shape index: {0}]
  %s15 = inlined_call_operand.hbm [shape: f32[2,10], index: 15, kind: output, shape index: {1}]
  %16 = xla_tuple %s14, %s15
  %s17 = sld [smem:[#allocation0]]
  $region74: #{hashing_two_branch_forward.5} parent=0
    _
  %s19 = ssub.s32 1, %s17
  %s20 = scalar_select 0, %s19, %s17
  $region1: #{hashing_two_branch_forward.5} parent=0
    #allocation2 [shape = 'u8[2048]{0}', space=vmem, size = 0x800, scoped, tag = 'output window, operand 0, single buffered']
    #allocation3 [shape = 's32[1]{0}', space=sflag, size = 0x4, scoped, tag = 'scoped memory for hashing_two_branch_forward.5']
    #allocation4 [shape = 'u8[1024]{0}', space=vmem, size = 0x400, scoped, tag = 'output window, operand 1, single buffered']
    #allocation5 [shape = 's32[1]{0}', space=sflag, size = 0x4, scoped, tag = 'scoped memory for hashing_two_branch_forward.5']
    %21 = vsyncpa [#allocation3], 0
    %22 = vsyncpa [#allocation5], 0
    // Predicated region
    $region2: #{hashing_two_branch_forward.5} parent=1 // pred_check
      _
    $region3: #{hashing_two_branch_forward.5} parent=1 // pred_check_branch
      %24 = sbr.rel (0) target = $region5
    $region4: #{hashing_two_branch_forward.5} parent=1 // pred_region
      _
    $region5: #{hashing_two_branch_forward.5} parent=1 // pred_fallthru
      _
    // Predicated region
    $region6: #{hashing_two_branch_forward.5} parent=1 // pred_check
      _
    $region7: #{hashing_two_branch_forward.5} parent=1 // pred_check_branch
      %26 = sbr.rel (0) target = $region9
    $region8: #{hashing_two_branch_forward.5} parent=1 // pred_region
      _
    $region9: #{hashing_two_branch_forward.5} parent=1 // pred_fallthru
      _
    // Predicated region
    $region10: #{hashing_two_branch_forward.5} parent=1 // pred_check
      _
    $region11: #{hashing_two_branch_forward.5} parent=1 // pred_check_branch
      %28 = sbr.rel (0) target = $region13
    $region12: #{hashing_two_branch_forward.5} parent=1 // pred_region
      _
    $region13: #{hashing_two_branch_forward.5} parent=1 // pred_fallthru
      _
    // Predicated region
    $region14: #{hashing_two_branch_forward.5} parent=1 // pred_check
      _
    $region15: #{hashing_two_branch_forward.5} parent=1 // pred_check_branch
      %30 = sbr.rel (0) target = $region17
    $region16: #{hashing_two_branch_forward.5} parent=1 // pred_region
      _
    $region17: #{hashing_two_branch_forward.5} parent=1 // pred_fallthru
      _
    // Predicated region
    $region18: #{hashing_two_branch_forward.5} parent=1 // pred_check
      _
    $region19: #{hashing_two_branch_forward.5} parent=1 // pred_check_branch
      %32 = sbr.rel (0) target = $region21
    $region20: #{hashing_two_branch_forward.5} parent=1 // pred_region
      _
    $region21: #{hashing_two_branch_forward.5} parent=1 // pred_fallthru
      _
    // Predicated region
    $region22: #{hashing_two_branch_forward.5} parent=1 // pred_check
      _
    $region23: #{hashing_two_branch_forward.5} parent=1 // pred_check_branch
      %34 = sbr.rel (0) target = $region25
    $region24: #{hashing_two_branch_forward.5} parent=1 // pred_region
      _
    $region25: #{hashing_two_branch_forward.5} parent=1 // pred_fallthru
      _
    // Predicated region
    $region26: #{hashing_two_branch_forward.5} parent=1 // pred_check
      _
    $region27: #{hashing_two_branch_forward.5} parent=1 // pred_check_branch
      %36 = sbr.rel (0) target = $region29
    $region28: #{hashing_two_branch_forward.5} parent=1 // pred_region
      _
    $region29: #{hashing_two_branch_forward.5} parent=1 // pred_fallthru
      _
    // Predicated region
    $region30: #{hashing_two_branch_forward.5} parent=1 // pred_check
      _
    $region31: #{hashing_two_branch_forward.5} parent=1 // pred_check_branch
      %38 = sbr.rel (0) target = $region33
    $region32: #{hashing_two_branch_forward.5} parent=1 // pred_region
      _
    $region33: #{hashing_two_branch_forward.5} parent=1 // pred_fallthru
      _
    // Predicated region
    $region34: #{hashing_two_branch_forward.5} parent=1 // pred_check
      _
    $region35: #{hashing_two_branch_forward.5} parent=1 // pred_check_branch
      %40 = sbr.rel (0) target = $region37
    $region36: #{hashing_two_branch_forward.5} parent=1 // pred_region
      _
    $region37: #{hashing_two_branch_forward.5} parent=1 // pred_fallthru
      _
    // Predicated region
    $region38: #{hashing_two_branch_forward.5} parent=1 // pred_check
      _
    $region39: #{hashing_two_branch_forward.5} parent=1 // pred_check_branch
      %42 = sbr.rel (0) target = $region41
    $region40: #{hashing_two_branch_forward.5} parent=1 // pred_region
      _
    $region41: #{hashing_two_branch_forward.5} parent=1 // pred_fallthru
      _
    // Predicated region
    $region42: #{hashing_two_branch_forward.5} parent=1 // pred_check
      _
    $region43: #{hashing_two_branch_forward.5} parent=1 // pred_check_branch
      %44 = sbr.rel (0) target = $region45
    $region44: #{hashing_two_branch_forward.5} parent=1 // pred_region
      _
    $region45: #{hashing_two_branch_forward.5} parent=1 // pred_fallthru
      _
    // Predicated region
    $region46: #{hashing_two_branch_forward.5} parent=1 // pred_check
      _
    $region47: #{hashing_two_branch_forward.5} parent=1 // pred_check_branch
      %46 = sbr.rel (0) target = $region49
    $region48: #{hashing_two_branch_forward.5} parent=1 // pred_region
      _
    $region49: #{hashing_two_branch_forward.5} parent=1 // pred_fallthru
      _
    // Predicated region
    $region50: #{hashing_two_branch_forward.5} parent=1 // pred_check
      _
    $region51: #{hashing_two_branch_forward.5} parent=1 // pred_check_branch
      %48 = sbr.rel (0) target = $region53
    $region52: #{hashing_two_branch_forward.5} parent=1 // pred_region
      _
    $region53: #{hashing_two_branch_forward.5} parent=1 // pred_fallthru
      _
    // Predicated region
    $region54: #{hashing_two_branch_forward.5} parent=1 // pred_check
      _
    $region55: #{hashing_two_branch_forward.5} parent=1 // pred_check_branch
      %50 = sbr.rel (0) target = $region57
    $region56: #{hashing_two_branch_forward.5} parent=1 // pred_region
      _
    $region57: #{hashing_two_branch_forward.5} parent=1 // pred_fallthru
      _
    %v51 = vld [vmem:[%s0] sm:$0xff]
    %v52 = vld [vmem:[%s0 + $0x8] sm:$0xff]
    %v53 = vld [vmem:[%s0 + $0x10] sm:$0xff]
    %v54 = vld [vmem:[%s0 + $0x18] sm:$0xff]
    %v55 = vld [vmem:[%s0 + $0x20] sm:$0xff]
    %v56 = vld [vmem:[%s0 + $0x28] sm:$0xff]
    %v57 = vld [vmem:[%s0 + $0x30] sm:$0x3]
    %v58 = vld [vmem:[%s4] sm:$0xff]
    %v59 = vld [vmem:[%s4 + $0x8] sm:$0xff]
    %v60 = vld [vmem:[%s4 + $0x10] sm:$0xff]
    %v61 = vld [vmem:[%s4 + $0x18] sm:$0xff]
    %v62 = vld [vmem:[%s4 + $0x20] sm:$0xff]
    %v63 = vld [vmem:[%s4 + $0x28] sm:$0xff]
    %v64 = vld [vmem:[%s4 + $0x30] sm:$0xff]
    %v65 = vld [vmem:[%s4 + $0x38] sm:$0xff]
    %v66 = vld [vmem:[%s4 + $0x40] sm:$0xff]
    %v67 = vld [vmem:[%s4 + $0x48] sm:$0xff]
    %v68 = vld [vmem:[%s4 + $0x50] sm:$0xff]
    %v69 = vld [vmem:[%s4 + $0x58] sm:$0xff]
    %v70 = vld [vmem:[%s4 + $0x60] sm:$0xff]
    %v71 = vld [vmem:[%s4 + $0x68] sm:$0xff]
    %v72 = vld [vmem:[%s4 + $0x70] sm:$0xff]
    %v73 = vld [vmem:[%s4 + $0x78] sm:$0xff]
    %v74 = vld [vmem:[%s4 + $0x80] sm:$0xff]
    %v75 = vld [vmem:[%s4 + $0x88] sm:$0xff]
    %v76 = vld [vmem:[%s4 + $0x90] sm:$0xff]
    %v77 = vld [vmem:[%s4 + $0x98] sm:$0xff]
    %v78 = vld [vmem:[%s4 + $0xa0] sm:$0xff]
    %v79 = vld [vmem:[%s4 + $0xa8] sm:$0xff]
    %v80 = vld [vmem:[%s4 + $0xb0] sm:$0xff]
    %v81 = vld [vmem:[%s4 + $0xb8] sm:$0xff]
    %v82 = vld [vmem:[%s4 + $0xc0] sm:$0xff]
    %v83 = vld [vmem:[%s4 + $0xc8] sm:$0xff]
    %v84 = vld [vmem:[%s4 + $0xd0] sm:$0xff]
    %v85 = vld [vmem:[%s4 + $0xd8] sm:$0xff]
    %v86 = vld [vmem:[%s4 + $0xe0] sm:$0xff]
    %v87 = vld [vmem:[%s4 + $0xe8] sm:$0xff]
    %v88 = vld [vmem:[%s4 + $0xf0] sm:$0xff]
    %v89 = vld [vmem:[%s4 + $0xf8] sm:$0xff]
    %v90 = vld [vmem:[%s4 + $0x100] sm:$0xff]
    %v91 = vld [vmem:[%s4 + $0x108] sm:$0xff]
    %v92 = vld [vmem:[%s4 + $0x110] sm:$0xff]
    %v93 = vld [vmem:[%s4 + $0x118] sm:$0xff]
    %v94 = vld [vmem:[%s4 + $0x120] sm:$0xff]
    %v95 = vld [vmem:[%s4 + $0x128] sm:$0xff]
    %v96 = vld [vmem:[%s4 + $0x130] sm:$0xff]
    %v97 = vld [vmem:[%s4 + $0x138] sm:$0xff]
    %v98 = vld [vmem:[%s4 + $0x140] sm:$0xff]
    %v99 = vld [vmem:[%s4 + $0x148] sm:$0xff]
    %v100 = vld [vmem:[%s4 + $0x150] sm:$0xff]
    %v101 = vld [vmem:[%s4 + $0x158] sm:$0xff]
    %v102 = vld [vmem:[%s4 + $0x160] sm:$0xff]
    %v103 = vld [vmem:[%s4 + $0x168] sm:$0xff]
    %v104 = vld [vmem:[%s4 + $0x170] sm:$0xff]
    %v105 = vld [vmem:[%s4 + $0x178] sm:$0xff]
    %v106 = vld [vmem:[%s4 + $0x180] sm:$0xff]
    %v107 = vld [vmem:[%s4 + $0x188] sm:$0xff]
    %v108 = vld [vmem:[%s4 + $0x190] sm:$0xff]
    %v109 = vld [vmem:[%s4 + $0x198] sm:$0xff]
    %v110 = vld [vmem:[%s4 + $0x1a0] sm:$0xff]
    %v111 = vld [vmem:[%s4 + $0x1a8] sm:$0xff]
    %v112 = vld [vmem:[%s4 + $0x1b0] sm:$0xff]
    %v113 = vld [vmem:[%s4 + $0x1b8] sm:$0xff]
    %v114 = vld [vmem:[%s4 + $0x1c0] sm:$0xff]
    %v115 = vld [vmem:[%s4 + $0x1c8] sm:$0xff]
    %v116 = vld [vmem:[%s4 + $0x1d0] sm:$0xff]
    %v117 = vld [vmem:[%s4 + $0x1d8] sm:$0xff]
    %v118 = vld [vmem:[%s4 + $0x1e0] sm:$0xff]
    %v119 = vld [vmem:[%s4 + $0x1e8] sm:$0xff]
    %v120 = vld [vmem:[%s4 + $0x1f0] sm:$0xff]
    %v121 = vld [vmem:[%s4 + $0x1f8] sm:$0xff]
    %v122 = vld [vmem:[%s4 + $0x200] sm:$0xff]
    %v123 = vld [vmem:[%s4 + $0x208] sm:$0xff]
    %v124 = vld [vmem:[%s4 + $0x210] sm:$0xff]
    %v125 = vld [vmem:[%s4 + $0x218] sm:$0xff]
    %v126 = vld [vmem:[%s4 + $0x220] sm:$0xff]
    %v127 = vld [vmem:[%s4 + $0x228] sm:$0xff]
    %v128 = vld [vmem:[%s4 + $0x230] sm:$0xff]
    %v129 = vld [vmem:[%s4 + $0x238] sm:$0xff]
    %v130 = vld [vmem:[%s4 + $0x240] sm:$0xff]
    %v131 = vld [vmem:[%s4 + $0x248] sm:$0xff]
    %v132 = vld [vmem:[%s4 + $0x250] sm:$0xff]
    %v133 = vld [vmem:[%s4 + $0x258] sm:$0xff]
    %v134 = vld [vmem:[%s4 + $0x260] sm:$0xff]
    %v135 = vld [vmem:[%s4 + $0x268] sm:$0xff]
    %v136 = vld [vmem:[%s4 + $0x270] sm:$0xff]
    %v137 = vld [vmem:[%s4 + $0x278] sm:$0xff]
    %v138 = vld [vmem:[%s4 + $0x280] sm:$0xff]
    %v139 = vld [vmem:[%s4 + $0x288] sm:$0xff]
    %v140 = vld [vmem:[%s4 + $0x290] sm:$0xff]
    %v141 = vld [vmem:[%s4 + $0x298] sm:$0xff]
    %v142 = vld [vmem:[%s4 + $0x2a0] sm:$0xff]
    %v143 = vld [vmem:[%s4 + $0x2a8] sm:$0xff]
    %v144 = vld [vmem:[%s4 + $0x2b0] sm:$0xff]
    %v145 = vld [vmem:[%s4 + $0x2b8] sm:$0xff]
    %v146 = vld [vmem:[%s4 + $0x2c0] sm:$0xff]
    %v147 = vld [vmem:[%s4 + $0x2c8] sm:$0xff]
    %v148 = vld [vmem:[%s4 + $0x2d0] sm:$0xff]
    %v149 = vld [vmem:[%s4 + $0x2d8] sm:$0xff]
    %v150 = vld [vmem:[%s4 + $0x2e0] sm:$0xff]
    %v151 = vld [vmem:[%s4 + $0x2e8] sm:$0xff]
    %v152 = vld [vmem:[%s4 + $0x2f0] sm:$0xff]
    %v153 = vld [vmem:[%s4 + $0x2f8] sm:$0xff]
    %v154 = vld [vmem:[%s4 + $0x300] sm:$0xff]
    %v155 = vld [vmem:[%s4 + $0x308] sm:$0xff]
    %v156 = vld [vmem:[%s4 + $0x310] sm:$0xff]
    %v157 = vld [vmem:[%s4 + $0x318] sm:$0xff]
    %v158 = vld [vmem:[%s4 + $0x320] sm:$0xff]
    %v159 = vld [vmem:[%s4 + $0x328] sm:$0xff]
    %v160 = vld [vmem:[%s4 + $0x330] sm:$0xff]
    %v161 = vld [vmem:[%s4 + $0x338] sm:$0xff]
    %v162 = vld [vmem:[%s4 + $0x340] sm:$0xff]
    %v163 = vld [vmem:[%s4 + $0x348] sm:$0xff]
    %v164 = vld [vmem:[%s4 + $0x350] sm:$0xff]
    %v165 = vld [vmem:[%s4 + $0x358] sm:$0xff]
    %v166 = vld [vmem:[%s4 + $0x360] sm:$0xff]
    %v167 = vld [vmem:[%s4 + $0x368] sm:$0xff]
    %v168 = vld [vmem:[%s4 + $0x370] sm:$0xff]
    %v169 = vld [vmem:[%s4 + $0x378] sm:$0xff]
    %v170 = vld [vmem:[%s4 + $0x380] sm:$0xff]
    %v171 = vld [vmem:[%s4 + $0x388] sm:$0xff]
    %v172 = vld [vmem:[%s4 + $0x390] sm:$0xff]
    %v173 = vld [vmem:[%s4 + $0x398] sm:$0xff]
    %v174 = vld [vmem:[%s4 + $0x3a0] sm:$0xff]
    %v175 = vld [vmem:[%s4 + $0x3a8] sm:$0xff]
    %v176 = vld [vmem:[%s4 + $0x3b0] sm:$0xff]
    %v177 = vld [vmem:[%s4 + $0x3b8] sm:$0xff]
    %v178 = vld [vmem:[%s4 + $0x3c0] sm:$0xff]
    %v179 = vld [vmem:[%s4 + $0x3c8] sm:$0xff]
    %v180 = vld [vmem:[%s4 + $0x3d0] sm:$0xff]
    %v181 = vld [vmem:[%s4 + $0x3d8] sm:$0xff]
    %v182 = vld [vmem:[%s4 + $0x3e0] sm:$0xff]
    %v183 = vld [vmem:[%s4 + $0x3e8] sm:$0xff]
    %v184 = vld [vmem:[%s4 + $0x3f0] sm:$0xff]
    %v185 = vld [vmem:[%s4 + $0x3f8] sm:$0xff]
    %v186 = vld [vmem:[%s4 + $0x400] sm:$0xff]
    %v187 = vld [vmem:[%s4 + $0x408] sm:$0xff]
    %v188 = vld [vmem:[%s4 + $0x410] sm:$0xff]
    %v189 = vld [vmem:[%s4 + $0x418] sm:$0xff]
    %v190 = vld [vmem:[%s4 + $0x420] sm:$0xff]
    %v191 = vld [vmem:[%s4 + $0x428] sm:$0xff]
    %v192 = vld [vmem:[%s4 + $0x430] sm:$0xff]
    %v193 = vld [vmem:[%s4 + $0x438] sm:$0xff]
    %v194 = vld [vmem:[%s4 + $0x440] sm:$0xff]
    %v195 = vld [vmem:[%s4 + $0x448] sm:$0xff]
    %v196 = vld [vmem:[%s4 + $0x450] sm:$0xff]
    %v197 = vld [vmem:[%s4 + $0x458] sm:$0xff]
    %v198 = vld [vmem:[%s4 + $0x460] sm:$0xff]
    %v199 = vld [vmem:[%s4 + $0x468] sm:$0xff]
    %v200 = vld [vmem:[%s4 + $0x470] sm:$0xff]
    %v201 = vld [vmem:[%s4 + $0x478] sm:$0xff]
    %v202 = vld [vmem:[%s4 + $0x480] sm:$0xff]
    %v203 = vld [vmem:[%s4 + $0x488] sm:$0xff]
    %v204 = vld [vmem:[%s4 + $0x490] sm:$0xff]
    %v205 = vld [vmem:[%s4 + $0x498] sm:$0xff]
    %v206 = vld [vmem:[%s4 + $0x4a0] sm:$0xff]
    %v207 = vld [vmem:[%s4 + $0x4a8] sm:$0xff]
    %v208 = vld [vmem:[%s4 + $0x4b0] sm:$0xff]
    %v209 = vld [vmem:[%s4 + $0x4b8] sm:$0xff]
    %v210 = vld [vmem:[%s4 + $0x4c0] sm:$0xff]
    %v211 = vld [vmem:[%s4 + $0x4c8] sm:$0xff]
    %v212 = vld [vmem:[%s4 + $0x4d0] sm:$0xff]
    %v213 = vld [vmem:[%s4 + $0x4d8] sm:$0xff]
    %v214 = vld [vmem:[%s4 + $0x4e0] sm:$0xff]
    %v215 = vld [vmem:[%s4 + $0x4e8] sm:$0xff]
    %v216 = vld [vmem:[%s4 + $0x4f0] sm:$0xff]
    %v217 = vld [vmem:[%s4 + $0x4f8] sm:$0xff]
    %v218 = vld [vmem:[%s4 + $0x500] sm:$0xff]
    %v219 = vld [vmem:[%s4 + $0x508] sm:$0xff]
    %v220 = vld [vmem:[%s4 + $0x510] sm:$0xff]
    %v221 = vld [vmem:[%s4 + $0x518] sm:$0xff]
    %v222 = vld [vmem:[%s4 + $0x520] sm:$0xff]
    %v223 = vld [vmem:[%s4 + $0x528] sm:$0xff]
    %v224 = vld [vmem:[%s4 + $0x530] sm:$0xff]
    %v225 = vld [vmem:[%s4 + $0x538] sm:$0xff]
    %v226 = vld [vmem:[%s4 + $0x540] sm:$0xff]
    %v227 = vld [vmem:[%s4 + $0x548] sm:$0xff]
    %v228 = vld [vmem:[%s4 + $0x550] sm:$0xff]
    %v229 = vld [vmem:[%s4 + $0x558] sm:$0xff]
    %v230 = vld [vmem:[%s4 + $0x560] sm:$0xff]
    %v231 = vld [vmem:[%s4 + $0x568] sm:$0xff]
    %v232 = vld [vmem:[%s4 + $0x570] sm:$0xff]
    %v233 = vld [vmem:[%s4 + $0x578] sm:$0xff]
    %v234 = vld [vmem:[%s4 + $0x580] sm:$0xff]
    %v235 = vld [vmem:[%s4 + $0x588] sm:$0xff]
    %v236 = vld [vmem:[%s4 + $0x590] sm:$0xff]
    %v237 = vld [vmem:[%s4 + $0x598] sm:$0xff]
    %v238 = vld [vmem:[%s4 + $0x5a0] sm:$0xff]
    %v239 = vld [vmem:[%s4 + $0x5a8] sm:$0xff]
    %v240 = vld [vmem:[%s4 + $0x5b0] sm:$0xff]
    %v241 = vld [vmem:[%s4 + $0x5b8] sm:$0xff]
    %v242 = vld [vmem:[%s4 + $0x5c0] sm:$0xff]
    %v243 = vld [vmem:[%s4 + $0x5c8] sm:$0xff]
    %v244 = vld [vmem:[%s4 + $0x5d0] sm:$0xff]
    %v245 = vld [vmem:[%s4 + $0x5d8] sm:$0xff]
    %v246 = vld [vmem:[%s4 + $0x5e0] sm:$0xff]
    %v247 = vld [vmem:[%s4 + $0x5e8] sm:$0xff]
    %v248 = vld [vmem:[%s4 + $0x5f0] sm:$0xff]
    %v249 = vld [vmem:[%s4 + $0x5f8] sm:$0xff]
    %v250 = vld [vmem:[%s4 + $0x600] sm:$0xff]
    %v251 = vld [vmem:[%s4 + $0x608] sm:$0xff]
    %v252 = vld [vmem:[%s4 + $0x610] sm:$0xff]
    %v253 = vld [vmem:[%s4 + $0x618] sm:$0xff]
    %v254 = vld [vmem:[%s4 + $0x620] sm:$0xff]
    %v255 = vld [vmem:[%s4 + $0x628] sm:$0xff]
    %v256 = vld [vmem:[%s4 + $0x630] sm:$0xff]
    %v257 = vld [vmem:[%s4 + $0x638] sm:$0xff]
    %v258 = vld [vmem:[%s4 + $0x640] sm:$0xff]
    %v259 = vld [vmem:[%s4 + $0x648] sm:$0xff]
    %v260 = vld [vmem:[%s4 + $0x650] sm:$0xff]
    %v261 = vld [vmem:[%s4 + $0x658] sm:$0xff]
    %v262 = vld [vmem:[%s4 + $0x660] sm:$0xff]
    %v263 = vld [vmem:[%s4 + $0x668] sm:$0xff]
    %v264 = vld [vmem:[%s4 + $0x670] sm:$0xff]
    %v265 = vld [vmem:[%s4 + $0x678] sm:$0xff]
    %v266 = vld [vmem:[%s4 + $0x680] sm:$0xff]
    %v267 = vld [vmem:[%s4 + $0x688] sm:$0xff]
    %v268 = vld [vmem:[%s4 + $0x690] sm:$0xff]
    %v269 = vld [vmem:[%s4 + $0x698] sm:$0xff]
    %v270 = vld [vmem:[%s4 + $0x6a0] sm:$0xff]
    %v271 = vld [vmem:[%s4 + $0x6a8] sm:$0xff]
    %v272 = vld [vmem:[%s4 + $0x6b0] sm:$0xff]
    %v273 = vld [vmem:[%s4 + $0x6b8] sm:$0xff]
    %v274 = vld [vmem:[%s4 + $0x6c0] sm:$0xff]
    %v275 = vld [vmem:[%s4 + $0x6c8] sm:$0xff]
    %v276 = vld [vmem:[%s4 + $0x6d0] sm:$0xff]
    %v277 = vld [vmem:[%s4 + $0x6d8] sm:$0xff]
    %v278 = vld [vmem:[%s4 + $0x6e0] sm:$0xff]
    %v279 = vld [vmem:[%s4 + $0x6e8] sm:$0xff]
    %v280 = vld [vmem:[%s4 + $0x6f0] sm:$0xff]
    %v281 = vld [vmem:[%s4 + $0x6f8] sm:$0xff]
    %v282 = vld [vmem:[%s4 + $0x700] sm:$0xff]
    %v283 = vld [vmem:[%s4 + $0x708] sm:$0xff]
    %v284 = vld [vmem:[%s4 + $0x710] sm:$0xff]
    %v285 = vld [vmem:[%s4 + $0x718] sm:$0xff]
    %v286 = vld [vmem:[%s4 + $0x720] sm:$0xff]
    %v287 = vld [vmem:[%s4 + $0x728] sm:$0xff]
    %v288 = vld [vmem:[%s4 + $0x730] sm:$0xff]
    %v289 = vld [vmem:[%s4 + $0x738] sm:$0xff]
    %v290 = vld [vmem:[%s4 + $0x740] sm:$0xff]
    %v291 = vld [vmem:[%s4 + $0x748] sm:$0xff]
    %v292 = vld [vmem:[%s4 + $0x750] sm:$0xff]
    %v293 = vld [vmem:[%s4 + $0x758] sm:$0xff]
    %v294 = vld [vmem:[%s4 + $0x760] sm:$0xff]
    %v295 = vld [vmem:[%s4 + $0x768] sm:$0xff]
    %v296 = vld [vmem:[%s4 + $0x770] sm:$0xff]
    %v297 = vld [vmem:[%s4 + $0x778] sm:$0xff]
    %v298 = vld [vmem:[%s4 + $0x780] sm:$0xff]
    %v299 = vld [vmem:[%s4 + $0x788] sm:$0xff]
    %v300 = vld [vmem:[%s4 + $0x790] sm:$0xff]
    %v301 = vld [vmem:[%s4 + $0x798] sm:$0xff]
    %v302 = vld [vmem:[%s4 + $0x7a0] sm:$0xff]
    %v303 = vld [vmem:[%s4 + $0x7a8] sm:$0xff]
    %v304 = vld [vmem:[%s4 + $0x7b0] sm:$0xff]
    %v305 = vld [vmem:[%s4 + $0x7b8] sm:$0xff]
    %v306 = vld [vmem:[%s4 + $0x7c0] sm:$0xff]
    %v307 = vld [vmem:[%s4 + $0x7c8] sm:$0xff]
    %v308 = vld [vmem:[%s4 + $0x7d0] sm:$0xff]
    %v309 = vld [vmem:[%s4 + $0x7d8] sm:$0xff]
    %v310 = vld [vmem:[%s4 + $0x7e0] sm:$0xff]
    %v311 = vld [vmem:[%s4 + $0x7e8] sm:$0xff]
    %v312 = vld [vmem:[%s4 + $0x7f0] sm:$0xff]
    %v313 = vld [vmem:[%s4 + $0x7f8] sm:$0xff]
    %v314 = vld [vmem:[%s4 + $0x800] sm:$0xff]
    %v315 = vld [vmem:[%s4 + $0x808] sm:$0xff]
    %v316 = vld [vmem:[%s4 + $0x810] sm:$0xff]
    %v317 = vld [vmem:[%s4 + $0x818] sm:$0xff]
    %v318 = vld [vmem:[%s4 + $0x820] sm:$0xff]
    %v319 = vld [vmem:[%s4 + $0x828] sm:$0xff]
    %v320 = vld [vmem:[%s4 + $0x830] sm:$0xff]
    %v321 = vld [vmem:[%s4 + $0x838] sm:$0xff]
    %v322 = vld [vmem:[%s4 + $0x840] sm:$0xff]
    %v323 = vld [vmem:[%s4 + $0x848] sm:$0xff]
    %v324 = vld [vmem:[%s4 + $0x850] sm:$0xff]
    %v325 = vld [vmem:[%s4 + $0x858] sm:$0xff]
    %v326 = vld [vmem:[%s4 + $0x860] sm:$0xff]
    %v327 = vld [vmem:[%s4 + $0x868] sm:$0xff]
    %v328 = vld [vmem:[%s4 + $0x870] sm:$0xff]
    %v329 = vld [vmem:[%s4 + $0x878] sm:$0xff]
    %v330 = vld [vmem:[%s4 + $0x880] sm:$0xff]
    %v331 = vld [vmem:[%s4 + $0x888] sm:$0xff]
    %v332 = vld [vmem:[%s4 + $0x890] sm:$0xff]
    %v333 = vld [vmem:[%s4 + $0x898] sm:$0xff]
    %v334 = vld [vmem:[%s4 + $0x8a0] sm:$0xff]
    %v335 = vld [vmem:[%s4 + $0x8a8] sm:$0xff]
    %v336 = vld [vmem:[%s4 + $0x8b0] sm:$0xff]
    %v337 = vld [vmem:[%s4 + $0x8b8] sm:$0xff]
    %v338 = vld [vmem:[%s4 + $0x8c0] sm:$0xff]
    %v339 = vld [vmem:[%s4 + $0x8c8] sm:$0xff]
    %v340 = vld [vmem:[%s4 + $0x8d0] sm:$0xff]
    %v341 = vld [vmem:[%s4 + $0x8d8] sm:$0xff]
    %v342 = vld [vmem:[%s4 + $0x8e0] sm:$0xff]
    %v343 = vld [vmem:[%s4 + $0x8e8] sm:$0xff]
    %v344 = vld [vmem:[%s4 + $0x8f0] sm:$0xff]
    %v345 = vld [vmem:[%s4 + $0x8f8] sm:$0xff]
    %v346 = vld [vmem:[%s4 + $0x900] sm:$0xff]
    %v347 = vld [vmem:[%s4 + $0x908] sm:$0xff]
    %v348 = vld [vmem:[%s4 + $0x910] sm:$0xff]
    %v349 = vld [vmem:[%s4 + $0x918] sm:$0xff]
    %v350 = vld [vmem:[%s4 + $0x920] sm:$0xff]
    %v351 = vld [vmem:[%s4 + $0x928] sm:$0xff]
    %v352 = vld [vmem:[%s4 + $0x930] sm:$0xff]
    %v353 = vld [vmem:[%s4 + $0x938] sm:$0xff]
    %v354 = vld [vmem:[%s4 + $0x940] sm:$0xff]
    %v355 = vld [vmem:[%s4 + $0x948] sm:$0xff]
    %v356 = vld [vmem:[%s4 + $0x950] sm:$0xff]
    %v357 = vld [vmem:[%s4 + $0x958] sm:$0xff]
    %v358 = vld [vmem:[%s4 + $0x960] sm:$0xff]
    %v359 = vld [vmem:[%s4 + $0x968] sm:$0xff]
    %v360 = vld [vmem:[%s4 + $0x970] sm:$0xff]
    %v361 = vld [vmem:[%s4 + $0x978] sm:$0xff]
    %v362 = vld [vmem:[%s4 + $0x980] sm:$0xff]
    %v363 = vld [vmem:[%s4 + $0x988] sm:$0xff]
    %v364 = vld [vmem:[%s4 + $0x990] sm:$0xff]
    %v365 = vld [vmem:[%s4 + $0x998] sm:$0xff]
    %v366 = vld [vmem:[%s4 + $0x9a0] sm:$0xff]
    %v367 = vld [vmem:[%s4 + $0x9a8] sm:$0xff]
    %v368 = vld [vmem:[%s4 + $0x9b0] sm:$0xff]
    %v369 = vld [vmem:[%s4 + $0x9b8] sm:$0xff]
    %v370 = vld [vmem:[%s4 + $0x9c0] sm:$0xff]
    %v371 = vld [vmem:[%s4 + $0x9c8] sm:$0xff]
    %v372 = vld [vmem:[%s4 + $0x9d0] sm:$0xff]
    %v373 = vld [vmem:[%s4 + $0x9d8] sm:$0xff]
    %v374 = vld [vmem:[%s4 + $0x9e0] sm:$0xff]
    %v375 = vld [vmem:[%s4 + $0x9e8] sm:$0xff]
    %v376 = vld [vmem:[%s4 + $0x9f0] sm:$0xff]
    %v377 = vld [vmem:[%s4 + $0x9f8] sm:$0xff]
    %v378 = vld [vmem:[%s4 + $0xa00] sm:$0xff]
    %v379 = vld [vmem:[%s4 + $0xa08] sm:$0xff]
    %v380 = vld [vmem:[%s4 + $0xa10] sm:$0xff]
    %v381 = vld [vmem:[%s4 + $0xa18] sm:$0xff]
    %v382 = vld [vmem:[%s4 + $0xa20] sm:$0xff]
    %v383 = vld [vmem:[%s4 + $0xa28] sm:$0xff]
    %v384 = vld [vmem:[%s4 + $0xa30] sm:$0xff]
    %v385 = vld [vmem:[%s4 + $0xa38] sm:$0xff]
    %v386 = vld [vmem:[%s4 + $0xa40] sm:$0xff]
    %v387 = vld [vmem:[%s4 + $0xa48] sm:$0xff]
    %v388 = vld [vmem:[%s4 + $0xa50] sm:$0xff]
    %v389 = vld [vmem:[%s4 + $0xa58] sm:$0xff]
    %v390 = vld [vmem:[%s4 + $0xa60] sm:$0xff]
    %v391 = vld [vmem:[%s4 + $0xa68] sm:$0xff]
    %v392 = vld [vmem:[%s4 + $0xa70] sm:$0xff]
    %v393 = vld [vmem:[%s4 + $0xa78] sm:$0xff]
    %v394 = vld [vmem:[%s4 + $0xa80] sm:$0xff]
    %v395 = vld [vmem:[%s4 + $0xa88] sm:$0xff]
    %v396 = vld [vmem:[%s4 + $0xa90] sm:$0xff]
    %v397 = vld [vmem:[%s4 + $0xa98] sm:$0xff]
    %v398 = vld [vmem:[%s4 + $0xaa0] sm:$0xff]
    %v399 = vld [vmem:[%s4 + $0xaa8] sm:$0xff]
    %v400 = vld [vmem:[%s4 + $0xab0] sm:$0xff]
    %v401 = vld [vmem:[%s4 + $0xab8] sm:$0xff]
    %v402 = vld [vmem:[%s4 + $0xac0] sm:$0xff]
    %v403 = vld [vmem:[%s4 + $0xac8] sm:$0xff]
    %v404 = vld [vmem:[%s4 + $0xad0] sm:$0xff]
    %v405 = vld [vmem:[%s4 + $0xad8] sm:$0xff]
    %v406 = vld [vmem:[%s4 + $0xae0] sm:$0xff]
    %v407 = vld [vmem:[%s4 + $0xae8] sm:$0xff]
    %v408 = vld [vmem:[%s4 + $0xaf0] sm:$0xff]
    %v409 = vld [vmem:[%s4 + $0xaf8] sm:$0xff]
    %v410 = vld [vmem:[%s4 + $0xb00] sm:$0xff]
    %v411 = vld [vmem:[%s4 + $0xb08] sm:$0xff]
    %v412 = vld [vmem:[%s4 + $0xb10] sm:$0xff]
    %v413 = vld [vmem:[%s4 + $0xb18] sm:$0xff]
    %v414 = vld [vmem:[%s4 + $0xb20] sm:$0xff]
    %v415 = vld [vmem:[%s4 + $0xb28] sm:$0xff]
    %v416 = vld [vmem:[%s4 + $0xb30] sm:$0xff]
    %v417 = vld [vmem:[%s4 + $0xb38] sm:$0xff]
    %v418 = vld [vmem:[%s4 + $0xb40] sm:$0xff]
    %v419 = vld [vmem:[%s4 + $0xb48] sm:$0xff]
    %v420 = vld [vmem:[%s4 + $0xb50] sm:$0xff]
    %v421 = vld [vmem:[%s4 + $0xb58] sm:$0xff]
    %v422 = vld [vmem:[%s4 + $0xb60] sm:$0xff]
    %v423 = vld [vmem:[%s4 + $0xb68] sm:$0xff]
    %v424 = vld [vmem:[%s4 + $0xb70] sm:$0xff]
    %v425 = vld [vmem:[%s4 + $0xb78] sm:$0xff]
    %v426 = vld [vmem:[%s4 + $0xb80] sm:$0xff]
    %v427 = vld [vmem:[%s4 + $0xb88] sm:$0xff]
    %v428 = vld [vmem:[%s4 + $0xb90] sm:$0xff]
    %v429 = vld [vmem:[%s4 + $0xb98] sm:$0xff]
    %v430 = vld [vmem:[%s4 + $0xba0] sm:$0xff]
    %v431 = vld [vmem:[%s4 + $0xba8] sm:$0xff]
    %v432 = vld [vmem:[%s4 + $0xbb0] sm:$0xff]
    %v433 = vld [vmem:[%s4 + $0xbb8] sm:$0xff]
    %v434 = vld [vmem:[%s4 + $0xbc0] sm:$0xff]
    %v435 = vld [vmem:[%s4 + $0xbc8] sm:$0xff]
    %v436 = vld [vmem:[%s4 + $0xbd0] sm:$0xff]
    %v437 = vld [vmem:[%s4 + $0xbd8] sm:$0xff]
    %v438 = vld [vmem:[%s4 + $0xbe0] sm:$0xff]
    %v439 = vld [vmem:[%s4 + $0xbe8] sm:$0xff]
    %v440 = vld [vmem:[%s4 + $0xbf0] sm:$0xff]
    %v441 = vld [vmem:[%s4 + $0xbf8] sm:$0xff]
    %v442 = vld [vmem:[%s4 + $0xc00] sm:$0xff]
    %v443 = vld [vmem:[%s4 + $0xc08] sm:$0xff]
    %v444 = vld [vmem:[%s4 + $0xc10] sm:$0xff]
    %v445 = vld [vmem:[%s4 + $0xc18] sm:$0xff]
    %v446 = vld [vmem:[%s4 + $0xc20] sm:$0xff]
    %v447 = vld [vmem:[%s4 + $0xc28] sm:$0xff]
    %v448 = vld [vmem:[%s4 + $0xc30] sm:$0xff]
    %v449 = vld [vmem:[%s4 + $0xc38] sm:$0xff]
    %v450 = vld [vmem:[%s4 + $0xc40] sm:$0xff]
    %v451 = vld [vmem:[%s4 + $0xc48] sm:$0xff]
    %v452 = vld [vmem:[%s4 + $0xc50] sm:$0xff]
    %v453 = vld [vmem:[%s4 + $0xc58] sm:$0xff]
    %v454 = vld [vmem:[%s4 + $0xc60] sm:$0xff]
    %v455 = vld [vmem:[%s4 + $0xc68] sm:$0xff]
    %v456 = vld [vmem:[%s4 + $0xc70] sm:$0xff]
    %v457 = vld [vmem:[%s4 + $0xc78] sm:$0xff]
    %v458 = vld [vmem:[%s5] sm:$0x1]
    %v460 = vlaneseq
    %v461 = vshrl.u32 %v460, 7
    %v462 = vsub.s32 0, %v461
    %v463 = vrot.slane %v458, %v462
    %v472 = vcombine.high %v51, %v51
    %v474 = vunpack.c.l.s4 1983009808
    %v475 = vunpack.c.0.s8 %v474
    %v476 = vlaneseq
    %v477 = vshrl.u32 %v476, 7
    %v478 = vsub.s32 %v475, %v477
    %v479 = vrot.slane %v51, %v478
    %v481 = vunpack.c.l.s4 1983009808
    %v482 = vunpack.c.0.s8 %v481
    %v483 = vlaneseq
    %v484 = vshrl.u32 %v483, 7
    %v485 = vsub.s32 %v482, %v484
    %v486 = vrot.slane %v472, %v485
    %v487 = vcombine.high %v479, %v479
    %v488 = vcombine.high %v486, %v486
    %v489 = vcombine.high %v52, %v52
    %v491 = vunpack.c.l.s4 1983009808
    %v492 = vunpack.c.0.s8 %v491
    %v493 = vlaneseq
    %v494 = vshrl.u32 %v493, 7
    %v495 = vsub.s32 %v492, %v494
    %v496 = vrot.slane %v52, %v495
    %v498 = vunpack.c.l.s4 1983009808
    %v499 = vunpack.c.0.s8 %v498
    %v500 = vlaneseq
    %v501 = vshrl.u32 %v500, 7
    %v502 = vsub.s32 %v499, %v501
    %v503 = vrot.slane %v489, %v502
    %v504 = vcombine.high %v496, %v496
    %v505 = vcombine.high %v503, %v503
    %v506 = vcombine.high %v53, %v53
    %v508 = vunpack.c.l.s4 1983009808
    %v509 = vunpack.c.0.s8 %v508
    %v510 = vlaneseq
    %v511 = vshrl.u32 %v510, 7
    %v512 = vsub.s32 %v509, %v511
    %v513 = vrot.slane %v53, %v512
    %v515 = vunpack.c.l.s4 1983009808
    %v516 = vunpack.c.0.s8 %v515
    %v517 = vlaneseq
    %v518 = vshrl.u32 %v517, 7
    %v519 = vsub.s32 %v516, %v518
    %v520 = vrot.slane %v506, %v519
    %v521 = vcombine.high %v513, %v513
    %v522 = vcombine.high %v520, %v520
    %v523 = vcombine.high %v54, %v54
    %v525 = vunpack.c.l.s4 1983009808
    %v526 = vunpack.c.0.s8 %v525
    %v527 = vlaneseq
    %v528 = vshrl.u32 %v527, 7
    %v529 = vsub.s32 %v526, %v528
    %v530 = vrot.slane %v54, %v529
    %v532 = vunpack.c.l.s4 1983009808
    %v533 = vunpack.c.0.s8 %v532
    %v534 = vlaneseq
    %v535 = vshrl.u32 %v534, 7
    %v536 = vsub.s32 %v533, %v535
    %v537 = vrot.slane %v523, %v536
    %v538 = vcombine.high %v530, %v530
    %v539 = vcombine.high %v537, %v537
    %v540 = vcombine.high %v55, %v55
    %v542 = vunpack.c.l.s4 1983009808
    %v543 = vunpack.c.0.s8 %v542
    %v544 = vlaneseq
    %v545 = vshrl.u32 %v544, 7
    %v546 = vsub.s32 %v543, %v545
    %v547 = vrot.slane %v55, %v546
    %v549 = vunpack.c.l.s4 1983009808
    %v550 = vunpack.c.0.s8 %v549
    %v551 = vlaneseq
    %v552 = vshrl.u32 %v551, 7
    %v553 = vsub.s32 %v550, %v552
    %v554 = vrot.slane %v540, %v553
    %v555 = vcombine.high %v547, %v547
    %v556 = vcombine.high %v554, %v554
    %v557 = vcombine.high %v56, %v56
    %v559 = vunpack.c.l.s4 1983009808
    %v560 = vunpack.c.0.s8 %v559
    %v561 = vlaneseq
    %v562 = vshrl.u32 %v561, 7
    %v563 = vsub.s32 %v560, %v562
    %v564 = vrot.slane %v56, %v563
    %v566 = vunpack.c.l.s4 1983009808
    %v567 = vunpack.c.0.s8 %v566
    %v568 = vlaneseq
    %v569 = vshrl.u32 %v568, 7
    %v570 = vsub.s32 %v567, %v569
    %v571 = vrot.slane %v557, %v570
    %v572 = vcombine.high %v564, %v564
    %v573 = vcombine.high %v571, %v571
    %v575 = vunpack.c.l.s4 1983009808
    %v576 = vunpack.c.0.s8 %v575
    %v577 = vlaneseq
    %v578 = vshrl.u32 %v577, 7
    %v579 = vsub.s32 %v576, %v578
    %v580 = vrot.slane %v57, %v579
    %606 = vmatprep.subr.mxu0 0.0
    %607 = vmatpush1.msra.mxu0 %v73
    %608 = vmatprep.subr.mxu0 0.0
    %609 = vmatpush1.msra.mxu0 %v72
    %610 = vmatprep.subr.mxu0 0.0
    %611 = vmatpush1.msra.mxu0 %v71
    %612 = vmatprep.subr.mxu0 0.0
    %613 = vmatpush1.msra.mxu0 %v70
    %614 = vmatprep.subr.mxu0 0.0
    %615 = vmatpush1.msra.mxu0 %v69
    %616 = vmatprep.subr.mxu0 0.0
    %617 = vmatpush1.msra.mxu0 %v68
    %618 = vmatprep.subr.mxu0 0.0
    %619 = vmatpush1.msra.mxu0 %v67
    %620 = vmatprep.subr.mxu0 0.0
    %621 = vmatpush1.msra.mxu0 %v66
    %622 = vmatprep.subr.mxu0 0.0
    %623 = vmatpush1.msra.mxu0 %v65
    %624 = vmatprep.subr.mxu0 0.0
    %625 = vmatpush1.msra.mxu0 %v64
    %626 = vmatprep.subr.mxu0 0.0
    %627 = vmatpush1.msra.mxu0 %v63
    %628 = vmatprep.subr.mxu0 0.0
    %629 = vmatpush1.msra.mxu0 %v62
    %630 = vmatprep.subr.mxu0 0.0
    %631 = vmatpush1.msra.mxu0 %v61
    %632 = vmatprep.subr.mxu0 0.0
    %633 = vmatpush1.msra.mxu0 %v60
    %634 = vmatprep.subr.mxu0 0.0
    %635 = vmatpush1.msra.mxu0 %v59
    %636 = vmatprep.subr.mxu0 0.0
    %637 = vmatpush1.msra.mxu0 %v58
    %638 = vmatprep.subr.mxu0 0.0
    %639 = vmatpush2.msra.mxu0 %v89
    %640 = vmatprep.subr.mxu0 0.0
    %641 = vmatpush2.msra.mxu0 %v88
    %642 = vmatprep.subr.mxu0 0.0
    %643 = vmatpush2.msra.mxu0 %v87
    %644 = vmatprep.subr.mxu0 0.0
    %645 = vmatpush2.msra.mxu0 %v86
    %646 = vmatprep.subr.mxu0 0.0
    %647 = vmatpush2.msra.mxu0 %v85
    %648 = vmatprep.subr.mxu0 0.0
    %649 = vmatpush2.msra.mxu0 %v84
    %650 = vmatprep.subr.mxu0 0.0
    %651 = vmatpush2.msra.mxu0 %v83
    %652 = vmatprep.subr.mxu0 0.0
    %653 = vmatpush2.msra.mxu0 %v82
    %654 = vmatprep.subr.mxu0 0.0
    %655 = vmatpush2.msra.mxu0 %v81
    %656 = vmatprep.subr.mxu0 0.0
    %657 = vmatpush2.msra.mxu0 %v80
    %658 = vmatprep.subr.mxu0 0.0
    %659 = vmatpush2.msra.mxu0 %v79
    %660 = vmatprep.subr.mxu0 0.0
    %661 = vmatpush2.msra.mxu0 %v78
    %662 = vmatprep.subr.mxu0 0.0
    %663 = vmatpush2.msra.mxu0 %v77
    %664 = vmatprep.subr.mxu0 0.0
    %665 = vmatpush2.msra.mxu0 %v76
    %666 = vmatprep.subr.mxu0 0.0
    %667 = vmatpush2.msra.mxu0 %v75
    %668 = vmatprep.subr.mxu0 0.0
    %669 = vmatpush2.msra.mxu0 %v74
    %670 = vmatprep.mubr.f32.mxu0 %v487
    %671 = vmatmul.mubr.f32.gmra.mxu0 %v479
    %v672 = vpop.f32.mrf.mxu0
    %v673 = vadd.f32 %v463, %v672
    %v674 = vpop.f32.mrf.mxu0
    %675 = vdwg.mxu0
    %676 = vmatprep.subr.mxu0 0.0
    %677 = vmatpush1.msra.mxu0 %v105
    %678 = vmatprep.subr.mxu0 0.0
    %679 = vmatpush1.msra.mxu0 %v104
    %680 = vmatprep.subr.mxu0 0.0
    %681 = vmatpush1.msra.mxu0 %v103
    %682 = vmatprep.subr.mxu0 0.0
    %683 = vmatpush1.msra.mxu0 %v102
    %684 = vmatprep.subr.mxu0 0.0
    %685 = vmatpush1.msra.mxu0 %v101
    %686 = vmatprep.subr.mxu0 0.0
    %687 = vmatpush1.msra.mxu0 %v100
    %688 = vmatprep.subr.mxu0 0.0
    %689 = vmatpush1.msra.mxu0 %v99
    %690 = vmatprep.subr.mxu0 0.0
    %691 = vmatpush1.msra.mxu0 %v98
    %692 = vmatprep.subr.mxu0 0.0
    %693 = vmatpush1.msra.mxu0 %v97
    %694 = vmatprep.subr.mxu0 0.0
    %695 = vmatpush1.msra.mxu0 %v96
    %696 = vmatprep.subr.mxu0 0.0
    %697 = vmatpush1.msra.mxu0 %v95
    %698 = vmatprep.subr.mxu0 0.0
    %699 = vmatpush1.msra.mxu0 %v94
    %700 = vmatprep.subr.mxu0 0.0
    %701 = vmatpush1.msra.mxu0 %v93
    %702 = vmatprep.subr.mxu0 0.0
    %703 = vmatpush1.msra.mxu0 %v92
    %704 = vmatprep.subr.mxu0 0.0
    %705 = vmatpush1.msra.mxu0 %v91
    %706 = vmatprep.subr.mxu0 0.0
    %707 = vmatpush1.msra.mxu0 %v90
    %708 = vmatprep.subr.mxu0 0.0
    %709 = vmatpush2.msra.mxu0 %v121
    %710 = vmatprep.subr.mxu0 0.0
    %711 = vmatpush2.msra.mxu0 %v120
    %712 = vmatprep.subr.mxu0 0.0
    %713 = vmatpush2.msra.mxu0 %v119
    %714 = vmatprep.subr.mxu0 0.0
    %715 = vmatpush2.msra.mxu0 %v118
    %716 = vmatprep.subr.mxu0 0.0
    %717 = vmatpush2.msra.mxu0 %v117
    %718 = vmatprep.subr.mxu0 0.0
    %719 = vmatpush2.msra.mxu0 %v116
    %720 = vmatprep.subr.mxu0 0.0
    %721 = vmatpush2.msra.mxu0 %v115
    %722 = vmatprep.subr.mxu0 0.0
    %723 = vmatpush2.msra.mxu0 %v114
    %724 = vmatprep.subr.mxu0 0.0
    %725 = vmatpush2.msra.mxu0 %v113
    %726 = vmatprep.subr.mxu0 0.0
    %727 = vmatpush2.msra.mxu0 %v112
    %728 = vmatprep.subr.mxu0 0.0
    %729 = vmatpush2.msra.mxu0 %v111
    %730 = vmatprep.subr.mxu0 0.0
    %731 = vmatpush2.msra.mxu0 %v110
    %732 = vmatprep.subr.mxu0 0.0
    %733 = vmatpush2.msra.mxu0 %v109
    %734 = vmatprep.subr.mxu0 0.0
    %735 = vmatpush2.msra.mxu0 %v108
    %736 = vmatprep.subr.mxu0 0.0
    %737 = vmatpush2.msra.mxu0 %v107
    %738 = vmatprep.subr.mxu0 0.0
    %739 = vmatpush2.msra.mxu0 %v106
    %740 = vmatprep.mubr.f32.mxu0 %v488
    %741 = vmatmul.mubr.f32.gmra.mxu0 %v486
    %v742 = vpop.f32.mrf.mxu0
    %v743 = vadd.f32 %v673, %v742
    %v744 = vpop.f32.mrf.mxu0
    %745 = vdwg.mxu0
    %746 = vmatprep.subr.mxu0 0.0
    %747 = vmatpush1.msra.mxu0 %v137
    %748 = vmatprep.subr.mxu0 0.0
    %749 = vmatpush1.msra.mxu0 %v136
    %750 = vmatprep.subr.mxu0 0.0
    %751 = vmatpush1.msra.mxu0 %v135
    %752 = vmatprep.subr.mxu0 0.0
    %753 = vmatpush1.msra.mxu0 %v134
    %754 = vmatprep.subr.mxu0 0.0
    %755 = vmatpush1.msra.mxu0 %v133
    %756 = vmatprep.subr.mxu0 0.0
    %757 = vmatpush1.msra.mxu0 %v132
    %758 = vmatprep.subr.mxu0 0.0
    %759 = vmatpush1.msra.mxu0 %v131
    %760 = vmatprep.subr.mxu0 0.0
    %761 = vmatpush1.msra.mxu0 %v130
    %762 = vmatprep.subr.mxu0 0.0
    %763 = vmatpush1.msra.mxu0 %v129
    %764 = vmatprep.subr.mxu0 0.0
    %765 = vmatpush1.msra.mxu0 %v128
    %766 = vmatprep.subr.mxu0 0.0
    %767 = vmatpush1.msra.mxu0 %v127
    %768 = vmatprep.subr.mxu0 0.0
    %769 = vmatpush1.msra.mxu0 %v126
    %770 = vmatprep.subr.mxu0 0.0
    %771 = vmatpush1.msra.mxu0 %v125
    %772 = vmatprep.subr.mxu0 0.0
    %773 = vmatpush1.msra.mxu0 %v124
    %774 = vmatprep.subr.mxu0 0.0
    %775 = vmatpush1.msra.mxu0 %v123
    %776 = vmatprep.subr.mxu0 0.0
    %777 = vmatpush1.msra.mxu0 %v122
    %778 = vmatprep.subr.mxu0 0.0
    %779 = vmatpush2.msra.mxu0 %v153
    %780 = vmatprep.subr.mxu0 0.0
    %781 = vmatpush2.msra.mxu0 %v152
    %782 = vmatprep.subr.mxu0 0.0
    %783 = vmatpush2.msra.mxu0 %v151
    %784 = vmatprep.subr.mxu0 0.0
    %785 = vmatpush2.msra.mxu0 %v150
    %786 = vmatprep.subr.mxu0 0.0
    %787 = vmatpush2.msra.mxu0 %v149
    %788 = vmatprep.subr.mxu0 0.0
    %789 = vmatpush2.msra.mxu0 %v148
    %790 = vmatprep.subr.mxu0 0.0
    %791 = vmatpush2.msra.mxu0 %v147
    %792 = vmatprep.subr.mxu0 0.0
    %793 = vmatpush2.msra.mxu0 %v146
    %794 = vmatprep.subr.mxu0 0.0
    %795 = vmatpush2.msra.mxu0 %v145
    %796 = vmatprep.subr.mxu0 0.0
    %797 = vmatpush2.msra.mxu0 %v144
    %798 = vmatprep.subr.mxu0 0.0
    %799 = vmatpush2.msra.mxu0 %v143
    %800 = vmatprep.subr.mxu0 0.0
    %801 = vmatpush2.msra.mxu0 %v142
    %802 = vmatprep.subr.mxu0 0.0
    %803 = vmatpush2.msra.mxu0 %v141
    %804 = vmatprep.subr.mxu0 0.0
    %805 = vmatpush2.msra.mxu0 %v140
    %806 = vmatprep.subr.mxu0 0.0
    %807 = vmatpush2.msra.mxu0 %v139
    %808 = vmatprep.subr.mxu0 0.0
    %809 = vmatpush2.msra.mxu0 %v138
    %810 = vmatprep.mubr.f32.mxu0 %v504
    %811 = vmatmul.mubr.f32.gmra.mxu0 %v496
    %v812 = vpop.f32.mrf.mxu0
    %v813 = vadd.f32 %v743, %v812
    %v814 = vpop.f32.mrf.mxu0
    %815 = vdwg.mxu0
    %816 = vmatprep.subr.mxu0 0.0
    %817 = vmatpush1.msra.mxu0 %v169
    %818 = vmatprep.subr.mxu0 0.0
    %819 = vmatpush1.msra.mxu0 %v168
    %820 = vmatprep.subr.mxu0 0.0
    %821 = vmatpush1.msra.mxu0 %v167
    %822 = vmatprep.subr.mxu0 0.0
    %823 = vmatpush1.msra.mxu0 %v166
    %824 = vmatprep.subr.mxu0 0.0
    %825 = vmatpush1.msra.mxu0 %v165
    %826 = vmatprep.subr.mxu0 0.0
    %827 = vmatpush1.msra.mxu0 %v164
    %828 = vmatprep.subr.mxu0 0.0
    %829 = vmatpush1.msra.mxu0 %v163
    %830 = vmatprep.subr.mxu0 0.0
    %831 = vmatpush1.msra.mxu0 %v162
    %832 = vmatprep.subr.mxu0 0.0
    %833 = vmatpush1.msra.mxu0 %v161
    %834 = vmatprep.subr.mxu0 0.0
    %835 = vmatpush1.msra.mxu0 %v160
    %836 = vmatprep.subr.mxu0 0.0
    %837 = vmatpush1.msra.mxu0 %v159
    %838 = vmatprep.subr.mxu0 0.0
    %839 = vmatpush1.msra.mxu0 %v158
    %840 = vmatprep.subr.mxu0 0.0
    %841 = vmatpush1.msra.mxu0 %v157
    %842 = vmatprep.subr.mxu0 0.0
    %843 = vmatpush1.msra.mxu0 %v156
    %844 = vmatprep.subr.mxu0 0.0
    %845 = vmatpush1.msra.mxu0 %v155
    %846 = vmatprep.subr.mxu0 0.0
    %847 = vmatpush1.msra.mxu0 %v154
    %848 = vmatprep.subr.mxu0 0.0
    %849 = vmatpush2.msra.mxu0 %v185
    %850 = vmatprep.subr.mxu0 0.0
    %851 = vmatpush2.msra.mxu0 %v184
    %852 = vmatprep.subr.mxu0 0.0
    %853 = vmatpush2.msra.mxu0 %v183
    %854 = vmatprep.subr.mxu0 0.0
    %855 = vmatpush2.msra.mxu0 %v182
    %856 = vmatprep.subr.mxu0 0.0
    %857 = vmatpush2.msra.mxu0 %v181
    %858 = vmatprep.subr.mxu0 0.0
    %859 = vmatpush2.msra.mxu0 %v180
    %860 = vmatprep.subr.mxu0 0.0
    %861 = vmatpush2.msra.mxu0 %v179
    %862 = vmatprep.subr.mxu0 0.0
    %863 = vmatpush2.msra.mxu0 %v178
    %864 = vmatprep.subr.mxu0 0.0
    %865 = vmatpush2.msra.mxu0 %v177
    %866 = vmatprep.subr.mxu0 0.0
    %867 = vmatpush2.msra.mxu0 %v176
    %868 = vmatprep.subr.mxu0 0.0
    %869 = vmatpush2.msra.mxu0 %v175
    %870 = vmatprep.subr.mxu0 0.0
    %871 = vmatpush2.msra.mxu0 %v174
    %872 = vmatprep.subr.mxu0 0.0
    %873 = vmatpush2.msra.mxu0 %v173
    %874 = vmatprep.subr.mxu0 0.0
    %875 = vmatpush2.msra.mxu0 %v172
    %876 = vmatprep.subr.mxu0 0.0
    %877 = vmatpush2.msra.mxu0 %v171
    %878 = vmatprep.subr.mxu0 0.0
    %879 = vmatpush2.msra.mxu0 %v170
    %880 = vmatprep.mubr.f32.mxu0 %v505
    %881 = vmatmul.mubr.f32.gmra.mxu0 %v503
    %v882 = vpop.f32.mrf.mxu0
    %v883 = vadd.f32 %v813, %v882
    %v884 = vpop.f32.mrf.mxu0
    %885 = vdwg.mxu0
    %886 = vmatprep.subr.mxu0 0.0
    %887 = vmatpush1.msra.mxu0 %v201
    %888 = vmatprep.subr.mxu0 0.0
    %889 = vmatpush1.msra.mxu0 %v200
    %890 = vmatprep.subr.mxu0 0.0
    %891 = vmatpush1.msra.mxu0 %v199
    %892 = vmatprep.subr.mxu0 0.0
    %893 = vmatpush1.msra.mxu0 %v198
    %894 = vmatprep.subr.mxu0 0.0
    %895 = vmatpush1.msra.mxu0 %v197
    %896 = vmatprep.subr.mxu0 0.0
    %897 = vmatpush1.msra.mxu0 %v196
    %898 = vmatprep.subr.mxu0 0.0
    %899 = vmatpush1.msra.mxu0 %v195
    %900 = vmatprep.subr.mxu0 0.0
    %901 = vmatpush1.msra.mxu0 %v194
    %902 = vmatprep.subr.mxu0 0.0
    %903 = vmatpush1.msra.mxu0 %v193
    %904 = vmatprep.subr.mxu0 0.0
    %905 = vmatpush1.msra.mxu0 %v192
    %906 = vmatprep.subr.mxu0 0.0
    %907 = vmatpush1.msra.mxu0 %v191
    %908 = vmatprep.subr.mxu0 0.0
    %909 = vmatpush1.msra.mxu0 %v190
    %910 = vmatprep.subr.mxu0 0.0
    %911 = vmatpush1.msra.mxu0 %v189
    %912 = vmatprep.subr.mxu0 0.0
    %913 = vmatpush1.msra.mxu0 %v188
    %914 = vmatprep.subr.mxu0 0.0
    %915 = vmatpush1.msra.mxu0 %v187
    %916 = vmatprep.subr.mxu0 0.0
    %917 = vmatpush1.msra.mxu0 %v186
    %918 = vmatprep.subr.mxu0 0.0
    %919 = vmatpush2.msra.mxu0 %v217
    %920 = vmatprep.subr.mxu0 0.0
    %921 = vmatpush2.msra.mxu0 %v216
    %922 = vmatprep.subr.mxu0 0.0
    %923 = vmatpush2.msra.mxu0 %v215
    %924 = vmatprep.subr.mxu0 0.0
    %925 = vmatpush2.msra.mxu0 %v214
    %926 = vmatprep.subr.mxu0 0.0
    %927 = vmatpush2.msra.mxu0 %v213
    %928 = vmatprep.subr.mxu0 0.0
    %929 = vmatpush2.msra.mxu0 %v212
    %930 = vmatprep.subr.mxu0 0.0
    %931 = vmatpush2.msra.mxu0 %v211
    %932 = vmatprep.subr.mxu0 0.0
    %933 = vmatpush2.msra.mxu0 %v210
    %934 = vmatprep.subr.mxu0 0.0
    %935 = vmatpush2.msra.mxu0 %v209
    %936 = vmatprep.subr.mxu0 0.0
    %937 = vmatpush2.msra.mxu0 %v208
    %938 = vmatprep.subr.mxu0 0.0
    %939 = vmatpush2.msra.mxu0 %v207
    %940 = vmatprep.subr.mxu0 0.0
    %941 = vmatpush2.msra.mxu0 %v206
    %942 = vmatprep.subr.mxu0 0.0
    %943 = vmatpush2.msra.mxu0 %v205
    %944 = vmatprep.subr.mxu0 0.0
    %945 = vmatpush2.msra.mxu0 %v204
    %946 = vmatprep.subr.mxu0 0.0
    %947 = vmatpush2.msra.mxu0 %v203
    %948 = vmatprep.subr.mxu0 0.0
    %949 = vmatpush2.msra.mxu0 %v202
    %950 = vmatprep.mubr.f32.mxu0 %v521
    %951 = vmatmul.mubr.f32.gmra.mxu0 %v513
    %v952 = vpop.f32.mrf.mxu0
    %v953 = vadd.f32 %v883, %v952
    %v954 = vpop.f32.mrf.mxu0
    %955 = vdwg.mxu0
    %956 = vmatprep.subr.mxu0 0.0
    %957 = vmatpush1.msra.mxu0 %v233
    %958 = vmatprep.subr.mxu0 0.0
    %959 = vmatpush1.msra.mxu0 %v232
    %960 = vmatprep.subr.mxu0 0.0
    %961 = vmatpush1.msra.mxu0 %v231
    %962 = vmatprep.subr.mxu0 0.0
    %963 = vmatpush1.msra.mxu0 %v230
    %964 = vmatprep.subr.mxu0 0.0
    %965 = vmatpush1.msra.mxu0 %v229
    %966 = vmatprep.subr.mxu0 0.0
    %967 = vmatpush1.msra.mxu0 %v228
    %968 = vmatprep.subr.mxu0 0.0
    %969 = vmatpush1.msra.mxu0 %v227
    %970 = vmatprep.subr.mxu0 0.0
    %971 = vmatpush1.msra.mxu0 %v226
    %972 = vmatprep.subr.mxu0 0.0
    %973 = vmatpush1.msra.mxu0 %v225
    %974 = vmatprep.subr.mxu0 0.0
    %975 = vmatpush1.msra.mxu0 %v224
    %976 = vmatprep.subr.mxu0 0.0
    %977 = vmatpush1.msra.mxu0 %v223
    %978 = vmatprep.subr.mxu0 0.0
    %979 = vmatpush1.msra.mxu0 %v222
    %980 = vmatprep.subr.mxu0 0.0
    %981 = vmatpush1.msra.mxu0 %v221
    %982 = vmatprep.subr.mxu0 0.0
    %983 = vmatpush1.msra.mxu0 %v220
    %984 = vmatprep.subr.mxu0 0.0
    %985 = vmatpush1.msra.mxu0 %v219
    %986 = vmatprep.subr.mxu0 0.0
    %987 = vmatpush1.msra.mxu0 %v218
    %988 = vmatprep.subr.mxu0 0.0
    %989 = vmatpush2.msra.mxu0 %v249
    %990 = vmatprep.subr.mxu0 0.0
    %991 = vmatpush2.msra.mxu0 %v248
    %992 = vmatprep.subr.mxu0 0.0
    %993 = vmatpush2.msra.mxu0 %v247
    %994 = vmatprep.subr.mxu0 0.0
    %995 = vmatpush2.msra.mxu0 %v246
    %996 = vmatprep.subr.mxu0 0.0
    %997 = vmatpush2.msra.mxu0 %v245
    %998 = vmatprep.subr.mxu0 0.0
    %999 = vmatpush2.msra.mxu0 %v244
    %1000 = vmatprep.subr.mxu0 0.0
    %1001 = vmatpush2.msra.mxu0 %v243
    %1002 = vmatprep.subr.mxu0 0.0
    %1003 = vmatpush2.msra.mxu0 %v242
    %1004 = vmatprep.subr.mxu0 0.0
    %1005 = vmatpush2.msra.mxu0 %v241
    %1006 = vmatprep.subr.mxu0 0.0
    %1007 = vmatpush2.msra.mxu0 %v240
    %1008 = vmatprep.subr.mxu0 0.0
    %1009 = vmatpush2.msra.mxu0 %v239
    %1010 = vmatprep.subr.mxu0 0.0
    %1011 = vmatpush2.msra.mxu0 %v238
    %1012 = vmatprep.subr.mxu0 0.0
    %1013 = vmatpush2.msra.mxu0 %v237
    %1014 = vmatprep.subr.mxu0 0.0
    %1015 = vmatpush2.msra.mxu0 %v236
    %1016 = vmatprep.subr.mxu0 0.0
    %1017 = vmatpush2.msra.mxu0 %v235
    %1018 = vmatprep.subr.mxu0 0.0
    %1019 = vmatpush2.msra.mxu0 %v234
    %1020 = vmatprep.mubr.f32.mxu0 %v522
    %1021 = vmatmul.mubr.f32.gmra.mxu0 %v520
    %v1022 = vpop.f32.mrf.mxu0
    %v1023 = vadd.f32 %v953, %v1022
    %v1024 = vpop.f32.mrf.mxu0
    %1025 = vdwg.mxu0
    %1026 = vmatprep.subr.mxu0 0.0
    %1027 = vmatpush1.msra.mxu0 %v265
    %1028 = vmatprep.subr.mxu0 0.0
    %1029 = vmatpush1.msra.mxu0 %v264
    %1030 = vmatprep.subr.mxu0 0.0
    %1031 = vmatpush1.msra.mxu0 %v263
    %1032 = vmatprep.subr.mxu0 0.0
    %1033 = vmatpush1.msra.mxu0 %v262
    %1034 = vmatprep.subr.mxu0 0.0
    %1035 = vmatpush1.msra.mxu0 %v261
    %1036 = vmatprep.subr.mxu0 0.0
    %1037 = vmatpush1.msra.mxu0 %v260
    %1038 = vmatprep.subr.mxu0 0.0
    %1039 = vmatpush1.msra.mxu0 %v259
    %1040 = vmatprep.subr.mxu0 0.0
    %1041 = vmatpush1.msra.mxu0 %v258
    %1042 = vmatprep.subr.mxu0 0.0
    %1043 = vmatpush1.msra.mxu0 %v257
    %1044 = vmatprep.subr.mxu0 0.0
    %1045 = vmatpush1.msra.mxu0 %v256
    %1046 = vmatprep.subr.mxu0 0.0
    %1047 = vmatpush1.msra.mxu0 %v255
    %1048 = vmatprep.subr.mxu0 0.0
    %1049 = vmatpush1.msra.mxu0 %v254
    %1050 = vmatprep.subr.mxu0 0.0
    %1051 = vmatpush1.msra.mxu0 %v253
    %1052 = vmatprep.subr.mxu0 0.0
    %1053 = vmatpush1.msra.mxu0 %v252
    %1054 = vmatprep.subr.mxu0 0.0
    %1055 = vmatpush1.msra.mxu0 %v251
    %1056 = vmatprep.subr.mxu0 0.0
    %1057 = vmatpush1.msra.mxu0 %v250
    %1058 = vmatprep.subr.mxu0 0.0
    %1059 = vmatpush2.msra.mxu0 %v281
    %1060 = vmatprep.subr.mxu0 0.0
    %1061 = vmatpush2.msra.mxu0 %v280
    %1062 = vmatprep.subr.mxu0 0.0
    %1063 = vmatpush2.msra.mxu0 %v279
    %1064 = vmatprep.subr.mxu0 0.0
    %1065 = vmatpush2.msra.mxu0 %v278
    %1066 = vmatprep.subr.mxu0 0.0
    %1067 = vmatpush2.msra.mxu0 %v277
    %1068 = vmatprep.subr.mxu0 0.0
    %1069 = vmatpush2.msra.mxu0 %v276
    %1070 = vmatprep.subr.mxu0 0.0
    %1071 = vmatpush2.msra.mxu0 %v275
    %1072 = vmatprep.subr.mxu0 0.0
    %1073 = vmatpush2.msra.mxu0 %v274
    %1074 = vmatprep.subr.mxu0 0.0
    %1075 = vmatpush2.msra.mxu0 %v273
    %1076 = vmatprep.subr.mxu0 0.0
    %1077 = vmatpush2.msra.mxu0 %v272
    %1078 = vmatprep.subr.mxu0 0.0
    %1079 = vmatpush2.msra.mxu0 %v271
    %1080 = vmatprep.subr.mxu0 0.0
    %1081 = vmatpush2.msra.mxu0 %v270
    %1082 = vmatprep.subr.mxu0 0.0
    %1083 = vmatpush2.msra.mxu0 %v269
    %1084 = vmatprep.subr.mxu0 0.0
    %1085 = vmatpush2.msra.mxu0 %v268
    %1086 = vmatprep.subr.mxu0 0.0
    %1087 = vmatpush2.msra.mxu0 %v267
    %1088 = vmatprep.subr.mxu0 0.0
    %1089 = vmatpush2.msra.mxu0 %v266
    %1090 = vmatprep.mubr.f32.mxu0 %v538
    %1091 = vmatmul.mubr.f32.gmra.mxu0 %v530
    %v1092 = vpop.f32.mrf.mxu0
    %v1093 = vadd.f32 %v1023, %v1092
    %v1094 = vpop.f32.mrf.mxu0
    %1095 = vdwg.mxu0
    %1096 = vmatprep.subr.mxu0 0.0
    %1097 = vmatpush1.msra.mxu0 %v297
    %1098 = vmatprep.subr.mxu0 0.0
    %1099 = vmatpush1.msra.mxu0 %v296
    %1100 = vmatprep.subr.mxu0 0.0
    %1101 = vmatpush1.msra.mxu0 %v295
    %1102 = vmatprep.subr.mxu0 0.0
    %1103 = vmatpush1.msra.mxu0 %v294
    %1104 = vmatprep.subr.mxu0 0.0
    %1105 = vmatpush1.msra.mxu0 %v293
    %1106 = vmatprep.subr.mxu0 0.0
    %1107 = vmatpush1.msra.mxu0 %v292
    %1108 = vmatprep.subr.mxu0 0.0
    %1109 = vmatpush1.msra.mxu0 %v291
    %1110 = vmatprep.subr.mxu0 0.0
    %1111 = vmatpush1.msra.mxu0 %v290
    %1112 = vmatprep.subr.mxu0 0.0
    %1113 = vmatpush1.msra.mxu0 %v289
    %1114 = vmatprep.subr.mxu0 0.0
    %1115 = vmatpush1.msra.mxu0 %v288
    %1116 = vmatprep.subr.mxu0 0.0
    %1117 = vmatpush1.msra.mxu0 %v287
    %1118 = vmatprep.subr.mxu0 0.0
    %1119 = vmatpush1.msra.mxu0 %v286
    %1120 = vmatprep.subr.mxu0 0.0
    %1121 = vmatpush1.msra.mxu0 %v285
    %1122 = vmatprep.subr.mxu0 0.0
    %1123 = vmatpush1.msra.mxu0 %v284
    %1124 = vmatprep.subr.mxu0 0.0
    %1125 = vmatpush1.msra.mxu0 %v283
    %1126 = vmatprep.subr.mxu0 0.0
    %1127 = vmatpush1.msra.mxu0 %v282
    %1128 = vmatprep.subr.mxu0 0.0
    %1129 = vmatpush2.msra.mxu0 %v313
    %1130 = vmatprep.subr.mxu0 0.0
    %1131 = vmatpush2.msra.mxu0 %v312
    %1132 = vmatprep.subr.mxu0 0.0
    %1133 = vmatpush2.msra.mxu0 %v311
    %1134 = vmatprep.subr.mxu0 0.0
    %1135 = vmatpush2.msra.mxu0 %v310
    %1136 = vmatprep.subr.mxu0 0.0
    %1137 = vmatpush2.msra.mxu0 %v309
    %1138 = vmatprep.subr.mxu0 0.0
    %1139 = vmatpush2.msra.mxu0 %v308
    %1140 = vmatprep.subr.mxu0 0.0
    %1141 = vmatpush2.msra.mxu0 %v307
    %1142 = vmatprep.subr.mxu0 0.0
    %1143 = vmatpush2.msra.mxu0 %v306
    %1144 = vmatprep.subr.mxu0 0.0
    %1145 = vmatpush2.msra.mxu0 %v305
    %1146 = vmatprep.subr.mxu0 0.0
    %1147 = vmatpush2.msra.mxu0 %v304
    %1148 = vmatprep.subr.mxu0 0.0
    %1149 = vmatpush2.msra.mxu0 %v303
    %1150 = vmatprep.subr.mxu0 0.0
    %1151 = vmatpush2.msra.mxu0 %v302
    %1152 = vmatprep.subr.mxu0 0.0
    %1153 = vmatpush2.msra.mxu0 %v301
    %1154 = vmatprep.subr.mxu0 0.0
    %1155 = vmatpush2.msra.mxu0 %v300
    %1156 = vmatprep.subr.mxu0 0.0
    %1157 = vmatpush2.msra.mxu0 %v299
    %1158 = vmatprep.subr.mxu0 0.0
    %1159 = vmatpush2.msra.mxu0 %v298
    %1160 = vmatprep.mubr.f32.mxu0 %v539
    %1161 = vmatmul.mubr.f32.gmra.mxu0 %v537
    %v1162 = vpop.f32.mrf.mxu0
    %v1163 = vadd.f32 %v1093, %v1162
    %v1164 = vpop.f32.mrf.mxu0
    %1165 = vdwg.mxu0
    %1166 = vmatprep.subr.mxu0 0.0
    %1167 = vmatpush1.msra.mxu0 %v329
    %1168 = vmatprep.subr.mxu0 0.0
    %1169 = vmatpush1.msra.mxu0 %v328
    %1170 = vmatprep.subr.mxu0 0.0
    %1171 = vmatpush1.msra.mxu0 %v327
    %1172 = vmatprep.subr.mxu0 0.0
    %1173 = vmatpush1.msra.mxu0 %v326
    %1174 = vmatprep.subr.mxu0 0.0
    %1175 = vmatpush1.msra.mxu0 %v325
    %1176 = vmatprep.subr.mxu0 0.0
    %1177 = vmatpush1.msra.mxu0 %v324
    %1178 = vmatprep.subr.mxu0 0.0
    %1179 = vmatpush1.msra.mxu0 %v323
    %1180 = vmatprep.subr.mxu0 0.0
    %1181 = vmatpush1.msra.mxu0 %v322
    %1182 = vmatprep.subr.mxu0 0.0
    %1183 = vmatpush1.msra.mxu0 %v321
    %1184 = vmatprep.subr.mxu0 0.0
    %1185 = vmatpush1.msra.mxu0 %v320
    %1186 = vmatprep.subr.mxu0 0.0
    %1187 = vmatpush1.msra.mxu0 %v319
    %1188 = vmatprep.subr.mxu0 0.0
    %1189 = vmatpush1.msra.mxu0 %v318
    %1190 = vmatprep.subr.mxu0 0.0
    %1191 = vmatpush1.msra.mxu0 %v317
    %1192 = vmatprep.subr.mxu0 0.0
    %1193 = vmatpush1.msra.mxu0 %v316
    %1194 = vmatprep.subr.mxu0 0.0
    %1195 = vmatpush1.msra.mxu0 %v315
    %1196 = vmatprep.subr.mxu0 0.0
    %1197 = vmatpush1.msra.mxu0 %v314
    %1198 = vmatprep.subr.mxu0 0.0
    %1199 = vmatpush2.msra.mxu0 %v345
    %1200 = vmatprep.subr.mxu0 0.0
    %1201 = vmatpush2.msra.mxu0 %v344
    %1202 = vmatprep.subr.mxu0 0.0
    %1203 = vmatpush2.msra.mxu0 %v343
    %1204 = vmatprep.subr.mxu0 0.0
    %1205 = vmatpush2.msra.mxu0 %v342
    %1206 = vmatprep.subr.mxu0 0.0
    %1207 = vmatpush2.msra.mxu0 %v341
    %1208 = vmatprep.subr.mxu0 0.0
    %1209 = vmatpush2.msra.mxu0 %v340
    %1210 = vmatprep.subr.mxu0 0.0
    %1211 = vmatpush2.msra.mxu0 %v339
    %1212 = vmatprep.subr.mxu0 0.0
    %1213 = vmatpush2.msra.mxu0 %v338
    %1214 = vmatprep.subr.mxu0 0.0
    %1215 = vmatpush2.msra.mxu0 %v337
    %1216 = vmatprep.subr.mxu0 0.0
    %1217 = vmatpush2.msra.mxu0 %v336
    %1218 = vmatprep.subr.mxu0 0.0
    %1219 = vmatpush2.msra.mxu0 %v335
    %1220 = vmatprep.subr.mxu0 0.0
    %1221 = vmatpush2.msra.mxu0 %v334
    %1222 = vmatprep.subr.mxu0 0.0
    %1223 = vmatpush2.msra.mxu0 %v333
    %1224 = vmatprep.subr.mxu0 0.0
    %1225 = vmatpush2.msra.mxu0 %v332
    %1226 = vmatprep.subr.mxu0 0.0
    %1227 = vmatpush2.msra.mxu0 %v331
    %1228 = vmatprep.subr.mxu0 0.0
    %1229 = vmatpush2.msra.mxu0 %v330
    %1230 = vmatprep.mubr.f32.mxu0 %v555
    %1231 = vmatmul.mubr.f32.gmra.mxu0 %v547
    %v1232 = vpop.f32.mrf.mxu0
    %v1233 = vadd.f32 %v1163, %v1232
    %v1234 = vpop.f32.mrf.mxu0
    %1235 = vdwg.mxu0
    %1236 = vmatprep.subr.mxu0 0.0
    %1237 = vmatpush1.msra.mxu0 %v361
    %1238 = vmatprep.subr.mxu0 0.0
    %1239 = vmatpush1.msra.mxu0 %v360
    %1240 = vmatprep.subr.mxu0 0.0
    %1241 = vmatpush1.msra.mxu0 %v359
    %1242 = vmatprep.subr.mxu0 0.0
    %1243 = vmatpush1.msra.mxu0 %v358
    %1244 = vmatprep.subr.mxu0 0.0
    %1245 = vmatpush1.msra.mxu0 %v357
    %1246 = vmatprep.subr.mxu0 0.0
    %1247 = vmatpush1.msra.mxu0 %v356
    %1248 = vmatprep.subr.mxu0 0.0
    %1249 = vmatpush1.msra.mxu0 %v355
    %1250 = vmatprep.subr.mxu0 0.0
    %1251 = vmatpush1.msra.mxu0 %v354
    %1252 = vmatprep.subr.mxu0 0.0
    %1253 = vmatpush1.msra.mxu0 %v353
    %1254 = vmatprep.subr.mxu0 0.0
    %1255 = vmatpush1.msra.mxu0 %v352
    %1256 = vmatprep.subr.mxu0 0.0
    %1257 = vmatpush1.msra.mxu0 %v351
    %1258 = vmatprep.subr.mxu0 0.0
    %1259 = vmatpush1.msra.mxu0 %v350
    %1260 = vmatprep.subr.mxu0 0.0
    %1261 = vmatpush1.msra.mxu0 %v349
    %1262 = vmatprep.subr.mxu0 0.0
    %1263 = vmatpush1.msra.mxu0 %v348
    %1264 = vmatprep.subr.mxu0 0.0
    %1265 = vmatpush1.msra.mxu0 %v347
    %1266 = vmatprep.subr.mxu0 0.0
    %1267 = vmatpush1.msra.mxu0 %v346
    %1268 = vmatprep.subr.mxu0 0.0
    %1269 = vmatpush2.msra.mxu0 %v377
    %1270 = vmatprep.subr.mxu0 0.0
    %1271 = vmatpush2.msra.mxu0 %v376
    %1272 = vmatprep.subr.mxu0 0.0
    %1273 = vmatpush2.msra.mxu0 %v375
    %1274 = vmatprep.subr.mxu0 0.0
    %1275 = vmatpush2.msra.mxu0 %v374
    %1276 = vmatprep.subr.mxu0 0.0
    %1277 = vmatpush2.msra.mxu0 %v373
    %1278 = vmatprep.subr.mxu0 0.0
    %1279 = vmatpush2.msra.mxu0 %v372
    %1280 = vmatprep.subr.mxu0 0.0
    %1281 = vmatpush2.msra.mxu0 %v371
    %1282 = vmatprep.subr.mxu0 0.0
    %1283 = vmatpush2.msra.mxu0 %v370
    %1284 = vmatprep.subr.mxu0 0.0
    %1285 = vmatpush2.msra.mxu0 %v369
    %1286 = vmatprep.subr.mxu0 0.0
    %1287 = vmatpush2.msra.mxu0 %v368
    %1288 = vmatprep.subr.mxu0 0.0
    %1289 = vmatpush2.msra.mxu0 %v367
    %1290 = vmatprep.subr.mxu0 0.0
    %1291 = vmatpush2.msra.mxu0 %v366
    %1292 = vmatprep.subr.mxu0 0.0
    %1293 = vmatpush2.msra.mxu0 %v365
    %1294 = vmatprep.subr.mxu0 0.0
    %1295 = vmatpush2.msra.mxu0 %v364
    %1296 = vmatprep.subr.mxu0 0.0
    %1297 = vmatpush2.msra.mxu0 %v363
    %1298 = vmatprep.subr.mxu0 0.0
    %1299 = vmatpush2.msra.mxu0 %v362
    %1300 = vmatprep.mubr.f32.mxu0 %v556
    %1301 = vmatmul.mubr.f32.gmra.mxu0 %v554
    %v1302 = vpop.f32.mrf.mxu0
    %v1303 = vadd.f32 %v1233, %v1302
    %v1304 = vpop.f32.mrf.mxu0
    %1305 = vdwg.mxu0
    %1306 = vmatprep.subr.mxu0 0.0
    %1307 = vmatpush1.msra.mxu0 %v393
    %1308 = vmatprep.subr.mxu0 0.0
    %1309 = vmatpush1.msra.mxu0 %v392
    %1310 = vmatprep.subr.mxu0 0.0
    %1311 = vmatpush1.msra.mxu0 %v391
    %1312 = vmatprep.subr.mxu0 0.0
    %1313 = vmatpush1.msra.mxu0 %v390
    %1314 = vmatprep.subr.mxu0 0.0
    %1315 = vmatpush1.msra.mxu0 %v389
    %1316 = vmatprep.subr.mxu0 0.0
    %1317 = vmatpush1.msra.mxu0 %v388
    %1318 = vmatprep.subr.mxu0 0.0
    %1319 = vmatpush1.msra.mxu0 %v387
    %1320 = vmatprep.subr.mxu0 0.0
    %1321 = vmatpush1.msra.mxu0 %v386
    %1322 = vmatprep.subr.mxu0 0.0
    %1323 = vmatpush1.msra.mxu0 %v385
    %1324 = vmatprep.subr.mxu0 0.0
    %1325 = vmatpush1.msra.mxu0 %v384
    %1326 = vmatprep.subr.mxu0 0.0
    %1327 = vmatpush1.msra.mxu0 %v383
    %1328 = vmatprep.subr.mxu0 0.0
    %1329 = vmatpush1.msra.mxu0 %v382
    %1330 = vmatprep.subr.mxu0 0.0
    %1331 = vmatpush1.msra.mxu0 %v381
    %1332 = vmatprep.subr.mxu0 0.0
    %1333 = vmatpush1.msra.mxu0 %v380
    %1334 = vmatprep.subr.mxu0 0.0
    %1335 = vmatpush1.msra.mxu0 %v379
    %1336 = vmatprep.subr.mxu0 0.0
    %1337 = vmatpush1.msra.mxu0 %v378
    %1338 = vmatprep.subr.mxu0 0.0
    %1339 = vmatpush2.msra.mxu0 %v409
    %1340 = vmatprep.subr.mxu0 0.0
    %1341 = vmatpush2.msra.mxu0 %v408
    %1342 = vmatprep.subr.mxu0 0.0
    %1343 = vmatpush2.msra.mxu0 %v407
    %1344 = vmatprep.subr.mxu0 0.0
    %1345 = vmatpush2.msra.mxu0 %v406
    %1346 = vmatprep.subr.mxu0 0.0
    %1347 = vmatpush2.msra.mxu0 %v405
    %1348 = vmatprep.subr.mxu0 0.0
    %1349 = vmatpush2.msra.mxu0 %v404
    %1350 = vmatprep.subr.mxu0 0.0
    %1351 = vmatpush2.msra.mxu0 %v403
    %1352 = vmatprep.subr.mxu0 0.0
    %1353 = vmatpush2.msra.mxu0 %v402
    %1354 = vmatprep.subr.mxu0 0.0
    %1355 = vmatpush2.msra.mxu0 %v401
    %1356 = vmatprep.subr.mxu0 0.0
    %1357 = vmatpush2.msra.mxu0 %v400
    %1358 = vmatprep.subr.mxu0 0.0
    %1359 = vmatpush2.msra.mxu0 %v399
    %1360 = vmatprep.subr.mxu0 0.0
    %1361 = vmatpush2.msra.mxu0 %v398
    %1362 = vmatprep.subr.mxu0 0.0
    %1363 = vmatpush2.msra.mxu0 %v397
    %1364 = vmatprep.subr.mxu0 0.0
    %1365 = vmatpush2.msra.mxu0 %v396
    %1366 = vmatprep.subr.mxu0 0.0
    %1367 = vmatpush2.msra.mxu0 %v395
    %1368 = vmatprep.subr.mxu0 0.0
    %1369 = vmatpush2.msra.mxu0 %v394
    %1370 = vmatprep.mubr.f32.mxu0 %v572
    %1371 = vmatmul.mubr.f32.gmra.mxu0 %v564
    %v1372 = vpop.f32.mrf.mxu0
    %v1373 = vadd.f32 %v1303, %v1372
    %v1374 = vpop.f32.mrf.mxu0
    %1375 = vdwg.mxu0
    %1376 = vmatprep.subr.mxu0 0.0
    %1377 = vmatpush1.msra.mxu0 %v425
    %1378 = vmatprep.subr.mxu0 0.0
    %1379 = vmatpush1.msra.mxu0 %v424
    %1380 = vmatprep.subr.mxu0 0.0
    %1381 = vmatpush1.msra.mxu0 %v423
    %1382 = vmatprep.subr.mxu0 0.0
    %1383 = vmatpush1.msra.mxu0 %v422
    %1384 = vmatprep.subr.mxu0 0.0
    %1385 = vmatpush1.msra.mxu0 %v421
    %1386 = vmatprep.subr.mxu0 0.0
    %1387 = vmatpush1.msra.mxu0 %v420
    %1388 = vmatprep.subr.mxu0 0.0
    %1389 = vmatpush1.msra.mxu0 %v419
    %1390 = vmatprep.subr.mxu0 0.0
    %1391 = vmatpush1.msra.mxu0 %v418
    %1392 = vmatprep.subr.mxu0 0.0
    %1393 = vmatpush1.msra.mxu0 %v417
    %1394 = vmatprep.subr.mxu0 0.0
    %1395 = vmatpush1.msra.mxu0 %v416
    %1396 = vmatprep.subr.mxu0 0.0
    %1397 = vmatpush1.msra.mxu0 %v415
    %1398 = vmatprep.subr.mxu0 0.0
    %1399 = vmatpush1.msra.mxu0 %v414
    %1400 = vmatprep.subr.mxu0 0.0
    %1401 = vmatpush1.msra.mxu0 %v413
    %1402 = vmatprep.subr.mxu0 0.0
    %1403 = vmatpush1.msra.mxu0 %v412
    %1404 = vmatprep.subr.mxu0 0.0
    %1405 = vmatpush1.msra.mxu0 %v411
    %1406 = vmatprep.subr.mxu0 0.0
    %1407 = vmatpush1.msra.mxu0 %v410
    %1408 = vmatprep.subr.mxu0 0.0
    %1409 = vmatpush2.msra.mxu0 %v441
    %1410 = vmatprep.subr.mxu0 0.0
    %1411 = vmatpush2.msra.mxu0 %v440
    %1412 = vmatprep.subr.mxu0 0.0
    %1413 = vmatpush2.msra.mxu0 %v439
    %1414 = vmatprep.subr.mxu0 0.0
    %1415 = vmatpush2.msra.mxu0 %v438
    %1416 = vmatprep.subr.mxu0 0.0
    %1417 = vmatpush2.msra.mxu0 %v437
    %1418 = vmatprep.subr.mxu0 0.0
    %1419 = vmatpush2.msra.mxu0 %v436
    %1420 = vmatprep.subr.mxu0 0.0
    %1421 = vmatpush2.msra.mxu0 %v435
    %1422 = vmatprep.subr.mxu0 0.0
    %1423 = vmatpush2.msra.mxu0 %v434
    %1424 = vmatprep.subr.mxu0 0.0
    %1425 = vmatpush2.msra.mxu0 %v433
    %1426 = vmatprep.subr.mxu0 0.0
    %1427 = vmatpush2.msra.mxu0 %v432
    %1428 = vmatprep.subr.mxu0 0.0
    %1429 = vmatpush2.msra.mxu0 %v431
    %1430 = vmatprep.subr.mxu0 0.0
    %1431 = vmatpush2.msra.mxu0 %v430
    %1432 = vmatprep.subr.mxu0 0.0
    %1433 = vmatpush2.msra.mxu0 %v429
    %1434 = vmatprep.subr.mxu0 0.0
    %1435 = vmatpush2.msra.mxu0 %v428
    %1436 = vmatprep.subr.mxu0 0.0
    %1437 = vmatpush2.msra.mxu0 %v427
    %1438 = vmatprep.subr.mxu0 0.0
    %1439 = vmatpush2.msra.mxu0 %v426
    %1440 = vmatprep.mubr.f32.mxu0 %v573
    %1441 = vmatmul.mubr.f32.gmra.mxu0 %v571
    %v1442 = vpop.f32.mrf.mxu0
    %v1443 = vadd.f32 %v1373, %v1442
    %v1444 = vpop.f32.mrf.mxu0
    %1445 = vdwg.mxu0
    %1446 = vmatprep.subr.mxu0 0.0
    %1447 = vmatpush1.msra.mxu0 %v457
    %1448 = vmatprep.subr.mxu0 0.0
    %1449 = vmatpush1.msra.mxu0 %v456
    %1450 = vmatprep.subr.mxu0 0.0
    %1451 = vmatpush1.msra.mxu0 %v455
    %1452 = vmatprep.subr.mxu0 0.0
    %1453 = vmatpush1.msra.mxu0 %v454
    %1454 = vmatprep.subr.mxu0 0.0
    %1455 = vmatpush1.msra.mxu0 %v453
    %1456 = vmatprep.subr.mxu0 0.0
    %1457 = vmatpush1.msra.mxu0 %v452
    %1458 = vmatprep.subr.mxu0 0.0
    %1459 = vmatpush1.msra.mxu0 %v451
    %1460 = vmatprep.subr.mxu0 0.0
    %1461 = vmatpush1.msra.mxu0 %v450
    %1462 = vmatprep.subr.mxu0 0.0
    %1463 = vmatpush1.msra.mxu0 %v449
    %1464 = vmatprep.subr.mxu0 0.0
    %1465 = vmatpush1.msra.mxu0 %v448
    %1466 = vmatprep.subr.mxu0 0.0
    %1467 = vmatpush1.msra.mxu0 %v447
    %1468 = vmatprep.subr.mxu0 0.0
    %1469 = vmatpush1.msra.mxu0 %v446
    %1470 = vmatprep.subr.mxu0 0.0
    %1471 = vmatpush1.msra.mxu0 %v445
    %1472 = vmatprep.subr.mxu0 0.0
    %1473 = vmatpush1.msra.mxu0 %v444
    %1474 = vmatprep.subr.mxu0 0.0
    %1475 = vmatpush1.msra.mxu0 %v443
    %1476 = vmatprep.subr.mxu0 0.0
    %1477 = vmatpush1.msra.mxu0 %v442
    %1478 = vmatprep.subr.mxu0 0.0
    %1479 = vmatpush2.msra.mxu0 0.0
    %1480 = vmatprep.subr.mxu0 0.0
    %1481 = vmatpush2.msra.mxu0 0.0
    %1482 = vmatprep.subr.mxu0 0.0
    %1483 = vmatpush2.msra.mxu0 0.0
    %1484 = vmatprep.subr.mxu0 0.0
    %1485 = vmatpush2.msra.mxu0 0.0
    %1486 = vmatprep.subr.mxu0 0.0
    %1487 = vmatpush2.msra.mxu0 0.0
    %1488 = vmatprep.subr.mxu0 0.0
    %1489 = vmatpush2.msra.mxu0 0.0
    %1490 = vmatprep.subr.mxu0 0.0
    %1491 = vmatpush2.msra.mxu0 0.0
    %1492 = vmatprep.subr.mxu0 0.0
    %1493 = vmatpush2.msra.mxu0 0.0
    %1494 = vmatprep.subr.mxu0 0.0
    %1495 = vmatpush2.msra.mxu0 0.0
    %1496 = vmatprep.subr.mxu0 0.0
    %1497 = vmatpush2.msra.mxu0 0.0
    %1498 = vmatprep.subr.mxu0 0.0
    %1499 = vmatpush2.msra.mxu0 0.0
    %1500 = vmatprep.subr.mxu0 0.0
    %1501 = vmatpush2.msra.mxu0 0.0
    %1502 = vmatprep.subr.mxu0 0.0
    %1503 = vmatpush2.msra.mxu0 0.0
    %1504 = vmatprep.subr.mxu0 0.0
    %1505 = vmatpush2.msra.mxu0 0.0
    %1506 = vmatprep.subr.mxu0 0.0
    %1507 = vmatpush2.msra.mxu0 0.0
    %1508 = vmatprep.subr.mxu0 0.0
    %1509 = vmatpush2.msra.mxu0 0.0
    %1510 = vmatprep.mubr.f32.mxu0 0.0
    %1511 = vmatmul.mubr.f32.gmra.mxu0 %v580
    %v1512 = vpop.f32.mrf.mxu0
    %v1513 = vadd.f32 %v1443, %v1512
    %v1514 = vpop.f32.mrf.mxu0
    %1515 = vdwg.mxu0
    %v1516 = vmax.f32 %v1513, 0.0
    %v1517 = vld [vmem:[%s1] sm:$0xff]
    %v1518 = vld [vmem:[%s1 + $0x8] sm:$0xff]
    %v1519 = vld [vmem:[%s1 + $0x10] sm:$0xff]
    %v1520 = vld [vmem:[%s1 + $0x18] sm:$0xff]
    %v1521 = vld [vmem:[%s1 + $0x20] sm:$0xff]
    %v1522 = vld [vmem:[%s1 + $0x28] sm:$0xff]
    %v1523 = vld [vmem:[%s1 + $0x30] sm:$0x3]
    %v1531 = vcombine.high %v1517, %v1517
    %v1533 = vunpack.c.l.s4 1983009808
    %v1534 = vunpack.c.0.s8 %v1533
    %v1535 = vlaneseq
    %v1536 = vshrl.u32 %v1535, 7
    %v1537 = vsub.s32 %v1534, %v1536
    %v1538 = vrot.slane %v1517, %v1537
    %v1540 = vunpack.c.l.s4 1983009808
    %v1541 = vunpack.c.0.s8 %v1540
    %v1542 = vlaneseq
    %v1543 = vshrl.u32 %v1542, 7
    %v1544 = vsub.s32 %v1541, %v1543
    %v1545 = vrot.slane %v1531, %v1544
    %v1546 = vcombine.high %v1538, %v1538
    %v1547 = vcombine.high %v1545, %v1545
    %v1548 = vcombine.high %v1518, %v1518
    %v1550 = vunpack.c.l.s4 1983009808
    %v1551 = vunpack.c.0.s8 %v1550
    %v1552 = vlaneseq
    %v1553 = vshrl.u32 %v1552, 7
    %v1554 = vsub.s32 %v1551, %v1553
    %v1555 = vrot.slane %v1518, %v1554
    %v1557 = vunpack.c.l.s4 1983009808
    %v1558 = vunpack.c.0.s8 %v1557
    %v1559 = vlaneseq
    %v1560 = vshrl.u32 %v1559, 7
    %v1561 = vsub.s32 %v1558, %v1560
    %v1562 = vrot.slane %v1548, %v1561
    %v1563 = vcombine.high %v1555, %v1555
    %v1564 = vcombine.high %v1562, %v1562
    %v1565 = vcombine.high %v1519, %v1519
    %v1567 = vunpack.c.l.s4 1983009808
    %v1568 = vunpack.c.0.s8 %v1567
    %v1569 = vlaneseq
    %v1570 = vshrl.u32 %v1569, 7
    %v1571 = vsub.s32 %v1568, %v1570
    %v1572 = vrot.slane %v1519, %v1571
    %v1574 = vunpack.c.l.s4 1983009808
    %v1575 = vunpack.c.0.s8 %v1574
    %v1576 = vlaneseq
    %v1577 = vshrl.u32 %v1576, 7
    %v1578 = vsub.s32 %v1575, %v1577
    %v1579 = vrot.slane %v1565, %v1578
    %v1580 = vcombine.high %v1572, %v1572
    %v1581 = vcombine.high %v1579, %v1579
    %v1582 = vcombine.high %v1520, %v1520
    %v1584 = vunpack.c.l.s4 1983009808
    %v1585 = vunpack.c.0.s8 %v1584
    %v1586 = vlaneseq
    %v1587 = vshrl.u32 %v1586, 7
    %v1588 = vsub.s32 %v1585, %v1587
    %v1589 = vrot.slane %v1520, %v1588
    %v1591 = vunpack.c.l.s4 1983009808
    %v1592 = vunpack.c.0.s8 %v1591
    %v1593 = vlaneseq
    %v1594 = vshrl.u32 %v1593, 7
    %v1595 = vsub.s32 %v1592, %v1594
    %v1596 = vrot.slane %v1582, %v1595
    %v1597 = vcombine.high %v1589, %v1589
    %v1598 = vcombine.high %v1596, %v1596
    %v1599 = vcombine.high %v1521, %v1521
    %v1601 = vunpack.c.l.s4 1983009808
    %v1602 = vunpack.c.0.s8 %v1601
    %v1603 = vlaneseq
    %v1604 = vshrl.u32 %v1603, 7
    %v1605 = vsub.s32 %v1602, %v1604
    %v1606 = vrot.slane %v1521, %v1605
    %v1608 = vunpack.c.l.s4 1983009808
    %v1609 = vunpack.c.0.s8 %v1608
    %v1610 = vlaneseq
    %v1611 = vshrl.u32 %v1610, 7
    %v1612 = vsub.s32 %v1609, %v1611
    %v1613 = vrot.slane %v1599, %v1612
    %v1614 = vcombine.high %v1606, %v1606
    %v1615 = vcombine.high %v1613, %v1613
    %v1616 = vcombine.high %v1522, %v1522
    %v1618 = vunpack.c.l.s4 1983009808
    %v1619 = vunpack.c.0.s8 %v1618
    %v1620 = vlaneseq
    %v1621 = vshrl.u32 %v1620, 7
    %v1622 = vsub.s32 %v1619, %v1621
    %v1623 = vrot.slane %v1522, %v1622
    %v1625 = vunpack.c.l.s4 1983009808
    %v1626 = vunpack.c.0.s8 %v1625
    %v1627 = vlaneseq
    %v1628 = vshrl.u32 %v1627, 7
    %v1629 = vsub.s32 %v1626, %v1628
    %v1630 = vrot.slane %v1616, %v1629
    %v1631 = vcombine.high %v1623, %v1623
    %v1632 = vcombine.high %v1630, %v1630
    %v1634 = vunpack.c.l.s4 1983009808
    %v1635 = vunpack.c.0.s8 %v1634
    %v1636 = vlaneseq
    %v1637 = vshrl.u32 %v1636, 7
    %v1638 = vsub.s32 %v1635, %v1637
    %v1639 = vrot.slane %v1523, %v1638
    %1665 = vmatprep.subr.mxu0 0.0
    %1666 = vmatpush1.msra.mxu0 %v73
    %1667 = vmatprep.subr.mxu0 0.0
    %1668 = vmatpush1.msra.mxu0 %v72
    %1669 = vmatprep.subr.mxu0 0.0
    %1670 = vmatpush1.msra.mxu0 %v71
    %1671 = vmatprep.subr.mxu0 0.0
    %1672 = vmatpush1.msra.mxu0 %v70
    %1673 = vmatprep.subr.mxu0 0.0
    %1674 = vmatpush1.msra.mxu0 %v69
    %1675 = vmatprep.subr.mxu0 0.0
    %1676 = vmatpush1.msra.mxu0 %v68
    %1677 = vmatprep.subr.mxu0 0.0
    %1678 = vmatpush1.msra.mxu0 %v67
    %1679 = vmatprep.subr.mxu0 0.0
    %1680 = vmatpush1.msra.mxu0 %v66
    %1681 = vmatprep.subr.mxu0 0.0
    %1682 = vmatpush1.msra.mxu0 %v65
    %1683 = vmatprep.subr.mxu0 0.0
    %1684 = vmatpush1.msra.mxu0 %v64
    %1685 = vmatprep.subr.mxu0 0.0
    %1686 = vmatpush1.msra.mxu0 %v63
    %1687 = vmatprep.subr.mxu0 0.0
    %1688 = vmatpush1.msra.mxu0 %v62
    %1689 = vmatprep.subr.mxu0 0.0
    %1690 = vmatpush1.msra.mxu0 %v61
    %1691 = vmatprep.subr.mxu0 0.0
    %1692 = vmatpush1.msra.mxu0 %v60
    %1693 = vmatprep.subr.mxu0 0.0
    %1694 = vmatpush1.msra.mxu0 %v59
    %1695 = vmatprep.subr.mxu0 0.0
    %1696 = vmatpush1.msra.mxu0 %v58
    %1697 = vmatprep.subr.mxu0 0.0
    %1698 = vmatpush2.msra.mxu0 %v89
    %1699 = vmatprep.subr.mxu0 0.0
    %1700 = vmatpush2.msra.mxu0 %v88
    %1701 = vmatprep.subr.mxu0 0.0
    %1702 = vmatpush2.msra.mxu0 %v87
    %1703 = vmatprep.subr.mxu0 0.0
    %1704 = vmatpush2.msra.mxu0 %v86
    %1705 = vmatprep.subr.mxu0 0.0
    %1706 = vmatpush2.msra.mxu0 %v85
    %1707 = vmatprep.subr.mxu0 0.0
    %1708 = vmatpush2.msra.mxu0 %v84
    %1709 = vmatprep.subr.mxu0 0.0
    %1710 = vmatpush2.msra.mxu0 %v83
    %1711 = vmatprep.subr.mxu0 0.0
    %1712 = vmatpush2.msra.mxu0 %v82
    %1713 = vmatprep.subr.mxu0 0.0
    %1714 = vmatpush2.msra.mxu0 %v81
    %1715 = vmatprep.subr.mxu0 0.0
    %1716 = vmatpush2.msra.mxu0 %v80
    %1717 = vmatprep.subr.mxu0 0.0
    %1718 = vmatpush2.msra.mxu0 %v79
    %1719 = vmatprep.subr.mxu0 0.0
    %1720 = vmatpush2.msra.mxu0 %v78
    %1721 = vmatprep.subr.mxu0 0.0
    %1722 = vmatpush2.msra.mxu0 %v77
    %1723 = vmatprep.subr.mxu0 0.0
    %1724 = vmatpush2.msra.mxu0 %v76
    %1725 = vmatprep.subr.mxu0 0.0
    %1726 = vmatpush2.msra.mxu0 %v75
    %1727 = vmatprep.subr.mxu0 0.0
    %1728 = vmatpush2.msra.mxu0 %v74
    %1729 = vmatprep.mubr.f32.mxu0 %v1546
    %1730 = vmatmul.mubr.f32.gmra.mxu0 %v1538
    %v1731 = vpop.f32.mrf.mxu0
    %v1732 = vadd.f32 %v463, %v1731
    %v1733 = vpop.f32.mrf.mxu0
    %1734 = vdwg.mxu0
    %1735 = vmatprep.subr.mxu0 0.0
    %1736 = vmatpush1.msra.mxu0 %v105
    %1737 = vmatprep.subr.mxu0 0.0
    %1738 = vmatpush1.msra.mxu0 %v104
    %1739 = vmatprep.subr.mxu0 0.0
    %1740 = vmatpush1.msra.mxu0 %v103
    %1741 = vmatprep.subr.mxu0 0.0
    %1742 = vmatpush1.msra.mxu0 %v102
    %1743 = vmatprep.subr.mxu0 0.0
    %1744 = vmatpush1.msra.mxu0 %v101
    %1745 = vmatprep.subr.mxu0 0.0
    %1746 = vmatpush1.msra.mxu0 %v100
    %1747 = vmatprep.subr.mxu0 0.0
    %1748 = vmatpush1.msra.mxu0 %v99
    %1749 = vmatprep.subr.mxu0 0.0
    %1750 = vmatpush1.msra.mxu0 %v98
    %1751 = vmatprep.subr.mxu0 0.0
    %1752 = vmatpush1.msra.mxu0 %v97
    %1753 = vmatprep.subr.mxu0 0.0
    %1754 = vmatpush1.msra.mxu0 %v96
    %1755 = vmatprep.subr.mxu0 0.0
    %1756 = vmatpush1.msra.mxu0 %v95
    %1757 = vmatprep.subr.mxu0 0.0
    %1758 = vmatpush1.msra.mxu0 %v94
    %1759 = vmatprep.subr.mxu0 0.0
    %1760 = vmatpush1.msra.mxu0 %v93
    %1761 = vmatprep.subr.mxu0 0.0
    %1762 = vmatpush1.msra.mxu0 %v92
    %1763 = vmatprep.subr.mxu0 0.0
    %1764 = vmatpush1.msra.mxu0 %v91
    %1765 = vmatprep.subr.mxu0 0.0
    %1766 = vmatpush1.msra.mxu0 %v90
    %1767 = vmatprep.subr.mxu0 0.0
    %1768 = vmatpush2.msra.mxu0 %v121
    %1769 = vmatprep.subr.mxu0 0.0
    %1770 = vmatpush2.msra.mxu0 %v120
    %1771 = vmatprep.subr.mxu0 0.0
    %1772 = vmatpush2.msra.mxu0 %v119
    %1773 = vmatprep.subr.mxu0 0.0
    %1774 = vmatpush2.msra.mxu0 %v118
    %1775 = vmatprep.subr.mxu0 0.0
    %1776 = vmatpush2.msra.mxu0 %v117
    %1777 = vmatprep.subr.mxu0 0.0
    %1778 = vmatpush2.msra.mxu0 %v116
    %1779 = vmatprep.subr.mxu0 0.0
    %1780 = vmatpush2.msra.mxu0 %v115
    %1781 = vmatprep.subr.mxu0 0.0
    %1782 = vmatpush2.msra.mxu0 %v114
    %1783 = vmatprep.subr.mxu0 0.0
    %1784 = vmatpush2.msra.mxu0 %v113
    %1785 = vmatprep.subr.mxu0 0.0
    %1786 = vmatpush2.msra.mxu0 %v112
    %1787 = vmatprep.subr.mxu0 0.0
    %1788 = vmatpush2.msra.mxu0 %v111
    %1789 = vmatprep.subr.mxu0 0.0
    %1790 = vmatpush2.msra.mxu0 %v110
    %1791 = vmatprep.subr.mxu0 0.0
    %1792 = vmatpush2.msra.mxu0 %v109
    %1793 = vmatprep.subr.mxu0 0.0
    %1794 = vmatpush2.msra.mxu0 %v108
    %1795 = vmatprep.subr.mxu0 0.0
    %1796 = vmatpush2.msra.mxu0 %v107
    %1797 = vmatprep.subr.mxu0 0.0
    %1798 = vmatpush2.msra.mxu0 %v106
    %1799 = vmatprep.mubr.f32.mxu0 %v1547
    %1800 = vmatmul.mubr.f32.gmra.mxu0 %v1545
    %v1801 = vpop.f32.mrf.mxu0
    %v1802 = vadd.f32 %v1732, %v1801
    %v1803 = vpop.f32.mrf.mxu0
    %1804 = vdwg.mxu0
    %1805 = vmatprep.subr.mxu0 0.0
    %1806 = vmatpush1.msra.mxu0 %v137
    %1807 = vmatprep.subr.mxu0 0.0
    %1808 = vmatpush1.msra.mxu0 %v136
    %1809 = vmatprep.subr.mxu0 0.0
    %1810 = vmatpush1.msra.mxu0 %v135
    %1811 = vmatprep.subr.mxu0 0.0
    %1812 = vmatpush1.msra.mxu0 %v134
    %1813 = vmatprep.subr.mxu0 0.0
    %1814 = vmatpush1.msra.mxu0 %v133
    %1815 = vmatprep.subr.mxu0 0.0
    %1816 = vmatpush1.msra.mxu0 %v132
    %1817 = vmatprep.subr.mxu0 0.0
    %1818 = vmatpush1.msra.mxu0 %v131
    %1819 = vmatprep.subr.mxu0 0.0
    %1820 = vmatpush1.msra.mxu0 %v130
    %1821 = vmatprep.subr.mxu0 0.0
    %1822 = vmatpush1.msra.mxu0 %v129
    %1823 = vmatprep.subr.mxu0 0.0
    %1824 = vmatpush1.msra.mxu0 %v128
    %1825 = vmatprep.subr.mxu0 0.0
    %1826 = vmatpush1.msra.mxu0 %v127
    %1827 = vmatprep.subr.mxu0 0.0
    %1828 = vmatpush1.msra.mxu0 %v126
    %1829 = vmatprep.subr.mxu0 0.0
    %1830 = vmatpush1.msra.mxu0 %v125
    %1831 = vmatprep.subr.mxu0 0.0
    %1832 = vmatpush1.msra.mxu0 %v124
    %1833 = vmatprep.subr.mxu0 0.0
    %1834 = vmatpush1.msra.mxu0 %v123
    %1835 = vmatprep.subr.mxu0 0.0
    %1836 = vmatpush1.msra.mxu0 %v122
    %1837 = vmatprep.subr.mxu0 0.0
    %1838 = vmatpush2.msra.mxu0 %v153
    %1839 = vmatprep.subr.mxu0 0.0
    %1840 = vmatpush2.msra.mxu0 %v152
    %1841 = vmatprep.subr.mxu0 0.0
    %1842 = vmatpush2.msra.mxu0 %v151
    %1843 = vmatprep.subr.mxu0 0.0
    %1844 = vmatpush2.msra.mxu0 %v150
    %1845 = vmatprep.subr.mxu0 0.0
    %1846 = vmatpush2.msra.mxu0 %v149
    %1847 = vmatprep.subr.mxu0 0.0
    %1848 = vmatpush2.msra.mxu0 %v148
    %1849 = vmatprep.subr.mxu0 0.0
    %1850 = vmatpush2.msra.mxu0 %v147
    %1851 = vmatprep.subr.mxu0 0.0
    %1852 = vmatpush2.msra.mxu0 %v146
    %1853 = vmatprep.subr.mxu0 0.0
    %1854 = vmatpush2.msra.mxu0 %v145
    %1855 = vmatprep.subr.mxu0 0.0
    %1856 = vmatpush2.msra.mxu0 %v144
    %1857 = vmatprep.subr.mxu0 0.0
    %1858 = vmatpush2.msra.mxu0 %v143
    %1859 = vmatprep.subr.mxu0 0.0
    %1860 = vmatpush2.msra.mxu0 %v142
    %1861 = vmatprep.subr.mxu0 0.0
    %1862 = vmatpush2.msra.mxu0 %v141
    %1863 = vmatprep.subr.mxu0 0.0
    %1864 = vmatpush2.msra.mxu0 %v140
    %1865 = vmatprep.subr.mxu0 0.0
    %1866 = vmatpush2.msra.mxu0 %v139
    %1867 = vmatprep.subr.mxu0 0.0
    %1868 = vmatpush2.msra.mxu0 %v138
    %1869 = vmatprep.mubr.f32.mxu0 %v1563
    %1870 = vmatmul.mubr.f32.gmra.mxu0 %v1555
    %v1871 = vpop.f32.mrf.mxu0
    %v1872 = vadd.f32 %v1802, %v1871
    %v1873 = vpop.f32.mrf.mxu0
    %1874 = vdwg.mxu0
    %1875 = vmatprep.subr.mxu0 0.0
    %1876 = vmatpush1.msra.mxu0 %v169
    %1877 = vmatprep.subr.mxu0 0.0
    %1878 = vmatpush1.msra.mxu0 %v168
    %1879 = vmatprep.subr.mxu0 0.0
    %1880 = vmatpush1.msra.mxu0 %v167
    %1881 = vmatprep.subr.mxu0 0.0
    %1882 = vmatpush1.msra.mxu0 %v166
    %1883 = vmatprep.subr.mxu0 0.0
    %1884 = vmatpush1.msra.mxu0 %v165
    %1885 = vmatprep.subr.mxu0 0.0
    %1886 = vmatpush1.msra.mxu0 %v164
    %1887 = vmatprep.subr.mxu0 0.0
    %1888 = vmatpush1.msra.mxu0 %v163
    %1889 = vmatprep.subr.mxu0 0.0
    %1890 = vmatpush1.msra.mxu0 %v162
    %1891 = vmatprep.subr.mxu0 0.0
    %1892 = vmatpush1.msra.mxu0 %v161
    %1893 = vmatprep.subr.mxu0 0.0
    %1894 = vmatpush1.msra.mxu0 %v160
    %1895 = vmatprep.subr.mxu0 0.0
    %1896 = vmatpush1.msra.mxu0 %v159
    %1897 = vmatprep.subr.mxu0 0.0
    %1898 = vmatpush1.msra.mxu0 %v158
    %1899 = vmatprep.subr.mxu0 0.0
    %1900 = vmatpush1.msra.mxu0 %v157
    %1901 = vmatprep.subr.mxu0 0.0
    %1902 = vmatpush1.msra.mxu0 %v156
    %1903 = vmatprep.subr.mxu0 0.0
    %1904 = vmatpush1.msra.mxu0 %v155
    %1905 = vmatprep.subr.mxu0 0.0
    %1906 = vmatpush1.msra.mxu0 %v154
    %1907 = vmatprep.subr.mxu0 0.0
    %1908 = vmatpush2.msra.mxu0 %v185
    %1909 = vmatprep.subr.mxu0 0.0
    %1910 = vmatpush2.msra.mxu0 %v184
    %1911 = vmatprep.subr.mxu0 0.0
    %1912 = vmatpush2.msra.mxu0 %v183
    %1913 = vmatprep.subr.mxu0 0.0
    %1914 = vmatpush2.msra.mxu0 %v182
    %1915 = vmatprep.subr.mxu0 0.0
    %1916 = vmatpush2.msra.mxu0 %v181
    %1917 = vmatprep.subr.mxu0 0.0
    %1918 = vmatpush2.msra.mxu0 %v180
    %1919 = vmatprep.subr.mxu0 0.0
    %1920 = vmatpush2.msra.mxu0 %v179
    %1921 = vmatprep.subr.mxu0 0.0
    %1922 = vmatpush2.msra.mxu0 %v178
    %1923 = vmatprep.subr.mxu0 0.0
    %1924 = vmatpush2.msra.mxu0 %v177
    %1925 = vmatprep.subr.mxu0 0.0
    %1926 = vmatpush2.msra.mxu0 %v176
    %1927 = vmatprep.subr.mxu0 0.0
    %1928 = vmatpush2.msra.mxu0 %v175
    %1929 = vmatprep.subr.mxu0 0.0
    %1930 = vmatpush2.msra.mxu0 %v174
    %1931 = vmatprep.subr.mxu0 0.0
    %1932 = vmatpush2.msra.mxu0 %v173
    %1933 = vmatprep.subr.mxu0 0.0
    %1934 = vmatpush2.msra.mxu0 %v172
    %1935 = vmatprep.subr.mxu0 0.0
    %1936 = vmatpush2.msra.mxu0 %v171
    %1937 = vmatprep.subr.mxu0 0.0
    %1938 = vmatpush2.msra.mxu0 %v170
    %1939 = vmatprep.mubr.f32.mxu0 %v1564
    %1940 = vmatmul.mubr.f32.gmra.mxu0 %v1562
    %v1941 = vpop.f32.mrf.mxu0
    %v1942 = vadd.f32 %v1872, %v1941
    %v1943 = vpop.f32.mrf.mxu0
    %1944 = vdwg.mxu0
    %1945 = vmatprep.subr.mxu0 0.0
    %1946 = vmatpush1.msra.mxu0 %v201
    %1947 = vmatprep.subr.mxu0 0.0
    %1948 = vmatpush1.msra.mxu0 %v200
    %1949 = vmatprep.subr.mxu0 0.0
    %1950 = vmatpush1.msra.mxu0 %v199
    %1951 = vmatprep.subr.mxu0 0.0
    %1952 = vmatpush1.msra.mxu0 %v198
    %1953 = vmatprep.subr.mxu0 0.0
    %1954 = vmatpush1.msra.mxu0 %v197
    %1955 = vmatprep.subr.mxu0 0.0
    %1956 = vmatpush1.msra.mxu0 %v196
    %1957 = vmatprep.subr.mxu0 0.0
    %1958 = vmatpush1.msra.mxu0 %v195
    %1959 = vmatprep.subr.mxu0 0.0
    %1960 = vmatpush1.msra.mxu0 %v194
    %1961 = vmatprep.subr.mxu0 0.0
    %1962 = vmatpush1.msra.mxu0 %v193
    %1963 = vmatprep.subr.mxu0 0.0
    %1964 = vmatpush1.msra.mxu0 %v192
    %1965 = vmatprep.subr.mxu0 0.0
    %1966 = vmatpush1.msra.mxu0 %v191
    %1967 = vmatprep.subr.mxu0 0.0
    %1968 = vmatpush1.msra.mxu0 %v190
    %1969 = vmatprep.subr.mxu0 0.0
    %1970 = vmatpush1.msra.mxu0 %v189
    %1971 = vmatprep.subr.mxu0 0.0
    %1972 = vmatpush1.msra.mxu0 %v188
    %1973 = vmatprep.subr.mxu0 0.0
    %1974 = vmatpush1.msra.mxu0 %v187
    %1975 = vmatprep.subr.mxu0 0.0
    %1976 = vmatpush1.msra.mxu0 %v186
    %1977 = vmatprep.subr.mxu0 0.0
    %1978 = vmatpush2.msra.mxu0 %v217
    %1979 = vmatprep.subr.mxu0 0.0
    %1980 = vmatpush2.msra.mxu0 %v216
    %1981 = vmatprep.subr.mxu0 0.0
    %1982 = vmatpush2.msra.mxu0 %v215
    %1983 = vmatprep.subr.mxu0 0.0
    %1984 = vmatpush2.msra.mxu0 %v214
    %1985 = vmatprep.subr.mxu0 0.0
    %1986 = vmatpush2.msra.mxu0 %v213
    %1987 = vmatprep.subr.mxu0 0.0
    %1988 = vmatpush2.msra.mxu0 %v212
    %1989 = vmatprep.subr.mxu0 0.0
    %1990 = vmatpush2.msra.mxu0 %v211
    %1991 = vmatprep.subr.mxu0 0.0
    %1992 = vmatpush2.msra.mxu0 %v210
    %1993 = vmatprep.subr.mxu0 0.0
    %1994 = vmatpush2.msra.mxu0 %v209
    %1995 = vmatprep.subr.mxu0 0.0
    %1996 = vmatpush2.msra.mxu0 %v208
    %1997 = vmatprep.subr.mxu0 0.0
    %1998 = vmatpush2.msra.mxu0 %v207
    %1999 = vmatprep.subr.mxu0 0.0
    %2000 = vmatpush2.msra.mxu0 %v206
    %2001 = vmatprep.subr.mxu0 0.0
    %2002 = vmatpush2.msra.mxu0 %v205
    %2003 = vmatprep.subr.mxu0 0.0
    %2004 = vmatpush2.msra.mxu0 %v204
    %2005 = vmatprep.subr.mxu0 0.0
    %2006 = vmatpush2.msra.mxu0 %v203
    %2007 = vmatprep.subr.mxu0 0.0
    %2008 = vmatpush2.msra.mxu0 %v202
    %2009 = vmatprep.mubr.f32.mxu0 %v1580
    %2010 = vmatmul.mubr.f32.gmra.mxu0 %v1572
    %v2011 = vpop.f32.mrf.mxu0
    %v2012 = vadd.f32 %v1942, %v2011
    %v2013 = vpop.f32.mrf.mxu0
    %2014 = vdwg.mxu0
    %2015 = vmatprep.subr.mxu0 0.0
    %2016 = vmatpush1.msra.mxu0 %v233
    %2017 = vmatprep.subr.mxu0 0.0
    %2018 = vmatpush1.msra.mxu0 %v232
    %2019 = vmatprep.subr.mxu0 0.0
    %2020 = vmatpush1.msra.mxu0 %v231
    %2021 = vmatprep.subr.mxu0 0.0
    %2022 = vmatpush1.msra.mxu0 %v230
    %2023 = vmatprep.subr.mxu0 0.0
    %2024 = vmatpush1.msra.mxu0 %v229
    %2025 = vmatprep.subr.mxu0 0.0
    %2026 = vmatpush1.msra.mxu0 %v228
    %2027 = vmatprep.subr.mxu0 0.0
    %2028 = vmatpush1.msra.mxu0 %v227
    %2029 = vmatprep.subr.mxu0 0.0
    %2030 = vmatpush1.msra.mxu0 %v226
    %2031 = vmatprep.subr.mxu0 0.0
    %2032 = vmatpush1.msra.mxu0 %v225
    %2033 = vmatprep.subr.mxu0 0.0
    %2034 = vmatpush1.msra.mxu0 %v224
    %2035 = vmatprep.subr.mxu0 0.0
    %2036 = vmatpush1.msra.mxu0 %v223
    %2037 = vmatprep.subr.mxu0 0.0
    %2038 = vmatpush1.msra.mxu0 %v222
    %2039 = vmatprep.subr.mxu0 0.0
    %2040 = vmatpush1.msra.mxu0 %v221
    %2041 = vmatprep.subr.mxu0 0.0
    %2042 = vmatpush1.msra.mxu0 %v220
    %2043 = vmatprep.subr.mxu0 0.0
    %2044 = vmatpush1.msra.mxu0 %v219
    %2045 = vmatprep.subr.mxu0 0.0
    %2046 = vmatpush1.msra.mxu0 %v218
    %2047 = vmatprep.subr.mxu0 0.0
    %2048 = vmatpush2.msra.mxu0 %v249
    %2049 = vmatprep.subr.mxu0 0.0
    %2050 = vmatpush2.msra.mxu0 %v248
    %2051 = vmatprep.subr.mxu0 0.0
    %2052 = vmatpush2.msra.mxu0 %v247
    %2053 = vmatprep.subr.mxu0 0.0
    %2054 = vmatpush2.msra.mxu0 %v246
    %2055 = vmatprep.subr.mxu0 0.0
    %2056 = vmatpush2.msra.mxu0 %v245
    %2057 = vmatprep.subr.mxu0 0.0
    %2058 = vmatpush2.msra.mxu0 %v244
    %2059 = vmatprep.subr.mxu0 0.0
    %2060 = vmatpush2.msra.mxu0 %v243
    %2061 = vmatprep.subr.mxu0 0.0
    %2062 = vmatpush2.msra.mxu0 %v242
    %2063 = vmatprep.subr.mxu0 0.0
    %2064 = vmatpush2.msra.mxu0 %v241
    %2065 = vmatprep.subr.mxu0 0.0
    %2066 = vmatpush2.msra.mxu0 %v240
    %2067 = vmatprep.subr.mxu0 0.0
    %2068 = vmatpush2.msra.mxu0 %v239
    %2069 = vmatprep.subr.mxu0 0.0
    %2070 = vmatpush2.msra.mxu0 %v238
    %2071 = vmatprep.subr.mxu0 0.0
    %2072 = vmatpush2.msra.mxu0 %v237
    %2073 = vmatprep.subr.mxu0 0.0
    %2074 = vmatpush2.msra.mxu0 %v236
    %2075 = vmatprep.subr.mxu0 0.0
    %2076 = vmatpush2.msra.mxu0 %v235
    %2077 = vmatprep.subr.mxu0 0.0
    %2078 = vmatpush2.msra.mxu0 %v234
    %2079 = vmatprep.mubr.f32.mxu0 %v1581
    %2080 = vmatmul.mubr.f32.gmra.mxu0 %v1579
    %v2081 = vpop.f32.mrf.mxu0
    %v2082 = vadd.f32 %v2012, %v2081
    %v2083 = vpop.f32.mrf.mxu0
    %2084 = vdwg.mxu0
    %2085 = vmatprep.subr.mxu0 0.0
    %2086 = vmatpush1.msra.mxu0 %v265
    %2087 = vmatprep.subr.mxu0 0.0
    %2088 = vmatpush1.msra.mxu0 %v264
    %2089 = vmatprep.subr.mxu0 0.0
    %2090 = vmatpush1.msra.mxu0 %v263
    %2091 = vmatprep.subr.mxu0 0.0
    %2092 = vmatpush1.msra.mxu0 %v262
    %2093 = vmatprep.subr.mxu0 0.0
    %2094 = vmatpush1.msra.mxu0 %v261
    %2095 = vmatprep.subr.mxu0 0.0
    %2096 = vmatpush1.msra.mxu0 %v260
    %2097 = vmatprep.subr.mxu0 0.0
    %2098 = vmatpush1.msra.mxu0 %v259
    %2099 = vmatprep.subr.mxu0 0.0
    %2100 = vmatpush1.msra.mxu0 %v258
    %2101 = vmatprep.subr.mxu0 0.0
    %2102 = vmatpush1.msra.mxu0 %v257
    %2103 = vmatprep.subr.mxu0 0.0
    %2104 = vmatpush1.msra.mxu0 %v256
    %2105 = vmatprep.subr.mxu0 0.0
    %2106 = vmatpush1.msra.mxu0 %v255
    %2107 = vmatprep.subr.mxu0 0.0
    %2108 = vmatpush1.msra.mxu0 %v254
    %2109 = vmatprep.subr.mxu0 0.0
    %2110 = vmatpush1.msra.mxu0 %v253
    %2111 = vmatprep.subr.mxu0 0.0
    %2112 = vmatpush1.msra.mxu0 %v252
    %2113 = vmatprep.subr.mxu0 0.0
    %2114 = vmatpush1.msra.mxu0 %v251
    %2115 = vmatprep.subr.mxu0 0.0
    %2116 = vmatpush1.msra.mxu0 %v250
    %2117 = vmatprep.subr.mxu0 0.0
    %2118 = vmatpush2.msra.mxu0 %v281
    %2119 = vmatprep.subr.mxu0 0.0
    %2120 = vmatpush2.msra.mxu0 %v280
    %2121 = vmatprep.subr.mxu0 0.0
    %2122 = vmatpush2.msra.mxu0 %v279
    %2123 = vmatprep.subr.mxu0 0.0
    %2124 = vmatpush2.msra.mxu0 %v278
    %2125 = vmatprep.subr.mxu0 0.0
    %2126 = vmatpush2.msra.mxu0 %v277
    %2127 = vmatprep.subr.mxu0 0.0
    %2128 = vmatpush2.msra.mxu0 %v276
    %2129 = vmatprep.subr.mxu0 0.0
    %2130 = vmatpush2.msra.mxu0 %v275
    %2131 = vmatprep.subr.mxu0 0.0
    %2132 = vmatpush2.msra.mxu0 %v274
    %2133 = vmatprep.subr.mxu0 0.0
    %2134 = vmatpush2.msra.mxu0 %v273
    %2135 = vmatprep.subr.mxu0 0.0
    %2136 = vmatpush2.msra.mxu0 %v272
    %2137 = vmatprep.subr.mxu0 0.0
    %2138 = vmatpush2.msra.mxu0 %v271
    %2139 = vmatprep.subr.mxu0 0.0
    %2140 = vmatpush2.msra.mxu0 %v270
    %2141 = vmatprep.subr.mxu0 0.0
    %2142 = vmatpush2.msra.mxu0 %v269
    %2143 = vmatprep.subr.mxu0 0.0
    %2144 = vmatpush2.msra.mxu0 %v268
    %2145 = vmatprep.subr.mxu0 0.0
    %2146 = vmatpush2.msra.mxu0 %v267
    %2147 = vmatprep.subr.mxu0 0.0
    %2148 = vmatpush2.msra.mxu0 %v266
    %2149 = vmatprep.mubr.f32.mxu0 %v1597
    %2150 = vmatmul.mubr.f32.gmra.mxu0 %v1589
    %v2151 = vpop.f32.mrf.mxu0
    %v2152 = vadd.f32 %v2082, %v2151
    %v2153 = vpop.f32.mrf.mxu0
    %2154 = vdwg.mxu0
    %2155 = vmatprep.subr.mxu0 0.0
    %2156 = vmatpush1.msra.mxu0 %v297
    %2157 = vmatprep.subr.mxu0 0.0
    %2158 = vmatpush1.msra.mxu0 %v296
    %2159 = vmatprep.subr.mxu0 0.0
    %2160 = vmatpush1.msra.mxu0 %v295
    %2161 = vmatprep.subr.mxu0 0.0
    %2162 = vmatpush1.msra.mxu0 %v294
    %2163 = vmatprep.subr.mxu0 0.0
    %2164 = vmatpush1.msra.mxu0 %v293
    %2165 = vmatprep.subr.mxu0 0.0
    %2166 = vmatpush1.msra.mxu0 %v292
    %2167 = vmatprep.subr.mxu0 0.0
    %2168 = vmatpush1.msra.mxu0 %v291
    %2169 = vmatprep.subr.mxu0 0.0
    %2170 = vmatpush1.msra.mxu0 %v290
    %2171 = vmatprep.subr.mxu0 0.0
    %2172 = vmatpush1.msra.mxu0 %v289
    %2173 = vmatprep.subr.mxu0 0.0
    %2174 = vmatpush1.msra.mxu0 %v288
    %2175 = vmatprep.subr.mxu0 0.0
    %2176 = vmatpush1.msra.mxu0 %v287
    %2177 = vmatprep.subr.mxu0 0.0
    %2178 = vmatpush1.msra.mxu0 %v286
    %2179 = vmatprep.subr.mxu0 0.0
    %2180 = vmatpush1.msra.mxu0 %v285
    %2181 = vmatprep.subr.mxu0 0.0
    %2182 = vmatpush1.msra.mxu0 %v284
    %2183 = vmatprep.subr.mxu0 0.0
    %2184 = vmatpush1.msra.mxu0 %v283
    %2185 = vmatprep.subr.mxu0 0.0
    %2186 = vmatpush1.msra.mxu0 %v282
    %2187 = vmatprep.subr.mxu0 0.0
    %2188 = vmatpush2.msra.mxu0 %v313
    %2189 = vmatprep.subr.mxu0 0.0
    %2190 = vmatpush2.msra.mxu0 %v312
    %2191 = vmatprep.subr.mxu0 0.0
    %2192 = vmatpush2.msra.mxu0 %v311
    %2193 = vmatprep.subr.mxu0 0.0
    %2194 = vmatpush2.msra.mxu0 %v310
    %2195 = vmatprep.subr.mxu0 0.0
    %2196 = vmatpush2.msra.mxu0 %v309
    %2197 = vmatprep.subr.mxu0 0.0
    %2198 = vmatpush2.msra.mxu0 %v308
    %2199 = vmatprep.subr.mxu0 0.0
    %2200 = vmatpush2.msra.mxu0 %v307
    %2201 = vmatprep.subr.mxu0 0.0
    %2202 = vmatpush2.msra.mxu0 %v306
    %2203 = vmatprep.subr.mxu0 0.0
    %2204 = vmatpush2.msra.mxu0 %v305
    %2205 = vmatprep.subr.mxu0 0.0
    %2206 = vmatpush2.msra.mxu0 %v304
    %2207 = vmatprep.subr.mxu0 0.0
    %2208 = vmatpush2.msra.mxu0 %v303
    %2209 = vmatprep.subr.mxu0 0.0
    %2210 = vmatpush2.msra.mxu0 %v302
    %2211 = vmatprep.subr.mxu0 0.0
    %2212 = vmatpush2.msra.mxu0 %v301
    %2213 = vmatprep.subr.mxu0 0.0
    %2214 = vmatpush2.msra.mxu0 %v300
    %2215 = vmatprep.subr.mxu0 0.0
    %2216 = vmatpush2.msra.mxu0 %v299
    %2217 = vmatprep.subr.mxu0 0.0
    %2218 = vmatpush2.msra.mxu0 %v298
    %2219 = vmatprep.mubr.f32.mxu0 %v1598
    %2220 = vmatmul.mubr.f32.gmra.mxu0 %v1596
    %v2221 = vpop.f32.mrf.mxu0
    %v2222 = vadd.f32 %v2152, %v2221
    %v2223 = vpop.f32.mrf.mxu0
    %2224 = vdwg.mxu0
    %2225 = vmatprep.subr.mxu0 0.0
    %2226 = vmatpush1.msra.mxu0 %v329
    %2227 = vmatprep.subr.mxu0 0.0
    %2228 = vmatpush1.msra.mxu0 %v328
    %2229 = vmatprep.subr.mxu0 0.0
    %2230 = vmatpush1.msra.mxu0 %v327
    %2231 = vmatprep.subr.mxu0 0.0
    %2232 = vmatpush1.msra.mxu0 %v326
    %2233 = vmatprep.subr.mxu0 0.0
    %2234 = vmatpush1.msra.mxu0 %v325
    %2235 = vmatprep.subr.mxu0 0.0
    %2236 = vmatpush1.msra.mxu0 %v324
    %2237 = vmatprep.subr.mxu0 0.0
    %2238 = vmatpush1.msra.mxu0 %v323
    %2239 = vmatprep.subr.mxu0 0.0
    %2240 = vmatpush1.msra.mxu0 %v322
    %2241 = vmatprep.subr.mxu0 0.0
    %2242 = vmatpush1.msra.mxu0 %v321
    %2243 = vmatprep.subr.mxu0 0.0
    %2244 = vmatpush1.msra.mxu0 %v320
    %2245 = vmatprep.subr.mxu0 0.0
    %2246 = vmatpush1.msra.mxu0 %v319
    %2247 = vmatprep.subr.mxu0 0.0
    %2248 = vmatpush1.msra.mxu0 %v318
    %2249 = vmatprep.subr.mxu0 0.0
    %2250 = vmatpush1.msra.mxu0 %v317
    %2251 = vmatprep.subr.mxu0 0.0
    %2252 = vmatpush1.msra.mxu0 %v316
    %2253 = vmatprep.subr.mxu0 0.0
    %2254 = vmatpush1.msra.mxu0 %v315
    %2255 = vmatprep.subr.mxu0 0.0
    %2256 = vmatpush1.msra.mxu0 %v314
    %2257 = vmatprep.subr.mxu0 0.0
    %2258 = vmatpush2.msra.mxu0 %v345
    %2259 = vmatprep.subr.mxu0 0.0
    %2260 = vmatpush2.msra.mxu0 %v344
    %2261 = vmatprep.subr.mxu0 0.0
    %2262 = vmatpush2.msra.mxu0 %v343
    %2263 = vmatprep.subr.mxu0 0.0
    %2264 = vmatpush2.msra.mxu0 %v342
    %2265 = vmatprep.subr.mxu0 0.0
    %2266 = vmatpush2.msra.mxu0 %v341
    %2267 = vmatprep.subr.mxu0 0.0
    %2268 = vmatpush2.msra.mxu0 %v340
    %2269 = vmatprep.subr.mxu0 0.0
    %2270 = vmatpush2.msra.mxu0 %v339
    %2271 = vmatprep.subr.mxu0 0.0
    %2272 = vmatpush2.msra.mxu0 %v338
    %2273 = vmatprep.subr.mxu0 0.0
    %2274 = vmatpush2.msra.mxu0 %v337
    %2275 = vmatprep.subr.mxu0 0.0
    %2276 = vmatpush2.msra.mxu0 %v336
    %2277 = vmatprep.subr.mxu0 0.0
    %2278 = vmatpush2.msra.mxu0 %v335
    %2279 = vmatprep.subr.mxu0 0.0
    %2280 = vmatpush2.msra.mxu0 %v334
    %2281 = vmatprep.subr.mxu0 0.0
    %2282 = vmatpush2.msra.mxu0 %v333
    %2283 = vmatprep.subr.mxu0 0.0
    %2284 = vmatpush2.msra.mxu0 %v332
    %2285 = vmatprep.subr.mxu0 0.0
    %2286 = vmatpush2.msra.mxu0 %v331
    %2287 = vmatprep.subr.mxu0 0.0
    %2288 = vmatpush2.msra.mxu0 %v330
    %2289 = vmatprep.mubr.f32.mxu0 %v1614
    %2290 = vmatmul.mubr.f32.gmra.mxu0 %v1606
    %v2291 = vpop.f32.mrf.mxu0
    %v2292 = vadd.f32 %v2222, %v2291
    %v2293 = vpop.f32.mrf.mxu0
    %2294 = vdwg.mxu0
    %2295 = vmatprep.subr.mxu0 0.0
    %2296 = vmatpush1.msra.mxu0 %v361
    %2297 = vmatprep.subr.mxu0 0.0
    %2298 = vmatpush1.msra.mxu0 %v360
    %2299 = vmatprep.subr.mxu0 0.0
    %2300 = vmatpush1.msra.mxu0 %v359
    %2301 = vmatprep.subr.mxu0 0.0
    %2302 = vmatpush1.msra.mxu0 %v358
    %2303 = vmatprep.subr.mxu0 0.0
    %2304 = vmatpush1.msra.mxu0 %v357
    %2305 = vmatprep.subr.mxu0 0.0
    %2306 = vmatpush1.msra.mxu0 %v356
    %2307 = vmatprep.subr.mxu0 0.0
    %2308 = vmatpush1.msra.mxu0 %v355
    %2309 = vmatprep.subr.mxu0 0.0
    %2310 = vmatpush1.msra.mxu0 %v354
    %2311 = vmatprep.subr.mxu0 0.0
    %2312 = vmatpush1.msra.mxu0 %v353
    %2313 = vmatprep.subr.mxu0 0.0
    %2314 = vmatpush1.msra.mxu0 %v352
    %2315 = vmatprep.subr.mxu0 0.0
    %2316 = vmatpush1.msra.mxu0 %v351
    %2317 = vmatprep.subr.mxu0 0.0
    %2318 = vmatpush1.msra.mxu0 %v350
    %2319 = vmatprep.subr.mxu0 0.0
    %2320 = vmatpush1.msra.mxu0 %v349
    %2321 = vmatprep.subr.mxu0 0.0
    %2322 = vmatpush1.msra.mxu0 %v348
    %2323 = vmatprep.subr.mxu0 0.0
    %2324 = vmatpush1.msra.mxu0 %v347
    %2325 = vmatprep.subr.mxu0 0.0
    %2326 = vmatpush1.msra.mxu0 %v346
    %2327 = vmatprep.subr.mxu0 0.0
    %2328 = vmatpush2.msra.mxu0 %v377
    %2329 = vmatprep.subr.mxu0 0.0
    %2330 = vmatpush2.msra.mxu0 %v376
    %2331 = vmatprep.subr.mxu0 0.0
    %2332 = vmatpush2.msra.mxu0 %v375
    %2333 = vmatprep.subr.mxu0 0.0
    %2334 = vmatpush2.msra.mxu0 %v374
    %2335 = vmatprep.subr.mxu0 0.0
    %2336 = vmatpush2.msra.mxu0 %v373
    %2337 = vmatprep.subr.mxu0 0.0
    %2338 = vmatpush2.msra.mxu0 %v372
    %2339 = vmatprep.subr.mxu0 0.0
    %2340 = vmatpush2.msra.mxu0 %v371
    %2341 = vmatprep.subr.mxu0 0.0
    %2342 = vmatpush2.msra.mxu0 %v370
    %2343 = vmatprep.subr.mxu0 0.0
    %2344 = vmatpush2.msra.mxu0 %v369
    %2345 = vmatprep.subr.mxu0 0.0
    %2346 = vmatpush2.msra.mxu0 %v368
    %2347 = vmatprep.subr.mxu0 0.0
    %2348 = vmatpush2.msra.mxu0 %v367
    %2349 = vmatprep.subr.mxu0 0.0
    %2350 = vmatpush2.msra.mxu0 %v366
    %2351 = vmatprep.subr.mxu0 0.0
    %2352 = vmatpush2.msra.mxu0 %v365
    %2353 = vmatprep.subr.mxu0 0.0
    %2354 = vmatpush2.msra.mxu0 %v364
    %2355 = vmatprep.subr.mxu0 0.0
    %2356 = vmatpush2.msra.mxu0 %v363
    %2357 = vmatprep.subr.mxu0 0.0
    %2358 = vmatpush2.msra.mxu0 %v362
    %2359 = vmatprep.mubr.f32.mxu0 %v1615
    %2360 = vmatmul.mubr.f32.gmra.mxu0 %v1613
    %v2361 = vpop.f32.mrf.mxu0
    %v2362 = vadd.f32 %v2292, %v2361
    %v2363 = vpop.f32.mrf.mxu0
    %2364 = vdwg.mxu0
    %2365 = vmatprep.subr.mxu0 0.0
    %2366 = vmatpush1.msra.mxu0 %v393
    %2367 = vmatprep.subr.mxu0 0.0
    %2368 = vmatpush1.msra.mxu0 %v392
    %2369 = vmatprep.subr.mxu0 0.0
    %2370 = vmatpush1.msra.mxu0 %v391
    %2371 = vmatprep.subr.mxu0 0.0
    %2372 = vmatpush1.msra.mxu0 %v390
    %2373 = vmatprep.subr.mxu0 0.0
    %2374 = vmatpush1.msra.mxu0 %v389
    %2375 = vmatprep.subr.mxu0 0.0
    %2376 = vmatpush1.msra.mxu0 %v388
    %2377 = vmatprep.subr.mxu0 0.0
    %2378 = vmatpush1.msra.mxu0 %v387
    %2379 = vmatprep.subr.mxu0 0.0
    %2380 = vmatpush1.msra.mxu0 %v386
    %2381 = vmatprep.subr.mxu0 0.0
    %2382 = vmatpush1.msra.mxu0 %v385
    %2383 = vmatprep.subr.mxu0 0.0
    %2384 = vmatpush1.msra.mxu0 %v384
    %2385 = vmatprep.subr.mxu0 0.0
    %2386 = vmatpush1.msra.mxu0 %v383
    %2387 = vmatprep.subr.mxu0 0.0
    %2388 = vmatpush1.msra.mxu0 %v382
    %2389 = vmatprep.subr.mxu0 0.0
    %2390 = vmatpush1.msra.mxu0 %v381
    %2391 = vmatprep.subr.mxu0 0.0
    %2392 = vmatpush1.msra.mxu0 %v380
    %2393 = vmatprep.subr.mxu0 0.0
    %2394 = vmatpush1.msra.mxu0 %v379
    %2395 = vmatprep.subr.mxu0 0.0
    %2396 = vmatpush1.msra.mxu0 %v378
    %2397 = vmatprep.subr.mxu0 0.0
    %2398 = vmatpush2.msra.mxu0 %v409
    %2399 = vmatprep.subr.mxu0 0.0
    %2400 = vmatpush2.msra.mxu0 %v408
    %2401 = vmatprep.subr.mxu0 0.0
    %2402 = vmatpush2.msra.mxu0 %v407
    %2403 = vmatprep.subr.mxu0 0.0
    %2404 = vmatpush2.msra.mxu0 %v406
    %2405 = vmatprep.subr.mxu0 0.0
    %2406 = vmatpush2.msra.mxu0 %v405
    %2407 = vmatprep.subr.mxu0 0.0
    %2408 = vmatpush2.msra.mxu0 %v404
    %2409 = vmatprep.subr.mxu0 0.0
    %2410 = vmatpush2.msra.mxu0 %v403
    %2411 = vmatprep.subr.mxu0 0.0
    %2412 = vmatpush2.msra.mxu0 %v402
    %2413 = vmatprep.subr.mxu0 0.0
    %2414 = vmatpush2.msra.mxu0 %v401
    %2415 = vmatprep.subr.mxu0 0.0
    %2416 = vmatpush2.msra.mxu0 %v400
    %2417 = vmatprep.subr.mxu0 0.0
    %2418 = vmatpush2.msra.mxu0 %v399
    %2419 = vmatprep.subr.mxu0 0.0
    %2420 = vmatpush2.msra.mxu0 %v398
    %2421 = vmatprep.subr.mxu0 0.0
    %2422 = vmatpush2.msra.mxu0 %v397
    %2423 = vmatprep.subr.mxu0 0.0
    %2424 = vmatpush2.msra.mxu0 %v396
    %2425 = vmatprep.subr.mxu0 0.0
    %2426 = vmatpush2.msra.mxu0 %v395
    %2427 = vmatprep.subr.mxu0 0.0
    %2428 = vmatpush2.msra.mxu0 %v394
    %2429 = vmatprep.mubr.f32.mxu0 %v1631
    %2430 = vmatmul.mubr.f32.gmra.mxu0 %v1623
    %v2431 = vpop.f32.mrf.mxu0
    %v2432 = vadd.f32 %v2362, %v2431
    %v2433 = vpop.f32.mrf.mxu0
    %2434 = vdwg.mxu0
    %2435 = vmatprep.subr.mxu0 0.0
    %2436 = vmatpush1.msra.mxu0 %v425
    %2437 = vmatprep.subr.mxu0 0.0
    %2438 = vmatpush1.msra.mxu0 %v424
    %2439 = vmatprep.subr.mxu0 0.0
    %2440 = vmatpush1.msra.mxu0 %v423
    %2441 = vmatprep.subr.mxu0 0.0
    %2442 = vmatpush1.msra.mxu0 %v422
    %2443 = vmatprep.subr.mxu0 0.0
    %2444 = vmatpush1.msra.mxu0 %v421
    %2445 = vmatprep.subr.mxu0 0.0
    %2446 = vmatpush1.msra.mxu0 %v420
    %2447 = vmatprep.subr.mxu0 0.0
    %2448 = vmatpush1.msra.mxu0 %v419
    %2449 = vmatprep.subr.mxu0 0.0
    %2450 = vmatpush1.msra.mxu0 %v418
    %2451 = vmatprep.subr.mxu0 0.0
    %2452 = vmatpush1.msra.mxu0 %v417
    %2453 = vmatprep.subr.mxu0 0.0
    %2454 = vmatpush1.msra.mxu0 %v416
    %2455 = vmatprep.subr.mxu0 0.0
    %2456 = vmatpush1.msra.mxu0 %v415
    %2457 = vmatprep.subr.mxu0 0.0
    %2458 = vmatpush1.msra.mxu0 %v414
    %2459 = vmatprep.subr.mxu0 0.0
    %2460 = vmatpush1.msra.mxu0 %v413
    %2461 = vmatprep.subr.mxu0 0.0
    %2462 = vmatpush1.msra.mxu0 %v412
    %2463 = vmatprep.subr.mxu0 0.0
    %2464 = vmatpush1.msra.mxu0 %v411
    %2465 = vmatprep.subr.mxu0 0.0
    %2466 = vmatpush1.msra.mxu0 %v410
    %2467 = vmatprep.subr.mxu0 0.0
    %2468 = vmatpush2.msra.mxu0 %v441
    %2469 = vmatprep.subr.mxu0 0.0
    %2470 = vmatpush2.msra.mxu0 %v440
    %2471 = vmatprep.subr.mxu0 0.0
    %2472 = vmatpush2.msra.mxu0 %v439
    %2473 = vmatprep.subr.mxu0 0.0
    %2474 = vmatpush2.msra.mxu0 %v438
    %2475 = vmatprep.subr.mxu0 0.0
    %2476 = vmatpush2.msra.mxu0 %v437
    %2477 = vmatprep.subr.mxu0 0.0
    %2478 = vmatpush2.msra.mxu0 %v436
    %2479 = vmatprep.subr.mxu0 0.0
    %2480 = vmatpush2.msra.mxu0 %v435
    %2481 = vmatprep.subr.mxu0 0.0
    %2482 = vmatpush2.msra.mxu0 %v434
    %2483 = vmatprep.subr.mxu0 0.0
    %2484 = vmatpush2.msra.mxu0 %v433
    %2485 = vmatprep.subr.mxu0 0.0
    %2486 = vmatpush2.msra.mxu0 %v432
    %2487 = vmatprep.subr.mxu0 0.0
    %2488 = vmatpush2.msra.mxu0 %v431
    %2489 = vmatprep.subr.mxu0 0.0
    %2490 = vmatpush2.msra.mxu0 %v430
    %2491 = vmatprep.subr.mxu0 0.0
    %2492 = vmatpush2.msra.mxu0 %v429
    %2493 = vmatprep.subr.mxu0 0.0
    %2494 = vmatpush2.msra.mxu0 %v428
    %2495 = vmatprep.subr.mxu0 0.0
    %2496 = vmatpush2.msra.mxu0 %v427
    %2497 = vmatprep.subr.mxu0 0.0
    %2498 = vmatpush2.msra.mxu0 %v426
    %2499 = vmatprep.mubr.f32.mxu0 %v1632
    %2500 = vmatmul.mubr.f32.gmra.mxu0 %v1630
    %v2501 = vpop.f32.mrf.mxu0
    %v2502 = vadd.f32 %v2432, %v2501
    %v2503 = vpop.f32.mrf.mxu0
    %2504 = vdwg.mxu0
    %2505 = vmatprep.subr.mxu0 0.0
    %2506 = vmatpush1.msra.mxu0 %v457
    %2507 = vmatprep.subr.mxu0 0.0
    %2508 = vmatpush1.msra.mxu0 %v456
    %2509 = vmatprep.subr.mxu0 0.0
    %2510 = vmatpush1.msra.mxu0 %v455
    %2511 = vmatprep.subr.mxu0 0.0
    %2512 = vmatpush1.msra.mxu0 %v454
    %2513 = vmatprep.subr.mxu0 0.0
    %2514 = vmatpush1.msra.mxu0 %v453
    %2515 = vmatprep.subr.mxu0 0.0
    %2516 = vmatpush1.msra.mxu0 %v452
    %2517 = vmatprep.subr.mxu0 0.0
    %2518 = vmatpush1.msra.mxu0 %v451
    %2519 = vmatprep.subr.mxu0 0.0
    %2520 = vmatpush1.msra.mxu0 %v450
    %2521 = vmatprep.subr.mxu0 0.0
    %2522 = vmatpush1.msra.mxu0 %v449
    %2523 = vmatprep.subr.mxu0 0.0
    %2524 = vmatpush1.msra.mxu0 %v448
    %2525 = vmatprep.subr.mxu0 0.0
    %2526 = vmatpush1.msra.mxu0 %v447
    %2527 = vmatprep.subr.mxu0 0.0
    %2528 = vmatpush1.msra.mxu0 %v446
    %2529 = vmatprep.subr.mxu0 0.0
    %2530 = vmatpush1.msra.mxu0 %v445
    %2531 = vmatprep.subr.mxu0 0.0
    %2532 = vmatpush1.msra.mxu0 %v444
    %2533 = vmatprep.subr.mxu0 0.0
    %2534 = vmatpush1.msra.mxu0 %v443
    %2535 = vmatprep.subr.mxu0 0.0
    %2536 = vmatpush1.msra.mxu0 %v442
    %2537 = vmatprep.subr.mxu0 0.0
    %2538 = vmatpush2.msra.mxu0 0.0
    %2539 = vmatprep.subr.mxu0 0.0
    %2540 = vmatpush2.msra.mxu0 0.0
    %2541 = vmatprep.subr.mxu0 0.0
    %2542 = vmatpush2.msra.mxu0 0.0
    %2543 = vmatprep.subr.mxu0 0.0
    %2544 = vmatpush2.msra.mxu0 0.0
    %2545 = vmatprep.subr.mxu0 0.0
    %2546 = vmatpush2.msra.mxu0 0.0
    %2547 = vmatprep.subr.mxu0 0.0
    %2548 = vmatpush2.msra.mxu0 0.0
    %2549 = vmatprep.subr.mxu0 0.0
    %2550 = vmatpush2.msra.mxu0 0.0
    %2551 = vmatprep.subr.mxu0 0.0
    %2552 = vmatpush2.msra.mxu0 0.0
    %2553 = vmatprep.subr.mxu0 0.0
    %2554 = vmatpush2.msra.mxu0 0.0
    %2555 = vmatprep.subr.mxu0 0.0
    %2556 = vmatpush2.msra.mxu0 0.0
    %2557 = vmatprep.subr.mxu0 0.0
    %2558 = vmatpush2.msra.mxu0 0.0
    %2559 = vmatprep.subr.mxu0 0.0
    %2560 = vmatpush2.msra.mxu0 0.0
    %2561 = vmatprep.subr.mxu0 0.0
    %2562 = vmatpush2.msra.mxu0 0.0
    %2563 = vmatprep.subr.mxu0 0.0
    %2564 = vmatpush2.msra.mxu0 0.0
    %2565 = vmatprep.subr.mxu0 0.0
    %2566 = vmatpush2.msra.mxu0 0.0
    %2567 = vmatprep.subr.mxu0 0.0
    %2568 = vmatpush2.msra.mxu0 0.0
    %2569 = vmatprep.mubr.f32.mxu0 0.0
    %2570 = vmatmul.mubr.f32.gmra.mxu0 %v1639
    %v2571 = vpop.f32.mrf.mxu0
    %v2572 = vadd.f32 %v2502, %v2571
    %v2573 = vpop.f32.mrf.mxu0
    %2574 = vdwg.mxu0
    %v2575 = vmax.f32 %v2572, 0.0
    %v2576 = vmax.f32 %v1516, %v2575
    %v2577 = vld [vmem:[%s2] sm:$0xff]
    %v2578 = vld [vmem:[%s2 + $0x8] sm:$0xff]
    %v2579 = vld [vmem:[%s2 + $0x10] sm:$0xff]
    %v2580 = vld [vmem:[%s2 + $0x18] sm:$0xff]
    %v2581 = vld [vmem:[%s2 + $0x20] sm:$0xff]
    %v2582 = vld [vmem:[%s2 + $0x28] sm:$0xff]
    %v2583 = vld [vmem:[%s2 + $0x30] sm:$0x3]
    %v2591 = vcombine.high %v2577, %v2577
    %v2593 = vunpack.c.l.s4 1983009808
    %v2594 = vunpack.c.0.s8 %v2593
    %v2595 = vlaneseq
    %v2596 = vshrl.u32 %v2595, 7
    %v2597 = vsub.s32 %v2594, %v2596
    %v2598 = vrot.slane %v2577, %v2597
    %v2600 = vunpack.c.l.s4 1983009808
    %v2601 = vunpack.c.0.s8 %v2600
    %v2602 = vlaneseq
    %v2603 = vshrl.u32 %v2602, 7
    %v2604 = vsub.s32 %v2601, %v2603
    %v2605 = vrot.slane %v2591, %v2604
    %v2606 = vcombine.high %v2598, %v2598
    %v2607 = vcombine.high %v2605, %v2605
    %v2608 = vcombine.high %v2578, %v2578
    %v2610 = vunpack.c.l.s4 1983009808
    %v2611 = vunpack.c.0.s8 %v2610
    %v2612 = vlaneseq
    %v2613 = vshrl.u32 %v2612, 7
    %v2614 = vsub.s32 %v2611, %v2613
    %v2615 = vrot.slane %v2578, %v2614
    %v2617 = vunpack.c.l.s4 1983009808
    %v2618 = vunpack.c.0.s8 %v2617
    %v2619 = vlaneseq
    %v2620 = vshrl.u32 %v2619, 7
    %v2621 = vsub.s32 %v2618, %v2620
    %v2622 = vrot.slane %v2608, %v2621
    %v2623 = vcombine.high %v2615, %v2615
    %v2624 = vcombine.high %v2622, %v2622
    %v2625 = vcombine.high %v2579, %v2579
    %v2627 = vunpack.c.l.s4 1983009808
    %v2628 = vunpack.c.0.s8 %v2627
    %v2629 = vlaneseq
    %v2630 = vshrl.u32 %v2629, 7
    %v2631 = vsub.s32 %v2628, %v2630
    %v2632 = vrot.slane %v2579, %v2631
    %v2634 = vunpack.c.l.s4 1983009808
    %v2635 = vunpack.c.0.s8 %v2634
    %v2636 = vlaneseq
    %v2637 = vshrl.u32 %v2636, 7
    %v2638 = vsub.s32 %v2635, %v2637
    %v2639 = vrot.slane %v2625, %v2638
    %v2640 = vcombine.high %v2632, %v2632
    %v2641 = vcombine.high %v2639, %v2639
    %v2642 = vcombine.high %v2580, %v2580
    %v2644 = vunpack.c.l.s4 1983009808
    %v2645 = vunpack.c.0.s8 %v2644
    %v2646 = vlaneseq
    %v2647 = vshrl.u32 %v2646, 7
    %v2648 = vsub.s32 %v2645, %v2647
    %v2649 = vrot.slane %v2580, %v2648
    %v2651 = vunpack.c.l.s4 1983009808
    %v2652 = vunpack.c.0.s8 %v2651
    %v2653 = vlaneseq
    %v2654 = vshrl.u32 %v2653, 7
    %v2655 = vsub.s32 %v2652, %v2654
    %v2656 = vrot.slane %v2642, %v2655
    %v2657 = vcombine.high %v2649, %v2649
    %v2658 = vcombine.high %v2656, %v2656
    %v2659 = vcombine.high %v2581, %v2581
    %v2661 = vunpack.c.l.s4 1983009808
    %v2662 = vunpack.c.0.s8 %v2661
    %v2663 = vlaneseq
    %v2664 = vshrl.u32 %v2663, 7
    %v2665 = vsub.s32 %v2662, %v2664
    %v2666 = vrot.slane %v2581, %v2665
    %v2668 = vunpack.c.l.s4 1983009808
    %v2669 = vunpack.c.0.s8 %v2668
    %v2670 = vlaneseq
    %v2671 = vshrl.u32 %v2670, 7
    %v2672 = vsub.s32 %v2669, %v2671
    %v2673 = vrot.slane %v2659, %v2672
    %v2674 = vcombine.high %v2666, %v2666
    %v2675 = vcombine.high %v2673, %v2673
    %v2676 = vcombine.high %v2582, %v2582
    %v2678 = vunpack.c.l.s4 1983009808
    %v2679 = vunpack.c.0.s8 %v2678
    %v2680 = vlaneseq
    %v2681 = vshrl.u32 %v2680, 7
    %v2682 = vsub.s32 %v2679, %v2681
    %v2683 = vrot.slane %v2582, %v2682
    %v2685 = vunpack.c.l.s4 1983009808
    %v2686 = vunpack.c.0.s8 %v2685
    %v2687 = vlaneseq
    %v2688 = vshrl.u32 %v2687, 7
    %v2689 = vsub.s32 %v2686, %v2688
    %v2690 = vrot.slane %v2676, %v2689
    %v2691 = vcombine.high %v2683, %v2683
    %v2692 = vcombine.high %v2690, %v2690
    %v2694 = vunpack.c.l.s4 1983009808
    %v2695 = vunpack.c.0.s8 %v2694
    %v2696 = vlaneseq
    %v2697 = vshrl.u32 %v2696, 7
    %v2698 = vsub.s32 %v2695, %v2697
    %v2699 = vrot.slane %v2583, %v2698
    %2725 = vmatprep.subr.mxu0 0.0
    %2726 = vmatpush1.msra.mxu0 %v73
    %2727 = vmatprep.subr.mxu0 0.0
    %2728 = vmatpush1.msra.mxu0 %v72
    %2729 = vmatprep.subr.mxu0 0.0
    %2730 = vmatpush1.msra.mxu0 %v71
    %2731 = vmatprep.subr.mxu0 0.0
    %2732 = vmatpush1.msra.mxu0 %v70
    %2733 = vmatprep.subr.mxu0 0.0
    %2734 = vmatpush1.msra.mxu0 %v69
    %2735 = vmatprep.subr.mxu0 0.0
    %2736 = vmatpush1.msra.mxu0 %v68
    %2737 = vmatprep.subr.mxu0 0.0
    %2738 = vmatpush1.msra.mxu0 %v67
    %2739 = vmatprep.subr.mxu0 0.0
    %2740 = vmatpush1.msra.mxu0 %v66
    %2741 = vmatprep.subr.mxu0 0.0
    %2742 = vmatpush1.msra.mxu0 %v65
    %2743 = vmatprep.subr.mxu0 0.0
    %2744 = vmatpush1.msra.mxu0 %v64
    %2745 = vmatprep.subr.mxu0 0.0
    %2746 = vmatpush1.msra.mxu0 %v63
    %2747 = vmatprep.subr.mxu0 0.0
    %2748 = vmatpush1.msra.mxu0 %v62
    %2749 = vmatprep.subr.mxu0 0.0
    %2750 = vmatpush1.msra.mxu0 %v61
    %2751 = vmatprep.subr.mxu0 0.0
    %2752 = vmatpush1.msra.mxu0 %v60
    %2753 = vmatprep.subr.mxu0 0.0
    %2754 = vmatpush1.msra.mxu0 %v59
    %2755 = vmatprep.subr.mxu0 0.0
    %2756 = vmatpush1.msra.mxu0 %v58
    %2757 = vmatprep.subr.mxu0 0.0
    %2758 = vmatpush2.msra.mxu0 %v89
    %2759 = vmatprep.subr.mxu0 0.0
    %2760 = vmatpush2.msra.mxu0 %v88
    %2761 = vmatprep.subr.mxu0 0.0
    %2762 = vmatpush2.msra.mxu0 %v87
    %2763 = vmatprep.subr.mxu0 0.0
    %2764 = vmatpush2.msra.mxu0 %v86
    %2765 = vmatprep.subr.mxu0 0.0
    %2766 = vmatpush2.msra.mxu0 %v85
    %2767 = vmatprep.subr.mxu0 0.0
    %2768 = vmatpush2.msra.mxu0 %v84
    %2769 = vmatprep.subr.mxu0 0.0
    %2770 = vmatpush2.msra.mxu0 %v83
    %2771 = vmatprep.subr.mxu0 0.0
    %2772 = vmatpush2.msra.mxu0 %v82
    %2773 = vmatprep.subr.mxu0 0.0
    %2774 = vmatpush2.msra.mxu0 %v81
    %2775 = vmatprep.subr.mxu0 0.0
    %2776 = vmatpush2.msra.mxu0 %v80
    %2777 = vmatprep.subr.mxu0 0.0
    %2778 = vmatpush2.msra.mxu0 %v79
    %2779 = vmatprep.subr.mxu0 0.0
    %2780 = vmatpush2.msra.mxu0 %v78
    %2781 = vmatprep.subr.mxu0 0.0
    %2782 = vmatpush2.msra.mxu0 %v77
    %2783 = vmatprep.subr.mxu0 0.0
    %2784 = vmatpush2.msra.mxu0 %v76
    %2785 = vmatprep.subr.mxu0 0.0
    %2786 = vmatpush2.msra.mxu0 %v75
    %2787 = vmatprep.subr.mxu0 0.0
    %2788 = vmatpush2.msra.mxu0 %v74
    %2789 = vmatprep.mubr.f32.mxu0 %v2606
    %2790 = vmatmul.mubr.f32.gmra.mxu0 %v2598
    %v2791 = vpop.f32.mrf.mxu0
    %v2792 = vadd.f32 %v463, %v2791
    %v2793 = vpop.f32.mrf.mxu0
    %2794 = vdwg.mxu0
    %2795 = vmatprep.subr.mxu0 0.0
    %2796 = vmatpush1.msra.mxu0 %v105
    %2797 = vmatprep.subr.mxu0 0.0
    %2798 = vmatpush1.msra.mxu0 %v104
    %2799 = vmatprep.subr.mxu0 0.0
    %2800 = vmatpush1.msra.mxu0 %v103
    %2801 = vmatprep.subr.mxu0 0.0
    %2802 = vmatpush1.msra.mxu0 %v102
    %2803 = vmatprep.subr.mxu0 0.0
    %2804 = vmatpush1.msra.mxu0 %v101
    %2805 = vmatprep.subr.mxu0 0.0
    %2806 = vmatpush1.msra.mxu0 %v100
    %2807 = vmatprep.subr.mxu0 0.0
    %2808 = vmatpush1.msra.mxu0 %v99
    %2809 = vmatprep.subr.mxu0 0.0
    %2810 = vmatpush1.msra.mxu0 %v98
    %2811 = vmatprep.subr.mxu0 0.0
    %2812 = vmatpush1.msra.mxu0 %v97
    %2813 = vmatprep.subr.mxu0 0.0
    %2814 = vmatpush1.msra.mxu0 %v96
    %2815 = vmatprep.subr.mxu0 0.0
    %2816 = vmatpush1.msra.mxu0 %v95
    %2817 = vmatprep.subr.mxu0 0.0
    %2818 = vmatpush1.msra.mxu0 %v94
    %2819 = vmatprep.subr.mxu0 0.0
    %2820 = vmatpush1.msra.mxu0 %v93
    %2821 = vmatprep.subr.mxu0 0.0
    %2822 = vmatpush1.msra.mxu0 %v92
    %2823 = vmatprep.subr.mxu0 0.0
    %2824 = vmatpush1.msra.mxu0 %v91
    %2825 = vmatprep.subr.mxu0 0.0
    %2826 = vmatpush1.msra.mxu0 %v90
    %2827 = vmatprep.subr.mxu0 0.0
    %2828 = vmatpush2.msra.mxu0 %v121
    %2829 = vmatprep.subr.mxu0 0.0
    %2830 = vmatpush2.msra.mxu0 %v120
    %2831 = vmatprep.subr.mxu0 0.0
    %2832 = vmatpush2.msra.mxu0 %v119
    %2833 = vmatprep.subr.mxu0 0.0
    %2834 = vmatpush2.msra.mxu0 %v118
    %2835 = vmatprep.subr.mxu0 0.0
    %2836 = vmatpush2.msra.mxu0 %v117
    %2837 = vmatprep.subr.mxu0 0.0
    %2838 = vmatpush2.msra.mxu0 %v116
    %2839 = vmatprep.subr.mxu0 0.0
    %2840 = vmatpush2.msra.mxu0 %v115
    %2841 = vmatprep.subr.mxu0 0.0
    %2842 = vmatpush2.msra.mxu0 %v114
    %2843 = vmatprep.subr.mxu0 0.0
    %2844 = vmatpush2.msra.mxu0 %v113
    %2845 = vmatprep.subr.mxu0 0.0
    %2846 = vmatpush2.msra.mxu0 %v112
    %2847 = vmatprep.subr.mxu0 0.0
    %2848 = vmatpush2.msra.mxu0 %v111
    %2849 = vmatprep.subr.mxu0 0.0
    %2850 = vmatpush2.msra.mxu0 %v110
    %2851 = vmatprep.subr.mxu0 0.0
    %2852 = vmatpush2.msra.mxu0 %v109
    %2853 = vmatprep.subr.mxu0 0.0
    %2854 = vmatpush2.msra.mxu0 %v108
    %2855 = vmatprep.subr.mxu0 0.0
    %2856 = vmatpush2.msra.mxu0 %v107
    %2857 = vmatprep.subr.mxu0 0.0
    %2858 = vmatpush2.msra.mxu0 %v106
    %2859 = vmatprep.mubr.f32.mxu0 %v2607
    %2860 = vmatmul.mubr.f32.gmra.mxu0 %v2605
    %v2861 = vpop.f32.mrf.mxu0
    %v2862 = vadd.f32 %v2792, %v2861
    %v2863 = vpop.f32.mrf.mxu0
    %2864 = vdwg.mxu0
    %2865 = vmatprep.subr.mxu0 0.0
    %2866 = vmatpush1.msra.mxu0 %v137
    %2867 = vmatprep.subr.mxu0 0.0
    %2868 = vmatpush1.msra.mxu0 %v136
    %2869 = vmatprep.subr.mxu0 0.0
    %2870 = vmatpush1.msra.mxu0 %v135
    %2871 = vmatprep.subr.mxu0 0.0
    %2872 = vmatpush1.msra.mxu0 %v134
    %2873 = vmatprep.subr.mxu0 0.0
    %2874 = vmatpush1.msra.mxu0 %v133
    %2875 = vmatprep.subr.mxu0 0.0
    %2876 = vmatpush1.msra.mxu0 %v132
    %2877 = vmatprep.subr.mxu0 0.0
    %2878 = vmatpush1.msra.mxu0 %v131
    %2879 = vmatprep.subr.mxu0 0.0
    %2880 = vmatpush1.msra.mxu0 %v130
    %2881 = vmatprep.subr.mxu0 0.0
    %2882 = vmatpush1.msra.mxu0 %v129
    %2883 = vmatprep.subr.mxu0 0.0
    %2884 = vmatpush1.msra.mxu0 %v128
    %2885 = vmatprep.subr.mxu0 0.0
    %2886 = vmatpush1.msra.mxu0 %v127
    %2887 = vmatprep.subr.mxu0 0.0
    %2888 = vmatpush1.msra.mxu0 %v126
    %2889 = vmatprep.subr.mxu0 0.0
    %2890 = vmatpush1.msra.mxu0 %v125
    %2891 = vmatprep.subr.mxu0 0.0
    %2892 = vmatpush1.msra.mxu0 %v124
    %2893 = vmatprep.subr.mxu0 0.0
    %2894 = vmatpush1.msra.mxu0 %v123
    %2895 = vmatprep.subr.mxu0 0.0
    %2896 = vmatpush1.msra.mxu0 %v122
    %2897 = vmatprep.subr.mxu0 0.0
    %2898 = vmatpush2.msra.mxu0 %v153
    %2899 = vmatprep.subr.mxu0 0.0
    %2900 = vmatpush2.msra.mxu0 %v152
    %2901 = vmatprep.subr.mxu0 0.0
    %2902 = vmatpush2.msra.mxu0 %v151
    %2903 = vmatprep.subr.mxu0 0.0
    %2904 = vmatpush2.msra.mxu0 %v150
    %2905 = vmatprep.subr.mxu0 0.0
    %2906 = vmatpush2.msra.mxu0 %v149
    %2907 = vmatprep.subr.mxu0 0.0
    %2908 = vmatpush2.msra.mxu0 %v148
    %2909 = vmatprep.subr.mxu0 0.0
    %2910 = vmatpush2.msra.mxu0 %v147
    %2911 = vmatprep.subr.mxu0 0.0
    %2912 = vmatpush2.msra.mxu0 %v146
    %2913 = vmatprep.subr.mxu0 0.0
    %2914 = vmatpush2.msra.mxu0 %v145
    %2915 = vmatprep.subr.mxu0 0.0
    %2916 = vmatpush2.msra.mxu0 %v144
    %2917 = vmatprep.subr.mxu0 0.0
    %2918 = vmatpush2.msra.mxu0 %v143
    %2919 = vmatprep.subr.mxu0 0.0
    %2920 = vmatpush2.msra.mxu0 %v142
    %2921 = vmatprep.subr.mxu0 0.0
    %2922 = vmatpush2.msra.mxu0 %v141
    %2923 = vmatprep.subr.mxu0 0.0
    %2924 = vmatpush2.msra.mxu0 %v140
    %2925 = vmatprep.subr.mxu0 0.0
    %2926 = vmatpush2.msra.mxu0 %v139
    %2927 = vmatprep.subr.mxu0 0.0
    %2928 = vmatpush2.msra.mxu0 %v138
    %2929 = vmatprep.mubr.f32.mxu0 %v2623
    %2930 = vmatmul.mubr.f32.gmra.mxu0 %v2615
    %v2931 = vpop.f32.mrf.mxu0
    %v2932 = vadd.f32 %v2862, %v2931
    %v2933 = vpop.f32.mrf.mxu0
    %2934 = vdwg.mxu0
    %2935 = vmatprep.subr.mxu0 0.0
    %2936 = vmatpush1.msra.mxu0 %v169
    %2937 = vmatprep.subr.mxu0 0.0
    %2938 = vmatpush1.msra.mxu0 %v168
    %2939 = vmatprep.subr.mxu0 0.0
    %2940 = vmatpush1.msra.mxu0 %v167
    %2941 = vmatprep.subr.mxu0 0.0
    %2942 = vmatpush1.msra.mxu0 %v166
    %2943 = vmatprep.subr.mxu0 0.0
    %2944 = vmatpush1.msra.mxu0 %v165
    %2945 = vmatprep.subr.mxu0 0.0
    %2946 = vmatpush1.msra.mxu0 %v164
    %2947 = vmatprep.subr.mxu0 0.0
    %2948 = vmatpush1.msra.mxu0 %v163
    %2949 = vmatprep.subr.mxu0 0.0
    %2950 = vmatpush1.msra.mxu0 %v162
    %2951 = vmatprep.subr.mxu0 0.0
    %2952 = vmatpush1.msra.mxu0 %v161
    %2953 = vmatprep.subr.mxu0 0.0
    %2954 = vmatpush1.msra.mxu0 %v160
    %2955 = vmatprep.subr.mxu0 0.0
    %2956 = vmatpush1.msra.mxu0 %v159
    %2957 = vmatprep.subr.mxu0 0.0
    %2958 = vmatpush1.msra.mxu0 %v158
    %2959 = vmatprep.subr.mxu0 0.0
    %2960 = vmatpush1.msra.mxu0 %v157
    %2961 = vmatprep.subr.mxu0 0.0
    %2962 = vmatpush1.msra.mxu0 %v156
    %2963 = vmatprep.subr.mxu0 0.0
    %2964 = vmatpush1.msra.mxu0 %v155
    %2965 = vmatprep.subr.mxu0 0.0
    %2966 = vmatpush1.msra.mxu0 %v154
    %2967 = vmatprep.subr.mxu0 0.0
    %2968 = vmatpush2.msra.mxu0 %v185
    %2969 = vmatprep.subr.mxu0 0.0
    %2970 = vmatpush2.msra.mxu0 %v184
    %2971 = vmatprep.subr.mxu0 0.0
    %2972 = vmatpush2.msra.mxu0 %v183
    %2973 = vmatprep.subr.mxu0 0.0
    %2974 = vmatpush2.msra.mxu0 %v182
    %2975 = vmatprep.subr.mxu0 0.0
    %2976 = vmatpush2.msra.mxu0 %v181
    %2977 = vmatprep.subr.mxu0 0.0
    %2978 = vmatpush2.msra.mxu0 %v180
    %2979 = vmatprep.subr.mxu0 0.0
    %2980 = vmatpush2.msra.mxu0 %v179
    %2981 = vmatprep.subr.mxu0 0.0
    %2982 = vmatpush2.msra.mxu0 %v178
    %2983 = vmatprep.subr.mxu0 0.0
    %2984 = vmatpush2.msra.mxu0 %v177
    %2985 = vmatprep.subr.mxu0 0.0
    %2986 = vmatpush2.msra.mxu0 %v176
    %2987 = vmatprep.subr.mxu0 0.0
    %2988 = vmatpush2.msra.mxu0 %v175
    %2989 = vmatprep.subr.mxu0 0.0
    %2990 = vmatpush2.msra.mxu0 %v174
    %2991 = vmatprep.subr.mxu0 0.0
    %2992 = vmatpush2.msra.mxu0 %v173
    %2993 = vmatprep.subr.mxu0 0.0
    %2994 = vmatpush2.msra.mxu0 %v172
    %2995 = vmatprep.subr.mxu0 0.0
    %2996 = vmatpush2.msra.mxu0 %v171
    %2997 = vmatprep.subr.mxu0 0.0
    %2998 = vmatpush2.msra.mxu0 %v170
    %2999 = vmatprep.mubr.f32.mxu0 %v2624
    %3000 = vmatmul.mubr.f32.gmra.mxu0 %v2622
    %v3001 = vpop.f32.mrf.mxu0
    %v3002 = vadd.f32 %v2932, %v3001
    %v3003 = vpop.f32.mrf.mxu0
    %3004 = vdwg.mxu0
    %3005 = vmatprep.subr.mxu0 0.0
    %3006 = vmatpush1.msra.mxu0 %v201
    %3007 = vmatprep.subr.mxu0 0.0
    %3008 = vmatpush1.msra.mxu0 %v200
    %3009 = vmatprep.subr.mxu0 0.0
    %3010 = vmatpush1.msra.mxu0 %v199
    %3011 = vmatprep.subr.mxu0 0.0
    %3012 = vmatpush1.msra.mxu0 %v198
    %3013 = vmatprep.subr.mxu0 0.0
    %3014 = vmatpush1.msra.mxu0 %v197
    %3015 = vmatprep.subr.mxu0 0.0
    %3016 = vmatpush1.msra.mxu0 %v196
    %3017 = vmatprep.subr.mxu0 0.0
    %3018 = vmatpush1.msra.mxu0 %v195
    %3019 = vmatprep.subr.mxu0 0.0
    %3020 = vmatpush1.msra.mxu0 %v194
    %3021 = vmatprep.subr.mxu0 0.0
    %3022 = vmatpush1.msra.mxu0 %v193
    %3023 = vmatprep.subr.mxu0 0.0
    %3024 = vmatpush1.msra.mxu0 %v192
    %3025 = vmatprep.subr.mxu0 0.0
    %3026 = vmatpush1.msra.mxu0 %v191
    %3027 = vmatprep.subr.mxu0 0.0
    %3028 = vmatpush1.msra.mxu0 %v190
    %3029 = vmatprep.subr.mxu0 0.0
    %3030 = vmatpush1.msra.mxu0 %v189
    %3031 = vmatprep.subr.mxu0 0.0
    %3032 = vmatpush1.msra.mxu0 %v188
    %3033 = vmatprep.subr.mxu0 0.0
    %3034 = vmatpush1.msra.mxu0 %v187
    %3035 = vmatprep.subr.mxu0 0.0
    %3036 = vmatpush1.msra.mxu0 %v186
    %3037 = vmatprep.subr.mxu0 0.0
    %3038 = vmatpush2.msra.mxu0 %v217
    %3039 = vmatprep.subr.mxu0 0.0
    %3040 = vmatpush2.msra.mxu0 %v216
    %3041 = vmatprep.subr.mxu0 0.0
    %3042 = vmatpush2.msra.mxu0 %v215
    %3043 = vmatprep.subr.mxu0 0.0
    %3044 = vmatpush2.msra.mxu0 %v214
    %3045 = vmatprep.subr.mxu0 0.0
    %3046 = vmatpush2.msra.mxu0 %v213
    %3047 = vmatprep.subr.mxu0 0.0
    %3048 = vmatpush2.msra.mxu0 %v212
    %3049 = vmatprep.subr.mxu0 0.0
    %3050 = vmatpush2.msra.mxu0 %v211
    %3051 = vmatprep.subr.mxu0 0.0
    %3052 = vmatpush2.msra.mxu0 %v210
    %3053 = vmatprep.subr.mxu0 0.0
    %3054 = vmatpush2.msra.mxu0 %v209
    %3055 = vmatprep.subr.mxu0 0.0
    %3056 = vmatpush2.msra.mxu0 %v208
    %3057 = vmatprep.subr.mxu0 0.0
    %3058 = vmatpush2.msra.mxu0 %v207
    %3059 = vmatprep.subr.mxu0 0.0
    %3060 = vmatpush2.msra.mxu0 %v206
    %3061 = vmatprep.subr.mxu0 0.0
    %3062 = vmatpush2.msra.mxu0 %v205
    %3063 = vmatprep.subr.mxu0 0.0
    %3064 = vmatpush2.msra.mxu0 %v204
    %3065 = vmatprep.subr.mxu0 0.0
    %3066 = vmatpush2.msra.mxu0 %v203
    %3067 = vmatprep.subr.mxu0 0.0
    %3068 = vmatpush2.msra.mxu0 %v202
    %3069 = vmatprep.mubr.f32.mxu0 %v2640
    %3070 = vmatmul.mubr.f32.gmra.mxu0 %v2632
    %v3071 = vpop.f32.mrf.mxu0
    %v3072 = vadd.f32 %v3002, %v3071
    %v3073 = vpop.f32.mrf.mxu0
    %3074 = vdwg.mxu0
    %3075 = vmatprep.subr.mxu0 0.0
    %3076 = vmatpush1.msra.mxu0 %v233
    %3077 = vmatprep.subr.mxu0 0.0
    %3078 = vmatpush1.msra.mxu0 %v232
    %3079 = vmatprep.subr.mxu0 0.0
    %3080 = vmatpush1.msra.mxu0 %v231
    %3081 = vmatprep.subr.mxu0 0.0
    %3082 = vmatpush1.msra.mxu0 %v230
    %3083 = vmatprep.subr.mxu0 0.0
    %3084 = vmatpush1.msra.mxu0 %v229
    %3085 = vmatprep.subr.mxu0 0.0
    %3086 = vmatpush1.msra.mxu0 %v228
    %3087 = vmatprep.subr.mxu0 0.0
    %3088 = vmatpush1.msra.mxu0 %v227
    %3089 = vmatprep.subr.mxu0 0.0
    %3090 = vmatpush1.msra.mxu0 %v226
    %3091 = vmatprep.subr.mxu0 0.0
    %3092 = vmatpush1.msra.mxu0 %v225
    %3093 = vmatprep.subr.mxu0 0.0
    %3094 = vmatpush1.msra.mxu0 %v224
    %3095 = vmatprep.subr.mxu0 0.0
    %3096 = vmatpush1.msra.mxu0 %v223
    %3097 = vmatprep.subr.mxu0 0.0
    %3098 = vmatpush1.msra.mxu0 %v222
    %3099 = vmatprep.subr.mxu0 0.0
    %3100 = vmatpush1.msra.mxu0 %v221
    %3101 = vmatprep.subr.mxu0 0.0
    %3102 = vmatpush1.msra.mxu0 %v220
    %3103 = vmatprep.subr.mxu0 0.0
    %3104 = vmatpush1.msra.mxu0 %v219
    %3105 = vmatprep.subr.mxu0 0.0
    %3106 = vmatpush1.msra.mxu0 %v218
    %3107 = vmatprep.subr.mxu0 0.0
    %3108 = vmatpush2.msra.mxu0 %v249
    %3109 = vmatprep.subr.mxu0 0.0
    %3110 = vmatpush2.msra.mxu0 %v248
    %3111 = vmatprep.subr.mxu0 0.0
    %3112 = vmatpush2.msra.mxu0 %v247
    %3113 = vmatprep.subr.mxu0 0.0
    %3114 = vmatpush2.msra.mxu0 %v246
    %3115 = vmatprep.subr.mxu0 0.0
    %3116 = vmatpush2.msra.mxu0 %v245
    %3117 = vmatprep.subr.mxu0 0.0
    %3118 = vmatpush2.msra.mxu0 %v244
    %3119 = vmatprep.subr.mxu0 0.0
    %3120 = vmatpush2.msra.mxu0 %v243
    %3121 = vmatprep.subr.mxu0 0.0
    %3122 = vmatpush2.msra.mxu0 %v242
    %3123 = vmatprep.subr.mxu0 0.0
    %3124 = vmatpush2.msra.mxu0 %v241
    %3125 = vmatprep.subr.mxu0 0.0
    %3126 = vmatpush2.msra.mxu0 %v240
    %3127 = vmatprep.subr.mxu0 0.0
    %3128 = vmatpush2.msra.mxu0 %v239
    %3129 = vmatprep.subr.mxu0 0.0
    %3130 = vmatpush2.msra.mxu0 %v238
    %3131 = vmatprep.subr.mxu0 0.0
    %3132 = vmatpush2.msra.mxu0 %v237
    %3133 = vmatprep.subr.mxu0 0.0
    %3134 = vmatpush2.msra.mxu0 %v236
    %3135 = vmatprep.subr.mxu0 0.0
    %3136 = vmatpush2.msra.mxu0 %v235
    %3137 = vmatprep.subr.mxu0 0.0
    %3138 = vmatpush2.msra.mxu0 %v234
    %3139 = vmatprep.mubr.f32.mxu0 %v2641
    %3140 = vmatmul.mubr.f32.gmra.mxu0 %v2639
    %v3141 = vpop.f32.mrf.mxu0
    %v3142 = vadd.f32 %v3072, %v3141
    %v3143 = vpop.f32.mrf.mxu0
    %3144 = vdwg.mxu0
    %3145 = vmatprep.subr.mxu0 0.0
    %3146 = vmatpush1.msra.mxu0 %v265
    %3147 = vmatprep.subr.mxu0 0.0
    %3148 = vmatpush1.msra.mxu0 %v264
    %3149 = vmatprep.subr.mxu0 0.0
    %3150 = vmatpush1.msra.mxu0 %v263
    %3151 = vmatprep.subr.mxu0 0.0
    %3152 = vmatpush1.msra.mxu0 %v262
    %3153 = vmatprep.subr.mxu0 0.0
    %3154 = vmatpush1.msra.mxu0 %v261
    %3155 = vmatprep.subr.mxu0 0.0
    %3156 = vmatpush1.msra.mxu0 %v260
    %3157 = vmatprep.subr.mxu0 0.0
    %3158 = vmatpush1.msra.mxu0 %v259
    %3159 = vmatprep.subr.mxu0 0.0
    %3160 = vmatpush1.msra.mxu0 %v258
    %3161 = vmatprep.subr.mxu0 0.0
    %3162 = vmatpush1.msra.mxu0 %v257
    %3163 = vmatprep.subr.mxu0 0.0
    %3164 = vmatpush1.msra.mxu0 %v256
    %3165 = vmatprep.subr.mxu0 0.0
    %3166 = vmatpush1.msra.mxu0 %v255
    %3167 = vmatprep.subr.mxu0 0.0
    %3168 = vmatpush1.msra.mxu0 %v254
    %3169 = vmatprep.subr.mxu0 0.0
    %3170 = vmatpush1.msra.mxu0 %v253
    %3171 = vmatprep.subr.mxu0 0.0
    %3172 = vmatpush1.msra.mxu0 %v252
    %3173 = vmatprep.subr.mxu0 0.0
    %3174 = vmatpush1.msra.mxu0 %v251
    %3175 = vmatprep.subr.mxu0 0.0
    %3176 = vmatpush1.msra.mxu0 %v250
    %3177 = vmatprep.subr.mxu0 0.0
    %3178 = vmatpush2.msra.mxu0 %v281
    %3179 = vmatprep.subr.mxu0 0.0
    %3180 = vmatpush2.msra.mxu0 %v280
    %3181 = vmatprep.subr.mxu0 0.0
    %3182 = vmatpush2.msra.mxu0 %v279
    %3183 = vmatprep.subr.mxu0 0.0
    %3184 = vmatpush2.msra.mxu0 %v278
    %3185 = vmatprep.subr.mxu0 0.0
    %3186 = vmatpush2.msra.mxu0 %v277
    %3187 = vmatprep.subr.mxu0 0.0
    %3188 = vmatpush2.msra.mxu0 %v276
    %3189 = vmatprep.subr.mxu0 0.0
    %3190 = vmatpush2.msra.mxu0 %v275
    %3191 = vmatprep.subr.mxu0 0.0
    %3192 = vmatpush2.msra.mxu0 %v274
    %3193 = vmatprep.subr.mxu0 0.0
    %3194 = vmatpush2.msra.mxu0 %v273
    %3195 = vmatprep.subr.mxu0 0.0
    %3196 = vmatpush2.msra.mxu0 %v272
    %3197 = vmatprep.subr.mxu0 0.0
    %3198 = vmatpush2.msra.mxu0 %v271
    %3199 = vmatprep.subr.mxu0 0.0
    %3200 = vmatpush2.msra.mxu0 %v270
    %3201 = vmatprep.subr.mxu0 0.0
    %3202 = vmatpush2.msra.mxu0 %v269
    %3203 = vmatprep.subr.mxu0 0.0
    %3204 = vmatpush2.msra.mxu0 %v268
    %3205 = vmatprep.subr.mxu0 0.0
    %3206 = vmatpush2.msra.mxu0 %v267
    %3207 = vmatprep.subr.mxu0 0.0
    %3208 = vmatpush2.msra.mxu0 %v266
    %3209 = vmatprep.mubr.f32.mxu0 %v2657
    %3210 = vmatmul.mubr.f32.gmra.mxu0 %v2649
    %v3211 = vpop.f32.mrf.mxu0
    %v3212 = vadd.f32 %v3142, %v3211
    %v3213 = vpop.f32.mrf.mxu0
    %3214 = vdwg.mxu0
    %3215 = vmatprep.subr.mxu0 0.0
    %3216 = vmatpush1.msra.mxu0 %v297
    %3217 = vmatprep.subr.mxu0 0.0
    %3218 = vmatpush1.msra.mxu0 %v296
    %3219 = vmatprep.subr.mxu0 0.0
    %3220 = vmatpush1.msra.mxu0 %v295
    %3221 = vmatprep.subr.mxu0 0.0
    %3222 = vmatpush1.msra.mxu0 %v294
    %3223 = vmatprep.subr.mxu0 0.0
    %3224 = vmatpush1.msra.mxu0 %v293
    %3225 = vmatprep.subr.mxu0 0.0
    %3226 = vmatpush1.msra.mxu0 %v292
    %3227 = vmatprep.subr.mxu0 0.0
    %3228 = vmatpush1.msra.mxu0 %v291
    %3229 = vmatprep.subr.mxu0 0.0
    %3230 = vmatpush1.msra.mxu0 %v290
    %3231 = vmatprep.subr.mxu0 0.0
    %3232 = vmatpush1.msra.mxu0 %v289
    %3233 = vmatprep.subr.mxu0 0.0
    %3234 = vmatpush1.msra.mxu0 %v288
    %3235 = vmatprep.subr.mxu0 0.0
    %3236 = vmatpush1.msra.mxu0 %v287
    %3237 = vmatprep.subr.mxu0 0.0
    %3238 = vmatpush1.msra.mxu0 %v286
    %3239 = vmatprep.subr.mxu0 0.0
    %3240 = vmatpush1.msra.mxu0 %v285
    %3241 = vmatprep.subr.mxu0 0.0
    %3242 = vmatpush1.msra.mxu0 %v284
    %3243 = vmatprep.subr.mxu0 0.0
    %3244 = vmatpush1.msra.mxu0 %v283
    %3245 = vmatprep.subr.mxu0 0.0
    %3246 = vmatpush1.msra.mxu0 %v282
    %3247 = vmatprep.subr.mxu0 0.0
    %3248 = vmatpush2.msra.mxu0 %v313
    %3249 = vmatprep.subr.mxu0 0.0
    %3250 = vmatpush2.msra.mxu0 %v312
    %3251 = vmatprep.subr.mxu0 0.0
    %3252 = vmatpush2.msra.mxu0 %v311
    %3253 = vmatprep.subr.mxu0 0.0
    %3254 = vmatpush2.msra.mxu0 %v310
    %3255 = vmatprep.subr.mxu0 0.0
    %3256 = vmatpush2.msra.mxu0 %v309
    %3257 = vmatprep.subr.mxu0 0.0
    %3258 = vmatpush2.msra.mxu0 %v308
    %3259 = vmatprep.subr.mxu0 0.0
    %3260 = vmatpush2.msra.mxu0 %v307
    %3261 = vmatprep.subr.mxu0 0.0
    %3262 = vmatpush2.msra.mxu0 %v306
    %3263 = vmatprep.subr.mxu0 0.0
    %3264 = vmatpush2.msra.mxu0 %v305
    %3265 = vmatprep.subr.mxu0 0.0
    %3266 = vmatpush2.msra.mxu0 %v304
    %3267 = vmatprep.subr.mxu0 0.0
    %3268 = vmatpush2.msra.mxu0 %v303
    %3269 = vmatprep.subr.mxu0 0.0
    %3270 = vmatpush2.msra.mxu0 %v302
    %3271 = vmatprep.subr.mxu0 0.0
    %3272 = vmatpush2.msra.mxu0 %v301
    %3273 = vmatprep.subr.mxu0 0.0
    %3274 = vmatpush2.msra.mxu0 %v300
    %3275 = vmatprep.subr.mxu0 0.0
    %3276 = vmatpush2.msra.mxu0 %v299
    %3277 = vmatprep.subr.mxu0 0.0
    %3278 = vmatpush2.msra.mxu0 %v298
    %3279 = vmatprep.mubr.f32.mxu0 %v2658
    %3280 = vmatmul.mubr.f32.gmra.mxu0 %v2656
    %v3281 = vpop.f32.mrf.mxu0
    %v3282 = vadd.f32 %v3212, %v3281
    %v3283 = vpop.f32.mrf.mxu0
    %3284 = vdwg.mxu0
    %3285 = vmatprep.subr.mxu0 0.0
    %3286 = vmatpush1.msra.mxu0 %v329
    %3287 = vmatprep.subr.mxu0 0.0
    %3288 = vmatpush1.msra.mxu0 %v328
    %3289 = vmatprep.subr.mxu0 0.0
    %3290 = vmatpush1.msra.mxu0 %v327
    %3291 = vmatprep.subr.mxu0 0.0
    %3292 = vmatpush1.msra.mxu0 %v326
    %3293 = vmatprep.subr.mxu0 0.0
    %3294 = vmatpush1.msra.mxu0 %v325
    %3295 = vmatprep.subr.mxu0 0.0
    %3296 = vmatpush1.msra.mxu0 %v324
    %3297 = vmatprep.subr.mxu0 0.0
    %3298 = vmatpush1.msra.mxu0 %v323
    %3299 = vmatprep.subr.mxu0 0.0
    %3300 = vmatpush1.msra.mxu0 %v322
    %3301 = vmatprep.subr.mxu0 0.0
    %3302 = vmatpush1.msra.mxu0 %v321
    %3303 = vmatprep.subr.mxu0 0.0
    %3304 = vmatpush1.msra.mxu0 %v320
    %3305 = vmatprep.subr.mxu0 0.0
    %3306 = vmatpush1.msra.mxu0 %v319
    %3307 = vmatprep.subr.mxu0 0.0
    %3308 = vmatpush1.msra.mxu0 %v318
    %3309 = vmatprep.subr.mxu0 0.0
    %3310 = vmatpush1.msra.mxu0 %v317
    %3311 = vmatprep.subr.mxu0 0.0
    %3312 = vmatpush1.msra.mxu0 %v316
    %3313 = vmatprep.subr.mxu0 0.0
    %3314 = vmatpush1.msra.mxu0 %v315
    %3315 = vmatprep.subr.mxu0 0.0
    %3316 = vmatpush1.msra.mxu0 %v314
    %3317 = vmatprep.subr.mxu0 0.0
    %3318 = vmatpush2.msra.mxu0 %v345
    %3319 = vmatprep.subr.mxu0 0.0
    %3320 = vmatpush2.msra.mxu0 %v344
    %3321 = vmatprep.subr.mxu0 0.0
    %3322 = vmatpush2.msra.mxu0 %v343
    %3323 = vmatprep.subr.mxu0 0.0
    %3324 = vmatpush2.msra.mxu0 %v342
    %3325 = vmatprep.subr.mxu0 0.0
    %3326 = vmatpush2.msra.mxu0 %v341
    %3327 = vmatprep.subr.mxu0 0.0
    %3328 = vmatpush2.msra.mxu0 %v340
    %3329 = vmatprep.subr.mxu0 0.0
    %3330 = vmatpush2.msra.mxu0 %v339
    %3331 = vmatprep.subr.mxu0 0.0
    %3332 = vmatpush2.msra.mxu0 %v338
    %3333 = vmatprep.subr.mxu0 0.0
    %3334 = vmatpush2.msra.mxu0 %v337
    %3335 = vmatprep.subr.mxu0 0.0
    %3336 = vmatpush2.msra.mxu0 %v336
    %3337 = vmatprep.subr.mxu0 0.0
    %3338 = vmatpush2.msra.mxu0 %v335
    %3339 = vmatprep.subr.mxu0 0.0
    %3340 = vmatpush2.msra.mxu0 %v334
    %3341 = vmatprep.subr.mxu0 0.0
    %3342 = vmatpush2.msra.mxu0 %v333
    %3343 = vmatprep.subr.mxu0 0.0
    %3344 = vmatpush2.msra.mxu0 %v332
    %3345 = vmatprep.subr.mxu0 0.0
    %3346 = vmatpush2.msra.mxu0 %v331
    %3347 = vmatprep.subr.mxu0 0.0
    %3348 = vmatpush2.msra.mxu0 %v330
    %3349 = vmatprep.mubr.f32.mxu0 %v2674
    %3350 = vmatmul.mubr.f32.gmra.mxu0 %v2666
    %v3351 = vpop.f32.mrf.mxu0
    %v3352 = vadd.f32 %v3282, %v3351
    %v3353 = vpop.f32.mrf.mxu0
    %3354 = vdwg.mxu0
    %3355 = vmatprep.subr.mxu0 0.0
    %3356 = vmatpush1.msra.mxu0 %v361
    %3357 = vmatprep.subr.mxu0 0.0
    %3358 = vmatpush1.msra.mxu0 %v360
    %3359 = vmatprep.subr.mxu0 0.0
    %3360 = vmatpush1.msra.mxu0 %v359
    %3361 = vmatprep.subr.mxu0 0.0
    %3362 = vmatpush1.msra.mxu0 %v358
    %3363 = vmatprep.subr.mxu0 0.0
    %3364 = vmatpush1.msra.mxu0 %v357
    %3365 = vmatprep.subr.mxu0 0.0
    %3366 = vmatpush1.msra.mxu0 %v356
    %3367 = vmatprep.subr.mxu0 0.0
    %3368 = vmatpush1.msra.mxu0 %v355
    %3369 = vmatprep.subr.mxu0 0.0
    %3370 = vmatpush1.msra.mxu0 %v354
    %3371 = vmatprep.subr.mxu0 0.0
    %3372 = vmatpush1.msra.mxu0 %v353
    %3373 = vmatprep.subr.mxu0 0.0
    %3374 = vmatpush1.msra.mxu0 %v352
    %3375 = vmatprep.subr.mxu0 0.0
    %3376 = vmatpush1.msra.mxu0 %v351
    %3377 = vmatprep.subr.mxu0 0.0
    %3378 = vmatpush1.msra.mxu0 %v350
    %3379 = vmatprep.subr.mxu0 0.0
    %3380 = vmatpush1.msra.mxu0 %v349
    %3381 = vmatprep.subr.mxu0 0.0
    %3382 = vmatpush1.msra.mxu0 %v348
    %3383 = vmatprep.subr.mxu0 0.0
    %3384 = vmatpush1.msra.mxu0 %v347
    %3385 = vmatprep.subr.mxu0 0.0
    %3386 = vmatpush1.msra.mxu0 %v346
    %3387 = vmatprep.subr.mxu0 0.0
    %3388 = vmatpush2.msra.mxu0 %v377
    %3389 = vmatprep.subr.mxu0 0.0
    %3390 = vmatpush2.msra.mxu0 %v376
    %3391 = vmatprep.subr.mxu0 0.0
    %3392 = vmatpush2.msra.mxu0 %v375
    %3393 = vmatprep.subr.mxu0 0.0
    %3394 = vmatpush2.msra.mxu0 %v374
    %3395 = vmatprep.subr.mxu0 0.0
    %3396 = vmatpush2.msra.mxu0 %v373
    %3397 = vmatprep.subr.mxu0 0.0
    %3398 = vmatpush2.msra.mxu0 %v372
    %3399 = vmatprep.subr.mxu0 0.0
    %3400 = vmatpush2.msra.mxu0 %v371
    %3401 = vmatprep.subr.mxu0 0.0
    %3402 = vmatpush2.msra.mxu0 %v370
    %3403 = vmatprep.subr.mxu0 0.0
    %3404 = vmatpush2.msra.mxu0 %v369
    %3405 = vmatprep.subr.mxu0 0.0
    %3406 = vmatpush2.msra.mxu0 %v368
    %3407 = vmatprep.subr.mxu0 0.0
    %3408 = vmatpush2.msra.mxu0 %v367
    %3409 = vmatprep.subr.mxu0 0.0
    %3410 = vmatpush2.msra.mxu0 %v366
    %3411 = vmatprep.subr.mxu0 0.0
    %3412 = vmatpush2.msra.mxu0 %v365
    %3413 = vmatprep.subr.mxu0 0.0
    %3414 = vmatpush2.msra.mxu0 %v364
    %3415 = vmatprep.subr.mxu0 0.0
    %3416 = vmatpush2.msra.mxu0 %v363
    %3417 = vmatprep.subr.mxu0 0.0
    %3418 = vmatpush2.msra.mxu0 %v362
    %3419 = vmatprep.mubr.f32.mxu0 %v2675
    %3420 = vmatmul.mubr.f32.gmra.mxu0 %v2673
    %v3421 = vpop.f32.mrf.mxu0
    %v3422 = vadd.f32 %v3352, %v3421
    %v3423 = vpop.f32.mrf.mxu0
    %3424 = vdwg.mxu0
    %3425 = vmatprep.subr.mxu0 0.0
    %3426 = vmatpush1.msra.mxu0 %v393
    %3427 = vmatprep.subr.mxu0 0.0
    %3428 = vmatpush1.msra.mxu0 %v392
    %3429 = vmatprep.subr.mxu0 0.0
    %3430 = vmatpush1.msra.mxu0 %v391
    %3431 = vmatprep.subr.mxu0 0.0
    %3432 = vmatpush1.msra.mxu0 %v390
    %3433 = vmatprep.subr.mxu0 0.0
    %3434 = vmatpush1.msra.mxu0 %v389
    %3435 = vmatprep.subr.mxu0 0.0
    %3436 = vmatpush1.msra.mxu0 %v388
    %3437 = vmatprep.subr.mxu0 0.0
    %3438 = vmatpush1.msra.mxu0 %v387
    %3439 = vmatprep.subr.mxu0 0.0
    %3440 = vmatpush1.msra.mxu0 %v386
    %3441 = vmatprep.subr.mxu0 0.0
    %3442 = vmatpush1.msra.mxu0 %v385
    %3443 = vmatprep.subr.mxu0 0.0
    %3444 = vmatpush1.msra.mxu0 %v384
    %3445 = vmatprep.subr.mxu0 0.0
    %3446 = vmatpush1.msra.mxu0 %v383
    %3447 = vmatprep.subr.mxu0 0.0
    %3448 = vmatpush1.msra.mxu0 %v382
    %3449 = vmatprep.subr.mxu0 0.0
    %3450 = vmatpush1.msra.mxu0 %v381
    %3451 = vmatprep.subr.mxu0 0.0
    %3452 = vmatpush1.msra.mxu0 %v380
    %3453 = vmatprep.subr.mxu0 0.0
    %3454 = vmatpush1.msra.mxu0 %v379
    %3455 = vmatprep.subr.mxu0 0.0
    %3456 = vmatpush1.msra.mxu0 %v378
    %3457 = vmatprep.subr.mxu0 0.0
    %3458 = vmatpush2.msra.mxu0 %v409
    %3459 = vmatprep.subr.mxu0 0.0
    %3460 = vmatpush2.msra.mxu0 %v408
    %3461 = vmatprep.subr.mxu0 0.0
    %3462 = vmatpush2.msra.mxu0 %v407
    %3463 = vmatprep.subr.mxu0 0.0
    %3464 = vmatpush2.msra.mxu0 %v406
    %3465 = vmatprep.subr.mxu0 0.0
    %3466 = vmatpush2.msra.mxu0 %v405
    %3467 = vmatprep.subr.mxu0 0.0
    %3468 = vmatpush2.msra.mxu0 %v404
    %3469 = vmatprep.subr.mxu0 0.0
    %3470 = vmatpush2.msra.mxu0 %v403
    %3471 = vmatprep.subr.mxu0 0.0
    %3472 = vmatpush2.msra.mxu0 %v402
    %3473 = vmatprep.subr.mxu0 0.0
    %3474 = vmatpush2.msra.mxu0 %v401
    %3475 = vmatprep.subr.mxu0 0.0
    %3476 = vmatpush2.msra.mxu0 %v400
    %3477 = vmatprep.subr.mxu0 0.0
    %3478 = vmatpush2.msra.mxu0 %v399
    %3479 = vmatprep.subr.mxu0 0.0
    %3480 = vmatpush2.msra.mxu0 %v398
    %3481 = vmatprep.subr.mxu0 0.0
    %3482 = vmatpush2.msra.mxu0 %v397
    %3483 = vmatprep.subr.mxu0 0.0
    %3484 = vmatpush2.msra.mxu0 %v396
    %3485 = vmatprep.subr.mxu0 0.0
    %3486 = vmatpush2.msra.mxu0 %v395
    %3487 = vmatprep.subr.mxu0 0.0
    %3488 = vmatpush2.msra.mxu0 %v394
    %3489 = vmatprep.mubr.f32.mxu0 %v2691
    %3490 = vmatmul.mubr.f32.gmra.mxu0 %v2683
    %v3491 = vpop.f32.mrf.mxu0
    %v3492 = vadd.f32 %v3422, %v3491
    %v3493 = vpop.f32.mrf.mxu0
    %3494 = vdwg.mxu0
    %3495 = vmatprep.subr.mxu0 0.0
    %3496 = vmatpush1.msra.mxu0 %v425
    %3497 = vmatprep.subr.mxu0 0.0
    %3498 = vmatpush1.msra.mxu0 %v424
    %3499 = vmatprep.subr.mxu0 0.0
    %3500 = vmatpush1.msra.mxu0 %v423
    %3501 = vmatprep.subr.mxu0 0.0
    %3502 = vmatpush1.msra.mxu0 %v422
    %3503 = vmatprep.subr.mxu0 0.0
    %3504 = vmatpush1.msra.mxu0 %v421
    %3505 = vmatprep.subr.mxu0 0.0
    %3506 = vmatpush1.msra.mxu0 %v420
    %3507 = vmatprep.subr.mxu0 0.0
    %3508 = vmatpush1.msra.mxu0 %v419
    %3509 = vmatprep.subr.mxu0 0.0
    %3510 = vmatpush1.msra.mxu0 %v418
    %3511 = vmatprep.subr.mxu0 0.0
    %3512 = vmatpush1.msra.mxu0 %v417
    %3513 = vmatprep.subr.mxu0 0.0
    %3514 = vmatpush1.msra.mxu0 %v416
    %3515 = vmatprep.subr.mxu0 0.0
    %3516 = vmatpush1.msra.mxu0 %v415
    %3517 = vmatprep.subr.mxu0 0.0
    %3518 = vmatpush1.msra.mxu0 %v414
    %3519 = vmatprep.subr.mxu0 0.0
    %3520 = vmatpush1.msra.mxu0 %v413
    %3521 = vmatprep.subr.mxu0 0.0
    %3522 = vmatpush1.msra.mxu0 %v412
    %3523 = vmatprep.subr.mxu0 0.0
    %3524 = vmatpush1.msra.mxu0 %v411
    %3525 = vmatprep.subr.mxu0 0.0
    %3526 = vmatpush1.msra.mxu0 %v410
    %3527 = vmatprep.subr.mxu0 0.0
    %3528 = vmatpush2.msra.mxu0 %v441
    %3529 = vmatprep.subr.mxu0 0.0
    %3530 = vmatpush2.msra.mxu0 %v440
    %3531 = vmatprep.subr.mxu0 0.0
    %3532 = vmatpush2.msra.mxu0 %v439
    %3533 = vmatprep.subr.mxu0 0.0
    %3534 = vmatpush2.msra.mxu0 %v438
    %3535 = vmatprep.subr.mxu0 0.0
    %3536 = vmatpush2.msra.mxu0 %v437
    %3537 = vmatprep.subr.mxu0 0.0
    %3538 = vmatpush2.msra.mxu0 %v436
    %3539 = vmatprep.subr.mxu0 0.0
    %3540 = vmatpush2.msra.mxu0 %v435
    %3541 = vmatprep.subr.mxu0 0.0
    %3542 = vmatpush2.msra.mxu0 %v434
    %3543 = vmatprep.subr.mxu0 0.0
    %3544 = vmatpush2.msra.mxu0 %v433
    %3545 = vmatprep.subr.mxu0 0.0
    %3546 = vmatpush2.msra.mxu0 %v432
    %3547 = vmatprep.subr.mxu0 0.0
    %3548 = vmatpush2.msra.mxu0 %v431
    %3549 = vmatprep.subr.mxu0 0.0
    %3550 = vmatpush2.msra.mxu0 %v430
    %3551 = vmatprep.subr.mxu0 0.0
    %3552 = vmatpush2.msra.mxu0 %v429
    %3553 = vmatprep.subr.mxu0 0.0
    %3554 = vmatpush2.msra.mxu0 %v428
    %3555 = vmatprep.subr.mxu0 0.0
    %3556 = vmatpush2.msra.mxu0 %v427
    %3557 = vmatprep.subr.mxu0 0.0
    %3558 = vmatpush2.msra.mxu0 %v426
    %3559 = vmatprep.mubr.f32.mxu0 %v2692
    %3560 = vmatmul.mubr.f32.gmra.mxu0 %v2690
    %v3561 = vpop.f32.mrf.mxu0
    %v3562 = vadd.f32 %v3492, %v3561
    %v3563 = vpop.f32.mrf.mxu0
    %3564 = vdwg.mxu0
    %3565 = vmatprep.subr.mxu0 0.0
    %3566 = vmatpush1.msra.mxu0 %v457
    %3567 = vmatprep.subr.mxu0 0.0
    %3568 = vmatpush1.msra.mxu0 %v456
    %3569 = vmatprep.subr.mxu0 0.0
    %3570 = vmatpush1.msra.mxu0 %v455
    %3571 = vmatprep.subr.mxu0 0.0
    %3572 = vmatpush1.msra.mxu0 %v454
    %3573 = vmatprep.subr.mxu0 0.0
    %3574 = vmatpush1.msra.mxu0 %v453
    %3575 = vmatprep.subr.mxu0 0.0
    %3576 = vmatpush1.msra.mxu0 %v452
    %3577 = vmatprep.subr.mxu0 0.0
    %3578 = vmatpush1.msra.mxu0 %v451
    %3579 = vmatprep.subr.mxu0 0.0
    %3580 = vmatpush1.msra.mxu0 %v450
    %3581 = vmatprep.subr.mxu0 0.0
    %3582 = vmatpush1.msra.mxu0 %v449
    %3583 = vmatprep.subr.mxu0 0.0
    %3584 = vmatpush1.msra.mxu0 %v448
    %3585 = vmatprep.subr.mxu0 0.0
    %3586 = vmatpush1.msra.mxu0 %v447
    %3587 = vmatprep.subr.mxu0 0.0
    %3588 = vmatpush1.msra.mxu0 %v446
    %3589 = vmatprep.subr.mxu0 0.0
    %3590 = vmatpush1.msra.mxu0 %v445
    %3591 = vmatprep.subr.mxu0 0.0
    %3592 = vmatpush1.msra.mxu0 %v444
    %3593 = vmatprep.subr.mxu0 0.0
    %3594 = vmatpush1.msra.mxu0 %v443
    %3595 = vmatprep.subr.mxu0 0.0
    %3596 = vmatpush1.msra.mxu0 %v442
    %3597 = vmatprep.subr.mxu0 0.0
    %3598 = vmatpush2.msra.mxu0 0.0
    %3599 = vmatprep.subr.mxu0 0.0
    %3600 = vmatpush2.msra.mxu0 0.0
    %3601 = vmatprep.subr.mxu0 0.0
    %3602 = vmatpush2.msra.mxu0 0.0
    %3603 = vmatprep.subr.mxu0 0.0
    %3604 = vmatpush2.msra.mxu0 0.0
    %3605 = vmatprep.subr.mxu0 0.0
    %3606 = vmatpush2.msra.mxu0 0.0
    %3607 = vmatprep.subr.mxu0 0.0
    %3608 = vmatpush2.msra.mxu0 0.0
    %3609 = vmatprep.subr.mxu0 0.0
    %3610 = vmatpush2.msra.mxu0 0.0
    %3611 = vmatprep.subr.mxu0 0.0
    %3612 = vmatpush2.msra.mxu0 0.0
    %3613 = vmatprep.subr.mxu0 0.0
    %3614 = vmatpush2.msra.mxu0 0.0
    %3615 = vmatprep.subr.mxu0 0.0
    %3616 = vmatpush2.msra.mxu0 0.0
    %3617 = vmatprep.subr.mxu0 0.0
    %3618 = vmatpush2.msra.mxu0 0.0
    %3619 = vmatprep.subr.mxu0 0.0
    %3620 = vmatpush2.msra.mxu0 0.0
    %3621 = vmatprep.subr.mxu0 0.0
    %3622 = vmatpush2.msra.mxu0 0.0
    %3623 = vmatprep.subr.mxu0 0.0
    %3624 = vmatpush2.msra.mxu0 0.0
    %3625 = vmatprep.subr.mxu0 0.0
    %3626 = vmatpush2.msra.mxu0 0.0
    %3627 = vmatprep.subr.mxu0 0.0
    %3628 = vmatpush2.msra.mxu0 0.0
    %3629 = vmatprep.mubr.f32.mxu0 0.0
    %3630 = vmatmul.mubr.f32.gmra.mxu0 %v2699
    %v3631 = vpop.f32.mrf.mxu0
    %v3632 = vadd.f32 %v3562, %v3631
    %v3633 = vpop.f32.mrf.mxu0
    %3634 = vdwg.mxu0
    %v3635 = vmax.f32 %v3632, 0.0
    %v3636 = vld [vmem:[%s3] sm:$0xff]
    %v3637 = vld [vmem:[%s3 + $0x8] sm:$0xff]
    %v3638 = vld [vmem:[%s3 + $0x10] sm:$0xff]
    %v3639 = vld [vmem:[%s3 + $0x18] sm:$0xff]
    %v3640 = vld [vmem:[%s3 + $0x20] sm:$0xff]
    %v3641 = vld [vmem:[%s3 + $0x28] sm:$0xff]
    %v3642 = vld [vmem:[%s3 + $0x30] sm:$0x3]
    %v3650 = vcombine.high %v3636, %v3636
    %v3652 = vunpack.c.l.s4 1983009808
    %v3653 = vunpack.c.0.s8 %v3652
    %v3654 = vlaneseq
    %v3655 = vshrl.u32 %v3654, 7
    %v3656 = vsub.s32 %v3653, %v3655
    %v3657 = vrot.slane %v3636, %v3656
    %v3659 = vunpack.c.l.s4 1983009808
    %v3660 = vunpack.c.0.s8 %v3659
    %v3661 = vlaneseq
    %v3662 = vshrl.u32 %v3661, 7
    %v3663 = vsub.s32 %v3660, %v3662
    %v3664 = vrot.slane %v3650, %v3663
    %v3665 = vcombine.high %v3657, %v3657
    %v3666 = vcombine.high %v3664, %v3664
    %v3667 = vcombine.high %v3637, %v3637
    %v3669 = vunpack.c.l.s4 1983009808
    %v3670 = vunpack.c.0.s8 %v3669
    %v3671 = vlaneseq
    %v3672 = vshrl.u32 %v3671, 7
    %v3673 = vsub.s32 %v3670, %v3672
    %v3674 = vrot.slane %v3637, %v3673
    %v3676 = vunpack.c.l.s4 1983009808
    %v3677 = vunpack.c.0.s8 %v3676
    %v3678 = vlaneseq
    %v3679 = vshrl.u32 %v3678, 7
    %v3680 = vsub.s32 %v3677, %v3679
    %v3681 = vrot.slane %v3667, %v3680
    %v3682 = vcombine.high %v3674, %v3674
    %v3683 = vcombine.high %v3681, %v3681
    %v3684 = vcombine.high %v3638, %v3638
    %v3686 = vunpack.c.l.s4 1983009808
    %v3687 = vunpack.c.0.s8 %v3686
    %v3688 = vlaneseq
    %v3689 = vshrl.u32 %v3688, 7
    %v3690 = vsub.s32 %v3687, %v3689
    %v3691 = vrot.slane %v3638, %v3690
    %v3693 = vunpack.c.l.s4 1983009808
    %v3694 = vunpack.c.0.s8 %v3693
    %v3695 = vlaneseq
    %v3696 = vshrl.u32 %v3695, 7
    %v3697 = vsub.s32 %v3694, %v3696
    %v3698 = vrot.slane %v3684, %v3697
    %v3699 = vcombine.high %v3691, %v3691
    %v3700 = vcombine.high %v3698, %v3698
    %v3701 = vcombine.high %v3639, %v3639
    %v3703 = vunpack.c.l.s4 1983009808
    %v3704 = vunpack.c.0.s8 %v3703
    %v3705 = vlaneseq
    %v3706 = vshrl.u32 %v3705, 7
    %v3707 = vsub.s32 %v3704, %v3706
    %v3708 = vrot.slane %v3639, %v3707
    %v3710 = vunpack.c.l.s4 1983009808
    %v3711 = vunpack.c.0.s8 %v3710
    %v3712 = vlaneseq
    %v3713 = vshrl.u32 %v3712, 7
    %v3714 = vsub.s32 %v3711, %v3713
    %v3715 = vrot.slane %v3701, %v3714
    %v3716 = vcombine.high %v3708, %v3708
    %v3717 = vcombine.high %v3715, %v3715
    %v3718 = vcombine.high %v3640, %v3640
    %v3720 = vunpack.c.l.s4 1983009808
    %v3721 = vunpack.c.0.s8 %v3720
    %v3722 = vlaneseq
    %v3723 = vshrl.u32 %v3722, 7
    %v3724 = vsub.s32 %v3721, %v3723
    %v3725 = vrot.slane %v3640, %v3724
    %v3727 = vunpack.c.l.s4 1983009808
    %v3728 = vunpack.c.0.s8 %v3727
    %v3729 = vlaneseq
    %v3730 = vshrl.u32 %v3729, 7
    %v3731 = vsub.s32 %v3728, %v3730
    %v3732 = vrot.slane %v3718, %v3731
    %v3733 = vcombine.high %v3725, %v3725
    %v3734 = vcombine.high %v3732, %v3732
    %v3735 = vcombine.high %v3641, %v3641
    %v3737 = vunpack.c.l.s4 1983009808
    %v3738 = vunpack.c.0.s8 %v3737
    %v3739 = vlaneseq
    %v3740 = vshrl.u32 %v3739, 7
    %v3741 = vsub.s32 %v3738, %v3740
    %v3742 = vrot.slane %v3641, %v3741
    %v3744 = vunpack.c.l.s4 1983009808
    %v3745 = vunpack.c.0.s8 %v3744
    %v3746 = vlaneseq
    %v3747 = vshrl.u32 %v3746, 7
    %v3748 = vsub.s32 %v3745, %v3747
    %v3749 = vrot.slane %v3735, %v3748
    %v3750 = vcombine.high %v3742, %v3742
    %v3751 = vcombine.high %v3749, %v3749
    %v3753 = vunpack.c.l.s4 1983009808
    %v3754 = vunpack.c.0.s8 %v3753
    %v3755 = vlaneseq
    %v3756 = vshrl.u32 %v3755, 7
    %v3757 = vsub.s32 %v3754, %v3756
    %v3758 = vrot.slane %v3642, %v3757
    %3784 = vmatprep.subr.mxu0 0.0
    %3785 = vmatpush1.msra.mxu0 %v73
    %3786 = vmatprep.subr.mxu0 0.0
    %3787 = vmatpush1.msra.mxu0 %v72
    %3788 = vmatprep.subr.mxu0 0.0
    %3789 = vmatpush1.msra.mxu0 %v71
    %3790 = vmatprep.subr.mxu0 0.0
    %3791 = vmatpush1.msra.mxu0 %v70
    %3792 = vmatprep.subr.mxu0 0.0
    %3793 = vmatpush1.msra.mxu0 %v69
    %3794 = vmatprep.subr.mxu0 0.0
    %3795 = vmatpush1.msra.mxu0 %v68
    %3796 = vmatprep.subr.mxu0 0.0
    %3797 = vmatpush1.msra.mxu0 %v67
    %3798 = vmatprep.subr.mxu0 0.0
    %3799 = vmatpush1.msra.mxu0 %v66
    %3800 = vmatprep.subr.mxu0 0.0
    %3801 = vmatpush1.msra.mxu0 %v65
    %3802 = vmatprep.subr.mxu0 0.0
    %3803 = vmatpush1.msra.mxu0 %v64
    %3804 = vmatprep.subr.mxu0 0.0
    %3805 = vmatpush1.msra.mxu0 %v63
    %3806 = vmatprep.subr.mxu0 0.0
    %3807 = vmatpush1.msra.mxu0 %v62
    %3808 = vmatprep.subr.mxu0 0.0
    %3809 = vmatpush1.msra.mxu0 %v61
    %3810 = vmatprep.subr.mxu0 0.0
    %3811 = vmatpush1.msra.mxu0 %v60
    %3812 = vmatprep.subr.mxu0 0.0
    %3813 = vmatpush1.msra.mxu0 %v59
    %3814 = vmatprep.subr.mxu0 0.0
    %3815 = vmatpush1.msra.mxu0 %v58
    %3816 = vmatprep.subr.mxu0 0.0
    %3817 = vmatpush2.msra.mxu0 %v89
    %3818 = vmatprep.subr.mxu0 0.0
    %3819 = vmatpush2.msra.mxu0 %v88
    %3820 = vmatprep.subr.mxu0 0.0
    %3821 = vmatpush2.msra.mxu0 %v87
    %3822 = vmatprep.subr.mxu0 0.0
    %3823 = vmatpush2.msra.mxu0 %v86
    %3824 = vmatprep.subr.mxu0 0.0
    %3825 = vmatpush2.msra.mxu0 %v85
    %3826 = vmatprep.subr.mxu0 0.0
    %3827 = vmatpush2.msra.mxu0 %v84
    %3828 = vmatprep.subr.mxu0 0.0
    %3829 = vmatpush2.msra.mxu0 %v83
    %3830 = vmatprep.subr.mxu0 0.0
    %3831 = vmatpush2.msra.mxu0 %v82
    %3832 = vmatprep.subr.mxu0 0.0
    %3833 = vmatpush2.msra.mxu0 %v81
    %3834 = vmatprep.subr.mxu0 0.0
    %3835 = vmatpush2.msra.mxu0 %v80
    %3836 = vmatprep.subr.mxu0 0.0
    %3837 = vmatpush2.msra.mxu0 %v79
    %3838 = vmatprep.subr.mxu0 0.0
    %3839 = vmatpush2.msra.mxu0 %v78
    %3840 = vmatprep.subr.mxu0 0.0
    %3841 = vmatpush2.msra.mxu0 %v77
    %3842 = vmatprep.subr.mxu0 0.0
    %3843 = vmatpush2.msra.mxu0 %v76
    %3844 = vmatprep.subr.mxu0 0.0
    %3845 = vmatpush2.msra.mxu0 %v75
    %3846 = vmatprep.subr.mxu0 0.0
    %3847 = vmatpush2.msra.mxu0 %v74
    %3848 = vmatprep.mubr.f32.mxu0 %v3665
    %3849 = vmatmul.mubr.f32.gmra.mxu0 %v3657
    %v3850 = vpop.f32.mrf.mxu0
    %v3851 = vadd.f32 %v463, %v3850
    %v3852 = vpop.f32.mrf.mxu0
    %3853 = vdwg.mxu0
    %3854 = vmatprep.subr.mxu0 0.0
    %3855 = vmatpush1.msra.mxu0 %v105
    %3856 = vmatprep.subr.mxu0 0.0
    %3857 = vmatpush1.msra.mxu0 %v104
    %3858 = vmatprep.subr.mxu0 0.0
    %3859 = vmatpush1.msra.mxu0 %v103
    %3860 = vmatprep.subr.mxu0 0.0
    %3861 = vmatpush1.msra.mxu0 %v102
    %3862 = vmatprep.subr.mxu0 0.0
    %3863 = vmatpush1.msra.mxu0 %v101
    %3864 = vmatprep.subr.mxu0 0.0
    %3865 = vmatpush1.msra.mxu0 %v100
    %3866 = vmatprep.subr.mxu0 0.0
    %3867 = vmatpush1.msra.mxu0 %v99
    %3868 = vmatprep.subr.mxu0 0.0
    %3869 = vmatpush1.msra.mxu0 %v98
    %3870 = vmatprep.subr.mxu0 0.0
    %3871 = vmatpush1.msra.mxu0 %v97
    %3872 = vmatprep.subr.mxu0 0.0
    %3873 = vmatpush1.msra.mxu0 %v96
    %3874 = vmatprep.subr.mxu0 0.0
    %3875 = vmatpush1.msra.mxu0 %v95
    %3876 = vmatprep.subr.mxu0 0.0
    %3877 = vmatpush1.msra.mxu0 %v94
    %3878 = vmatprep.subr.mxu0 0.0
    %3879 = vmatpush1.msra.mxu0 %v93
    %3880 = vmatprep.subr.mxu0 0.0
    %3881 = vmatpush1.msra.mxu0 %v92
    %3882 = vmatprep.subr.mxu0 0.0
    %3883 = vmatpush1.msra.mxu0 %v91
    %3884 = vmatprep.subr.mxu0 0.0
    %3885 = vmatpush1.msra.mxu0 %v90
    %3886 = vmatprep.subr.mxu0 0.0
    %3887 = vmatpush2.msra.mxu0 %v121
    %3888 = vmatprep.subr.mxu0 0.0
    %3889 = vmatpush2.msra.mxu0 %v120
    %3890 = vmatprep.subr.mxu0 0.0
    %3891 = vmatpush2.msra.mxu0 %v119
    %3892 = vmatprep.subr.mxu0 0.0
    %3893 = vmatpush2.msra.mxu0 %v118
    %3894 = vmatprep.subr.mxu0 0.0
    %3895 = vmatpush2.msra.mxu0 %v117
    %3896 = vmatprep.subr.mxu0 0.0
    %3897 = vmatpush2.msra.mxu0 %v116
    %3898 = vmatprep.subr.mxu0 0.0
    %3899 = vmatpush2.msra.mxu0 %v115
    %3900 = vmatprep.subr.mxu0 0.0
    %3901 = vmatpush2.msra.mxu0 %v114
    %3902 = vmatprep.subr.mxu0 0.0
    %3903 = vmatpush2.msra.mxu0 %v113
    %3904 = vmatprep.subr.mxu0 0.0
    %3905 = vmatpush2.msra.mxu0 %v112
    %3906 = vmatprep.subr.mxu0 0.0
    %3907 = vmatpush2.msra.mxu0 %v111
    %3908 = vmatprep.subr.mxu0 0.0
    %3909 = vmatpush2.msra.mxu0 %v110
    %3910 = vmatprep.subr.mxu0 0.0
    %3911 = vmatpush2.msra.mxu0 %v109
    %3912 = vmatprep.subr.mxu0 0.0
    %3913 = vmatpush2.msra.mxu0 %v108
    %3914 = vmatprep.subr.mxu0 0.0
    %3915 = vmatpush2.msra.mxu0 %v107
    %3916 = vmatprep.subr.mxu0 0.0
    %3917 = vmatpush2.msra.mxu0 %v106
    %3918 = vmatprep.mubr.f32.mxu0 %v3666
    %3919 = vmatmul.mubr.f32.gmra.mxu0 %v3664
    %v3920 = vpop.f32.mrf.mxu0
    %v3921 = vadd.f32 %v3851, %v3920
    %v3922 = vpop.f32.mrf.mxu0
    %3923 = vdwg.mxu0
    %3924 = vmatprep.subr.mxu0 0.0
    %3925 = vmatpush1.msra.mxu0 %v137
    %3926 = vmatprep.subr.mxu0 0.0
    %3927 = vmatpush1.msra.mxu0 %v136
    %3928 = vmatprep.subr.mxu0 0.0
    %3929 = vmatpush1.msra.mxu0 %v135
    %3930 = vmatprep.subr.mxu0 0.0
    %3931 = vmatpush1.msra.mxu0 %v134
    %3932 = vmatprep.subr.mxu0 0.0
    %3933 = vmatpush1.msra.mxu0 %v133
    %3934 = vmatprep.subr.mxu0 0.0
    %3935 = vmatpush1.msra.mxu0 %v132
    %3936 = vmatprep.subr.mxu0 0.0
    %3937 = vmatpush1.msra.mxu0 %v131
    %3938 = vmatprep.subr.mxu0 0.0
    %3939 = vmatpush1.msra.mxu0 %v130
    %3940 = vmatprep.subr.mxu0 0.0
    %3941 = vmatpush1.msra.mxu0 %v129
    %3942 = vmatprep.subr.mxu0 0.0
    %3943 = vmatpush1.msra.mxu0 %v128
    %3944 = vmatprep.subr.mxu0 0.0
    %3945 = vmatpush1.msra.mxu0 %v127
    %3946 = vmatprep.subr.mxu0 0.0
    %3947 = vmatpush1.msra.mxu0 %v126
    %3948 = vmatprep.subr.mxu0 0.0
    %3949 = vmatpush1.msra.mxu0 %v125
    %3950 = vmatprep.subr.mxu0 0.0
    %3951 = vmatpush1.msra.mxu0 %v124
    %3952 = vmatprep.subr.mxu0 0.0
    %3953 = vmatpush1.msra.mxu0 %v123
    %3954 = vmatprep.subr.mxu0 0.0
    %3955 = vmatpush1.msra.mxu0 %v122
    %3956 = vmatprep.subr.mxu0 0.0
    %3957 = vmatpush2.msra.mxu0 %v153
    %3958 = vmatprep.subr.mxu0 0.0
    %3959 = vmatpush2.msra.mxu0 %v152
    %3960 = vmatprep.subr.mxu0 0.0
    %3961 = vmatpush2.msra.mxu0 %v151
    %3962 = vmatprep.subr.mxu0 0.0
    %3963 = vmatpush2.msra.mxu0 %v150
    %3964 = vmatprep.subr.mxu0 0.0
    %3965 = vmatpush2.msra.mxu0 %v149
    %3966 = vmatprep.subr.mxu0 0.0
    %3967 = vmatpush2.msra.mxu0 %v148
    %3968 = vmatprep.subr.mxu0 0.0
    %3969 = vmatpush2.msra.mxu0 %v147
    %3970 = vmatprep.subr.mxu0 0.0
    %3971 = vmatpush2.msra.mxu0 %v146
    %3972 = vmatprep.subr.mxu0 0.0
    %3973 = vmatpush2.msra.mxu0 %v145
    %3974 = vmatprep.subr.mxu0 0.0
    %3975 = vmatpush2.msra.mxu0 %v144
    %3976 = vmatprep.subr.mxu0 0.0
    %3977 = vmatpush2.msra.mxu0 %v143
    %3978 = vmatprep.subr.mxu0 0.0
    %3979 = vmatpush2.msra.mxu0 %v142
    %3980 = vmatprep.subr.mxu0 0.0
    %3981 = vmatpush2.msra.mxu0 %v141
    %3982 = vmatprep.subr.mxu0 0.0
    %3983 = vmatpush2.msra.mxu0 %v140
    %3984 = vmatprep.subr.mxu0 0.0
    %3985 = vmatpush2.msra.mxu0 %v139
    %3986 = vmatprep.subr.mxu0 0.0
    %3987 = vmatpush2.msra.mxu0 %v138
    %3988 = vmatprep.mubr.f32.mxu0 %v3682
    %3989 = vmatmul.mubr.f32.gmra.mxu0 %v3674
    %v3990 = vpop.f32.mrf.mxu0
    %v3991 = vadd.f32 %v3921, %v3990
    %v3992 = vpop.f32.mrf.mxu0
    %3993 = vdwg.mxu0
    %3994 = vmatprep.subr.mxu0 0.0
    %3995 = vmatpush1.msra.mxu0 %v169
    %3996 = vmatprep.subr.mxu0 0.0
    %3997 = vmatpush1.msra.mxu0 %v168
    %3998 = vmatprep.subr.mxu0 0.0
    %3999 = vmatpush1.msra.mxu0 %v167
    %4000 = vmatprep.subr.mxu0 0.0
    %4001 = vmatpush1.msra.mxu0 %v166
    %4002 = vmatprep.subr.mxu0 0.0
    %4003 = vmatpush1.msra.mxu0 %v165
    %4004 = vmatprep.subr.mxu0 0.0
    %4005 = vmatpush1.msra.mxu0 %v164
    %4006 = vmatprep.subr.mxu0 0.0
    %4007 = vmatpush1.msra.mxu0 %v163
    %4008 = vmatprep.subr.mxu0 0.0
    %4009 = vmatpush1.msra.mxu0 %v162
    %4010 = vmatprep.subr.mxu0 0.0
    %4011 = vmatpush1.msra.mxu0 %v161
    %4012 = vmatprep.subr.mxu0 0.0
    %4013 = vmatpush1.msra.mxu0 %v160
    %4014 = vmatprep.subr.mxu0 0.0
    %4015 = vmatpush1.msra.mxu0 %v159
    %4016 = vmatprep.subr.mxu0 0.0
    %4017 = vmatpush1.msra.mxu0 %v158
    %4018 = vmatprep.subr.mxu0 0.0
    %4019 = vmatpush1.msra.mxu0 %v157
    %4020 = vmatprep.subr.mxu0 0.0
    %4021 = vmatpush1.msra.mxu0 %v156
    %4022 = vmatprep.subr.mxu0 0.0
    %4023 = vmatpush1.msra.mxu0 %v155
    %4024 = vmatprep.subr.mxu0 0.0
    %4025 = vmatpush1.msra.mxu0 %v154
    %4026 = vmatprep.subr.mxu0 0.0
    %4027 = vmatpush2.msra.mxu0 %v185
    %4028 = vmatprep.subr.mxu0 0.0
    %4029 = vmatpush2.msra.mxu0 %v184
    %4030 = vmatprep.subr.mxu0 0.0
    %4031 = vmatpush2.msra.mxu0 %v183
    %4032 = vmatprep.subr.mxu0 0.0
    %4033 = vmatpush2.msra.mxu0 %v182
    %4034 = vmatprep.subr.mxu0 0.0
    %4035 = vmatpush2.msra.mxu0 %v181
    %4036 = vmatprep.subr.mxu0 0.0
    %4037 = vmatpush2.msra.mxu0 %v180
    %4038 = vmatprep.subr.mxu0 0.0
    %4039 = vmatpush2.msra.mxu0 %v179
    %4040 = vmatprep.subr.mxu0 0.0
    %4041 = vmatpush2.msra.mxu0 %v178
    %4042 = vmatprep.subr.mxu0 0.0
    %4043 = vmatpush2.msra.mxu0 %v177
    %4044 = vmatprep.subr.mxu0 0.0
    %4045 = vmatpush2.msra.mxu0 %v176
    %4046 = vmatprep.subr.mxu0 0.0
    %4047 = vmatpush2.msra.mxu0 %v175
    %4048 = vmatprep.subr.mxu0 0.0
    %4049 = vmatpush2.msra.mxu0 %v174
    %4050 = vmatprep.subr.mxu0 0.0
    %4051 = vmatpush2.msra.mxu0 %v173
    %4052 = vmatprep.subr.mxu0 0.0
    %4053 = vmatpush2.msra.mxu0 %v172
    %4054 = vmatprep.subr.mxu0 0.0
    %4055 = vmatpush2.msra.mxu0 %v171
    %4056 = vmatprep.subr.mxu0 0.0
    %4057 = vmatpush2.msra.mxu0 %v170
    %4058 = vmatprep.mubr.f32.mxu0 %v3683
    %4059 = vmatmul.mubr.f32.gmra.mxu0 %v3681
    %v4060 = vpop.f32.mrf.mxu0
    %v4061 = vadd.f32 %v3991, %v4060
    %v4062 = vpop.f32.mrf.mxu0
    %4063 = vdwg.mxu0
    %4064 = vmatprep.subr.mxu0 0.0
    %4065 = vmatpush1.msra.mxu0 %v201
    %4066 = vmatprep.subr.mxu0 0.0
    %4067 = vmatpush1.msra.mxu0 %v200
    %4068 = vmatprep.subr.mxu0 0.0
    %4069 = vmatpush1.msra.mxu0 %v199
    %4070 = vmatprep.subr.mxu0 0.0
    %4071 = vmatpush1.msra.mxu0 %v198
    %4072 = vmatprep.subr.mxu0 0.0
    %4073 = vmatpush1.msra.mxu0 %v197
    %4074 = vmatprep.subr.mxu0 0.0
    %4075 = vmatpush1.msra.mxu0 %v196
    %4076 = vmatprep.subr.mxu0 0.0
    %4077 = vmatpush1.msra.mxu0 %v195
    %4078 = vmatprep.subr.mxu0 0.0
    %4079 = vmatpush1.msra.mxu0 %v194
    %4080 = vmatprep.subr.mxu0 0.0
    %4081 = vmatpush1.msra.mxu0 %v193
    %4082 = vmatprep.subr.mxu0 0.0
    %4083 = vmatpush1.msra.mxu0 %v192
    %4084 = vmatprep.subr.mxu0 0.0
    %4085 = vmatpush1.msra.mxu0 %v191
    %4086 = vmatprep.subr.mxu0 0.0
    %4087 = vmatpush1.msra.mxu0 %v190
    %4088 = vmatprep.subr.mxu0 0.0
    %4089 = vmatpush1.msra.mxu0 %v189
    %4090 = vmatprep.subr.mxu0 0.0
    %4091 = vmatpush1.msra.mxu0 %v188
    %4092 = vmatprep.subr.mxu0 0.0
    %4093 = vmatpush1.msra.mxu0 %v187
    %4094 = vmatprep.subr.mxu0 0.0
    %4095 = vmatpush1.msra.mxu0 %v186
    %4096 = vmatprep.subr.mxu0 0.0
    %4097 = vmatpush2.msra.mxu0 %v217
    %4098 = vmatprep.subr.mxu0 0.0
    %4099 = vmatpush2.msra.mxu0 %v216
    %4100 = vmatprep.subr.mxu0 0.0
    %4101 = vmatpush2.msra.mxu0 %v215
    %4102 = vmatprep.subr.mxu0 0.0
    %4103 = vmatpush2.msra.mxu0 %v214
    %4104 = vmatprep.subr.mxu0 0.0
    %4105 = vmatpush2.msra.mxu0 %v213
    %4106 = vmatprep.subr.mxu0 0.0
    %4107 = vmatpush2.msra.mxu0 %v212
    %4108 = vmatprep.subr.mxu0 0.0
    %4109 = vmatpush2.msra.mxu0 %v211
    %4110 = vmatprep.subr.mxu0 0.0
    %4111 = vmatpush2.msra.mxu0 %v210
    %4112 = vmatprep.subr.mxu0 0.0
    %4113 = vmatpush2.msra.mxu0 %v209
    %4114 = vmatprep.subr.mxu0 0.0
    %4115 = vmatpush2.msra.mxu0 %v208
    %4116 = vmatprep.subr.mxu0 0.0
    %4117 = vmatpush2.msra.mxu0 %v207
    %4118 = vmatprep.subr.mxu0 0.0
    %4119 = vmatpush2.msra.mxu0 %v206
    %4120 = vmatprep.subr.mxu0 0.0
    %4121 = vmatpush2.msra.mxu0 %v205
    %4122 = vmatprep.subr.mxu0 0.0
    %4123 = vmatpush2.msra.mxu0 %v204
    %4124 = vmatprep.subr.mxu0 0.0
    %4125 = vmatpush2.msra.mxu0 %v203
    %4126 = vmatprep.subr.mxu0 0.0
    %4127 = vmatpush2.msra.mxu0 %v202
    %4128 = vmatprep.mubr.f32.mxu0 %v3699
    %4129 = vmatmul.mubr.f32.gmra.mxu0 %v3691
    %v4130 = vpop.f32.mrf.mxu0
    %v4131 = vadd.f32 %v4061, %v4130
    %v4132 = vpop.f32.mrf.mxu0
    %4133 = vdwg.mxu0
    %4134 = vmatprep.subr.mxu0 0.0
    %4135 = vmatpush1.msra.mxu0 %v233
    %4136 = vmatprep.subr.mxu0 0.0
    %4137 = vmatpush1.msra.mxu0 %v232
    %4138 = vmatprep.subr.mxu0 0.0
    %4139 = vmatpush1.msra.mxu0 %v231
    %4140 = vmatprep.subr.mxu0 0.0
    %4141 = vmatpush1.msra.mxu0 %v230
    %4142 = vmatprep.subr.mxu0 0.0
    %4143 = vmatpush1.msra.mxu0 %v229
    %4144 = vmatprep.subr.mxu0 0.0
    %4145 = vmatpush1.msra.mxu0 %v228
    %4146 = vmatprep.subr.mxu0 0.0
    %4147 = vmatpush1.msra.mxu0 %v227
    %4148 = vmatprep.subr.mxu0 0.0
    %4149 = vmatpush1.msra.mxu0 %v226
    %4150 = vmatprep.subr.mxu0 0.0
    %4151 = vmatpush1.msra.mxu0 %v225
    %4152 = vmatprep.subr.mxu0 0.0
    %4153 = vmatpush1.msra.mxu0 %v224
    %4154 = vmatprep.subr.mxu0 0.0
    %4155 = vmatpush1.msra.mxu0 %v223
    %4156 = vmatprep.subr.mxu0 0.0
    %4157 = vmatpush1.msra.mxu0 %v222
    %4158 = vmatprep.subr.mxu0 0.0
    %4159 = vmatpush1.msra.mxu0 %v221
    %4160 = vmatprep.subr.mxu0 0.0
    %4161 = vmatpush1.msra.mxu0 %v220
    %4162 = vmatprep.subr.mxu0 0.0
    %4163 = vmatpush1.msra.mxu0 %v219
    %4164 = vmatprep.subr.mxu0 0.0
    %4165 = vmatpush1.msra.mxu0 %v218
    %4166 = vmatprep.subr.mxu0 0.0
    %4167 = vmatpush2.msra.mxu0 %v249
    %4168 = vmatprep.subr.mxu0 0.0
    %4169 = vmatpush2.msra.mxu0 %v248
    %4170 = vmatprep.subr.mxu0 0.0
    %4171 = vmatpush2.msra.mxu0 %v247
    %4172 = vmatprep.subr.mxu0 0.0
    %4173 = vmatpush2.msra.mxu0 %v246
    %4174 = vmatprep.subr.mxu0 0.0
    %4175 = vmatpush2.msra.mxu0 %v245
    %4176 = vmatprep.subr.mxu0 0.0
    %4177 = vmatpush2.msra.mxu0 %v244
    %4178 = vmatprep.subr.mxu0 0.0
    %4179 = vmatpush2.msra.mxu0 %v243
    %4180 = vmatprep.subr.mxu0 0.0
    %4181 = vmatpush2.msra.mxu0 %v242
    %4182 = vmatprep.subr.mxu0 0.0
    %4183 = vmatpush2.msra.mxu0 %v241
    %4184 = vmatprep.subr.mxu0 0.0
    %4185 = vmatpush2.msra.mxu0 %v240
    %4186 = vmatprep.subr.mxu0 0.0
    %4187 = vmatpush2.msra.mxu0 %v239
    %4188 = vmatprep.subr.mxu0 0.0
    %4189 = vmatpush2.msra.mxu0 %v238
    %4190 = vmatprep.subr.mxu0 0.0
    %4191 = vmatpush2.msra.mxu0 %v237
    %4192 = vmatprep.subr.mxu0 0.0
    %4193 = vmatpush2.msra.mxu0 %v236
    %4194 = vmatprep.subr.mxu0 0.0
    %4195 = vmatpush2.msra.mxu0 %v235
    %4196 = vmatprep.subr.mxu0 0.0
    %4197 = vmatpush2.msra.mxu0 %v234
    %4198 = vmatprep.mubr.f32.mxu0 %v3700
    %4199 = vmatmul.mubr.f32.gmra.mxu0 %v3698
    %v4200 = vpop.f32.mrf.mxu0
    %v4201 = vadd.f32 %v4131, %v4200
    %v4202 = vpop.f32.mrf.mxu0
    %4203 = vdwg.mxu0
    %4204 = vmatprep.subr.mxu0 0.0
    %4205 = vmatpush1.msra.mxu0 %v265
    %4206 = vmatprep.subr.mxu0 0.0
    %4207 = vmatpush1.msra.mxu0 %v264
    %4208 = vmatprep.subr.mxu0 0.0
    %4209 = vmatpush1.msra.mxu0 %v263
    %4210 = vmatprep.subr.mxu0 0.0
    %4211 = vmatpush1.msra.mxu0 %v262
    %4212 = vmatprep.subr.mxu0 0.0
    %4213 = vmatpush1.msra.mxu0 %v261
    %4214 = vmatprep.subr.mxu0 0.0
    %4215 = vmatpush1.msra.mxu0 %v260
    %4216 = vmatprep.subr.mxu0 0.0
    %4217 = vmatpush1.msra.mxu0 %v259
    %4218 = vmatprep.subr.mxu0 0.0
    %4219 = vmatpush1.msra.mxu0 %v258
    %4220 = vmatprep.subr.mxu0 0.0
    %4221 = vmatpush1.msra.mxu0 %v257
    %4222 = vmatprep.subr.mxu0 0.0
    %4223 = vmatpush1.msra.mxu0 %v256
    %4224 = vmatprep.subr.mxu0 0.0
    %4225 = vmatpush1.msra.mxu0 %v255
    %4226 = vmatprep.subr.mxu0 0.0
    %4227 = vmatpush1.msra.mxu0 %v254
    %4228 = vmatprep.subr.mxu0 0.0
    %4229 = vmatpush1.msra.mxu0 %v253
    %4230 = vmatprep.subr.mxu0 0.0
    %4231 = vmatpush1.msra.mxu0 %v252
    %4232 = vmatprep.subr.mxu0 0.0
    %4233 = vmatpush1.msra.mxu0 %v251
    %4234 = vmatprep.subr.mxu0 0.0
    %4235 = vmatpush1.msra.mxu0 %v250
    %4236 = vmatprep.subr.mxu0 0.0
    %4237 = vmatpush2.msra.mxu0 %v281
    %4238 = vmatprep.subr.mxu0 0.0
    %4239 = vmatpush2.msra.mxu0 %v280
    %4240 = vmatprep.subr.mxu0 0.0
    %4241 = vmatpush2.msra.mxu0 %v279
    %4242 = vmatprep.subr.mxu0 0.0
    %4243 = vmatpush2.msra.mxu0 %v278
    %4244 = vmatprep.subr.mxu0 0.0
    %4245 = vmatpush2.msra.mxu0 %v277
    %4246 = vmatprep.subr.mxu0 0.0
    %4247 = vmatpush2.msra.mxu0 %v276
    %4248 = vmatprep.subr.mxu0 0.0
    %4249 = vmatpush2.msra.mxu0 %v275
    %4250 = vmatprep.subr.mxu0 0.0
    %4251 = vmatpush2.msra.mxu0 %v274
    %4252 = vmatprep.subr.mxu0 0.0
    %4253 = vmatpush2.msra.mxu0 %v273
    %4254 = vmatprep.subr.mxu0 0.0
    %4255 = vmatpush2.msra.mxu0 %v272
    %4256 = vmatprep.subr.mxu0 0.0
    %4257 = vmatpush2.msra.mxu0 %v271
    %4258 = vmatprep.subr.mxu0 0.0
    %4259 = vmatpush2.msra.mxu0 %v270
    %4260 = vmatprep.subr.mxu0 0.0
    %4261 = vmatpush2.msra.mxu0 %v269
    %4262 = vmatprep.subr.mxu0 0.0
    %4263 = vmatpush2.msra.mxu0 %v268
    %4264 = vmatprep.subr.mxu0 0.0
    %4265 = vmatpush2.msra.mxu0 %v267
    %4266 = vmatprep.subr.mxu0 0.0
    %4267 = vmatpush2.msra.mxu0 %v266
    %4268 = vmatprep.mubr.f32.mxu0 %v3716
    %4269 = vmatmul.mubr.f32.gmra.mxu0 %v3708
    %v4270 = vpop.f32.mrf.mxu0
    %v4271 = vadd.f32 %v4201, %v4270
    %v4272 = vpop.f32.mrf.mxu0
    %4273 = vdwg.mxu0
    %4274 = vmatprep.subr.mxu0 0.0
    %4275 = vmatpush1.msra.mxu0 %v297
    %4276 = vmatprep.subr.mxu0 0.0
    %4277 = vmatpush1.msra.mxu0 %v296
    %4278 = vmatprep.subr.mxu0 0.0
    %4279 = vmatpush1.msra.mxu0 %v295
    %4280 = vmatprep.subr.mxu0 0.0
    %4281 = vmatpush1.msra.mxu0 %v294
    %4282 = vmatprep.subr.mxu0 0.0
    %4283 = vmatpush1.msra.mxu0 %v293
    %4284 = vmatprep.subr.mxu0 0.0
    %4285 = vmatpush1.msra.mxu0 %v292
    %4286 = vmatprep.subr.mxu0 0.0
    %4287 = vmatpush1.msra.mxu0 %v291
    %4288 = vmatprep.subr.mxu0 0.0
    %4289 = vmatpush1.msra.mxu0 %v290
    %4290 = vmatprep.subr.mxu0 0.0
    %4291 = vmatpush1.msra.mxu0 %v289
    %4292 = vmatprep.subr.mxu0 0.0
    %4293 = vmatpush1.msra.mxu0 %v288
    %4294 = vmatprep.subr.mxu0 0.0
    %4295 = vmatpush1.msra.mxu0 %v287
    %4296 = vmatprep.subr.mxu0 0.0
    %4297 = vmatpush1.msra.mxu0 %v286
    %4298 = vmatprep.subr.mxu0 0.0
    %4299 = vmatpush1.msra.mxu0 %v285
    %4300 = vmatprep.subr.mxu0 0.0
    %4301 = vmatpush1.msra.mxu0 %v284
    %4302 = vmatprep.subr.mxu0 0.0
    %4303 = vmatpush1.msra.mxu0 %v283
    %4304 = vmatprep.subr.mxu0 0.0
    %4305 = vmatpush1.msra.mxu0 %v282
    %4306 = vmatprep.subr.mxu0 0.0
    %4307 = vmatpush2.msra.mxu0 %v313
    %4308 = vmatprep.subr.mxu0 0.0
    %4309 = vmatpush2.msra.mxu0 %v312
    %4310 = vmatprep.subr.mxu0 0.0
    %4311 = vmatpush2.msra.mxu0 %v311
    %4312 = vmatprep.subr.mxu0 0.0
    %4313 = vmatpush2.msra.mxu0 %v310
    %4314 = vmatprep.subr.mxu0 0.0
    %4315 = vmatpush2.msra.mxu0 %v309
    %4316 = vmatprep.subr.mxu0 0.0
    %4317 = vmatpush2.msra.mxu0 %v308
    %4318 = vmatprep.subr.mxu0 0.0
    %4319 = vmatpush2.msra.mxu0 %v307
    %4320 = vmatprep.subr.mxu0 0.0
    %4321 = vmatpush2.msra.mxu0 %v306
    %4322 = vmatprep.subr.mxu0 0.0
    %4323 = vmatpush2.msra.mxu0 %v305
    %4324 = vmatprep.subr.mxu0 0.0
    %4325 = vmatpush2.msra.mxu0 %v304
    %4326 = vmatprep.subr.mxu0 0.0
    %4327 = vmatpush2.msra.mxu0 %v303
    %4328 = vmatprep.subr.mxu0 0.0
    %4329 = vmatpush2.msra.mxu0 %v302
    %4330 = vmatprep.subr.mxu0 0.0
    %4331 = vmatpush2.msra.mxu0 %v301
    %4332 = vmatprep.subr.mxu0 0.0
    %4333 = vmatpush2.msra.mxu0 %v300
    %4334 = vmatprep.subr.mxu0 0.0
    %4335 = vmatpush2.msra.mxu0 %v299
    %4336 = vmatprep.subr.mxu0 0.0
    %4337 = vmatpush2.msra.mxu0 %v298
    %4338 = vmatprep.mubr.f32.mxu0 %v3717
    %4339 = vmatmul.mubr.f32.gmra.mxu0 %v3715
    %v4340 = vpop.f32.mrf.mxu0
    %v4341 = vadd.f32 %v4271, %v4340
    %v4342 = vpop.f32.mrf.mxu0
    %4343 = vdwg.mxu0
    %4344 = vmatprep.subr.mxu0 0.0
    %4345 = vmatpush1.msra.mxu0 %v329
    %4346 = vmatprep.subr.mxu0 0.0
    %4347 = vmatpush1.msra.mxu0 %v328
    %4348 = vmatprep.subr.mxu0 0.0
    %4349 = vmatpush1.msra.mxu0 %v327
    %4350 = vmatprep.subr.mxu0 0.0
    %4351 = vmatpush1.msra.mxu0 %v326
    %4352 = vmatprep.subr.mxu0 0.0
    %4353 = vmatpush1.msra.mxu0 %v325
    %4354 = vmatprep.subr.mxu0 0.0
    %4355 = vmatpush1.msra.mxu0 %v324
    %4356 = vmatprep.subr.mxu0 0.0
    %4357 = vmatpush1.msra.mxu0 %v323
    %4358 = vmatprep.subr.mxu0 0.0
    %4359 = vmatpush1.msra.mxu0 %v322
    %4360 = vmatprep.subr.mxu0 0.0
    %4361 = vmatpush1.msra.mxu0 %v321
    %4362 = vmatprep.subr.mxu0 0.0
    %4363 = vmatpush1.msra.mxu0 %v320
    %4364 = vmatprep.subr.mxu0 0.0
    %4365 = vmatpush1.msra.mxu0 %v319
    %4366 = vmatprep.subr.mxu0 0.0
    %4367 = vmatpush1.msra.mxu0 %v318
    %4368 = vmatprep.subr.mxu0 0.0
    %4369 = vmatpush1.msra.mxu0 %v317
    %4370 = vmatprep.subr.mxu0 0.0
    %4371 = vmatpush1.msra.mxu0 %v316
    %4372 = vmatprep.subr.mxu0 0.0
    %4373 = vmatpush1.msra.mxu0 %v315
    %4374 = vmatprep.subr.mxu0 0.0
    %4375 = vmatpush1.msra.mxu0 %v314
    %4376 = vmatprep.subr.mxu0 0.0
    %4377 = vmatpush2.msra.mxu0 %v345
    %4378 = vmatprep.subr.mxu0 0.0
    %4379 = vmatpush2.msra.mxu0 %v344
    %4380 = vmatprep.subr.mxu0 0.0
    %4381 = vmatpush2.msra.mxu0 %v343
    %4382 = vmatprep.subr.mxu0 0.0
    %4383 = vmatpush2.msra.mxu0 %v342
    %4384 = vmatprep.subr.mxu0 0.0
    %4385 = vmatpush2.msra.mxu0 %v341
    %4386 = vmatprep.subr.mxu0 0.0
    %4387 = vmatpush2.msra.mxu0 %v340
    %4388 = vmatprep.subr.mxu0 0.0
    %4389 = vmatpush2.msra.mxu0 %v339
    %4390 = vmatprep.subr.mxu0 0.0
    %4391 = vmatpush2.msra.mxu0 %v338
    %4392 = vmatprep.subr.mxu0 0.0
    %4393 = vmatpush2.msra.mxu0 %v337
    %4394 = vmatprep.subr.mxu0 0.0
    %4395 = vmatpush2.msra.mxu0 %v336
    %4396 = vmatprep.subr.mxu0 0.0
    %4397 = vmatpush2.msra.mxu0 %v335
    %4398 = vmatprep.subr.mxu0 0.0
    %4399 = vmatpush2.msra.mxu0 %v334
    %4400 = vmatprep.subr.mxu0 0.0
    %4401 = vmatpush2.msra.mxu0 %v333
    %4402 = vmatprep.subr.mxu0 0.0
    %4403 = vmatpush2.msra.mxu0 %v332
    %4404 = vmatprep.subr.mxu0 0.0
    %4405 = vmatpush2.msra.mxu0 %v331
    %4406 = vmatprep.subr.mxu0 0.0
    %4407 = vmatpush2.msra.mxu0 %v330
    %4408 = vmatprep.mubr.f32.mxu0 %v3733
    %4409 = vmatmul.mubr.f32.gmra.mxu0 %v3725
    %v4410 = vpop.f32.mrf.mxu0
    %v4411 = vadd.f32 %v4341, %v4410
    %v4412 = vpop.f32.mrf.mxu0
    %4413 = vdwg.mxu0
    %4414 = vmatprep.subr.mxu0 0.0
    %4415 = vmatpush1.msra.mxu0 %v361
    %4416 = vmatprep.subr.mxu0 0.0
    %4417 = vmatpush1.msra.mxu0 %v360
    %4418 = vmatprep.subr.mxu0 0.0
    %4419 = vmatpush1.msra.mxu0 %v359
    %4420 = vmatprep.subr.mxu0 0.0
    %4421 = vmatpush1.msra.mxu0 %v358
    %4422 = vmatprep.subr.mxu0 0.0
    %4423 = vmatpush1.msra.mxu0 %v357
    %4424 = vmatprep.subr.mxu0 0.0
    %4425 = vmatpush1.msra.mxu0 %v356
    %4426 = vmatprep.subr.mxu0 0.0
    %4427 = vmatpush1.msra.mxu0 %v355
    %4428 = vmatprep.subr.mxu0 0.0
    %4429 = vmatpush1.msra.mxu0 %v354
    %4430 = vmatprep.subr.mxu0 0.0
    %4431 = vmatpush1.msra.mxu0 %v353
    %4432 = vmatprep.subr.mxu0 0.0
    %4433 = vmatpush1.msra.mxu0 %v352
    %4434 = vmatprep.subr.mxu0 0.0
    %4435 = vmatpush1.msra.mxu0 %v351
    %4436 = vmatprep.subr.mxu0 0.0
    %4437 = vmatpush1.msra.mxu0 %v350
    %4438 = vmatprep.subr.mxu0 0.0
    %4439 = vmatpush1.msra.mxu0 %v349
    %4440 = vmatprep.subr.mxu0 0.0
    %4441 = vmatpush1.msra.mxu0 %v348
    %4442 = vmatprep.subr.mxu0 0.0
    %4443 = vmatpush1.msra.mxu0 %v347
    %4444 = vmatprep.subr.mxu0 0.0
    %4445 = vmatpush1.msra.mxu0 %v346
    %4446 = vmatprep.subr.mxu0 0.0
    %4447 = vmatpush2.msra.mxu0 %v377
    %4448 = vmatprep.subr.mxu0 0.0
    %4449 = vmatpush2.msra.mxu0 %v376
    %4450 = vmatprep.subr.mxu0 0.0
    %4451 = vmatpush2.msra.mxu0 %v375
    %4452 = vmatprep.subr.mxu0 0.0
    %4453 = vmatpush2.msra.mxu0 %v374
    %4454 = vmatprep.subr.mxu0 0.0
    %4455 = vmatpush2.msra.mxu0 %v373
    %4456 = vmatprep.subr.mxu0 0.0
    %4457 = vmatpush2.msra.mxu0 %v372
    %4458 = vmatprep.subr.mxu0 0.0
    %4459 = vmatpush2.msra.mxu0 %v371
    %4460 = vmatprep.subr.mxu0 0.0
    %4461 = vmatpush2.msra.mxu0 %v370
    %4462 = vmatprep.subr.mxu0 0.0
    %4463 = vmatpush2.msra.mxu0 %v369
    %4464 = vmatprep.subr.mxu0 0.0
    %4465 = vmatpush2.msra.mxu0 %v368
    %4466 = vmatprep.subr.mxu0 0.0
    %4467 = vmatpush2.msra.mxu0 %v367
    %4468 = vmatprep.subr.mxu0 0.0
    %4469 = vmatpush2.msra.mxu0 %v366
    %4470 = vmatprep.subr.mxu0 0.0
    %4471 = vmatpush2.msra.mxu0 %v365
    %4472 = vmatprep.subr.mxu0 0.0
    %4473 = vmatpush2.msra.mxu0 %v364
    %4474 = vmatprep.subr.mxu0 0.0
    %4475 = vmatpush2.msra.mxu0 %v363
    %4476 = vmatprep.subr.mxu0 0.0
    %4477 = vmatpush2.msra.mxu0 %v362
    %4478 = vmatprep.mubr.f32.mxu0 %v3734
    %4479 = vmatmul.mubr.f32.gmra.mxu0 %v3732
    %v4480 = vpop.f32.mrf.mxu0
    %v4481 = vadd.f32 %v4411, %v4480
    %v4482 = vpop.f32.mrf.mxu0
    %4483 = vdwg.mxu0
    %4484 = vmatprep.subr.mxu0 0.0
    %4485 = vmatpush1.msra.mxu0 %v393
    %4486 = vmatprep.subr.mxu0 0.0
    %4487 = vmatpush1.msra.mxu0 %v392
    %4488 = vmatprep.subr.mxu0 0.0
    %4489 = vmatpush1.msra.mxu0 %v391
    %4490 = vmatprep.subr.mxu0 0.0
    %4491 = vmatpush1.msra.mxu0 %v390
    %4492 = vmatprep.subr.mxu0 0.0
    %4493 = vmatpush1.msra.mxu0 %v389
    %4494 = vmatprep.subr.mxu0 0.0
    %4495 = vmatpush1.msra.mxu0 %v388
    %4496 = vmatprep.subr.mxu0 0.0
    %4497 = vmatpush1.msra.mxu0 %v387
    %4498 = vmatprep.subr.mxu0 0.0
    %4499 = vmatpush1.msra.mxu0 %v386
    %4500 = vmatprep.subr.mxu0 0.0
    %4501 = vmatpush1.msra.mxu0 %v385
    %4502 = vmatprep.subr.mxu0 0.0
    %4503 = vmatpush1.msra.mxu0 %v384
    %4504 = vmatprep.subr.mxu0 0.0
    %4505 = vmatpush1.msra.mxu0 %v383
    %4506 = vmatprep.subr.mxu0 0.0
    %4507 = vmatpush1.msra.mxu0 %v382
    %4508 = vmatprep.subr.mxu0 0.0
    %4509 = vmatpush1.msra.mxu0 %v381
    %4510 = vmatprep.subr.mxu0 0.0
    %4511 = vmatpush1.msra.mxu0 %v380
    %4512 = vmatprep.subr.mxu0 0.0
    %4513 = vmatpush1.msra.mxu0 %v379
    %4514 = vmatprep.subr.mxu0 0.0
    %4515 = vmatpush1.msra.mxu0 %v378
    %4516 = vmatprep.subr.mxu0 0.0
    %4517 = vmatpush2.msra.mxu0 %v409
    %4518 = vmatprep.subr.mxu0 0.0
    %4519 = vmatpush2.msra.mxu0 %v408
    %4520 = vmatprep.subr.mxu0 0.0
    %4521 = vmatpush2.msra.mxu0 %v407
    %4522 = vmatprep.subr.mxu0 0.0
    %4523 = vmatpush2.msra.mxu0 %v406
    %4524 = vmatprep.subr.mxu0 0.0
    %4525 = vmatpush2.msra.mxu0 %v405
    %4526 = vmatprep.subr.mxu0 0.0
    %4527 = vmatpush2.msra.mxu0 %v404
    %4528 = vmatprep.subr.mxu0 0.0
    %4529 = vmatpush2.msra.mxu0 %v403
    %4530 = vmatprep.subr.mxu0 0.0
    %4531 = vmatpush2.msra.mxu0 %v402
    %4532 = vmatprep.subr.mxu0 0.0
    %4533 = vmatpush2.msra.mxu0 %v401
    %4534 = vmatprep.subr.mxu0 0.0
    %4535 = vmatpush2.msra.mxu0 %v400
    %4536 = vmatprep.subr.mxu0 0.0
    %4537 = vmatpush2.msra.mxu0 %v399
    %4538 = vmatprep.subr.mxu0 0.0
    %4539 = vmatpush2.msra.mxu0 %v398
    %4540 = vmatprep.subr.mxu0 0.0
    %4541 = vmatpush2.msra.mxu0 %v397
    %4542 = vmatprep.subr.mxu0 0.0
    %4543 = vmatpush2.msra.mxu0 %v396
    %4544 = vmatprep.subr.mxu0 0.0
    %4545 = vmatpush2.msra.mxu0 %v395
    %4546 = vmatprep.subr.mxu0 0.0
    %4547 = vmatpush2.msra.mxu0 %v394
    %4548 = vmatprep.mubr.f32.mxu0 %v3750
    %4549 = vmatmul.mubr.f32.gmra.mxu0 %v3742
    %v4550 = vpop.f32.mrf.mxu0
    %v4551 = vadd.f32 %v4481, %v4550
    %v4552 = vpop.f32.mrf.mxu0
    %4553 = vdwg.mxu0
    %4554 = vmatprep.subr.mxu0 0.0
    %4555 = vmatpush1.msra.mxu0 %v425
    %4556 = vmatprep.subr.mxu0 0.0
    %4557 = vmatpush1.msra.mxu0 %v424
    %4558 = vmatprep.subr.mxu0 0.0
    %4559 = vmatpush1.msra.mxu0 %v423
    %4560 = vmatprep.subr.mxu0 0.0
    %4561 = vmatpush1.msra.mxu0 %v422
    %4562 = vmatprep.subr.mxu0 0.0
    %4563 = vmatpush1.msra.mxu0 %v421
    %4564 = vmatprep.subr.mxu0 0.0
    %4565 = vmatpush1.msra.mxu0 %v420
    %4566 = vmatprep.subr.mxu0 0.0
    %4567 = vmatpush1.msra.mxu0 %v419
    %4568 = vmatprep.subr.mxu0 0.0
    %4569 = vmatpush1.msra.mxu0 %v418
    %4570 = vmatprep.subr.mxu0 0.0
    %4571 = vmatpush1.msra.mxu0 %v417
    %4572 = vmatprep.subr.mxu0 0.0
    %4573 = vmatpush1.msra.mxu0 %v416
    %4574 = vmatprep.subr.mxu0 0.0
    %4575 = vmatpush1.msra.mxu0 %v415
    %4576 = vmatprep.subr.mxu0 0.0
    %4577 = vmatpush1.msra.mxu0 %v414
    %4578 = vmatprep.subr.mxu0 0.0
    %4579 = vmatpush1.msra.mxu0 %v413
    %4580 = vmatprep.subr.mxu0 0.0
    %4581 = vmatpush1.msra.mxu0 %v412
    %4582 = vmatprep.subr.mxu0 0.0
    %4583 = vmatpush1.msra.mxu0 %v411
    %4584 = vmatprep.subr.mxu0 0.0
    %4585 = vmatpush1.msra.mxu0 %v410
    %4586 = vmatprep.subr.mxu0 0.0
    %4587 = vmatpush2.msra.mxu0 %v441
    %4588 = vmatprep.subr.mxu0 0.0
    %4589 = vmatpush2.msra.mxu0 %v440
    %4590 = vmatprep.subr.mxu0 0.0
    %4591 = vmatpush2.msra.mxu0 %v439
    %4592 = vmatprep.subr.mxu0 0.0
    %4593 = vmatpush2.msra.mxu0 %v438
    %4594 = vmatprep.subr.mxu0 0.0
    %4595 = vmatpush2.msra.mxu0 %v437
    %4596 = vmatprep.subr.mxu0 0.0
    %4597 = vmatpush2.msra.mxu0 %v436
    %4598 = vmatprep.subr.mxu0 0.0
    %4599 = vmatpush2.msra.mxu0 %v435
    %4600 = vmatprep.subr.mxu0 0.0
    %4601 = vmatpush2.msra.mxu0 %v434
    %4602 = vmatprep.subr.mxu0 0.0
    %4603 = vmatpush2.msra.mxu0 %v433
    %4604 = vmatprep.subr.mxu0 0.0
    %4605 = vmatpush2.msra.mxu0 %v432
    %4606 = vmatprep.subr.mxu0 0.0
    %4607 = vmatpush2.msra.mxu0 %v431
    %4608 = vmatprep.subr.mxu0 0.0
    %4609 = vmatpush2.msra.mxu0 %v430
    %4610 = vmatprep.subr.mxu0 0.0
    %4611 = vmatpush2.msra.mxu0 %v429
    %4612 = vmatprep.subr.mxu0 0.0
    %4613 = vmatpush2.msra.mxu0 %v428
    %4614 = vmatprep.subr.mxu0 0.0
    %4615 = vmatpush2.msra.mxu0 %v427
    %4616 = vmatprep.subr.mxu0 0.0
    %4617 = vmatpush2.msra.mxu0 %v426
    %4618 = vmatprep.mubr.f32.mxu0 %v3751
    %4619 = vmatmul.mubr.f32.gmra.mxu0 %v3749
    %v4620 = vpop.f32.mrf.mxu0
    %v4621 = vadd.f32 %v4551, %v4620
    %v4622 = vpop.f32.mrf.mxu0
    %4623 = vdwg.mxu0
    %4624 = vmatprep.subr.mxu0 0.0
    %4625 = vmatpush1.msra.mxu0 %v457
    %4626 = vmatprep.subr.mxu0 0.0
    %4627 = vmatpush1.msra.mxu0 %v456
    %4628 = vmatprep.subr.mxu0 0.0
    %4629 = vmatpush1.msra.mxu0 %v455
    %4630 = vmatprep.subr.mxu0 0.0
    %4631 = vmatpush1.msra.mxu0 %v454
    %4632 = vmatprep.subr.mxu0 0.0
    %4633 = vmatpush1.msra.mxu0 %v453
    %4634 = vmatprep.subr.mxu0 0.0
    %4635 = vmatpush1.msra.mxu0 %v452
    %4636 = vmatprep.subr.mxu0 0.0
    %4637 = vmatpush1.msra.mxu0 %v451
    %4638 = vmatprep.subr.mxu0 0.0
    %4639 = vmatpush1.msra.mxu0 %v450
    %4640 = vmatprep.subr.mxu0 0.0
    %4641 = vmatpush1.msra.mxu0 %v449
    %4642 = vmatprep.subr.mxu0 0.0
    %4643 = vmatpush1.msra.mxu0 %v448
    %4644 = vmatprep.subr.mxu0 0.0
    %4645 = vmatpush1.msra.mxu0 %v447
    %4646 = vmatprep.subr.mxu0 0.0
    %4647 = vmatpush1.msra.mxu0 %v446
    %4648 = vmatprep.subr.mxu0 0.0
    %4649 = vmatpush1.msra.mxu0 %v445
    %4650 = vmatprep.subr.mxu0 0.0
    %4651 = vmatpush1.msra.mxu0 %v444
    %4652 = vmatprep.subr.mxu0 0.0
    %4653 = vmatpush1.msra.mxu0 %v443
    %4654 = vmatprep.subr.mxu0 0.0
    %4655 = vmatpush1.msra.mxu0 %v442
    %4656 = vmatprep.subr.mxu0 0.0
    %4657 = vmatpush2.msra.mxu0 0.0
    %4658 = vmatprep.subr.mxu0 0.0
    %4659 = vmatpush2.msra.mxu0 0.0
    %4660 = vmatprep.subr.mxu0 0.0
    %4661 = vmatpush2.msra.mxu0 0.0
    %4662 = vmatprep.subr.mxu0 0.0
    %4663 = vmatpush2.msra.mxu0 0.0
    %4664 = vmatprep.subr.mxu0 0.0
    %4665 = vmatpush2.msra.mxu0 0.0
    %4666 = vmatprep.subr.mxu0 0.0
    %4667 = vmatpush2.msra.mxu0 0.0
    %4668 = vmatprep.subr.mxu0 0.0
    %4669 = vmatpush2.msra.mxu0 0.0
    %4670 = vmatprep.subr.mxu0 0.0
    %4671 = vmatpush2.msra.mxu0 0.0
    %4672 = vmatprep.subr.mxu0 0.0
    %4673 = vmatpush2.msra.mxu0 0.0
    %4674 = vmatprep.subr.mxu0 0.0
    %4675 = vmatpush2.msra.mxu0 0.0
    %4676 = vmatprep.subr.mxu0 0.0
    %4677 = vmatpush2.msra.mxu0 0.0
    %4678 = vmatprep.subr.mxu0 0.0
    %4679 = vmatpush2.msra.mxu0 0.0
    %4680 = vmatprep.subr.mxu0 0.0
    %4681 = vmatpush2.msra.mxu0 0.0
    %4682 = vmatprep.subr.mxu0 0.0
    %4683 = vmatpush2.msra.mxu0 0.0
    %4684 = vmatprep.subr.mxu0 0.0
    %4685 = vmatpush2.msra.mxu0 0.0
    %4686 = vmatprep.subr.mxu0 0.0
    %4687 = vmatpush2.msra.mxu0 0.0
    %4688 = vmatprep.mubr.f32.mxu0 0.0
    %4689 = vmatmul.mubr.f32.gmra.mxu0 %v3758
    %v4690 = vpop.f32.mrf.mxu0
    %v4691 = vadd.f32 %v4621, %v4690
    %v4692 = vpop.f32.mrf.mxu0
    %4693 = vdwg.mxu0
    %v4694 = vmax.f32 %v4691, 0.0
    %v4695 = vmax.f32 %v3635, %v4694
    %v4696 = vmax.f32 %v2576, %v4695
    %v4697 = vld [vmem:[%s6] sm:$0x3]
    %v4698 = vld [vmem:[%s7] sm:$0xff]
    %v4699 = vld [vmem:[%s7 + $0x8] sm:$0xff]
    %v4700 = vld [vmem:[%s7 + $0x10] sm:$0xff]
    %v4701 = vld [vmem:[%s7 + $0x18] sm:$0xff]
    %v4702 = vld [vmem:[%s7 + $0x20] sm:$0xff]
    %v4703 = vld [vmem:[%s7 + $0x28] sm:$0xff]
    %v4704 = vld [vmem:[%s7 + $0x30] sm:$0xff]
    %v4705 = vld [vmem:[%s7 + $0x38] sm:$0xff]
    %v4706 = vld [vmem:[%s7 + $0x40] sm:$0xff]
    %v4707 = vld [vmem:[%s7 + $0x48] sm:$0xff]
    %v4708 = vld [vmem:[%s7 + $0x50] sm:$0xff]
    %v4709 = vld [vmem:[%s7 + $0x58] sm:$0xff]
    %v4710 = vld [vmem:[%s7 + $0x60] sm:$0xff]
    %v4711 = vld [vmem:[%s7 + $0x68] sm:$0xff]
    %v4712 = vld [vmem:[%s7 + $0x70] sm:$0xff]
    %v4713 = vld [vmem:[%s7 + $0x78] sm:$0xff]
    %v4714 = vld [vmem:[%s7 + $0x80] sm:$0xff]
    %v4715 = vld [vmem:[%s7 + $0x88] sm:$0xff]
    %v4716 = vld [vmem:[%s7 + $0x90] sm:$0xff]
    %v4717 = vld [vmem:[%s7 + $0x98] sm:$0xff]
    %v4718 = vld [vmem:[%s7 + $0xa0] sm:$0xff]
    %v4719 = vld [vmem:[%s7 + $0xa8] sm:$0xff]
    %v4720 = vld [vmem:[%s7 + $0xb0] sm:$0xff]
    %v4721 = vld [vmem:[%s7 + $0xb8] sm:$0xff]
    %v4722 = vld [vmem:[%s7 + $0xc0] sm:$0xff]
    %v4723 = vld [vmem:[%s7 + $0xc8] sm:$0xff]
    %v4724 = vld [vmem:[%s7 + $0xd0] sm:$0xff]
    %v4725 = vld [vmem:[%s7 + $0xd8] sm:$0xff]
    %v4726 = vld [vmem:[%s7 + $0xe0] sm:$0xff]
    %v4727 = vld [vmem:[%s7 + $0xe8] sm:$0xff]
    %v4728 = vld [vmem:[%s7 + $0xf0] sm:$0xff]
    %v4729 = vld [vmem:[%s7 + $0xf8] sm:$0xff]
    %v4730 = vld [vmem:[%s9] sm:$0xf]
    %v4732 = vlaneseq
    %v4733 = vshrl.u32 %v4732, 7
    %v4734 = vsub.s32 0, %v4733
    %v4735 = vrot.slane %v4730, %v4734
    %v4736 = vlaneseq
    %v4737 = vshrl.u32 %v4736, 7
    %v4738 = vsub.s32 1, %v4737
    %v4739 = vrot.slane %v4730, %v4738
    %v4740 = vlaneseq
    %v4741 = vshrl.u32 %v4740, 7
    %v4742 = vsub.s32 2, %v4741
    %v4743 = vrot.slane %v4730, %v4742
    %v4744 = vlaneseq
    %v4745 = vshrl.u32 %v4744, 7
    %v4746 = vsub.s32 3, %v4745
    %v4747 = vrot.slane %v4730, %v4746
    %vm4752 = vcmask 523264
    %v4754 = vsel %vm4752, %v4697, 0
    %4756 = vmatprep.subr.mxu0 0.0
    %4757 = vmatpush1.msra.mxu0 0.0
    %4758 = vmatprep.subr.mxu0 0.0
    %4759 = vmatpush1.msra.mxu0 0.0
    %4760 = vmatprep.subr.mxu0 0.0
    %4761 = vmatpush1.msra.mxu0 0.0
    %4762 = vmatprep.subr.mxu0 0.0
    %4763 = vmatpush1.msra.mxu0 0.0
    %4764 = vmatprep.subr.mxu0 0.0
    %4765 = vmatpush1.msra.mxu0 0.0
    %4766 = vmatprep.subr.mxu0 0.0
    %4767 = vmatpush1.msra.mxu0 0.0
    %4768 = vmatprep.subr.mxu0 0.0
    %4769 = vmatpush1.msra.mxu0 0.0
    %4770 = vmatprep.subr.mxu0 0.0
    %4771 = vmatpush1.msra.mxu0 0.0
    %4772 = vmatprep.subr.mxu0 %v4727
    %4773 = vmatpush1.msra.mxu0 %v4726
    %4774 = vmatprep.subr.mxu0 %v4723
    %4775 = vmatpush1.msra.mxu0 %v4722
    %4776 = vmatprep.subr.mxu0 %v4719
    %4777 = vmatpush1.msra.mxu0 %v4718
    %4778 = vmatprep.subr.mxu0 %v4715
    %4779 = vmatpush1.msra.mxu0 %v4714
    %4780 = vmatprep.subr.mxu0 %v4711
    %4781 = vmatpush1.msra.mxu0 %v4710
    %4782 = vmatprep.subr.mxu0 %v4707
    %4783 = vmatpush1.msra.mxu0 %v4706
    %4784 = vmatprep.subr.mxu0 %v4703
    %4785 = vmatpush1.msra.mxu0 %v4702
    %4786 = vmatprep.subr.mxu0 %v4699
    %4787 = vmatpush1.msra.mxu0 %v4698
    %4788 = vmatprep.subr.mxu0 0.0
    %4789 = vmatpush2.msra.mxu0 0.0
    %4790 = vmatprep.subr.mxu0 0.0
    %4791 = vmatpush2.msra.mxu0 0.0
    %4792 = vmatprep.subr.mxu0 0.0
    %4793 = vmatpush2.msra.mxu0 0.0
    %4794 = vmatprep.subr.mxu0 0.0
    %4795 = vmatpush2.msra.mxu0 0.0
    %4796 = vmatprep.subr.mxu0 0.0
    %4797 = vmatpush2.msra.mxu0 0.0
    %4798 = vmatprep.subr.mxu0 0.0
    %4799 = vmatpush2.msra.mxu0 0.0
    %4800 = vmatprep.subr.mxu0 0.0
    %4801 = vmatpush2.msra.mxu0 0.0
    %4802 = vmatprep.subr.mxu0 0.0
    %4803 = vmatpush2.msra.mxu0 0.0
    %4804 = vmatprep.subr.mxu0 0.0
    %4805 = vmatpush2.msra.mxu0 0.0
    %4806 = vmatprep.subr.mxu0 0.0
    %4807 = vmatpush2.msra.mxu0 0.0
    %4808 = vmatprep.subr.mxu0 0.0
    %4809 = vmatpush2.msra.mxu0 0.0
    %4810 = vmatprep.subr.mxu0 0.0
    %4811 = vmatpush2.msra.mxu0 0.0
    %4812 = vmatprep.subr.mxu0 0.0
    %4813 = vmatpush2.msra.mxu0 0.0
    %4814 = vmatprep.subr.mxu0 0.0
    %4815 = vmatpush2.msra.mxu0 0.0
    %4816 = vmatprep.subr.mxu0 0.0
    %4817 = vmatpush2.msra.mxu0 0.0
    %4818 = vmatprep.subr.mxu0 0.0
    %4819 = vmatpush2.msra.mxu0 0.0
    %4820 = vmatprep.mubr.f32.mxu0 0.0
    %4821 = vmatmul.mubr.f32.gmra.mxu0 %v4754
    %v4822 = vpop.f32.mrf.mxu0
    %v4823 = vadd.f32 %v4735, %v4822
    %v4824 = vpop.f32.mrf.mxu0
    %v4825 = vadd.f32 %v4739, %v4824
    %4826 = vdwg.mxu0
    %4827 = vmatprep.subr.mxu0 0.0
    %4828 = vmatpush1.msra.mxu0 0.0
    %4829 = vmatprep.subr.mxu0 0.0
    %4830 = vmatpush1.msra.mxu0 0.0
    %4831 = vmatprep.subr.mxu0 0.0
    %4832 = vmatpush1.msra.mxu0 0.0
    %4833 = vmatprep.subr.mxu0 0.0
    %4834 = vmatpush1.msra.mxu0 0.0
    %4835 = vmatprep.subr.mxu0 0.0
    %4836 = vmatpush1.msra.mxu0 0.0
    %4837 = vmatprep.subr.mxu0 0.0
    %4838 = vmatpush1.msra.mxu0 0.0
    %4839 = vmatprep.subr.mxu0 0.0
    %4840 = vmatpush1.msra.mxu0 0.0
    %4841 = vmatprep.subr.mxu0 0.0
    %4842 = vmatpush1.msra.mxu0 0.0
    %4843 = vmatprep.subr.mxu0 %v4729
    %4844 = vmatpush1.msra.mxu0 %v4728
    %4845 = vmatprep.subr.mxu0 %v4725
    %4846 = vmatpush1.msra.mxu0 %v4724
    %4847 = vmatprep.subr.mxu0 %v4721
    %4848 = vmatpush1.msra.mxu0 %v4720
    %4849 = vmatprep.subr.mxu0 %v4717
    %4850 = vmatpush1.msra.mxu0 %v4716
    %4851 = vmatprep.subr.mxu0 %v4713
    %4852 = vmatpush1.msra.mxu0 %v4712
    %4853 = vmatprep.subr.mxu0 %v4709
    %4854 = vmatpush1.msra.mxu0 %v4708
    %4855 = vmatprep.subr.mxu0 %v4705
    %4856 = vmatpush1.msra.mxu0 %v4704
    %4857 = vmatprep.subr.mxu0 %v4701
    %4858 = vmatpush1.msra.mxu0 %v4700
    %4859 = vmatprep.subr.mxu0 0.0
    %4860 = vmatpush2.msra.mxu0 0.0
    %4861 = vmatprep.subr.mxu0 0.0
    %4862 = vmatpush2.msra.mxu0 0.0
    %4863 = vmatprep.subr.mxu0 0.0
    %4864 = vmatpush2.msra.mxu0 0.0
    %4865 = vmatprep.subr.mxu0 0.0
    %4866 = vmatpush2.msra.mxu0 0.0
    %4867 = vmatprep.subr.mxu0 0.0
    %4868 = vmatpush2.msra.mxu0 0.0
    %4869 = vmatprep.subr.mxu0 0.0
    %4870 = vmatpush2.msra.mxu0 0.0
    %4871 = vmatprep.subr.mxu0 0.0
    %4872 = vmatpush2.msra.mxu0 0.0
    %4873 = vmatprep.subr.mxu0 0.0
    %4874 = vmatpush2.msra.mxu0 0.0
    %4875 = vmatprep.subr.mxu0 0.0
    %4876 = vmatpush2.msra.mxu0 0.0
    %4877 = vmatprep.subr.mxu0 0.0
    %4878 = vmatpush2.msra.mxu0 0.0
    %4879 = vmatprep.subr.mxu0 0.0
    %4880 = vmatpush2.msra.mxu0 0.0
    %4881 = vmatprep.subr.mxu0 0.0
    %4882 = vmatpush2.msra.mxu0 0.0
    %4883 = vmatprep.subr.mxu0 0.0
    %4884 = vmatpush2.msra.mxu0 0.0
    %4885 = vmatprep.subr.mxu0 0.0
    %4886 = vmatpush2.msra.mxu0 0.0
    %4887 = vmatprep.subr.mxu0 0.0
    %4888 = vmatpush2.msra.mxu0 0.0
    %4889 = vmatprep.subr.mxu0 0.0
    %4890 = vmatpush2.msra.mxu0 0.0
    %4891 = vmatprep.mubr.f32.mxu0 0.0
    %4892 = vmatmul.mubr.f32.gmra.mxu0 %v4754
    %v4893 = vpop.f32.mrf.mxu0
    %v4894 = vadd.f32 %v4743, %v4893
    %v4895 = vpop.f32.mrf.mxu0
    %v4896 = vadd.f32 %v4747, %v4895
    %4897 = vdwg.mxu0
    %v4898 = vld [vmem:[%s8] sm:$0xff]
    %v4899 = vld [vmem:[%s8 + $0x8] sm:$0xff]
    %v4900 = vld [vmem:[%s8 + $0x10] sm:$0xff]
    %v4901 = vld [vmem:[%s8 + $0x18] sm:$0xff]
    %v4902 = vld [vmem:[%s8 + $0x20] sm:$0xff]
    %v4903 = vld [vmem:[%s8 + $0x28] sm:$0xff]
    %v4904 = vld [vmem:[%s8 + $0x30] sm:$0xff]
    %v4905 = vld [vmem:[%s8 + $0x38] sm:$0xff]
    %v4906 = vld [vmem:[%s8 + $0x40] sm:$0xff]
    %v4907 = vld [vmem:[%s8 + $0x48] sm:$0xff]
    %v4908 = vld [vmem:[%s8 + $0x50] sm:$0xff]
    %v4909 = vld [vmem:[%s8 + $0x58] sm:$0xff]
    %v4910 = vld [vmem:[%s8 + $0x60] sm:$0xff]
    %v4911 = vld [vmem:[%s8 + $0x68] sm:$0xff]
    %v4912 = vld [vmem:[%s8 + $0x70] sm:$0xff]
    %v4913 = vld [vmem:[%s8 + $0x78] sm:$0xff]
    %v4914 = vld [vmem:[%s8 + $0x80] sm:$0xff]
    %v4915 = vld [vmem:[%s8 + $0x88] sm:$0xff]
    %v4916 = vld [vmem:[%s8 + $0x90] sm:$0xff]
    %v4917 = vld [vmem:[%s8 + $0x98] sm:$0xff]
    %v4918 = vld [vmem:[%s8 + $0xa0] sm:$0xff]
    %v4919 = vld [vmem:[%s8 + $0xa8] sm:$0xff]
    %v4920 = vld [vmem:[%s8 + $0xb0] sm:$0xff]
    %v4921 = vld [vmem:[%s8 + $0xb8] sm:$0xff]
    %v4922 = vld [vmem:[%s8 + $0xc0] sm:$0xff]
    %v4923 = vld [vmem:[%s8 + $0xc8] sm:$0xff]
    %v4924 = vld [vmem:[%s8 + $0xd0] sm:$0xff]
    %v4925 = vld [vmem:[%s8 + $0xd8] sm:$0xff]
    %v4926 = vld [vmem:[%s8 + $0xe0] sm:$0xff]
    %v4927 = vld [vmem:[%s8 + $0xe8] sm:$0xff]
    %v4928 = vld [vmem:[%s8 + $0xf0] sm:$0xff]
    %v4929 = vld [vmem:[%s8 + $0xf8] sm:$0xff]
    %v4930 = vld [vmem:[%s8 + $0x100] sm:$0xff]
    %v4931 = vld [vmem:[%s8 + $0x108] sm:$0xff]
    %v4932 = vld [vmem:[%s8 + $0x110] sm:$0xff]
    %v4933 = vld [vmem:[%s8 + $0x118] sm:$0xff]
    %v4934 = vld [vmem:[%s8 + $0x120] sm:$0xff]
    %v4935 = vld [vmem:[%s8 + $0x128] sm:$0xff]
    %v4936 = vld [vmem:[%s8 + $0x130] sm:$0xff]
    %v4937 = vld [vmem:[%s8 + $0x138] sm:$0xff]
    %v4938 = vld [vmem:[%s8 + $0x140] sm:$0xff]
    %v4939 = vld [vmem:[%s8 + $0x148] sm:$0xff]
    %v4940 = vld [vmem:[%s8 + $0x150] sm:$0xff]
    %v4941 = vld [vmem:[%s8 + $0x158] sm:$0xff]
    %v4942 = vld [vmem:[%s8 + $0x160] sm:$0xff]
    %v4943 = vld [vmem:[%s8 + $0x168] sm:$0xff]
    %v4944 = vld [vmem:[%s8 + $0x170] sm:$0xff]
    %v4945 = vld [vmem:[%s8 + $0x178] sm:$0xff]
    %v4946 = vld [vmem:[%s8 + $0x180] sm:$0xff]
    %v4947 = vld [vmem:[%s8 + $0x188] sm:$0xff]
    %v4948 = vld [vmem:[%s8 + $0x190] sm:$0xff]
    %v4949 = vld [vmem:[%s8 + $0x198] sm:$0xff]
    %v4950 = vld [vmem:[%s8 + $0x1a0] sm:$0xff]
    %v4951 = vld [vmem:[%s8 + $0x1a8] sm:$0xff]
    %v4952 = vld [vmem:[%s8 + $0x1b0] sm:$0xff]
    %v4953 = vld [vmem:[%s8 + $0x1b8] sm:$0xff]
    %v4954 = vld [vmem:[%s8 + $0x1c0] sm:$0xff]
    %v4955 = vld [vmem:[%s8 + $0x1c8] sm:$0xff]
    %v4956 = vld [vmem:[%s8 + $0x1d0] sm:$0xff]
    %v4957 = vld [vmem:[%s8 + $0x1d8] sm:$0xff]
    %v4958 = vld [vmem:[%s8 + $0x1e0] sm:$0xff]
    %v4959 = vld [vmem:[%s8 + $0x1e8] sm:$0xff]
    %v4960 = vld [vmem:[%s8 + $0x1f0] sm:$0xff]
    %v4961 = vld [vmem:[%s8 + $0x1f8] sm:$0xff]
    %4962 = vmatprep.subr.mxu0 %v4959
    %4963 = vmatpush1.msra.mxu0 %v4958
    %4964 = vmatprep.subr.mxu0 %v4955
    %4965 = vmatpush1.msra.mxu0 %v4954
    %4966 = vmatprep.subr.mxu0 %v4951
    %4967 = vmatpush1.msra.mxu0 %v4950
    %4968 = vmatprep.subr.mxu0 %v4947
    %4969 = vmatpush1.msra.mxu0 %v4946
    %4970 = vmatprep.subr.mxu0 %v4943
    %4971 = vmatpush1.msra.mxu0 %v4942
    %4972 = vmatprep.subr.mxu0 %v4939
    %4973 = vmatpush1.msra.mxu0 %v4938
    %4974 = vmatprep.subr.mxu0 %v4935
    %4975 = vmatpush1.msra.mxu0 %v4934
    %4976 = vmatprep.subr.mxu0 %v4931
    %4977 = vmatpush1.msra.mxu0 %v4930
    %4978 = vmatprep.subr.mxu0 %v4927
    %4979 = vmatpush1.msra.mxu0 %v4926
    %4980 = vmatprep.subr.mxu0 %v4923
    %4981 = vmatpush1.msra.mxu0 %v4922
    %4982 = vmatprep.subr.mxu0 %v4919
    %4983 = vmatpush1.msra.mxu0 %v4918
    %4984 = vmatprep.subr.mxu0 %v4915
    %4985 = vmatpush1.msra.mxu0 %v4914
    %4986 = vmatprep.subr.mxu0 %v4911
    %4987 = vmatpush1.msra.mxu0 %v4910
    %4988 = vmatprep.subr.mxu0 %v4907
    %4989 = vmatpush1.msra.mxu0 %v4906
    %4990 = vmatprep.subr.mxu0 %v4903
    %4991 = vmatpush1.msra.mxu0 %v4902
    %4992 = vmatprep.subr.mxu0 %v4899
    %4993 = vmatpush1.msra.mxu0 %v4898
    %4994 = vmatprep.subr.mxu0 0.0
    %4995 = vmatpush2.msra.mxu0 0.0
    %4996 = vmatprep.subr.mxu0 0.0
    %4997 = vmatpush2.msra.mxu0 0.0
    %4998 = vmatprep.subr.mxu0 0.0
    %4999 = vmatpush2.msra.mxu0 0.0
    %5000 = vmatprep.subr.mxu0 0.0
    %5001 = vmatpush2.msra.mxu0 0.0
    %5002 = vmatprep.subr.mxu0 0.0
    %5003 = vmatpush2.msra.mxu0 0.0
    %5004 = vmatprep.subr.mxu0 0.0
    %5005 = vmatpush2.msra.mxu0 0.0
    %5006 = vmatprep.subr.mxu0 0.0
    %5007 = vmatpush2.msra.mxu0 0.0
    %5008 = vmatprep.subr.mxu0 0.0
    %5009 = vmatpush2.msra.mxu0 0.0
    %5010 = vmatprep.subr.mxu0 0.0
    %5011 = vmatpush2.msra.mxu0 0.0
    %5012 = vmatprep.subr.mxu0 0.0
    %5013 = vmatpush2.msra.mxu0 0.0
    %5014 = vmatprep.subr.mxu0 0.0
    %5015 = vmatpush2.msra.mxu0 0.0
    %5016 = vmatprep.subr.mxu0 0.0
    %5017 = vmatpush2.msra.mxu0 0.0
    %5018 = vmatprep.subr.mxu0 0.0
    %5019 = vmatpush2.msra.mxu0 0.0
    %5020 = vmatprep.subr.mxu0 0.0
    %5021 = vmatpush2.msra.mxu0 0.0
    %5022 = vmatprep.subr.mxu0 0.0
    %5023 = vmatpush2.msra.mxu0 0.0
    %5024 = vmatprep.subr.mxu0 0.0
    %5025 = vmatpush2.msra.mxu0 0.0
    %5026 = vmatprep.mubr.f32.mxu0 0.0
    %5027 = vmatmul.mubr.f32.gmra.mxu0 %v4696
    %v5028 = vpop.f32.mrf.mxu0
    %v5029 = vadd.f32 0.0, %v5028
    %v5030 = vpop.f32.mrf.mxu0
    %v5031 = vadd.f32 0.0, %v5030
    %5032 = vdwg.mxu0
    %5033 = vmatprep.subr.mxu0 %v4961
    %5034 = vmatpush1.msra.mxu0 %v4960
    %5035 = vmatprep.subr.mxu0 %v4957
    %5036 = vmatpush1.msra.mxu0 %v4956
    %5037 = vmatprep.subr.mxu0 %v4953
    %5038 = vmatpush1.msra.mxu0 %v4952
    %5039 = vmatprep.subr.mxu0 %v4949
    %5040 = vmatpush1.msra.mxu0 %v4948
    %5041 = vmatprep.subr.mxu0 %v4945
    %5042 = vmatpush1.msra.mxu0 %v4944
    %5043 = vmatprep.subr.mxu0 %v4941
    %5044 = vmatpush1.msra.mxu0 %v4940
    %5045 = vmatprep.subr.mxu0 %v4937
    %5046 = vmatpush1.msra.mxu0 %v4936
    %5047 = vmatprep.subr.mxu0 %v4933
    %5048 = vmatpush1.msra.mxu0 %v4932
    %5049 = vmatprep.subr.mxu0 %v4929
    %5050 = vmatpush1.msra.mxu0 %v4928
    %5051 = vmatprep.subr.mxu0 %v4925
    %5052 = vmatpush1.msra.mxu0 %v4924
    %5053 = vmatprep.subr.mxu0 %v4921
    %5054 = vmatpush1.msra.mxu0 %v4920
    %5055 = vmatprep.subr.mxu0 %v4917
    %5056 = vmatpush1.msra.mxu0 %v4916
    %5057 = vmatprep.subr.mxu0 %v4913
    %5058 = vmatpush1.msra.mxu0 %v4912
    %5059 = vmatprep.subr.mxu0 %v4909
    %5060 = vmatpush1.msra.mxu0 %v4908
    %5061 = vmatprep.subr.mxu0 %v4905
    %5062 = vmatpush1.msra.mxu0 %v4904
    %5063 = vmatprep.subr.mxu0 %v4901
    %5064 = vmatpush1.msra.mxu0 %v4900
    %5065 = vmatprep.subr.mxu0 0.0
    %5066 = vmatpush2.msra.mxu0 0.0
    %5067 = vmatprep.subr.mxu0 0.0
    %5068 = vmatpush2.msra.mxu0 0.0
    %5069 = vmatprep.subr.mxu0 0.0
    %5070 = vmatpush2.msra.mxu0 0.0
    %5071 = vmatprep.subr.mxu0 0.0
    %5072 = vmatpush2.msra.mxu0 0.0
    %5073 = vmatprep.subr.mxu0 0.0
    %5074 = vmatpush2.msra.mxu0 0.0
    %5075 = vmatprep.subr.mxu0 0.0
    %5076 = vmatpush2.msra.mxu0 0.0
    %5077 = vmatprep.subr.mxu0 0.0
    %5078 = vmatpush2.msra.mxu0 0.0
    %5079 = vmatprep.subr.mxu0 0.0
    %5080 = vmatpush2.msra.mxu0 0.0
    %5081 = vmatprep.subr.mxu0 0.0
    %5082 = vmatpush2.msra.mxu0 0.0
    %5083 = vmatprep.subr.mxu0 0.0
    %5084 = vmatpush2.msra.mxu0 0.0
    %5085 = vmatprep.subr.mxu0 0.0
    %5086 = vmatpush2.msra.mxu0 0.0
    %5087 = vmatprep.subr.mxu0 0.0
    %5088 = vmatpush2.msra.mxu0 0.0
    %5089 = vmatprep.subr.mxu0 0.0
    %5090 = vmatpush2.msra.mxu0 0.0
    %5091 = vmatprep.subr.mxu0 0.0
    %5092 = vmatpush2.msra.mxu0 0.0
    %5093 = vmatprep.subr.mxu0 0.0
    %5094 = vmatpush2.msra.mxu0 0.0
    %5095 = vmatprep.subr.mxu0 0.0
    %5096 = vmatpush2.msra.mxu0 0.0
    %5097 = vmatprep.mubr.f32.mxu0 0.0
    %5098 = vmatmul.mubr.f32.gmra.mxu0 %v4696
    %v5099 = vpop.f32.mrf.mxu0
    %v5100 = vadd.f32 0.0, %v5099
    %v5101 = vpop.f32.mrf.mxu0
    %v5102 = vadd.f32 0.0, %v5101
    %5103 = vdwg.mxu0
    %v5104 = vadd.f32 %v4823, %v5029
    %v5105 = vadd.f32 %v4825, %v5031
    %v5106 = vadd.f32 %v4894, %v5100
    %v5107 = vadd.f32 %v4896, %v5102
    %v5108 = vmax.f32 %v5104, 0.0
    %v5109 = vmax.f32 %v5105, 0.0
    %v5110 = vmax.f32 %v5106, 0.0
    %v5111 = vmax.f32 %v5107, 0.0
    %v5112 = vld [vmem:[%s10] sm:$0xff]
    %v5113 = vld [vmem:[%s10 + $0x8] sm:$0xff]
    %v5114 = vld [vmem:[%s10 + $0x10] sm:$0xff]
    %v5115 = vld [vmem:[%s10 + $0x18] sm:$0xff]
    %v5116 = vld [vmem:[%s10 + $0x20] sm:$0xff]
    %v5117 = vld [vmem:[%s10 + $0x28] sm:$0xff]
    %v5118 = vld [vmem:[%s10 + $0x30] sm:$0xff]
    %v5119 = vld [vmem:[%s10 + $0x38] sm:$0xff]
    %v5120 = vld [vmem:[%s10 + $0x40] sm:$0xff]
    %v5121 = vld [vmem:[%s10 + $0x48] sm:$0xff]
    %v5122 = vld [vmem:[%s10 + $0x50] sm:$0xff]
    %v5123 = vld [vmem:[%s10 + $0x58] sm:$0xff]
    %v5124 = vld [vmem:[%s10 + $0x60] sm:$0xff]
    %v5125 = vld [vmem:[%s10 + $0x68] sm:$0xff]
    %v5126 = vld [vmem:[%s10 + $0x70] sm:$0xff]
    %v5127 = vld [vmem:[%s10 + $0x78] sm:$0xff]
    %v5128 = vld [vmem:[%s10 + $0x80] sm:$0xff]
    %v5129 = vld [vmem:[%s10 + $0x88] sm:$0xff]
    %v5130 = vld [vmem:[%s10 + $0x90] sm:$0xff]
    %v5131 = vld [vmem:[%s10 + $0x98] sm:$0xff]
    %v5132 = vld [vmem:[%s10 + $0xa0] sm:$0xff]
    %v5133 = vld [vmem:[%s10 + $0xa8] sm:$0xff]
    %v5134 = vld [vmem:[%s10 + $0xb0] sm:$0xff]
    %v5135 = vld [vmem:[%s10 + $0xb8] sm:$0xff]
    %v5136 = vld [vmem:[%s10 + $0xc0] sm:$0xff]
    %v5137 = vld [vmem:[%s10 + $0xc8] sm:$0xff]
    %v5138 = vld [vmem:[%s10 + $0xd0] sm:$0xff]
    %v5139 = vld [vmem:[%s10 + $0xd8] sm:$0xff]
    %v5140 = vld [vmem:[%s10 + $0xe0] sm:$0xff]
    %v5141 = vld [vmem:[%s10 + $0xe8] sm:$0xff]
    %v5142 = vld [vmem:[%s10 + $0xf0] sm:$0xff]
    %v5143 = vld [vmem:[%s10 + $0xf8] sm:$0xff]
    %v5144 = vld [vmem:[%s10 + $0x100] sm:$0xff]
    %v5145 = vld [vmem:[%s10 + $0x108] sm:$0xff]
    %v5146 = vld [vmem:[%s10 + $0x110] sm:$0xff]
    %v5147 = vld [vmem:[%s10 + $0x118] sm:$0xff]
    %v5148 = vld [vmem:[%s10 + $0x120] sm:$0xff]
    %v5149 = vld [vmem:[%s10 + $0x128] sm:$0xff]
    %v5150 = vld [vmem:[%s10 + $0x130] sm:$0xff]
    %v5151 = vld [vmem:[%s10 + $0x138] sm:$0xff]
    %v5152 = vld [vmem:[%s10 + $0x140] sm:$0xff]
    %v5153 = vld [vmem:[%s10 + $0x148] sm:$0xff]
    %v5154 = vld [vmem:[%s10 + $0x150] sm:$0xff]
    %v5155 = vld [vmem:[%s10 + $0x158] sm:$0xff]
    %v5156 = vld [vmem:[%s10 + $0x160] sm:$0xff]
    %v5157 = vld [vmem:[%s10 + $0x168] sm:$0xff]
    %v5158 = vld [vmem:[%s10 + $0x170] sm:$0xff]
    %v5159 = vld [vmem:[%s10 + $0x178] sm:$0xff]
    %v5160 = vld [vmem:[%s10 + $0x180] sm:$0xff]
    %v5161 = vld [vmem:[%s10 + $0x188] sm:$0xff]
    %v5162 = vld [vmem:[%s10 + $0x190] sm:$0xff]
    %v5163 = vld [vmem:[%s10 + $0x198] sm:$0xff]
    %v5164 = vld [vmem:[%s10 + $0x1a0] sm:$0xff]
    %v5165 = vld [vmem:[%s10 + $0x1a8] sm:$0xff]
    %v5166 = vld [vmem:[%s10 + $0x1b0] sm:$0xff]
    %v5167 = vld [vmem:[%s10 + $0x1b8] sm:$0xff]
    %v5168 = vld [vmem:[%s10 + $0x1c0] sm:$0xff]
    %v5169 = vld [vmem:[%s10 + $0x1c8] sm:$0xff]
    %v5170 = vld [vmem:[%s10 + $0x1d0] sm:$0xff]
    %v5171 = vld [vmem:[%s10 + $0x1d8] sm:$0xff]
    %v5172 = vld [vmem:[%s10 + $0x1e0] sm:$0xff]
    %v5173 = vld [vmem:[%s10 + $0x1e8] sm:$0xff]
    %v5174 = vld [vmem:[%s10 + $0x1f0] sm:$0xff]
    %v5175 = vld [vmem:[%s10 + $0x1f8] sm:$0xff]
    %v5176 = vld [vmem:[%s10 + $0x200] sm:$0xff]
    %v5177 = vld [vmem:[%s10 + $0x208] sm:$0xff]
    %v5178 = vld [vmem:[%s10 + $0x210] sm:$0xff]
    %v5179 = vld [vmem:[%s10 + $0x218] sm:$0xff]
    %v5180 = vld [vmem:[%s10 + $0x220] sm:$0xff]
    %v5181 = vld [vmem:[%s10 + $0x228] sm:$0xff]
    %v5182 = vld [vmem:[%s10 + $0x230] sm:$0xff]
    %v5183 = vld [vmem:[%s10 + $0x238] sm:$0xff]
    %v5184 = vld [vmem:[%s10 + $0x240] sm:$0xff]
    %v5185 = vld [vmem:[%s10 + $0x248] sm:$0xff]
    %v5186 = vld [vmem:[%s10 + $0x250] sm:$0xff]
    %v5187 = vld [vmem:[%s10 + $0x258] sm:$0xff]
    %v5188 = vld [vmem:[%s10 + $0x260] sm:$0xff]
    %v5189 = vld [vmem:[%s10 + $0x268] sm:$0xff]
    %v5190 = vld [vmem:[%s10 + $0x270] sm:$0xff]
    %v5191 = vld [vmem:[%s10 + $0x278] sm:$0xff]
    %v5192 = vld [vmem:[%s10 + $0x280] sm:$0xff]
    %v5193 = vld [vmem:[%s10 + $0x288] sm:$0xff]
    %v5194 = vld [vmem:[%s10 + $0x290] sm:$0xff]
    %v5195 = vld [vmem:[%s10 + $0x298] sm:$0xff]
    %v5196 = vld [vmem:[%s10 + $0x2a0] sm:$0xff]
    %v5197 = vld [vmem:[%s10 + $0x2a8] sm:$0xff]
    %v5198 = vld [vmem:[%s10 + $0x2b0] sm:$0xff]
    %v5199 = vld [vmem:[%s10 + $0x2b8] sm:$0xff]
    %v5200 = vld [vmem:[%s10 + $0x2c0] sm:$0xff]
    %v5201 = vld [vmem:[%s10 + $0x2c8] sm:$0xff]
    %v5202 = vld [vmem:[%s10 + $0x2d0] sm:$0xff]
    %v5203 = vld [vmem:[%s10 + $0x2d8] sm:$0xff]
    %v5204 = vld [vmem:[%s10 + $0x2e0] sm:$0xff]
    %v5205 = vld [vmem:[%s10 + $0x2e8] sm:$0xff]
    %v5206 = vld [vmem:[%s10 + $0x2f0] sm:$0xff]
    %v5207 = vld [vmem:[%s10 + $0x2f8] sm:$0xff]
    %v5208 = vld [vmem:[%s10 + $0x300] sm:$0xff]
    %v5209 = vld [vmem:[%s10 + $0x308] sm:$0xff]
    %v5210 = vld [vmem:[%s10 + $0x310] sm:$0xff]
    %v5211 = vld [vmem:[%s10 + $0x318] sm:$0xff]
    %v5212 = vld [vmem:[%s10 + $0x320] sm:$0xff]
    %v5213 = vld [vmem:[%s10 + $0x328] sm:$0xff]
    %v5214 = vld [vmem:[%s10 + $0x330] sm:$0xff]
    %v5215 = vld [vmem:[%s10 + $0x338] sm:$0xff]
    %v5216 = vld [vmem:[%s10 + $0x340] sm:$0xff]
    %v5217 = vld [vmem:[%s10 + $0x348] sm:$0xff]
    %v5218 = vld [vmem:[%s10 + $0x350] sm:$0xff]
    %v5219 = vld [vmem:[%s10 + $0x358] sm:$0xff]
    %v5220 = vld [vmem:[%s10 + $0x360] sm:$0xff]
    %v5221 = vld [vmem:[%s10 + $0x368] sm:$0xff]
    %v5222 = vld [vmem:[%s10 + $0x370] sm:$0xff]
    %v5223 = vld [vmem:[%s10 + $0x378] sm:$0xff]
    %v5224 = vld [vmem:[%s10 + $0x380] sm:$0xff]
    %v5225 = vld [vmem:[%s10 + $0x388] sm:$0xff]
    %v5226 = vld [vmem:[%s10 + $0x390] sm:$0xff]
    %v5227 = vld [vmem:[%s10 + $0x398] sm:$0xff]
    %v5228 = vld [vmem:[%s10 + $0x3a0] sm:$0xff]
    %v5229 = vld [vmem:[%s10 + $0x3a8] sm:$0xff]
    %v5230 = vld [vmem:[%s10 + $0x3b0] sm:$0xff]
    %v5231 = vld [vmem:[%s10 + $0x3b8] sm:$0xff]
    %v5232 = vld [vmem:[%s10 + $0x3c0] sm:$0xff]
    %v5233 = vld [vmem:[%s10 + $0x3c8] sm:$0xff]
    %v5234 = vld [vmem:[%s10 + $0x3d0] sm:$0xff]
    %v5235 = vld [vmem:[%s10 + $0x3d8] sm:$0xff]
    %v5236 = vld [vmem:[%s10 + $0x3e0] sm:$0xf]
    %v5237 = vld [vmem:[%s10 + $0x3e8] sm:$0xf]
    %v5238 = vld [vmem:[%s11] sm:$0x3]
    %v5240 = vlaneseq
    %v5241 = vshrl.u32 %v5240, 7
    %v5242 = vsub.s32 0, %v5241
    %v5243 = vrot.slane %v5238, %v5242
    %v5244 = vlaneseq
    %v5245 = vshrl.u32 %v5244, 7
    %v5246 = vsub.s32 1, %v5245
    %v5247 = vrot.slane %v5238, %v5246
    %vm5250 = vcmask 949248
    %v5252 = vsel %vm5250, %v5111, 0
    %vm5254 = vcmask 1043456
    %v5256 = vsel %vm5254, %v5236, 0
    %v5259 = vsel %vm5254, %v5237, 0
    %5261 = vmatprep.subr.mxu0 %v5143
    %5262 = vmatpush1.msra.mxu0 %v5142
    %5263 = vmatprep.subr.mxu0 %v5141
    %5264 = vmatpush1.msra.mxu0 %v5140
    %5265 = vmatprep.subr.mxu0 %v5139
    %5266 = vmatpush1.msra.mxu0 %v5138
    %5267 = vmatprep.subr.mxu0 %v5137
    %5268 = vmatpush1.msra.mxu0 %v5136
    %5269 = vmatprep.subr.mxu0 %v5135
    %5270 = vmatpush1.msra.mxu0 %v5134
    %5271 = vmatprep.subr.mxu0 %v5133
    %5272 = vmatpush1.msra.mxu0 %v5132
    %5273 = vmatprep.subr.mxu0 %v5131
    %5274 = vmatpush1.msra.mxu0 %v5130
    %5275 = vmatprep.subr.mxu0 %v5129
    %5276 = vmatpush1.msra.mxu0 %v5128
    %5277 = vmatprep.subr.mxu0 %v5127
    %5278 = vmatpush1.msra.mxu0 %v5126
    %5279 = vmatprep.subr.mxu0 %v5125
    %5280 = vmatpush1.msra.mxu0 %v5124
    %5281 = vmatprep.subr.mxu0 %v5123
    %5282 = vmatpush1.msra.mxu0 %v5122
    %5283 = vmatprep.subr.mxu0 %v5121
    %5284 = vmatpush1.msra.mxu0 %v5120
    %5285 = vmatprep.subr.mxu0 %v5119
    %5286 = vmatpush1.msra.mxu0 %v5118
    %5287 = vmatprep.subr.mxu0 %v5117
    %5288 = vmatpush1.msra.mxu0 %v5116
    %5289 = vmatprep.subr.mxu0 %v5115
    %5290 = vmatpush1.msra.mxu0 %v5114
    %5291 = vmatprep.subr.mxu0 %v5113
    %5292 = vmatpush1.msra.mxu0 %v5112
    %5293 = vmatprep.subr.mxu0 %v5175
    %5294 = vmatpush2.msra.mxu0 %v5174
    %5295 = vmatprep.subr.mxu0 %v5173
    %5296 = vmatpush2.msra.mxu0 %v5172
    %5297 = vmatprep.subr.mxu0 %v5171
    %5298 = vmatpush2.msra.mxu0 %v5170
    %5299 = vmatprep.subr.mxu0 %v5169
    %5300 = vmatpush2.msra.mxu0 %v5168
    %5301 = vmatprep.subr.mxu0 %v5167
    %5302 = vmatpush2.msra.mxu0 %v5166
    %5303 = vmatprep.subr.mxu0 %v5165
    %5304 = vmatpush2.msra.mxu0 %v5164
    %5305 = vmatprep.subr.mxu0 %v5163
    %5306 = vmatpush2.msra.mxu0 %v5162
    %5307 = vmatprep.subr.mxu0 %v5161
    %5308 = vmatpush2.msra.mxu0 %v5160
    %5309 = vmatprep.subr.mxu0 %v5159
    %5310 = vmatpush2.msra.mxu0 %v5158
    %5311 = vmatprep.subr.mxu0 %v5157
    %5312 = vmatpush2.msra.mxu0 %v5156
    %5313 = vmatprep.subr.mxu0 %v5155
    %5314 = vmatpush2.msra.mxu0 %v5154
    %5315 = vmatprep.subr.mxu0 %v5153
    %5316 = vmatpush2.msra.mxu0 %v5152
    %5317 = vmatprep.subr.mxu0 %v5151
    %5318 = vmatpush2.msra.mxu0 %v5150
    %5319 = vmatprep.subr.mxu0 %v5149
    %5320 = vmatpush2.msra.mxu0 %v5148
    %5321 = vmatprep.subr.mxu0 %v5147
    %5322 = vmatpush2.msra.mxu0 %v5146
    %5323 = vmatprep.subr.mxu0 %v5145
    %5324 = vmatpush2.msra.mxu0 %v5144
    %5325 = vmatprep.mubr.f32.mxu0 %v5109
    %5326 = vmatmul.mubr.f32.gmra.mxu0 %v5108
    %v5327 = vpop.f32.mrf.mxu0
    %v5328 = vadd.f32 %v5243, %v5327
    %v5329 = vpop.f32.mrf.mxu0
    %v5330 = vadd.f32 %v5247, %v5329
    %5331 = vdwg.mxu0
    %5332 = vmatprep.subr.mxu0 %v5207
    %5333 = vmatpush1.msra.mxu0 %v5206
    %5334 = vmatprep.subr.mxu0 %v5205
    %5335 = vmatpush1.msra.mxu0 %v5204
    %5336 = vmatprep.subr.mxu0 %v5203
    %5337 = vmatpush1.msra.mxu0 %v5202
    %5338 = vmatprep.subr.mxu0 %v5201
    %5339 = vmatpush1.msra.mxu0 %v5200
    %5340 = vmatprep.subr.mxu0 %v5199
    %5341 = vmatpush1.msra.mxu0 %v5198
    %5342 = vmatprep.subr.mxu0 %v5197
    %5343 = vmatpush1.msra.mxu0 %v5196
    %5344 = vmatprep.subr.mxu0 %v5195
    %5345 = vmatpush1.msra.mxu0 %v5194
    %5346 = vmatprep.subr.mxu0 %v5193
    %5347 = vmatpush1.msra.mxu0 %v5192
    %5348 = vmatprep.subr.mxu0 %v5191
    %5349 = vmatpush1.msra.mxu0 %v5190
    %5350 = vmatprep.subr.mxu0 %v5189
    %5351 = vmatpush1.msra.mxu0 %v5188
    %5352 = vmatprep.subr.mxu0 %v5187
    %5353 = vmatpush1.msra.mxu0 %v5186
    %5354 = vmatprep.subr.mxu0 %v5185
    %5355 = vmatpush1.msra.mxu0 %v5184
    %5356 = vmatprep.subr.mxu0 %v5183
    %5357 = vmatpush1.msra.mxu0 %v5182
    %5358 = vmatprep.subr.mxu0 %v5181
    %5359 = vmatpush1.msra.mxu0 %v5180
    %5360 = vmatprep.subr.mxu0 %v5179
    %5361 = vmatpush1.msra.mxu0 %v5178
    %5362 = vmatprep.subr.mxu0 %v5177
    %5363 = vmatpush1.msra.mxu0 %v5176
    %5364 = vmatprep.subr.mxu0 0.0
    %5365 = vmatpush2.msra.mxu0 0.0
    %5366 = vmatprep.subr.mxu0 %v5259
    %5367 = vmatpush2.msra.mxu0 %v5256
    %5368 = vmatprep.subr.mxu0 %v5235
    %5369 = vmatpush2.msra.mxu0 %v5234
    %5370 = vmatprep.subr.mxu0 %v5233
    %5371 = vmatpush2.msra.mxu0 %v5232
    %5372 = vmatprep.subr.mxu0 %v5231
    %5373 = vmatpush2.msra.mxu0 %v5230
    %5374 = vmatprep.subr.mxu0 %v5229
    %5375 = vmatpush2.msra.mxu0 %v5228
    %5376 = vmatprep.subr.mxu0 %v5227
    %5377 = vmatpush2.msra.mxu0 %v5226
    %5378 = vmatprep.subr.mxu0 %v5225
    %5379 = vmatpush2.msra.mxu0 %v5224
    %5380 = vmatprep.subr.mxu0 %v5223
    %5381 = vmatpush2.msra.mxu0 %v5222
    %5382 = vmatprep.subr.mxu0 %v5221
    %5383 = vmatpush2.msra.mxu0 %v5220
    %5384 = vmatprep.subr.mxu0 %v5219
    %5385 = vmatpush2.msra.mxu0 %v5218
    %5386 = vmatprep.subr.mxu0 %v5217
    %5387 = vmatpush2.msra.mxu0 %v5216
    %5388 = vmatprep.subr.mxu0 %v5215
    %5389 = vmatpush2.msra.mxu0 %v5214
    %5390 = vmatprep.subr.mxu0 %v5213
    %5391 = vmatpush2.msra.mxu0 %v5212
    %5392 = vmatprep.subr.mxu0 %v5211
    %5393 = vmatpush2.msra.mxu0 %v5210
    %5394 = vmatprep.subr.mxu0 %v5209
    %5395 = vmatpush2.msra.mxu0 %v5208
    %5396 = vmatprep.mubr.f32.mxu0 %v5252
    %5397 = vmatmul.mubr.f32.gmra.mxu0 %v5110
    %v5398 = vpop.f32.mrf.mxu0
    %v5399 = vadd.f32 %v5328, %v5398
    %v5400 = vpop.f32.mrf.mxu0
    %v5401 = vadd.f32 %v5330, %v5400
    %5402 = vdwg.mxu0
    %v5403 = vxor.u32 %v5399, 2147483648
    %v5404 = vxor.u32 %v5401, 2147483648
    %v5405 = vmul.f32 %v5403, 1.442695
    %v5406 = vpow.pop %v5405
    %v5407 = vmul.f32 %v5404, 1.442695
    %v5408 = vpow.pop %v5407
    %v5409 = vadd.f32 %v5406, 1.0
    %v5410 = vadd.f32 %v5408, 1.0
    %v5411 = vrcp.pop %v5409
    %v5412 = vmul.f32 1.0, %v5411
    %v5413 = vrcp.pop %v5410
    %v5414 = vmul.f32 1.0, %v5413
    %v5417 = vcombine.low %v5412, %v5414
    %v5419 = vunpack.c.l.s4 1983009808
    %v5420 = vunpack.c.0.s8 %v5419
    %v5421 = vlaneseq
    %v5422 = vshrl.u32 %v5421, 7
    %v5423 = vsub.s32 %v5420, %v5422
    %v5424 = vrot.slane %v5417, %v5423
    %vm5426 = vcmask 1041408
    %vm5427 = vcmask 994306
    %vm5428 = vmor %vm5427, %vm5426
    %5429 = vst.msk [vmem:[#allocation2] sm:$0xf] %vm5428, %v5424
    %v5430 = vld [vmem:[%s12] sm:$0xff]
    %v5431 = vld [vmem:[%s12 + $0x8] sm:$0xff]
    %v5432 = vld [vmem:[%s12 + $0x10] sm:$0xff]
    %v5433 = vld [vmem:[%s12 + $0x18] sm:$0xff]
    %v5434 = vld [vmem:[%s12 + $0x20] sm:$0xff]
    %v5435 = vld [vmem:[%s12 + $0x28] sm:$0xff]
    %v5436 = vld [vmem:[%s12 + $0x30] sm:$0xff]
    %v5437 = vld [vmem:[%s12 + $0x38] sm:$0xff]
    %v5438 = vld [vmem:[%s12 + $0x40] sm:$0xff]
    %v5439 = vld [vmem:[%s12 + $0x48] sm:$0xff]
    %v5440 = vld [vmem:[%s12 + $0x50] sm:$0xff]
    %v5441 = vld [vmem:[%s12 + $0x58] sm:$0xff]
    %v5442 = vld [vmem:[%s12 + $0x60] sm:$0xff]
    %v5443 = vld [vmem:[%s12 + $0x68] sm:$0xff]
    %v5444 = vld [vmem:[%s12 + $0x70] sm:$0xff]
    %v5445 = vld [vmem:[%s12 + $0x78] sm:$0xff]
    %v5446 = vld [vmem:[%s12 + $0x80] sm:$0xff]
    %v5447 = vld [vmem:[%s12 + $0x88] sm:$0xff]
    %v5448 = vld [vmem:[%s12 + $0x90] sm:$0xff]
    %v5449 = vld [vmem:[%s12 + $0x98] sm:$0xff]
    %v5450 = vld [vmem:[%s12 + $0xa0] sm:$0xff]
    %v5451 = vld [vmem:[%s12 + $0xa8] sm:$0xff]
    %v5452 = vld [vmem:[%s12 + $0xb0] sm:$0xff]
    %v5453 = vld [vmem:[%s12 + $0xb8] sm:$0xff]
    %v5454 = vld [vmem:[%s12 + $0xc0] sm:$0xff]
    %v5455 = vld [vmem:[%s12 + $0xc8] sm:$0xff]
    %v5456 = vld [vmem:[%s12 + $0xd0] sm:$0xff]
    %v5457 = vld [vmem:[%s12 + $0xd8] sm:$0xff]
    %v5458 = vld [vmem:[%s12 + $0xe0] sm:$0xff]
    %v5459 = vld [vmem:[%s12 + $0xe8] sm:$0xff]
    %v5460 = vld [vmem:[%s12 + $0xf0] sm:$0xff]
    %v5461 = vld [vmem:[%s12 + $0xf8] sm:$0x3]
    %v5462 = vld [vmem:[%s13] sm:$0x1]
    %v5464 = vlaneseq
    %v5465 = vshrl.u32 %v5464, 7
    %v5466 = vsub.s32 0, %v5465
    %v5467 = vrot.slane %v5462, %v5466
    %vm5469 = vcmask 998400
    %v5470 = vsel %vm5469, %v5414, 0
    %v5473 = vsel %vm5426, %v5461, 0
    %5475 = vmatprep.subr.mxu0 0.0
    %5476 = vmatpush1.msra.mxu0 %v5445
    %5477 = vmatprep.subr.mxu0 0.0
    %5478 = vmatpush1.msra.mxu0 %v5444
    %5479 = vmatprep.subr.mxu0 0.0
    %5480 = vmatpush1.msra.mxu0 %v5443
    %5481 = vmatprep.subr.mxu0 0.0
    %5482 = vmatpush1.msra.mxu0 %v5442
    %5483 = vmatprep.subr.mxu0 0.0
    %5484 = vmatpush1.msra.mxu0 %v5441
    %5485 = vmatprep.subr.mxu0 0.0
    %5486 = vmatpush1.msra.mxu0 %v5440
    %5487 = vmatprep.subr.mxu0 0.0
    %5488 = vmatpush1.msra.mxu0 %v5439
    %5489 = vmatprep.subr.mxu0 0.0
    %5490 = vmatpush1.msra.mxu0 %v5438
    %5491 = vmatprep.subr.mxu0 0.0
    %5492 = vmatpush1.msra.mxu0 %v5437
    %5493 = vmatprep.subr.mxu0 0.0
    %5494 = vmatpush1.msra.mxu0 %v5436
    %5495 = vmatprep.subr.mxu0 0.0
    %5496 = vmatpush1.msra.mxu0 %v5435
    %5497 = vmatprep.subr.mxu0 0.0
    %5498 = vmatpush1.msra.mxu0 %v5434
    %5499 = vmatprep.subr.mxu0 0.0
    %5500 = vmatpush1.msra.mxu0 %v5433
    %5501 = vmatprep.subr.mxu0 0.0
    %5502 = vmatpush1.msra.mxu0 %v5432
    %5503 = vmatprep.subr.mxu0 0.0
    %5504 = vmatpush1.msra.mxu0 %v5431
    %5505 = vmatprep.subr.mxu0 0.0
    %5506 = vmatpush1.msra.mxu0 %v5430
    %5507 = vmatprep.subr.mxu0 0.0
    %5508 = vmatpush2.msra.mxu0 %v5473
    %5509 = vmatprep.subr.mxu0 0.0
    %5510 = vmatpush2.msra.mxu0 %v5460
    %5511 = vmatprep.subr.mxu0 0.0
    %5512 = vmatpush2.msra.mxu0 %v5459
    %5513 = vmatprep.subr.mxu0 0.0
    %5514 = vmatpush2.msra.mxu0 %v5458
    %5515 = vmatprep.subr.mxu0 0.0
    %5516 = vmatpush2.msra.mxu0 %v5457
    %5517 = vmatprep.subr.mxu0 0.0
    %5518 = vmatpush2.msra.mxu0 %v5456
    %5519 = vmatprep.subr.mxu0 0.0
    %5520 = vmatpush2.msra.mxu0 %v5455
    %5521 = vmatprep.subr.mxu0 0.0
    %5522 = vmatpush2.msra.mxu0 %v5454
    %5523 = vmatprep.subr.mxu0 0.0
    %5524 = vmatpush2.msra.mxu0 %v5453
    %5525 = vmatprep.subr.mxu0 0.0
    %5526 = vmatpush2.msra.mxu0 %v5452
    %5527 = vmatprep.subr.mxu0 0.0
    %5528 = vmatpush2.msra.mxu0 %v5451
    %5529 = vmatprep.subr.mxu0 0.0
    %5530 = vmatpush2.msra.mxu0 %v5450
    %5531 = vmatprep.subr.mxu0 0.0
    %5532 = vmatpush2.msra.mxu0 %v5449
    %5533 = vmatprep.subr.mxu0 0.0
    %5534 = vmatpush2.msra.mxu0 %v5448
    %5535 = vmatprep.subr.mxu0 0.0
    %5536 = vmatpush2.msra.mxu0 %v5447
    %5537 = vmatprep.subr.mxu0 0.0
    %5538 = vmatpush2.msra.mxu0 %v5446
    %5539 = vmatprep.mubr.f32.mxu0 %v5470
    %5540 = vmatmul.mubr.f32.gmra.mxu0 %v5412
    %v5541 = vpop.f32.mrf.mxu0
    %v5542 = vadd.f32 %v5467, %v5541
    %v5543 = vpop.f32.mrf.mxu0
    %5544 = vdwg.mxu0
    %vm5545 = vcmask 74752
    %5546 = vst.msk [vmem:[#allocation4] sm:$0x3] %vm5545, %v5542
    // Predicated region
    $region58: #{hashing_two_branch_forward.5} parent=1 // pred_check
      _
    $region59: #{hashing_two_branch_forward.5} parent=1 // pred_check_branch
      %5548 = sbr.rel (0) target = $region61
    $region60: #{hashing_two_branch_forward.5} parent=1 // pred_region
      %s5550 = ssub.s32 64, 64
      %5551 = vsyncadd [#allocation3], %s5550
      %s5553 = sshll.u32 [#allocation2], 4
      %s5554 = int_to_ptr.vmem [resolvable:$true] %s5553
      %5556 = dma.vmem_to_hbm [thread:$0]  %s5554, 64, %s14, [#allocation3]
    $region61: #{hashing_two_branch_forward.5} parent=1 // pred_fallthru
      _
    // Predicated region
    $region62: #{hashing_two_branch_forward.5} parent=1 // pred_check
      _
    $region63: #{hashing_two_branch_forward.5} parent=1 // pred_check_branch
      %5558 = sbr.rel (0) target = $region65
    $region64: #{hashing_two_branch_forward.5} parent=1 // pred_region
      %s5560 = ssub.s32 32, 32
      %5561 = vsyncadd [#allocation5], %s5560
      %s5563 = sshll.u32 [#allocation4], 4
      %s5564 = int_to_ptr.vmem [resolvable:$true] %s5563
      %5566 = dma.vmem_to_hbm [thread:$0]  %s5564, 32, %s15, [#allocation5]
    $region65: #{hashing_two_branch_forward.5} parent=1 // pred_fallthru
      _
    // Predicated region
    $region66: #{hashing_two_branch_forward.5} parent=1 // pred_check
      _
    $region67: #{hashing_two_branch_forward.5} parent=1 // pred_check_branch
      %5568 = sbr.rel (0) target = $region69
    $region68: #{hashing_two_branch_forward.5} parent=1 // pred_region
      %5569 = dma.done [#allocation3], 64
    $region69: #{hashing_two_branch_forward.5} parent=1 // pred_fallthru
      _
    // Predicated region
    $region70: #{hashing_two_branch_forward.5} parent=1 // pred_check
      _
    $region71: #{hashing_two_branch_forward.5} parent=1 // pred_check_branch
      %5571 = sbr.rel (0) target = $region73
    $region72: #{hashing_two_branch_forward.5} parent=1 // pred_region
      %5572 = dma.done [#allocation5], 32
    $region73: #{hashing_two_branch_forward.5} parent=1 // pred_fallthru
      _
    %5573 = vsyncpa [#allocation3], 1
    %5574 = vsyncpa [#allocation5], 1

</llo_original>
